<compile_context>
chip_gen: v5e
topology: v5e:2x2
jax: 0.10.0
libtpu: 0.0.40
codegen_flags: <defaults>
</compile_context>

<pallas_src>
import functools

import jax
import jax.numpy as jnp
from jax.experimental import pallas as pl
from jax.experimental.pallas import tpu as pltpu


def _tcn_gcn_unit_kernel(num_subset, residual, attention,
                         x_ref, alpha_ref, pa_t_ref, wab_ref, bab_ref,
                         wd_ref, bd_ref, wsa_ref, bsa_ref, wta_ref, bta_ref,
                         w1c_ref, b1c_ref, w2c_ref, b2c_ref, wt_ref, bt_ref,
                         out_ref):
    """Full TCNGCNUnit forward for one batch element; activations are (T, V, C)."""
    x = x_ref[0]                                    # (T, V, Cin) f32
    T, V, Cin = x.shape
    Cout = wd_ref.shape[2]
    R = wab_ref.shape[1] // (2 * num_subset)        # inter channels (Cout // 4)
    KSA = wsa_ref.shape[0] // Cout                  # spatial-attention kernel
    KTA = wta_ref.shape[0] // Cout                  # temporal-attention kernel
    KT = wt_ref.shape[0]                            # TCN temporal kernel (9)

    xf = x.reshape(T * V, Cin)                      # view (V % 8 == 0)
    xb = xf.astype(jnp.bfloat16)
    x3b = x.astype(jnp.bfloat16)
    alpha = alpha_ref[...]                          # (1, 1)

    # ---- conv_a | conv_b fused: ONE (TV, Cin) @ (Cin, 2*3R) matmul ----
    ab = jnp.dot(xb, wab_ref[...], preferred_element_type=jnp.float32) + bab_ref[...]
    nR = num_subset * R
    a3 = ab[:, :nR].reshape(T, V, nR)
    b3 = ab[:, nR:].reshape(T, V, nR)

    # ---- adaptive adjacency for all subsets, stacked into one (3V, V) ----
    inv_norm = 1.0 / float(R * T)
    mts = []
    for i in range(num_subset):                     # static, small (3)
        ai = a3[:, :, i * R:(i + 1) * R].astype(jnp.bfloat16)   # (T, V, R)
        bi = b3[:, :, i * R:(i + 1) * R].astype(jnp.bfloat16)
        # M_i^T[v, w] = sum_{t, r} b_i[t, v, r] * a_i[t, w, r]
        # (kept as batched matmul + sum for Mosaic-lowering safety; tiny FLOPs)
        mts.append(jnp.einsum('tvr,twr->tvw', bi, ai,
                              preferred_element_type=jnp.float32).sum(axis=0))
    mt_all = jnp.concatenate(mts, axis=0)                       # (3V, V)
    a1t_all = pa_t_ref[...] + alpha * jnp.tanh(mt_all * inv_norm)

    # ---- graph apply, all subsets at once: (3V, V) @ (V, Cin) per frame ----
    a1t_b = jnp.broadcast_to(a1t_all.astype(jnp.bfloat16)[None],
                             (T, num_subset * V, V))
    z_stack = jnp.einsum('tuw,twc->tuc', a1t_b, x3b,
                         preferred_element_type=jnp.float32)    # (T, 3V, Cin)

    # ---- conv_d accumulated per subset (BN folded into wd/bd); no concat ----
    y = jnp.zeros((T * V, Cout), jnp.float32)
    for i in range(num_subset):
        zi = z_stack[:, i * V:(i + 1) * V, :].reshape(T * V, Cin)
        y = y + jnp.dot(zi.astype(jnp.bfloat16), wd_ref[i],
                        preferred_element_type=jnp.float32)
    y = y + bd_ref[...]
    # identity `down` residual inside GCNUnit + ReLU
    # TODO(synk): 1x1-conv + BN `down` branch for in_channels != out_channels.
    y = jnp.maximum(y + xf, 0.0)
    y3 = y.reshape(T, V, Cout)

    if attention:
        # ---- spatial attention: Conv1d(C -> 1, KSA) over V on mean-over-T ----
        pad_s = (KSA - 1) // 2
        se_s = jnp.mean(y3, axis=0)                                     # (V, C)
        zs = jnp.zeros((pad_s, Cout), jnp.float32)
        se_sp = jnp.concatenate([zs, se_s, zs], axis=0)
        unf_s = jnp.concatenate([se_sp[k:k + V, :] for k in range(KSA)], axis=-1)
        sa = jax.nn.sigmoid(
            jnp.dot(unf_s, wsa_ref[...], preferred_element_type=jnp.float32)
            + bsa_ref[...])                                             # (V, 1)
        y3 = y3 * (1.0 + sa)[None, :, :]

        # ---- temporal attention: Conv1d(C -> 1, KTA) over T on mean-over-V ----
        pad_t = (KTA - 1) // 2
        se_t = jnp.mean(y3, axis=1)                                     # (T, C)
        zt = jnp.zeros((pad_t, Cout), jnp.float32)
        se_tp = jnp.concatenate([zt, se_t, zt], axis=0)
        unf_t = jnp.concatenate([se_tp[k:k + T, :] for k in range(KTA)], axis=-1)
        ta = jax.nn.sigmoid(
            jnp.dot(unf_t, wta_ref[...], preferred_element_type=jnp.float32)
            + bta_ref[...])                                             # (T, 1)
        y3 = y3 * (1.0 + ta)[:, :, None]

        # ---- channel attention: FC -> ReLU -> FC -> sigmoid on global mean ----
        se_c = jnp.mean(jnp.mean(y3, axis=0), axis=0, keepdims=True)    # (1, C)
        hc = jnp.maximum(
            jnp.dot(se_c, w1c_ref[...], preferred_element_type=jnp.float32)
            + b1c_ref[...], 0.0)
        ca = jax.nn.sigmoid(
            jnp.dot(hc, w2c_ref[...], preferred_element_type=jnp.float32)
            + b2c_ref[...])                                             # (1, C)
        y3 = y3 * (1.0 + ca)[None, :, :]

    # ---- TCN: (KT, 1) conv over time as KT accumulated shifted matmuls ----
    # TODO(synk): stride > 1 / pad=False variants of the temporal conv.
    pad_time = (KT - 1) // 2
    y3b = y3.astype(jnp.bfloat16)
    zpad = jnp.zeros((pad_time, V, Cout), jnp.bfloat16)
    y_pad = jnp.concatenate([zpad, y3b, zpad], axis=0)          # (T+KT-1, V, C) bf16
    t_out = jnp.zeros((T * V, Cout), jnp.float32)
    for k in range(KT):                                         # static, 9 taps
        yk = y_pad[k:k + T].reshape(T * V, Cout)                # sublane-shift view
        t_out = t_out + jnp.dot(yk, wt_ref[k],
                                preferred_element_type=jnp.float32)
    t_out = t_out + bt_ref[...]                                 # BN folded into wt/bt

    # ---- block residual (identity: in==out, stride==1) + final ReLU ----
    if residual:
        t_out = t_out + xf
    out_ref[0] = jnp.maximum(t_out, 0.0).reshape(T, V, Cout)


def _vmem_limit_bytes():
    """Generation-aware VMEM cap: ~96 MiB on v5e/v6e, ~48 MiB on v7x."""
    try:
        cap = getattr(pltpu.get_tpu_info(), "vmem_capacity_bytes", None)
        if cap:
            return int(min(96 * 2**20, max(32 * 2**20, (3 * int(cap)) // 4)))
    except Exception:
        pass
    return 64 * 2**20


def tcn_gcn_unit_forward(x_ntvc, params, num_subset=3, residual=True, attention=True):
    """x_ntvc: (N, T, V, Cin) float32 -> (N, T, V, Cout) float32."""
    N, T, V, Cin = x_ntvc.shape
    Cout = params["wd"].shape[2]

    names = ["alpha", "pa_t", "wab", "bab", "wd", "bd", "wsa", "bsa", "wta", "bta",
             "w1c", "b1c", "w2c", "b2c", "wt", "bt"]
    weights = [params[n] for n in names]

    def const_spec(a):
        return pl.BlockSpec(a.shape, lambda b, nd=a.ndim: (0,) * nd)

    kernel = functools.partial(_tcn_gcn_unit_kernel, num_subset, residual, attention)
    return pl.pallas_call(
        kernel,
        out_shape=jax.ShapeDtypeStruct((N, T, V, Cout), jnp.float32),
        grid=(N,),
        in_specs=[pl.BlockSpec((1, T, V, Cin), lambda b: (b, 0, 0, 0))]
                 + [const_spec(w) for w in weights],
        out_specs=pl.BlockSpec((1, T, V, Cout), lambda b: (b, 0, 0, 0)),
        compiler_params=pltpu.CompilerParams(
            dimension_semantics=("parallel",),      # keep N even to feed both v7x TCs
            vmem_limit_bytes=_vmem_limit_bytes()),
    )(x_ntvc, *weights)


def init_tcn_gcn_params(key, in_c, out_c, A, num_subset=3, kernel_size=9, eps=1e-5):
    """Weights packed into fused, kernel-friendly layouts; inference BN folded in."""
    V = A.shape[-1]
    R = out_c // 4                                   # coff_embedding = 4
    ksa = V - 1 if V % 2 == 0 else V                 # AAGCN spatial-attn kernel rule
    kta = 9
    ks = jax.random.split(key, 12)

    def w(k, shape, fan_in):
        return jax.random.normal(k, shape, jnp.float32) / jnp.sqrt(float(fan_in))

    # bn_init(bn, 1) inference: gamma=1, beta=0, mean=0, var=1.
    bn_scale = jnp.full((out_c,), (1.0 + eps) ** -0.5, jnp.float32)
    bn_shift = jnp.zeros((out_c,), jnp.float32)

    wa = w(ks[0], (in_c, num_subset * R), in_c)
    wb = w(ks[1], (in_c, num_subset * R), in_c)
    ba = 0.1 * w(ks[2], (1, num_subset * R), in_c)
    bb = 0.1 * w(ks[3], (1, num_subset * R), in_c)

    wd_raw = w(ks[4], (num_subset, in_c, out_c), in_c)
    bd_raw = 0.1 * w(ks[5], (1, out_c), in_c)
    wt_raw = w(ks[6], (kernel_size, out_c, out_c), kernel_size * out_c)
    bt_raw = jnp.zeros((1, out_c), jnp.float32)

    # Fold BatchNorm:  (conv + bias) * scale + shift  ->  conv' + bias'
    wd = (wd_raw * bn_scale[None, None, :]).astype(jnp.bfloat16)
    bd = bd_raw * bn_scale[None, :] + bn_shift[None, :]
    wt = (wt_raw * bn_scale[None, None, :]).astype(jnp.bfloat16)
    bt = bt_raw * bn_scale[None, :] + bn_shift[None, :]

    # Stacked transposed adjacencies: (num_subset*V, V).
    pa_t = jnp.transpose(A.astype(jnp.float32), (0, 2, 1)).reshape(num_subset * V, V)

    return dict(
        alpha=jnp.full((1, 1), 0.1, jnp.float32),
        pa_t=pa_t,
        wab=jnp.concatenate([wa, wb], axis=1).astype(jnp.bfloat16),
        bab=jnp.concatenate([ba, bb], axis=1),
        wd=wd, bd=bd,
        wsa=w(ks[7], (ksa * out_c, 1), ksa * out_c),
        bsa=jnp.zeros((1, 1), jnp.float32),
        wta=w(ks[8], (kta * out_c, 1), kta * out_c),
        bta=jnp.zeros((1, 1), jnp.float32),
        w1c=w(ks[9], (out_c, out_c // 2), out_c),
        b1c=jnp.zeros((1, out_c // 2), jnp.float32),
        w2c=w(ks[10], (out_c // 2, out_c), out_c // 2),
        b2c=jnp.zeros((1, out_c), jnp.float32),
        wt=wt, bt=bt,
    )


class TCNGCNUnitPallas:
    """Mirrors TCNGCNUnit.forward: x (N, C, T, V) -> relu(tcn(gcn(x)) + x)."""

    def __init__(self, in_channels, out_channels, A, num_subset=3,
                 kernel_size=9, stride=1, pad=True, residual=True,
                 attention=True, key=None):
        assert in_channels == out_channels and stride == 1 and pad, (
            "TODO(synk): 1x1-conv+BN residual/down branches (in!=out or stride>1) "
            "and pad=False are not implemented")
        self.num_subset = num_subset
        self.residual = residual
        self.attention = attention
        self.params = init_tcn_gcn_params(
            key, in_channels, out_channels, A,
            num_subset=num_subset, kernel_size=kernel_size)

    def __call__(self, x):
        # (N, C, T, V) -> channels-last (N, T, V, C) for lane-friendly matmuls.
        xt = jnp.transpose(x, (0, 2, 3, 1)).astype(jnp.float32)
        out = tcn_gcn_unit_forward(xt, self.params, self.num_subset,
                                   self.residual, self.attention)
        return jnp.transpose(out, (0, 3, 1, 2))


if __name__ == "__main__":
    # Small synthetic config: N batch, C channels, T frames, V graph vertices.
    N, C, T, V = 2, 64, 16, 16
    NUM_SUBSET, KERNEL_T = 3, 9

    key = jax.random.PRNGKey(0)
    k_x, k_a, k_p = jax.random.split(key, 3)
    x = jax.random.normal(k_x, (N, C, T, V), jnp.float32)
    A = jax.random.uniform(k_a, (NUM_SUBSET, V, V), jnp.float32) / float(V)

    unit = TCNGCNUnitPallas(C, C, A, num_subset=NUM_SUBSET,
                            kernel_size=KERNEL_T, stride=1, key=k_p)
    y = unit(x)
    y = jax.block_until_ready(y)

    assert y.shape == (N, C, T, V)
    assert bool(jnp.all(jnp.isfinite(y)))
    assert bool(jnp.all(y >= 0.0))   # final op is ReLU
    print("KERNEL_OK")
</pallas_src>

<mosaic_0001>
module attributes {stable_mosaic.version = 11 : i64} {
  func.func @_tcn_gcn_unit_kernel(%arg0: i32, %arg1: memref<1x16x16x64xf32, #tpu.memory_space<vmem>>, %arg2: memref<1x1xf32, #tpu.memory_space<vmem>>, %arg3: memref<48x16xf32, #tpu.memory_space<vmem>>, %arg4: memref<64x96xbf16, #tpu.memory_space<vmem>>, %arg5: memref<1x96xf32, #tpu.memory_space<vmem>>, %arg6: memref<3x64x64xbf16, #tpu.memory_space<vmem>>, %arg7: memref<1x64xf32, #tpu.memory_space<vmem>>, %arg8: memref<960x1xf32, #tpu.memory_space<vmem>>, %arg9: memref<1x1xf32, #tpu.memory_space<vmem>>, %arg10: memref<576x1xf32, #tpu.memory_space<vmem>>, %arg11: memref<1x1xf32, #tpu.memory_space<vmem>>, %arg12: memref<64x32xf32, #tpu.memory_space<vmem>>, %arg13: memref<1x32xf32, #tpu.memory_space<vmem>>, %arg14: memref<32x64xf32, #tpu.memory_space<vmem>>, %arg15: memref<1x64xf32, #tpu.memory_space<vmem>>, %arg16: memref<9x64x64xbf16, #tpu.memory_space<vmem>>, %arg17: memref<1x64xf32, #tpu.memory_space<vmem>>, %arg18: memref<1x16x16x64xf32, #tpu.memory_space<vmem>>) attributes {dimension_semantics = [#tpu.dimension_semantics<parallel>], iteration_bounds = array<i64: 2>, scalar_prefetch = 0 : i64, scratch_operands = 0 : i64, tpu.core_type = #tpu.core_type<tc>, window_params = [{transform_indices = @transform_0, window_bounds = array<i64: 1, 16, 16, 64>}, {pipeline_mode = #tpu.pipeline_mode<synchronous>, transform_indices = @transform_1, window_bounds = array<i64: 1, 1>}, {pipeline_mode = #tpu.pipeline_mode<synchronous>, transform_indices = @transform_2, window_bounds = array<i64: 48, 16>}, {pipeline_mode = #tpu.pipeline_mode<synchronous>, transform_indices = @transform_3, window_bounds = array<i64: 64, 96>}, {pipeline_mode = #tpu.pipeline_mode<synchronous>, transform_indices = @transform_4, window_bounds = array<i64: 1, 96>}, {pipeline_mode = #tpu.pipeline_mode<synchronous>, transform_indices = @transform_5, window_bounds = array<i64: 3, 64, 64>}, {pipeline_mode = #tpu.pipeline_mode<synchronous>, transform_indices = @transform_6, window_bounds = array<i64: 1, 64>}, {pipeline_mode = #tpu.pipeline_mode<synchronous>, transform_indices = @transform_7, window_bounds = array<i64: 960, 1>}, {pipeline_mode = #tpu.pipeline_mode<synchronous>, transform_indices = @transform_8, window_bounds = array<i64: 1, 1>}, {pipeline_mode = #tpu.pipeline_mode<synchronous>, transform_indices = @transform_9, window_bounds = array<i64: 576, 1>}, {pipeline_mode = #tpu.pipeline_mode<synchronous>, transform_indices = @transform_10, window_bounds = array<i64: 1, 1>}, {pipeline_mode = #tpu.pipeline_mode<synchronous>, transform_indices = @transform_11, window_bounds = array<i64: 64, 32>}, {pipeline_mode = #tpu.pipeline_mode<synchronous>, transform_indices = @transform_12, window_bounds = array<i64: 1, 32>}, {pipeline_mode = #tpu.pipeline_mode<synchronous>, transform_indices = @transform_13, window_bounds = array<i64: 32, 64>}, {pipeline_mode = #tpu.pipeline_mode<synchronous>, transform_indices = @transform_14, window_bounds = array<i64: 1, 64>}, {pipeline_mode = #tpu.pipeline_mode<synchronous>, transform_indices = @transform_15, window_bounds = array<i64: 9, 64, 64>}, {pipeline_mode = #tpu.pipeline_mode<synchronous>, transform_indices = @transform_16, window_bounds = array<i64: 1, 64>}, {transform_indices = @transform_17, window_bounds = array<i64: 1, 16, 16, 64>}]} {
    %c0 = arith.constant 0 : index
    %c0_0 = arith.constant 0 : index
    %c0_1 = arith.constant 0 : index
    %c0_2 = arith.constant 0 : index
    %0 = vector.load %arg1[%c0, %c0_0, %c0_1, %c0_2] : memref<1x16x16x64xf32, #tpu.memory_space<vmem>>, vector<1x16x16x64xf32>
    %1 = vector.shape_cast %0 : vector<1x16x16x64xf32> to vector<16x16x64xf32>
    %2 = vector.shape_cast %1 : vector<16x16x64xf32> to vector<256x64xf32>
    %3 = arith.truncf %2 : vector<256x64xf32> to vector<256x64xbf16>
    %4 = arith.truncf %1 : vector<16x16x64xf32> to vector<16x16x64xbf16>
    %c0_3 = arith.constant 0 : index
    %c0_4 = arith.constant 0 : index
    %5 = vector.load %arg2[%c0_3, %c0_4] : memref<1x1xf32, #tpu.memory_space<vmem>>, vector<1x1xf32>
    %c0_5 = arith.constant 0 : index
    %c0_6 = arith.constant 0 : index
    %6 = vector.load %arg4[%c0_5, %c0_6] : memref<64x96xbf16, #tpu.memory_space<vmem>>, vector<64x96xbf16>
    %cst = arith.constant dense<0.000000e+00> : vector<256x96xf32>
    %7 = tpu.matmul %3, %6, %cst {dimension_numbers = #tpu.dot_dimension_numbers<[1], [0], [0], [1], [0, 0, 1, 1], [], []>} : vector<256x64xbf16>, vector<64x96xbf16>, vector<256x96xf32> -> vector<256x96xf32>
    %c0_7 = arith.constant 0 : index
    %c0_8 = arith.constant 0 : index
    %8 = vector.load %arg5[%c0_7, %c0_8] : memref<1x96xf32, #tpu.memory_space<vmem>>, vector<1x96xf32>
    %9 = vector.broadcast %8 : vector<1x96xf32> to vector<256x96xf32>
    %10 = arith.addf %7, %9 : vector<256x96xf32>
    %11 = vector.extract_strided_slice %10 {offsets = [0, 0], sizes = [256, 48], strides = [1, 1]} : vector<256x96xf32> to vector<256x48xf32>
    %12 = vector.shape_cast %11 : vector<256x48xf32> to vector<16x16x48xf32>
    %13 = vector.extract_strided_slice %10 {offsets = [0, 48], sizes = [256, 48], strides = [1, 1]} : vector<256x96xf32> to vector<256x48xf32>
    %14 = vector.shape_cast %13 : vector<256x48xf32> to vector<16x16x48xf32>
    %15 = vector.extract_strided_slice %12 {offsets = [0, 0, 0], sizes = [16, 16, 16], strides = [1, 1, 1]} : vector<16x16x48xf32> to vector<16x16x16xf32>
    %16 = arith.truncf %15 : vector<16x16x16xf32> to vector<16x16x16xbf16>
    %17 = vector.extract_strided_slice %14 {offsets = [0, 0, 0], sizes = [16, 16, 16], strides = [1, 1, 1]} : vector<16x16x48xf32> to vector<16x16x16xf32>
    %18 = arith.truncf %17 : vector<16x16x16xf32> to vector<16x16x16xbf16>
    "tpu.trace_start"() <{level = 10 : i32, message = "tvr,twr->tvw"}> : () -> ()
    %cst_9 = arith.constant dense<0.000000e+00> : vector<16x16x16xf32>
    %19 = tpu.matmul %18, %16, %cst_9 {dimension_numbers = #tpu.dot_dimension_numbers<[2], [2], [1], [1], [0, 0, 0, 1, 1, 1], [0], [0]>} : vector<16x16x16xbf16>, vector<16x16x16xbf16>, vector<16x16x16xf32> -> vector<16x16x16xf32>
    "tpu.trace_stop"() : () -> ()
    %cst_10 = arith.constant dense<0.000000e+00> : vector<16x16xf32>
    %20 = vector.multi_reduction <add>, %19, %cst_10 [0] : vector<16x16x16xf32> to vector<16x16xf32>
    %21 = vector.extract_strided_slice %12 {offsets = [0, 0, 16], sizes = [16, 16, 16], strides = [1, 1, 1]} : vector<16x16x48xf32> to vector<16x16x16xf32>
    %22 = arith.truncf %21 : vector<16x16x16xf32> to vector<16x16x16xbf16>
    %23 = vector.extract_strided_slice %14 {offsets = [0, 0, 16], sizes = [16, 16, 16], strides = [1, 1, 1]} : vector<16x16x48xf32> to vector<16x16x16xf32>
    %24 = arith.truncf %23 : vector<16x16x16xf32> to vector<16x16x16xbf16>
    "tpu.trace_start"() <{level = 10 : i32, message = "tvr,twr->tvw"}> : () -> ()
    %cst_11 = arith.constant dense<0.000000e+00> : vector<16x16x16xf32>
    %25 = tpu.matmul %24, %22, %cst_11 {dimension_numbers = #tpu.dot_dimension_numbers<[2], [2], [1], [1], [0, 0, 0, 1, 1, 1], [0], [0]>} : vector<16x16x16xbf16>, vector<16x16x16xbf16>, vector<16x16x16xf32> -> vector<16x16x16xf32>
    "tpu.trace_stop"() : () -> ()
    %cst_12 = arith.constant dense<0.000000e+00> : vector<16x16xf32>
    %26 = vector.multi_reduction <add>, %25, %cst_12 [0] : vector<16x16x16xf32> to vector<16x16xf32>
    %27 = vector.extract_strided_slice %12 {offsets = [0, 0, 32], sizes = [16, 16, 16], strides = [1, 1, 1]} : vector<16x16x48xf32> to vector<16x16x16xf32>
    %28 = arith.truncf %27 : vector<16x16x16xf32> to vector<16x16x16xbf16>
    %29 = vector.extract_strided_slice %14 {offsets = [0, 0, 32], sizes = [16, 16, 16], strides = [1, 1, 1]} : vector<16x16x48xf32> to vector<16x16x16xf32>
    %30 = arith.truncf %29 : vector<16x16x16xf32> to vector<16x16x16xbf16>
    "tpu.trace_start"() <{level = 10 : i32, message = "tvr,twr->tvw"}> : () -> ()
    %cst_13 = arith.constant dense<0.000000e+00> : vector<16x16x16xf32>
    %31 = tpu.matmul %30, %28, %cst_13 {dimension_numbers = #tpu.dot_dimension_numbers<[2], [2], [1], [1], [0, 0, 0, 1, 1, 1], [0], [0]>} : vector<16x16x16xbf16>, vector<16x16x16xbf16>, vector<16x16x16xf32> -> vector<16x16x16xf32>
    "tpu.trace_stop"() : () -> ()
    %cst_14 = arith.constant dense<0.000000e+00> : vector<16x16xf32>
    %32 = vector.multi_reduction <add>, %31, %cst_14 [0] : vector<16x16x16xf32> to vector<16x16xf32>
    %33 = tpu.concatenate %20, %26, %32 in 0 : vector<16x16xf32>, vector<16x16xf32>, vector<16x16xf32> -> vector<48x16xf32>
    %c0_15 = arith.constant 0 : index
    %c0_16 = arith.constant 0 : index
    %34 = vector.load %arg3[%c0_15, %c0_16] : memref<48x16xf32, #tpu.memory_space<vmem>>, vector<48x16xf32>
    %cst_17 = arith.constant 3.906250e-03 : f32
    %35 = vector.broadcast %cst_17 : f32 to vector<48x16xf32>
    %36 = arith.mulf %33, %35 : vector<48x16xf32>
    %37 = math.tanh %36 : vector<48x16xf32>
    %38 = vector.broadcast %5 : vector<1x1xf32> to vector<48x16xf32>
    %39 = arith.mulf %38, %37 : vector<48x16xf32>
    %40 = arith.addf %34, %39 : vector<48x16xf32>
    %41 = arith.truncf %40 : vector<48x16xf32> to vector<48x16xbf16>
    %42 = vector.shape_cast %41 : vector<48x16xbf16> to vector<1x48x16xbf16>
    %43 = vector.shape_cast %42 : vector<1x48x16xbf16> to vector<1x48x16xbf16>
    %44 = vector.broadcast %43 : vector<1x48x16xbf16> to vector<16x48x16xbf16>
    "tpu.trace_start"() <{level = 10 : i32, message = "tuw,twc->tuc"}> : () -> ()
    %cst_18 = arith.constant dense<0.000000e+00> : vector<16x48x64xf32>
    %45 = tpu.matmul %44, %4, %cst_18 {dimension_numbers = #tpu.dot_dimension_numbers<[2], [1], [1], [2], [0, 0, 0, 1, 1, 2], [0], [0]>} : vector<16x48x16xbf16>, vector<16x16x64xbf16>, vector<16x48x64xf32> -> vector<16x48x64xf32>
    %cst_19 = arith.constant 0.000000e+00 : f32
    "tpu.trace_stop"() : () -> ()
    %46 = vector.broadcast %cst_19 : f32 to vector<256x64xf32>
    %47 = vector.extract_strided_slice %45 {offsets = [0, 0, 0], sizes = [16, 16, 64], strides = [1, 1, 1]} : vector<16x48x64xf32> to vector<16x16x64xf32>
    %48 = vector.shape_cast %47 : vector<16x16x64xf32> to vector<256x64xf32>
    %49 = arith.truncf %48 : vector<256x64xf32> to vector<256x64xbf16>
    %c0_20 = arith.constant 0 : index
    %c0_21 = arith.constant 0 : index
    %c0_22 = arith.constant 0 : index
    %50 = vector.load %arg6[%c0_20, %c0_21, %c0_22] : memref<3x64x64xbf16, #tpu.memory_space<vmem>>, vector<1x64x64xbf16>
    %51 = vector.shape_cast %50 : vector<1x64x64xbf16> to vector<64x64xbf16>
    %cst_23 = arith.constant dense<0.000000e+00> : vector<256x64xf32>
    %52 = tpu.matmul %49, %51, %cst_23 {dimension_numbers = #tpu.dot_dimension_numbers<[1], [0], [0], [1], [0, 0, 1, 1], [], []>} : vector<256x64xbf16>, vector<64x64xbf16>, vector<256x64xf32> -> vector<256x64xf32>
    %53 = arith.addf %46, %52 : vector<256x64xf32>
    %54 = vector.extract_strided_slice %45 {offsets = [0, 16, 0], sizes = [16, 16, 64], strides = [1, 1, 1]} : vector<16x48x64xf32> to vector<16x16x64xf32>
    %55 = vector.shape_cast %54 : vector<16x16x64xf32> to vector<256x64xf32>
    %56 = arith.truncf %55 : vector<256x64xf32> to vector<256x64xbf16>
    %c1 = arith.constant 1 : index
    %c0_24 = arith.constant 0 : index
    %c0_25 = arith.constant 0 : index
    %57 = vector.load %arg6[%c1, %c0_24, %c0_25] : memref<3x64x64xbf16, #tpu.memory_space<vmem>>, vector<1x64x64xbf16>
    %58 = vector.shape_cast %57 : vector<1x64x64xbf16> to vector<64x64xbf16>
    %cst_26 = arith.constant dense<0.000000e+00> : vector<256x64xf32>
    %59 = tpu.matmul %56, %58, %cst_26 {dimension_numbers = #tpu.dot_dimension_numbers<[1], [0], [0], [1], [0, 0, 1, 1], [], []>} : vector<256x64xbf16>, vector<64x64xbf16>, vector<256x64xf32> -> vector<256x64xf32>
    %60 = arith.addf %53, %59 : vector<256x64xf32>
    %61 = vector.extract_strided_slice %45 {offsets = [0, 32, 0], sizes = [16, 16, 64], strides = [1, 1, 1]} : vector<16x48x64xf32> to vector<16x16x64xf32>
    %62 = vector.shape_cast %61 : vector<16x16x64xf32> to vector<256x64xf32>
    %63 = arith.truncf %62 : vector<256x64xf32> to vector<256x64xbf16>
    %c2 = arith.constant 2 : index
    %c0_27 = arith.constant 0 : index
    %c0_28 = arith.constant 0 : index
    %64 = vector.load %arg6[%c2, %c0_27, %c0_28] : memref<3x64x64xbf16, #tpu.memory_space<vmem>>, vector<1x64x64xbf16>
    %65 = vector.shape_cast %64 : vector<1x64x64xbf16> to vector<64x64xbf16>
    %cst_29 = arith.constant dense<0.000000e+00> : vector<256x64xf32>
    %66 = tpu.matmul %63, %65, %cst_29 {dimension_numbers = #tpu.dot_dimension_numbers<[1], [0], [0], [1], [0, 0, 1, 1], [], []>} : vector<256x64xbf16>, vector<64x64xbf16>, vector<256x64xf32> -> vector<256x64xf32>
    %67 = arith.addf %60, %66 : vector<256x64xf32>
    %c0_30 = arith.constant 0 : index
    %c0_31 = arith.constant 0 : index
    %68 = vector.load %arg7[%c0_30, %c0_31] : memref<1x64xf32, #tpu.memory_space<vmem>>, vector<1x64xf32>
    %69 = vector.broadcast %68 : vector<1x64xf32> to vector<256x64xf32>
    %70 = arith.addf %67, %69 : vector<256x64xf32>
    %71 = arith.addf %70, %2 : vector<256x64xf32>
    %cst_32 = arith.constant 0.000000e+00 : f32
    %72 = vector.broadcast %cst_32 : f32 to vector<256x64xf32>
    %73 = arith.maximumf %71, %72 : vector<256x64xf32>
    %74 = vector.shape_cast %73 : vector<256x64xf32> to vector<16x16x64xf32>
    %cst_33 = arith.constant dense<0.000000e+00> : vector<16x64xf32>
    %75 = vector.multi_reduction <add>, %74, %cst_33 [0] : vector<16x16x64xf32> to vector<16x64xf32>
    %cst_34 = arith.constant 1.600000e+01 : f32
    %76 = vector.broadcast %cst_34 : f32 to vector<16x64xf32>
    %77 = arith.divf %75, %76 : vector<16x64xf32>
    %cst_35 = arith.constant 0.000000e+00 : f32
    %78 = vector.broadcast %cst_35 : f32 to vector<7x64xf32>
    %79 = tpu.concatenate %78, %77, %78 in 0 : vector<7x64xf32>, vector<16x64xf32>, vector<7x64xf32> -> vector<30x64xf32>
    %80 = vector.extract_strided_slice %79 {offsets = [0, 0], sizes = [16, 64], strides = [1, 1]} : vector<30x64xf32> to vector<16x64xf32>
    %81 = vector.extract_strided_slice %79 {offsets = [1, 0], sizes = [16, 64], strides = [1, 1]} : vector<30x64xf32> to vector<16x64xf32>
    %82 = vector.extract_strided_slice %79 {offsets = [2, 0], sizes = [16, 64], strides = [1, 1]} : vector<30x64xf32> to vector<16x64xf32>
    %83 = vector.extract_strided_slice %79 {offsets = [3, 0], sizes = [16, 64], strides = [1, 1]} : vector<30x64xf32> to vector<16x64xf32>
    %84 = vector.extract_strided_slice %79 {offsets = [4, 0], sizes = [16, 64], strides = [1, 1]} : vector<30x64xf32> to vector<16x64xf32>
    %85 = vector.extract_strided_slice %79 {offsets = [5, 0], sizes = [16, 64], strides = [1, 1]} : vector<30x64xf32> to vector<16x64xf32>
    %86 = vector.extract_strided_slice %79 {offsets = [6, 0], sizes = [16, 64], strides = [1, 1]} : vector<30x64xf32> to vector<16x64xf32>
    %87 = vector.extract_strided_slice %79 {offsets = [7, 0], sizes = [16, 64], strides = [1, 1]} : vector<30x64xf32> to vector<16x64xf32>
    %88 = vector.extract_strided_slice %79 {offsets = [8, 0], sizes = [16, 64], strides = [1, 1]} : vector<30x64xf32> to vector<16x64xf32>
    %89 = vector.extract_strided_slice %79 {offsets = [9, 0], sizes = [16, 64], strides = [1, 1]} : vector<30x64xf32> to vector<16x64xf32>
    %90 = vector.extract_strided_slice %79 {offsets = [10, 0], sizes = [16, 64], strides = [1, 1]} : vector<30x64xf32> to vector<16x64xf32>
    %91 = vector.extract_strided_slice %79 {offsets = [11, 0], sizes = [16, 64], strides = [1, 1]} : vector<30x64xf32> to vector<16x64xf32>
    %92 = vector.extract_strided_slice %79 {offsets = [12, 0], sizes = [16, 64], strides = [1, 1]} : vector<30x64xf32> to vector<16x64xf32>
    %93 = vector.extract_strided_slice %79 {offsets = [13, 0], sizes = [16, 64], strides = [1, 1]} : vector<30x64xf32> to vector<16x64xf32>
    %94 = vector.extract_strided_slice %79 {offsets = [14, 0], sizes = [16, 64], strides = [1, 1]} : vector<30x64xf32> to vector<16x64xf32>
    %95 = tpu.concatenate %80, %81, %82, %83, %84, %85, %86, %87, %88, %89, %90, %91, %92, %93, %94 in 1 : vector<16x64xf32>, vector<16x64xf32>, vector<16x64xf32>, vector<16x64xf32>, vector<16x64xf32>, vector<16x64xf32>, vector<16x64xf32>, vector<16x64xf32>, vector<16x64xf32>, vector<16x64xf32>, vector<16x64xf32>, vector<16x64xf32>, vector<16x64xf32>, vector<16x64xf32>, vector<16x64xf32> -> vector<16x960xf32>
    %c0_36 = arith.constant 0 : index
    %c0_37 = arith.constant 0 : index
    %96 = vector.load %arg8[%c0_36, %c0_37] : memref<960x1xf32, #tpu.memory_space<vmem>>, vector<960x1xf32>
    %cst_38 = arith.constant dense<0.000000e+00> : vector<16x1xf32>
    %97 = tpu.matmul %95, %96, %cst_38 {dimension_numbers = #tpu.dot_dimension_numbers<[1], [0], [0], [1], [0, 0, 1, 1], [], []>} : vector<16x960xf32>, vector<960x1xf32>, vector<16x1xf32> -> vector<16x1xf32>
    %c0_39 = arith.constant 0 : index
    %c0_40 = arith.constant 0 : index
    %98 = vector.load %arg9[%c0_39, %c0_40] : memref<1x1xf32, #tpu.memory_space<vmem>>, vector<1x1xf32>
    %99 = vector.broadcast %98 : vector<1x1xf32> to vector<16x1xf32>
    %100 = arith.addf %97, %99 : vector<16x1xf32>
    %101 = arith.negf %100 : vector<16x1xf32>
    %102 = math.exp %101 : vector<16x1xf32>
    %cst_41 = arith.constant 1.000000e+00 : f32
    %103 = vector.broadcast %cst_41 : f32 to vector<16x1xf32>
    %104 = arith.addf %103, %102 : vector<16x1xf32>
    %105 = arith.divf %103, %104 : vector<16x1xf32>
    %cst_42 = arith.constant 1.000000e+00 : f32
    %106 = vector.broadcast %cst_42 : f32 to vector<16x1xf32>
    %107 = arith.addf %106, %105 : vector<16x1xf32>
    %108 = vector.shape_cast %107 : vector<16x1xf32> to vector<1x16x1xf32>
    %109 = vector.broadcast %108 : vector<1x16x1xf32> to vector<16x16x64xf32>
    %110 = arith.mulf %74, %109 : vector<16x16x64xf32>
    %cst_43 = arith.constant dense<0.000000e+00> : vector<16x64xf32>
    %111 = vector.multi_reduction <add>, %110, %cst_43 [1] : vector<16x16x64xf32> to vector<16x64xf32>
    %cst_44 = arith.constant 1.600000e+01 : f32
    %112 = vector.broadcast %cst_44 : f32 to vector<16x64xf32>
    %113 = arith.divf %111, %112 : vector<16x64xf32>
    %cst_45 = arith.constant 0.000000e+00 : f32
    %114 = vector.broadcast %cst_45 : f32 to vector<4x64xf32>
    %115 = tpu.concatenate %114, %113, %114 in 0 : vector<4x64xf32>, vector<16x64xf32>, vector<4x64xf32> -> vector<24x64xf32>
    %116 = vector.extract_strided_slice %115 {offsets = [0, 0], sizes = [16, 64], strides = [1, 1]} : vector<24x64xf32> to vector<16x64xf32>
    %117 = vector.extract_strided_slice %115 {offsets = [1, 0], sizes = [16, 64], strides = [1, 1]} : vector<24x64xf32> to vector<16x64xf32>
    %118 = vector.extract_strided_slice %115 {offsets = [2, 0], sizes = [16, 64], strides = [1, 1]} : vector<24x64xf32> to vector<16x64xf32>
    %119 = vector.extract_strided_slice %115 {offsets = [3, 0], sizes = [16, 64], strides = [1, 1]} : vector<24x64xf32> to vector<16x64xf32>
    %120 = vector.extract_strided_slice %115 {offsets = [4, 0], sizes = [16, 64], strides = [1, 1]} : vector<24x64xf32> to vector<16x64xf32>
    %121 = vector.extract_strided_slice %115 {offsets = [5, 0], sizes = [16, 64], strides = [1, 1]} : vector<24x64xf32> to vector<16x64xf32>
    %122 = vector.extract_strided_slice %115 {offsets = [6, 0], sizes = [16, 64], strides = [1, 1]} : vector<24x64xf32> to vector<16x64xf32>
    %123 = vector.extract_strided_slice %115 {offsets = [7, 0], sizes = [16, 64], strides = [1, 1]} : vector<24x64xf32> to vector<16x64xf32>
    %124 = vector.extract_strided_slice %115 {offsets = [8, 0], sizes = [16, 64], strides = [1, 1]} : vector<24x64xf32> to vector<16x64xf32>
    %125 = tpu.concatenate %116, %117, %118, %119, %120, %121, %122, %123, %124 in 1 : vector<16x64xf32>, vector<16x64xf32>, vector<16x64xf32>, vector<16x64xf32>, vector<16x64xf32>, vector<16x64xf32>, vector<16x64xf32>, vector<16x64xf32>, vector<16x64xf32> -> vector<16x576xf32>
    %c0_46 = arith.constant 0 : index
    %c0_47 = arith.constant 0 : index
    %126 = vector.load %arg10[%c0_46, %c0_47] : memref<576x1xf32, #tpu.memory_space<vmem>>, vector<576x1xf32>
    %cst_48 = arith.constant dense<0.000000e+00> : vector<16x1xf32>
    %127 = tpu.matmul %125, %126, %cst_48 {dimension_numbers = #tpu.dot_dimension_numbers<[1], [0], [0], [1], [0, 0, 1, 1], [], []>} : vector<16x576xf32>, vector<576x1xf32>, vector<16x1xf32> -> vector<16x1xf32>
    %c0_49 = arith.constant 0 : index
    %c0_50 = arith.constant 0 : index
    %128 = vector.load %arg11[%c0_49, %c0_50] : memref<1x1xf32, #tpu.memory_space<vmem>>, vector<1x1xf32>
    %129 = vector.broadcast %128 : vector<1x1xf32> to vector<16x1xf32>
    %130 = arith.addf %127, %129 : vector<16x1xf32>
    %131 = arith.negf %130 : vector<16x1xf32>
    %132 = math.exp %131 : vector<16x1xf32>
    %cst_51 = arith.constant 1.000000e+00 : f32
    %133 = vector.broadcast %cst_51 : f32 to vector<16x1xf32>
    %134 = arith.addf %133, %132 : vector<16x1xf32>
    %135 = arith.divf %133, %134 : vector<16x1xf32>
    %cst_52 = arith.constant 1.000000e+00 : f32
    %136 = vector.broadcast %cst_52 : f32 to vector<16x1xf32>
    %137 = arith.addf %136, %135 : vector<16x1xf32>
    %138 = vector.shape_cast %137 : vector<16x1xf32> to vector<16x1x1xf32>
    %139 = vector.broadcast %138 : vector<16x1x1xf32> to vector<16x16x64xf32>
    %140 = arith.mulf %110, %139 : vector<16x16x64xf32>
    %cst_53 = arith.constant dense<0.000000e+00> : vector<16x64xf32>
    %141 = vector.multi_reduction <add>, %140, %cst_53 [0] : vector<16x16x64xf32> to vector<16x64xf32>
    %cst_54 = arith.constant 1.600000e+01 : f32
    %142 = vector.broadcast %cst_54 : f32 to vector<16x64xf32>
    %143 = arith.divf %141, %142 : vector<16x64xf32>
    %cst_55 = arith.constant dense<0.000000e+00> : vector<64xf32>
    %144 = vector.multi_reduction <add>, %143, %cst_55 [0] : vector<16x64xf32> to vector<64xf32>
    %145 = vector.shape_cast %144 : vector<64xf32> to vector<1x64xf32>
    %cst_56 = arith.constant 1.600000e+01 : f32
    %146 = vector.broadcast %cst_56 : f32 to vector<1x64xf32>
    %147 = arith.divf %145, %146 : vector<1x64xf32>
    %c0_57 = arith.constant 0 : index
    %c0_58 = arith.constant 0 : index
    %148 = vector.load %arg12[%c0_57, %c0_58] : memref<64x32xf32, #tpu.memory_space<vmem>>, vector<64x32xf32>
    %cst_59 = arith.constant dense<0.000000e+00> : vector<1x32xf32>
    %149 = tpu.matmul %147, %148, %cst_59 {dimension_numbers = #tpu.dot_dimension_numbers<[1], [0], [0], [1], [0, 0, 1, 1], [], []>} : vector<1x64xf32>, vector<64x32xf32>, vector<1x32xf32> -> vector<1x32xf32>
    %c0_60 = arith.constant 0 : index
    %c0_61 = arith.constant 0 : index
    %150 = vector.load %arg13[%c0_60, %c0_61] : memref<1x32xf32, #tpu.memory_space<vmem>>, vector<1x32xf32>
    %151 = arith.addf %149, %150 : vector<1x32xf32>
    %cst_62 = arith.constant 0.000000e+00 : f32
    %152 = vector.broadcast %cst_62 : f32 to vector<1x32xf32>
    %153 = arith.maximumf %151, %152 : vector<1x32xf32>
    %c0_63 = arith.constant 0 : index
    %c0_64 = arith.constant 0 : index
    %154 = vector.load %arg14[%c0_63, %c0_64] : memref<32x64xf32, #tpu.memory_space<vmem>>, vector<32x64xf32>
    %cst_65 = arith.constant dense<0.000000e+00> : vector<1x64xf32>
    %155 = tpu.matmul %153, %154, %cst_65 {dimension_numbers = #tpu.dot_dimension_numbers<[1], [0], [0], [1], [0, 0, 1, 1], [], []>} : vector<1x32xf32>, vector<32x64xf32>, vector<1x64xf32> -> vector<1x64xf32>
    %c0_66 = arith.constant 0 : index
    %c0_67 = arith.constant 0 : index
    %156 = vector.load %arg15[%c0_66, %c0_67] : memref<1x64xf32, #tpu.memory_space<vmem>>, vector<1x64xf32>
    %157 = arith.addf %155, %156 : vector<1x64xf32>
    %158 = arith.negf %157 : vector<1x64xf32>
    %159 = math.exp %158 : vector<1x64xf32>
    %cst_68 = arith.constant 1.000000e+00 : f32
    %160 = vector.broadcast %cst_68 : f32 to vector<1x64xf32>
    %161 = arith.addf %160, %159 : vector<1x64xf32>
    %162 = arith.divf %160, %161 : vector<1x64xf32>
    %cst_69 = arith.constant 1.000000e+00 : f32
    %163 = vector.broadcast %cst_69 : f32 to vector<1x64xf32>
    %164 = arith.addf %163, %162 : vector<1x64xf32>
    %165 = vector.shape_cast %164 : vector<1x64xf32> to vector<1x1x64xf32>
    %166 = vector.broadcast %165 : vector<1x1x64xf32> to vector<16x16x64xf32>
    %167 = arith.mulf %140, %166 : vector<16x16x64xf32>
    %168 = arith.truncf %167 : vector<16x16x64xf32> to vector<16x16x64xbf16>
    %cst_70 = arith.constant 0.000000e+00 : bf16
    %169 = vector.broadcast %cst_70 : bf16 to vector<4x16x64xbf16>
    %170 = tpu.concatenate %169, %168, %169 in 0 : vector<4x16x64xbf16>, vector<16x16x64xbf16>, vector<4x16x64xbf16> -> vector<24x16x64xbf16>
    %cst_71 = arith.constant 0.000000e+00 : f32
    %171 = vector.broadcast %cst_71 : f32 to vector<256x64xf32>
    %172 = vector.extract_strided_slice %170 {offsets = [0, 0, 0], sizes = [16, 16, 64], strides = [1, 1, 1]} : vector<24x16x64xbf16> to vector<16x16x64xbf16>
    %173 = vector.shape_cast %172 : vector<16x16x64xbf16> to vector<256x64xbf16>
    %c0_72 = arith.constant 0 : index
    %c0_73 = arith.constant 0 : index
    %c0_74 = arith.constant 0 : index
    %174 = vector.load %arg16[%c0_72, %c0_73, %c0_74] : memref<9x64x64xbf16, #tpu.memory_space<vmem>>, vector<1x64x64xbf16>
    %175 = vector.shape_cast %174 : vector<1x64x64xbf16> to vector<64x64xbf16>
    %cst_75 = arith.constant dense<0.000000e+00> : vector<256x64xf32>
    %176 = tpu.matmul %173, %175, %cst_75 {dimension_numbers = #tpu.dot_dimension_numbers<[1], [0], [0], [1], [0, 0, 1, 1], [], []>} : vector<256x64xbf16>, vector<64x64xbf16>, vector<256x64xf32> -> vector<256x64xf32>
    %177 = arith.addf %171, %176 : vector<256x64xf32>
    %178 = vector.extract_strided_slice %170 {offsets = [1, 0, 0], sizes = [16, 16, 64], strides = [1, 1, 1]} : vector<24x16x64xbf16> to vector<16x16x64xbf16>
    %179 = vector.shape_cast %178 : vector<16x16x64xbf16> to vector<256x64xbf16>
    %c1_76 = arith.constant 1 : index
    %c0_77 = arith.constant 0 : index
    %c0_78 = arith.constant 0 : index
    %180 = vector.load %arg16[%c1_76, %c0_77, %c0_78] : memref<9x64x64xbf16, #tpu.memory_space<vmem>>, vector<1x64x64xbf16>
    %181 = vector.shape_cast %180 : vector<1x64x64xbf16> to vector<64x64xbf16>
    %cst_79 = arith.constant dense<0.000000e+00> : vector<256x64xf32>
    %182 = tpu.matmul %179, %181, %cst_79 {dimension_numbers = #tpu.dot_dimension_numbers<[1], [0], [0], [1], [0, 0, 1, 1], [], []>} : vector<256x64xbf16>, vector<64x64xbf16>, vector<256x64xf32> -> vector<256x64xf32>
    %183 = arith.addf %177, %182 : vector<256x64xf32>
    %184 = vector.extract_strided_slice %170 {offsets = [2, 0, 0], sizes = [16, 16, 64], strides = [1, 1, 1]} : vector<24x16x64xbf16> to vector<16x16x64xbf16>
    %185 = vector.shape_cast %184 : vector<16x16x64xbf16> to vector<256x64xbf16>
    %c2_80 = arith.constant 2 : index
    %c0_81 = arith.constant 0 : index
    %c0_82 = arith.constant 0 : index
    %186 = vector.load %arg16[%c2_80, %c0_81, %c0_82] : memref<9x64x64xbf16, #tpu.memory_space<vmem>>, vector<1x64x64xbf16>
    %187 = vector.shape_cast %186 : vector<1x64x64xbf16> to vector<64x64xbf16>
    %cst_83 = arith.constant dense<0.000000e+00> : vector<256x64xf32>
    %188 = tpu.matmul %185, %187, %cst_83 {dimension_numbers = #tpu.dot_dimension_numbers<[1], [0], [0], [1], [0, 0, 1, 1], [], []>} : vector<256x64xbf16>, vector<64x64xbf16>, vector<256x64xf32> -> vector<256x64xf32>
    %189 = arith.addf %183, %188 : vector<256x64xf32>
    %190 = vector.extract_strided_slice %170 {offsets = [3, 0, 0], sizes = [16, 16, 64], strides = [1, 1, 1]} : vector<24x16x64xbf16> to vector<16x16x64xbf16>
    %191 = vector.shape_cast %190 : vector<16x16x64xbf16> to vector<256x64xbf16>
    %c3 = arith.constant 3 : index
    %c0_84 = arith.constant 0 : index
    %c0_85 = arith.constant 0 : index
    %192 = vector.load %arg16[%c3, %c0_84, %c0_85] : memref<9x64x64xbf16, #tpu.memory_space<vmem>>, vector<1x64x64xbf16>
    %193 = vector.shape_cast %192 : vector<1x64x64xbf16> to vector<64x64xbf16>
    %cst_86 = arith.constant dense<0.000000e+00> : vector<256x64xf32>
    %194 = tpu.matmul %191, %193, %cst_86 {dimension_numbers = #tpu.dot_dimension_numbers<[1], [0], [0], [1], [0, 0, 1, 1], [], []>} : vector<256x64xbf16>, vector<64x64xbf16>, vector<256x64xf32> -> vector<256x64xf32>
    %195 = arith.addf %189, %194 : vector<256x64xf32>
    %196 = vector.extract_strided_slice %170 {offsets = [4, 0, 0], sizes = [16, 16, 64], strides = [1, 1, 1]} : vector<24x16x64xbf16> to vector<16x16x64xbf16>
    %197 = vector.shape_cast %196 : vector<16x16x64xbf16> to vector<256x64xbf16>
    %c4 = arith.constant 4 : index
    %c0_87 = arith.constant 0 : index
    %c0_88 = arith.constant 0 : index
    %198 = vector.load %arg16[%c4, %c0_87, %c0_88] : memref<9x64x64xbf16, #tpu.memory_space<vmem>>, vector<1x64x64xbf16>
    %199 = vector.shape_cast %198 : vector<1x64x64xbf16> to vector<64x64xbf16>
    %cst_89 = arith.constant dense<0.000000e+00> : vector<256x64xf32>
    %200 = tpu.matmul %197, %199, %cst_89 {dimension_numbers = #tpu.dot_dimension_numbers<[1], [0], [0], [1], [0, 0, 1, 1], [], []>} : vector<256x64xbf16>, vector<64x64xbf16>, vector<256x64xf32> -> vector<256x64xf32>
    %201 = arith.addf %195, %200 : vector<256x64xf32>
    %202 = vector.extract_strided_slice %170 {offsets = [5, 0, 0], sizes = [16, 16, 64], strides = [1, 1, 1]} : vector<24x16x64xbf16> to vector<16x16x64xbf16>
    %203 = vector.shape_cast %202 : vector<16x16x64xbf16> to vector<256x64xbf16>
    %c5 = arith.constant 5 : index
    %c0_90 = arith.constant 0 : index
    %c0_91 = arith.constant 0 : index
    %204 = vector.load %arg16[%c5, %c0_90, %c0_91] : memref<9x64x64xbf16, #tpu.memory_space<vmem>>, vector<1x64x64xbf16>
    %205 = vector.shape_cast %204 : vector<1x64x64xbf16> to vector<64x64xbf16>
    %cst_92 = arith.constant dense<0.000000e+00> : vector<256x64xf32>
    %206 = tpu.matmul %203, %205, %cst_92 {dimension_numbers = #tpu.dot_dimension_numbers<[1], [0], [0], [1], [0, 0, 1, 1], [], []>} : vector<256x64xbf16>, vector<64x64xbf16>, vector<256x64xf32> -> vector<256x64xf32>
    %207 = arith.addf %201, %206 : vector<256x64xf32>
    %208 = vector.extract_strided_slice %170 {offsets = [6, 0, 0], sizes = [16, 16, 64], strides = [1, 1, 1]} : vector<24x16x64xbf16> to vector<16x16x64xbf16>
    %209 = vector.shape_cast %208 : vector<16x16x64xbf16> to vector<256x64xbf16>
    %c6 = arith.constant 6 : index
    %c0_93 = arith.constant 0 : index
    %c0_94 = arith.constant 0 : index
    %210 = vector.load %arg16[%c6, %c0_93, %c0_94] : memref<9x64x64xbf16, #tpu.memory_space<vmem>>, vector<1x64x64xbf16>
    %211 = vector.shape_cast %210 : vector<1x64x64xbf16> to vector<64x64xbf16>
    %cst_95 = arith.constant dense<0.000000e+00> : vector<256x64xf32>
    %212 = tpu.matmul %209, %211, %cst_95 {dimension_numbers = #tpu.dot_dimension_numbers<[1], [0], [0], [1], [0, 0, 1, 1], [], []>} : vector<256x64xbf16>, vector<64x64xbf16>, vector<256x64xf32> -> vector<256x64xf32>
    %213 = arith.addf %207, %212 : vector<256x64xf32>
    %214 = vector.extract_strided_slice %170 {offsets = [7, 0, 0], sizes = [16, 16, 64], strides = [1, 1, 1]} : vector<24x16x64xbf16> to vector<16x16x64xbf16>
    %215 = vector.shape_cast %214 : vector<16x16x64xbf16> to vector<256x64xbf16>
    %c7 = arith.constant 7 : index
    %c0_96 = arith.constant 0 : index
    %c0_97 = arith.constant 0 : index
    %216 = vector.load %arg16[%c7, %c0_96, %c0_97] : memref<9x64x64xbf16, #tpu.memory_space<vmem>>, vector<1x64x64xbf16>
    %217 = vector.shape_cast %216 : vector<1x64x64xbf16> to vector<64x64xbf16>
    %cst_98 = arith.constant dense<0.000000e+00> : vector<256x64xf32>
    %218 = tpu.matmul %215, %217, %cst_98 {dimension_numbers = #tpu.dot_dimension_numbers<[1], [0], [0], [1], [0, 0, 1, 1], [], []>} : vector<256x64xbf16>, vector<64x64xbf16>, vector<256x64xf32> -> vector<256x64xf32>
    %219 = arith.addf %213, %218 : vector<256x64xf32>
    %220 = vector.extract_strided_slice %170 {offsets = [8, 0, 0], sizes = [16, 16, 64], strides = [1, 1, 1]} : vector<24x16x64xbf16> to vector<16x16x64xbf16>
    %221 = vector.shape_cast %220 : vector<16x16x64xbf16> to vector<256x64xbf16>
    %c8 = arith.constant 8 : index
    %c0_99 = arith.constant 0 : index
    %c0_100 = arith.constant 0 : index
    %222 = vector.load %arg16[%c8, %c0_99, %c0_100] : memref<9x64x64xbf16, #tpu.memory_space<vmem>>, vector<1x64x64xbf16>
    %223 = vector.shape_cast %222 : vector<1x64x64xbf16> to vector<64x64xbf16>
    %cst_101 = arith.constant dense<0.000000e+00> : vector<256x64xf32>
    %224 = tpu.matmul %221, %223, %cst_101 {dimension_numbers = #tpu.dot_dimension_numbers<[1], [0], [0], [1], [0, 0, 1, 1], [], []>} : vector<256x64xbf16>, vector<64x64xbf16>, vector<256x64xf32> -> vector<256x64xf32>
    %225 = arith.addf %219, %224 : vector<256x64xf32>
    %c0_102 = arith.constant 0 : index
    %c0_103 = arith.constant 0 : index
    %226 = vector.load %arg17[%c0_102, %c0_103] : memref<1x64xf32, #tpu.memory_space<vmem>>, vector<1x64xf32>
    %227 = vector.broadcast %226 : vector<1x64xf32> to vector<256x64xf32>
    %228 = arith.addf %225, %227 : vector<256x64xf32>
    %229 = arith.addf %228, %2 : vector<256x64xf32>
    %cst_104 = arith.constant 0.000000e+00 : f32
    %230 = vector.broadcast %cst_104 : f32 to vector<256x64xf32>
    %231 = arith.maximumf %229, %230 : vector<256x64xf32>
    %232 = vector.shape_cast %231 : vector<256x64xf32> to vector<16x16x64xf32>
    %c0_105 = arith.constant 0 : index
    %c0_106 = arith.constant 0 : index
    %c0_107 = arith.constant 0 : index
    %c0_108 = arith.constant 0 : index
    %233 = vector.load %arg18[%c0_105, %c0_106, %c0_107, %c0_108] : memref<1x16x16x64xf32, #tpu.memory_space<vmem>>, vector<1x16x16x64xf32>
    %234 = vector.shape_cast %233 : vector<1x16x16x64xf32> to vector<16x16x64xf32>
    %235 = vector.shape_cast %232 : vector<16x16x64xf32> to vector<1x16x16x64xf32>
    tpu.vector_store %arg18[%c0_105, %c0_106, %c0_107, %c0_108], %235 {strides = array<i32>} : memref<1x16x16x64xf32, #tpu.memory_space<vmem>>, vector<1x16x16x64xf32>,
    return
  }
  func.func @transform_0(%arg0: i32) -> (i32, i32, i32, i32) {
    %c0_i32 = arith.constant 0 : i32
    %c0_i32_0 = arith.constant 0 : i32
    %c0_i32_1 = arith.constant 0 : i32
    %c0_i32_2 = arith.constant 0 : i32
    return %arg0, %c0_i32, %c0_i32_0, %c0_i32_1 : i32, i32, i32, i32
  }
  func.func @transform_1(%arg0: i32) -> (i32, i32) {
    %c0_i32 = arith.constant 0 : i32
    %c0_i32_0 = arith.constant 0 : i32
    %c0_i32_1 = arith.constant 0 : i32
    return %c0_i32, %c0_i32_0 : i32, i32
  }
  func.func @transform_2(%arg0: i32) -> (i32, i32) {
    %c0_i32 = arith.constant 0 : i32
    %c0_i32_0 = arith.constant 0 : i32
    %c0_i32_1 = arith.constant 0 : i32
    return %c0_i32, %c0_i32_0 : i32, i32
  }
  func.func @transform_3(%arg0: i32) -> (i32, i32) {
    %c0_i32 = arith.constant 0 : i32
    %c0_i32_0 = arith.constant 0 : i32
    %c0_i32_1 = arith.constant 0 : i32
    return %c0_i32, %c0_i32_0 : i32, i32
  }
  func.func @transform_4(%arg0: i32) -> (i32, i32) {
    %c0_i32 = arith.constant 0 : i32
    %c0_i32_0 = arith.constant 0 : i32
    %c0_i32_1 = arith.constant 0 : i32
    return %c0_i32, %c0_i32_0 : i32, i32
  }
  func.func @transform_5(%arg0: i32) -> (i32, i32, i32) {
    %c0_i32 = arith.constant 0 : i32
    %c0_i32_0 = arith.constant 0 : i32
    %c0_i32_1 = arith.constant 0 : i32
    %c0_i32_2 = arith.constant 0 : i32
    return %c0_i32, %c0_i32_0, %c0_i32_1 : i32, i32, i32
  }
  func.func @transform_6(%arg0: i32) -> (i32, i32) {
    %c0_i32 = arith.constant 0 : i32
    %c0_i32_0 = arith.constant 0 : i32
    %c0_i32_1 = arith.constant 0 : i32
    return %c0_i32, %c0_i32_0 : i32, i32
  }
  func.func @transform_7(%arg0: i32) -> (i32, i32) {
    %c0_i32 = arith.constant 0 : i32
    %c0_i32_0 = arith.constant 0 : i32
    %c0_i32_1 = arith.constant 0 : i32
    return %c0_i32, %c0_i32_0 : i32, i32
  }
  func.func @transform_8(%arg0: i32) -> (i32, i32) {
    %c0_i32 = arith.constant 0 : i32
    %c0_i32_0 = arith.constant 0 : i32
    %c0_i32_1 = arith.constant 0 : i32
    return %c0_i32, %c0_i32_0 : i32, i32
  }
  func.func @transform_9(%arg0: i32) -> (i32, i32) {
    %c0_i32 = arith.constant 0 : i32
    %c0_i32_0 = arith.constant 0 : i32
    %c0_i32_1 = arith.constant 0 : i32
    return %c0_i32, %c0_i32_0 : i32, i32
  }
  func.func @transform_10(%arg0: i32) -> (i32, i32) {
    %c0_i32 = arith.constant 0 : i32
    %c0_i32_0 = arith.constant 0 : i32
    %c0_i32_1 = arith.constant 0 : i32
    return %c0_i32, %c0_i32_0 : i32, i32
  }
  func.func @transform_11(%arg0: i32) -> (i32, i32) {
    %c0_i32 = arith.constant 0 : i32
    %c0_i32_0 = arith.constant 0 : i32
    %c0_i32_1 = arith.constant 0 : i32
    return %c0_i32, %c0_i32_0 : i32, i32
  }
  func.func @transform_12(%arg0: i32) -> (i32, i32) {
    %c0_i32 = arith.constant 0 : i32
    %c0_i32_0 = arith.constant 0 : i32
    %c0_i32_1 = arith.constant 0 : i32
    return %c0_i32, %c0_i32_0 : i32, i32
  }
  func.func @transform_13(%arg0: i32) -> (i32, i32) {
    %c0_i32 = arith.constant 0 : i32
    %c0_i32_0 = arith.constant 0 : i32
    %c0_i32_1 = arith.constant 0 : i32
    return %c0_i32, %c0_i32_0 : i32, i32
  }
  func.func @transform_14(%arg0: i32) -> (i32, i32) {
    %c0_i32 = arith.constant 0 : i32
    %c0_i32_0 = arith.constant 0 : i32
    %c0_i32_1 = arith.constant 0 : i32
    return %c0_i32, %c0_i32_0 : i32, i32
  }
  func.func @transform_15(%arg0: i32) -> (i32, i32, i32) {
    %c0_i32 = arith.constant 0 : i32
    %c0_i32_0 = arith.constant 0 : i32
    %c0_i32_1 = arith.constant 0 : i32
    %c0_i32_2 = arith.constant 0 : i32
    return %c0_i32, %c0_i32_0, %c0_i32_1 : i32, i32, i32
  }
  func.func @transform_16(%arg0: i32) -> (i32, i32) {
    %c0_i32 = arith.constant 0 : i32
    %c0_i32_0 = arith.constant 0 : i32
    %c0_i32_1 = arith.constant 0 : i32
    return %c0_i32, %c0_i32_0 : i32, i32
  }
  func.func @transform_17(%arg0: i32) -> (i32, i32, i32, i32) {
    %c0_i32 = arith.constant 0 : i32
    %c0_i32_0 = arith.constant 0 : i32
    %c0_i32_1 = arith.constant 0 : i32
    %c0_i32_2 = arith.constant 0 : i32
    return %arg0, %c0_i32, %c0_i32_0, %c0_i32_1 : i32, i32, i32, i32
  }
}

</mosaic_0001>

<llo_original>
// kernel: tpu_custom_call.1
$region0: #{tpu_custom_call.1}
  #allocation0 [shape = 'u32[]', space=smem, size = 0x4, offset = 0x4, fixed_abs, tag = 'smem constant byte address 0x4 - core index']
  #allocation1 [shape = 'u32[72,128]{1,0:T(1,128)}', space=vmem, size = 0x9000, scoped, tag = 'internal scratch']
  #allocation2 [shape = 'f32[1,1]{1,0:T(1,128)S(1)}', space=vmem, size = 0x200, scoped, tag = 'scoped memory for tpu_custom_call.1']
  #allocation3 [shape = 'f32[1,1]{1,0:T(1,128)S(1)}', space=vmem, size = 0x200, scoped, tag = 'scoped memory for tpu_custom_call.1']
  #allocation4 [shape = 'f32[1,1]{1,0:T(1,128)S(1)}', space=vmem, size = 0x200, scoped, tag = 'scoped memory for tpu_custom_call.1']
  %s0 = inlined_call_operand.vmem [shape: f32[2,16,16,64], index: 0, kind: input, shape index: {}]
  %s1 = inlined_call_operand.<no memory space> [shape: f32[1,1], index: 1, kind: input, shape index: {}]
  %s2 = inlined_call_operand.vmem [shape: f32[48,16], index: 2, kind: input, shape index: {}]
  %s3 = inlined_call_operand.vmem [shape: bf16[64,96], index: 3, kind: input, shape index: {}]
  %s4 = inlined_call_operand.vmem [shape: f32[1,96], index: 4, kind: input, shape index: {}]
  %s5 = inlined_call_operand.vmem [shape: bf16[3,64,64], index: 5, kind: input, shape index: {}]
  %s6 = inlined_call_operand.vmem [shape: f32[1,64], index: 6, kind: input, shape index: {}]
  %s7 = inlined_call_operand.vmem [shape: f32[960,1], index: 7, kind: input, shape index: {}]
  %s8 = inlined_call_operand.<no memory space> [shape: f32[1,1], index: 8, kind: input, shape index: {}]
  %s9 = inlined_call_operand.vmem [shape: f32[576,1], index: 9, kind: input, shape index: {}]
  %s10 = inlined_call_operand.<no memory space> [shape: f32[1,1], index: 10, kind: input, shape index: {}]
  %s11 = inlined_call_operand.vmem [shape: f32[64,32], index: 11, kind: input, shape index: {}]
  %s12 = inlined_call_operand.vmem [shape: f32[1,32], index: 12, kind: input, shape index: {}]
  %s13 = inlined_call_operand.vmem [shape: f32[32,64], index: 13, kind: input, shape index: {}]
  %s14 = inlined_call_operand.vmem [shape: f32[1,64], index: 14, kind: input, shape index: {}]
  %s15 = inlined_call_operand.vmem [shape: bf16[9,64,64], index: 15, kind: input, shape index: {}]
  %s16 = inlined_call_operand.vmem [shape: f32[1,64], index: 16, kind: input, shape index: {}]
  %s17 = inlined_call_operand.hbm [shape: f32[2,16,16,64], index: 17, kind: output, shape index: {}]
  %s18 = sld [smem:[#allocation0]]
  $region101: #{tpu_custom_call.1} parent=0
    _
  %s20 = ssub.s32 1, %s18
  %s21 = scalar_select 0, %s20, %s18
  %v22 = vstv %s1
  %23 = vst [vmem:[#allocation2] sm:$0x1] %v22
  %v24 = vstv %s8
  %25 = vst [vmem:[#allocation3] sm:$0x1] %v24
  %v26 = vstv %s10
  %27 = vst [vmem:[#allocation4] sm:$0x1] %v26
  $region1: #{tpu_custom_call.1} parent=0
    #allocation5 [shape = 'u8[262144]{0}', space=vmem, size = 0x40000, scoped, tag = 'output window, operand 0']
    #allocation6 [shape = 's32[2]{0}', space=sflag, size = 0x8, scoped, tag = 'scoped memory for tpu_custom_call.1']
    %28 = vsyncpa [#allocation6], 0
    %s29 = scalar_lea.sflag [#allocation6], 1
    %30 = vsyncpa %s29, 0
    loop: start=0, step=1, limit=4
    $region2: #{tpu_custom_call.1} parent=1 // loop_pre_header
      _
    $region3: #{tpu_custom_call.1} parent=1 // loop_header
      %s32 = sphi 0, %s36
      %p33 = scmp.ge.s32.totalorder %s32, 4
      %s42 = sphi 0, %s44
      %s45 = sphi 0, %s42
      %s46 = sphi 0, %s45
      %s62 = sphi 0, %s46
      %s66 = sphi 0, %s66
      %s68 = sphi 0, %s66
      %s69 = sphi 0, %s68
      %s83 = sphi 0, %s69
      %s87 = sphi 0, %s87
      %s89 = sphi 0, %s87
      %s90 = sphi 0, %s89
      %s104 = sphi 0, %s90
      %s108 = sphi 0, %s108
      %s110 = sphi 0, %s108
      %s111 = sphi 0, %s110
      %s125 = sphi 0, %s111
      %s129 = sphi 0, %s129
      %s131 = sphi 0, %s129
      %s132 = sphi 0, %s131
      %s146 = sphi 0, %s132
      %s150 = sphi 0, %s150
      %s152 = sphi 0, %s150
      %s153 = sphi 0, %s152
      %s167 = sphi 0, %s153
      %s171 = sphi 0, %s171
      %s173 = sphi 0, %s171
      %s174 = sphi 0, %s173
      %s188 = sphi 0, %s174
      %s192 = sphi 0, %s192
      %s194 = sphi 0, %s192
      %s195 = sphi 0, %s194
      %s209 = sphi 0, %s195
      %s213 = sphi 0, %s213
      %s215 = sphi 0, %s213
      %s216 = sphi 0, %s215
      %s230 = sphi 0, %s216
      %s234 = sphi 0, %s234
      %s236 = sphi 0, %s234
      %s237 = sphi 0, %s236
      %s251 = sphi 0, %s237
      %s255 = sphi 0, %s255
      %s257 = sphi 0, %s255
      %s258 = sphi 0, %s257
      %s272 = sphi 0, %s258
      %s276 = sphi 0, %s276
      %s278 = sphi 0, %s276
      %s279 = sphi 0, %s278
      %s293 = sphi 0, %s279
      %s297 = sphi 0, %s297
      %s299 = sphi 0, %s297
      %s300 = sphi 0, %s299
      %s314 = sphi 0, %s300
      %s318 = sphi 0, %s318
      %s320 = sphi 0, %s318
      %s321 = sphi 0, %s320
      %s335 = sphi 0, %s321
      %s339 = sphi 0, %s339
      %s341 = sphi 0, %s339
      %s342 = sphi 0, %s341
      %s356 = sphi 0, %s342
      %s360 = sphi 0, %s360
      %s362 = sphi 0, %s360
      %s363 = sphi 0, %s362
      %s377 = sphi 0, %s363
      %s381 = sphi 0, %s381
      %s383 = sphi 0, %s381
      %s384 = sphi 0, %s383
      %s398 = sphi 0, %s384
      %s404 = sphi 0, %s406
      %s407 = sphi 0, %s404
      %s408 = sphi 0, %s407
      %s424 = sphi 0, %s408
    $region4: #{tpu_custom_call.1} parent=1 // loop_header_branch
      %35 = sbr.rel (%p33) target = $region8
    $region5: #{tpu_custom_call.1} parent=1 // loop_body
      %s37 = ssub.s32 %s32, 1
      %s38 = ssub.s32 %s32, 2
      %s39 = sadd.s32 %s32, 1
      %s40 = ssub.s32 %s32, %s39
      %p41 = scmp.eq.s32.totalorder %s40, 0
      %s43 = sadd.s32 %s42, 1
      %s44 = scalar_select %p41, %s42, %s43
      %p47 = pneg %p41
      %p48 = scmp.eq.s32.totalorder %s32, 1
      %p49 = por %p47, %p48
      %p50 = scmp.ne.s32.totalorder %s42, %s45
      %p51 = scmp.eq.s32.totalorder %s32, 0
      %p52 = por %p50, %p51
      %p53 = scmp.ne.s32.totalorder %s42, %s45
      %p54 = scmp.eq.s32.totalorder %s37, 1
      %p55 = por %p53, %p54
      %p56 = scmp.ne.s32.totalorder %s45, %s46
      %p57 = scmp.eq.s32.totalorder %s37, 0
      %p58 = por %p56, %p57
      %p59 = scmp.ne.s32.totalorder %s45, %s46
      %p60 = scmp.eq.s32.totalorder %s38, 1
      %p61 = por %p59, %p60
      %p63 = scmp.ne.s32.totalorder %s46, %s62
      %p64 = scmp.eq.s32.totalorder %s38, 0
      %p65 = por %p63, %p64
      %s67 = sadd.s32 %s66, 1
      %p70 = scmp.eq.s32.totalorder %s32, 1
      %p71 = scmp.ne.s32.totalorder %s66, %s68
      %p72 = scmp.eq.s32.totalorder %s32, 0
      %p73 = por %p71, %p72
      %p74 = scmp.ne.s32.totalorder %s66, %s68
      %p75 = scmp.eq.s32.totalorder %s37, 1
      %p76 = por %p74, %p75
      %p77 = scmp.ne.s32.totalorder %s68, %s69
      %p78 = scmp.eq.s32.totalorder %s37, 0
      %p79 = por %p77, %p78
      %p80 = scmp.ne.s32.totalorder %s68, %s69
      %p81 = scmp.eq.s32.totalorder %s38, 1
      %p82 = por %p80, %p81
      %p84 = scmp.ne.s32.totalorder %s69, %s83
      %p85 = scmp.eq.s32.totalorder %s38, 0
      %p86 = por %p84, %p85
      %s88 = sadd.s32 %s87, 1
      %p91 = scmp.eq.s32.totalorder %s32, 1
      %p92 = scmp.ne.s32.totalorder %s87, %s89
      %p93 = scmp.eq.s32.totalorder %s32, 0
      %p94 = por %p92, %p93
      %p95 = scmp.ne.s32.totalorder %s87, %s89
      %p96 = scmp.eq.s32.totalorder %s37, 1
      %p97 = por %p95, %p96
      %p98 = scmp.ne.s32.totalorder %s89, %s90
      %p99 = scmp.eq.s32.totalorder %s37, 0
      %p100 = por %p98, %p99
      %p101 = scmp.ne.s32.totalorder %s89, %s90
      %p102 = scmp.eq.s32.totalorder %s38, 1
      %p103 = por %p101, %p102
      %p105 = scmp.ne.s32.totalorder %s90, %s104
      %p106 = scmp.eq.s32.totalorder %s38, 0
      %p107 = por %p105, %p106
      %s109 = sadd.s32 %s108, 1
      %p112 = scmp.eq.s32.totalorder %s32, 1
      %p113 = scmp.ne.s32.totalorder %s108, %s110
      %p114 = scmp.eq.s32.totalorder %s32, 0
      %p115 = por %p113, %p114
      %p116 = scmp.ne.s32.totalorder %s108, %s110
      %p117 = scmp.eq.s32.totalorder %s37, 1
      %p118 = por %p116, %p117
      %p119 = scmp.ne.s32.totalorder %s110, %s111
      %p120 = scmp.eq.s32.totalorder %s37, 0
      %p121 = por %p119, %p120
      %p122 = scmp.ne.s32.totalorder %s110, %s111
      %p123 = scmp.eq.s32.totalorder %s38, 1
      %p124 = por %p122, %p123
      %p126 = scmp.ne.s32.totalorder %s111, %s125
      %p127 = scmp.eq.s32.totalorder %s38, 0
      %p128 = por %p126, %p127
      %s130 = sadd.s32 %s129, 1
      %p133 = scmp.eq.s32.totalorder %s32, 1
      %p134 = scmp.ne.s32.totalorder %s129, %s131
      %p135 = scmp.eq.s32.totalorder %s32, 0
      %p136 = por %p134, %p135
      %p137 = scmp.ne.s32.totalorder %s129, %s131
      %p138 = scmp.eq.s32.totalorder %s37, 1
      %p139 = por %p137, %p138
      %p140 = scmp.ne.s32.totalorder %s131, %s132
      %p141 = scmp.eq.s32.totalorder %s37, 0
      %p142 = por %p140, %p141
      %p143 = scmp.ne.s32.totalorder %s131, %s132
      %p144 = scmp.eq.s32.totalorder %s38, 1
      %p145 = por %p143, %p144
      %p147 = scmp.ne.s32.totalorder %s132, %s146
      %p148 = scmp.eq.s32.totalorder %s38, 0
      %p149 = por %p147, %p148
      %s151 = sadd.s32 %s150, 1
      %p154 = scmp.eq.s32.totalorder %s32, 1
      %p155 = scmp.ne.s32.totalorder %s150, %s152
      %p156 = scmp.eq.s32.totalorder %s32, 0
      %p157 = por %p155, %p156
      %p158 = scmp.ne.s32.totalorder %s150, %s152
      %p159 = scmp.eq.s32.totalorder %s37, 1
      %p160 = por %p158, %p159
      %p161 = scmp.ne.s32.totalorder %s152, %s153
      %p162 = scmp.eq.s32.totalorder %s37, 0
      %p163 = por %p161, %p162
      %p164 = scmp.ne.s32.totalorder %s152, %s153
      %p165 = scmp.eq.s32.totalorder %s38, 1
      %p166 = por %p164, %p165
      %p168 = scmp.ne.s32.totalorder %s153, %s167
      %p169 = scmp.eq.s32.totalorder %s38, 0
      %p170 = por %p168, %p169
      %s172 = sadd.s32 %s171, 1
      %p175 = scmp.eq.s32.totalorder %s32, 1
      %p176 = scmp.ne.s32.totalorder %s171, %s173
      %p177 = scmp.eq.s32.totalorder %s32, 0
      %p178 = por %p176, %p177
      %p179 = scmp.ne.s32.totalorder %s171, %s173
      %p180 = scmp.eq.s32.totalorder %s37, 1
      %p181 = por %p179, %p180
      %p182 = scmp.ne.s32.totalorder %s173, %s174
      %p183 = scmp.eq.s32.totalorder %s37, 0
      %p184 = por %p182, %p183
      %p185 = scmp.ne.s32.totalorder %s173, %s174
      %p186 = scmp.eq.s32.totalorder %s38, 1
      %p187 = por %p185, %p186
      %p189 = scmp.ne.s32.totalorder %s174, %s188
      %p190 = scmp.eq.s32.totalorder %s38, 0
      %p191 = por %p189, %p190
      %s193 = sadd.s32 %s192, 1
      %p196 = scmp.eq.s32.totalorder %s32, 1
      %p197 = scmp.ne.s32.totalorder %s192, %s194
      %p198 = scmp.eq.s32.totalorder %s32, 0
      %p199 = por %p197, %p198
      %p200 = scmp.ne.s32.totalorder %s192, %s194
      %p201 = scmp.eq.s32.totalorder %s37, 1
      %p202 = por %p200, %p201
      %p203 = scmp.ne.s32.totalorder %s194, %s195
      %p204 = scmp.eq.s32.totalorder %s37, 0
      %p205 = por %p203, %p204
      %p206 = scmp.ne.s32.totalorder %s194, %s195
      %p207 = scmp.eq.s32.totalorder %s38, 1
      %p208 = por %p206, %p207
      %p210 = scmp.ne.s32.totalorder %s195, %s209
      %p211 = scmp.eq.s32.totalorder %s38, 0
      %p212 = por %p210, %p211
      %s214 = sadd.s32 %s213, 1
      %p217 = scmp.eq.s32.totalorder %s32, 1
      %p218 = scmp.ne.s32.totalorder %s213, %s215
      %p219 = scmp.eq.s32.totalorder %s32, 0
      %p220 = por %p218, %p219
      %p221 = scmp.ne.s32.totalorder %s213, %s215
      %p222 = scmp.eq.s32.totalorder %s37, 1
      %p223 = por %p221, %p222
      %p224 = scmp.ne.s32.totalorder %s215, %s216
      %p225 = scmp.eq.s32.totalorder %s37, 0
      %p226 = por %p224, %p225
      %p227 = scmp.ne.s32.totalorder %s215, %s216
      %p228 = scmp.eq.s32.totalorder %s38, 1
      %p229 = por %p227, %p228
      %p231 = scmp.ne.s32.totalorder %s216, %s230
      %p232 = scmp.eq.s32.totalorder %s38, 0
      %p233 = por %p231, %p232
      %s235 = sadd.s32 %s234, 1
      %p238 = scmp.eq.s32.totalorder %s32, 1
      %p239 = scmp.ne.s32.totalorder %s234, %s236
      %p240 = scmp.eq.s32.totalorder %s32, 0
      %p241 = por %p239, %p240
      %p242 = scmp.ne.s32.totalorder %s234, %s236
      %p243 = scmp.eq.s32.totalorder %s37, 1
      %p244 = por %p242, %p243
      %p245 = scmp.ne.s32.totalorder %s236, %s237
      %p246 = scmp.eq.s32.totalorder %s37, 0
      %p247 = por %p245, %p246
      %p248 = scmp.ne.s32.totalorder %s236, %s237
      %p249 = scmp.eq.s32.totalorder %s38, 1
      %p250 = por %p248, %p249
      %p252 = scmp.ne.s32.totalorder %s237, %s251
      %p253 = scmp.eq.s32.totalorder %s38, 0
      %p254 = por %p252, %p253
      %s256 = sadd.s32 %s255, 1
      %p259 = scmp.eq.s32.totalorder %s32, 1
      %p260 = scmp.ne.s32.totalorder %s255, %s257
      %p261 = scmp.eq.s32.totalorder %s32, 0
      %p262 = por %p260, %p261
      %p263 = scmp.ne.s32.totalorder %s255, %s257
      %p264 = scmp.eq.s32.totalorder %s37, 1
      %p265 = por %p263, %p264
      %p266 = scmp.ne.s32.totalorder %s257, %s258
      %p267 = scmp.eq.s32.totalorder %s37, 0
      %p268 = por %p266, %p267
      %p269 = scmp.ne.s32.totalorder %s257, %s258
      %p270 = scmp.eq.s32.totalorder %s38, 1
      %p271 = por %p269, %p270
      %p273 = scmp.ne.s32.totalorder %s258, %s272
      %p274 = scmp.eq.s32.totalorder %s38, 0
      %p275 = por %p273, %p274
      %s277 = sadd.s32 %s276, 1
      %p280 = scmp.eq.s32.totalorder %s32, 1
      %p281 = scmp.ne.s32.totalorder %s276, %s278
      %p282 = scmp.eq.s32.totalorder %s32, 0
      %p283 = por %p281, %p282
      %p284 = scmp.ne.s32.totalorder %s276, %s278
      %p285 = scmp.eq.s32.totalorder %s37, 1
      %p286 = por %p284, %p285
      %p287 = scmp.ne.s32.totalorder %s278, %s279
      %p288 = scmp.eq.s32.totalorder %s37, 0
      %p289 = por %p287, %p288
      %p290 = scmp.ne.s32.totalorder %s278, %s279
      %p291 = scmp.eq.s32.totalorder %s38, 1
      %p292 = por %p290, %p291
      %p294 = scmp.ne.s32.totalorder %s279, %s293
      %p295 = scmp.eq.s32.totalorder %s38, 0
      %p296 = por %p294, %p295
      %s298 = sadd.s32 %s297, 1
      %p301 = scmp.eq.s32.totalorder %s32, 1
      %p302 = scmp.ne.s32.totalorder %s297, %s299
      %p303 = scmp.eq.s32.totalorder %s32, 0
      %p304 = por %p302, %p303
      %p305 = scmp.ne.s32.totalorder %s297, %s299
      %p306 = scmp.eq.s32.totalorder %s37, 1
      %p307 = por %p305, %p306
      %p308 = scmp.ne.s32.totalorder %s299, %s300
      %p309 = scmp.eq.s32.totalorder %s37, 0
      %p310 = por %p308, %p309
      %p311 = scmp.ne.s32.totalorder %s299, %s300
      %p312 = scmp.eq.s32.totalorder %s38, 1
      %p313 = por %p311, %p312
      %p315 = scmp.ne.s32.totalorder %s300, %s314
      %p316 = scmp.eq.s32.totalorder %s38, 0
      %p317 = por %p315, %p316
      %s319 = sadd.s32 %s318, 1
      %p322 = scmp.eq.s32.totalorder %s32, 1
      %p323 = scmp.ne.s32.totalorder %s318, %s320
      %p324 = scmp.eq.s32.totalorder %s32, 0
      %p325 = por %p323, %p324
      %p326 = scmp.ne.s32.totalorder %s318, %s320
      %p327 = scmp.eq.s32.totalorder %s37, 1
      %p328 = por %p326, %p327
      %p329 = scmp.ne.s32.totalorder %s320, %s321
      %p330 = scmp.eq.s32.totalorder %s37, 0
      %p331 = por %p329, %p330
      %p332 = scmp.ne.s32.totalorder %s320, %s321
      %p333 = scmp.eq.s32.totalorder %s38, 1
      %p334 = por %p332, %p333
      %p336 = scmp.ne.s32.totalorder %s321, %s335
      %p337 = scmp.eq.s32.totalorder %s38, 0
      %p338 = por %p336, %p337
      %s340 = sadd.s32 %s339, 1
      %p343 = scmp.eq.s32.totalorder %s32, 1
      %p344 = scmp.ne.s32.totalorder %s339, %s341
      %p345 = scmp.eq.s32.totalorder %s32, 0
      %p346 = por %p344, %p345
      %p347 = scmp.ne.s32.totalorder %s339, %s341
      %p348 = scmp.eq.s32.totalorder %s37, 1
      %p349 = por %p347, %p348
      %p350 = scmp.ne.s32.totalorder %s341, %s342
      %p351 = scmp.eq.s32.totalorder %s37, 0
      %p352 = por %p350, %p351
      %p353 = scmp.ne.s32.totalorder %s341, %s342
      %p354 = scmp.eq.s32.totalorder %s38, 1
      %p355 = por %p353, %p354
      %p357 = scmp.ne.s32.totalorder %s342, %s356
      %p358 = scmp.eq.s32.totalorder %s38, 0
      %p359 = por %p357, %p358
      %s361 = sadd.s32 %s360, 1
      %p364 = scmp.eq.s32.totalorder %s32, 1
      %p365 = scmp.ne.s32.totalorder %s360, %s362
      %p366 = scmp.eq.s32.totalorder %s32, 0
      %p367 = por %p365, %p366
      %p368 = scmp.ne.s32.totalorder %s360, %s362
      %p369 = scmp.eq.s32.totalorder %s37, 1
      %p370 = por %p368, %p369
      %p371 = scmp.ne.s32.totalorder %s362, %s363
      %p372 = scmp.eq.s32.totalorder %s37, 0
      %p373 = por %p371, %p372
      %p374 = scmp.ne.s32.totalorder %s362, %s363
      %p375 = scmp.eq.s32.totalorder %s38, 1
      %p376 = por %p374, %p375
      %p378 = scmp.ne.s32.totalorder %s363, %s377
      %p379 = scmp.eq.s32.totalorder %s38, 0
      %p380 = por %p378, %p379
      %s382 = sadd.s32 %s381, 1
      %p385 = scmp.eq.s32.totalorder %s32, 1
      %p386 = scmp.ne.s32.totalorder %s381, %s383
      %p387 = scmp.eq.s32.totalorder %s32, 0
      %p388 = por %p386, %p387
      %p389 = scmp.ne.s32.totalorder %s381, %s383
      %p390 = scmp.eq.s32.totalorder %s37, 1
      %p391 = por %p389, %p390
      %p392 = scmp.ne.s32.totalorder %s383, %s384
      %p393 = scmp.eq.s32.totalorder %s37, 0
      %p394 = por %p392, %p393
      %p395 = scmp.ne.s32.totalorder %s383, %s384
      %p396 = scmp.eq.s32.totalorder %s38, 1
      %p397 = por %p395, %p396
      %p399 = scmp.ne.s32.totalorder %s384, %s398
      %p400 = scmp.eq.s32.totalorder %s38, 0
      %p401 = por %p399, %p400
      %s402 = ssub.s32 %s32, %s39
      %p403 = scmp.eq.s32.totalorder %s402, 0
      %s405 = sadd.s32 %s404, 1
      %s406 = scalar_select %p403, %s404, %s405
      %p409 = pneg %p403
      %p410 = scmp.eq.s32.totalorder %s32, 1
      %p411 = por %p409, %p410
      %p412 = scmp.ne.s32.totalorder %s404, %s407
      %p413 = scmp.eq.s32.totalorder %s32, 0
      %p414 = por %p412, %p413
      %p415 = scmp.ne.s32.totalorder %s404, %s407
      %p416 = scmp.eq.s32.totalorder %s37, 1
      %p417 = por %p415, %p416
      %p418 = scmp.ne.s32.totalorder %s407, %s408
      %p419 = scmp.eq.s32.totalorder %s37, 0
      %p420 = por %p418, %p419
      %p421 = scmp.ne.s32.totalorder %s407, %s408
      %p422 = scmp.eq.s32.totalorder %s38, 1
      %p423 = por %p421, %p422
      %p425 = scmp.ne.s32.totalorder %s408, %s424
      %p426 = scmp.eq.s32.totalorder %s38, 0
      %p427 = por %p425, %p426
      %p428 = scmp.le.s32.totalorder 1, %s32
      %p429 = scmp.lt.s32.totalorder %s32, 3
      %p430 = pnand %p428, %p429
      %p431 = pneg %p430
      // Predicated region
      $region9: #{tpu_custom_call.1} parent=5 // pred_check
        _
      $region10: #{tpu_custom_call.1} parent=5 // pred_check_branch
        %433 = sbr.rel (%p430) target = $region12
      $region11: #{tpu_custom_call.1} parent=5 // pred_region
        %s434 = ssub.s32 %s32, 1
        // Predicated region
        $region13: #{tpu_custom_call.1} parent=11 // pred_check
          %p435 = pneg %p79
        $region14: #{tpu_custom_call.1} parent=11 // pred_check_branch
          %437 = sbr.rel (%p435) target = $region16
        $region15: #{tpu_custom_call.1} parent=11 // pred_region
          _
        $region16: #{tpu_custom_call.1} parent=11 // pred_fallthru
          _
        // Predicated region
        $region17: #{tpu_custom_call.1} parent=11 // pred_check
          %p438 = pneg %p100
        $region18: #{tpu_custom_call.1} parent=11 // pred_check_branch
          %440 = sbr.rel (%p438) target = $region20
        $region19: #{tpu_custom_call.1} parent=11 // pred_region
          _
        $region20: #{tpu_custom_call.1} parent=11 // pred_fallthru
          _
        // Predicated region
        $region21: #{tpu_custom_call.1} parent=11 // pred_check
          %p441 = pneg %p121
        $region22: #{tpu_custom_call.1} parent=11 // pred_check_branch
          %443 = sbr.rel (%p441) target = $region24
        $region23: #{tpu_custom_call.1} parent=11 // pred_region
          _
        $region24: #{tpu_custom_call.1} parent=11 // pred_fallthru
          _
        // Predicated region
        $region25: #{tpu_custom_call.1} parent=11 // pred_check
          %p444 = pneg %p142
        $region26: #{tpu_custom_call.1} parent=11 // pred_check_branch
          %446 = sbr.rel (%p444) target = $region28
        $region27: #{tpu_custom_call.1} parent=11 // pred_region
          _
        $region28: #{tpu_custom_call.1} parent=11 // pred_fallthru
          _
        // Predicated region
        $region29: #{tpu_custom_call.1} parent=11 // pred_check
          %p447 = pneg %p163
        $region30: #{tpu_custom_call.1} parent=11 // pred_check_branch
          %449 = sbr.rel (%p447) target = $region32
        $region31: #{tpu_custom_call.1} parent=11 // pred_region
          _
        $region32: #{tpu_custom_call.1} parent=11 // pred_fallthru
          _
        // Predicated region
        $region33: #{tpu_custom_call.1} parent=11 // pred_check
          %p450 = pneg %p184
        $region34: #{tpu_custom_call.1} parent=11 // pred_check_branch
          %452 = sbr.rel (%p450) target = $region36
        $region35: #{tpu_custom_call.1} parent=11 // pred_region
          _
        $region36: #{tpu_custom_call.1} parent=11 // pred_fallthru
          _
        // Predicated region
        $region37: #{tpu_custom_call.1} parent=11 // pred_check
          %p453 = pneg %p205
        $region38: #{tpu_custom_call.1} parent=11 // pred_check_branch
          %455 = sbr.rel (%p453) target = $region40
        $region39: #{tpu_custom_call.1} parent=11 // pred_region
          _
        $region40: #{tpu_custom_call.1} parent=11 // pred_fallthru
          _
        // Predicated region
        $region41: #{tpu_custom_call.1} parent=11 // pred_check
          %p456 = pneg %p226
        $region42: #{tpu_custom_call.1} parent=11 // pred_check_branch
          %458 = sbr.rel (%p456) target = $region44
        $region43: #{tpu_custom_call.1} parent=11 // pred_region
          _
        $region44: #{tpu_custom_call.1} parent=11 // pred_fallthru
          _
        // Predicated region
        $region45: #{tpu_custom_call.1} parent=11 // pred_check
          %p459 = pneg %p247
        $region46: #{tpu_custom_call.1} parent=11 // pred_check_branch
          %461 = sbr.rel (%p459) target = $region48
        $region47: #{tpu_custom_call.1} parent=11 // pred_region
          _
        $region48: #{tpu_custom_call.1} parent=11 // pred_fallthru
          _
        // Predicated region
        $region49: #{tpu_custom_call.1} parent=11 // pred_check
          %p462 = pneg %p268
        $region50: #{tpu_custom_call.1} parent=11 // pred_check_branch
          %464 = sbr.rel (%p462) target = $region52
        $region51: #{tpu_custom_call.1} parent=11 // pred_region
          _
        $region52: #{tpu_custom_call.1} parent=11 // pred_fallthru
          _
        // Predicated region
        $region53: #{tpu_custom_call.1} parent=11 // pred_check
          %p465 = pneg %p289
        $region54: #{tpu_custom_call.1} parent=11 // pred_check_branch
          %467 = sbr.rel (%p465) target = $region56
        $region55: #{tpu_custom_call.1} parent=11 // pred_region
          _
        $region56: #{tpu_custom_call.1} parent=11 // pred_fallthru
          _
        // Predicated region
        $region57: #{tpu_custom_call.1} parent=11 // pred_check
          %p468 = pneg %p310
        $region58: #{tpu_custom_call.1} parent=11 // pred_check_branch
          %470 = sbr.rel (%p468) target = $region60
        $region59: #{tpu_custom_call.1} parent=11 // pred_region
          _
        $region60: #{tpu_custom_call.1} parent=11 // pred_fallthru
          _
        // Predicated region
        $region61: #{tpu_custom_call.1} parent=11 // pred_check
          %p471 = pneg %p331
        $region62: #{tpu_custom_call.1} parent=11 // pred_check_branch
          %473 = sbr.rel (%p471) target = $region64
        $region63: #{tpu_custom_call.1} parent=11 // pred_region
          _
        $region64: #{tpu_custom_call.1} parent=11 // pred_fallthru
          _
        // Predicated region
        $region65: #{tpu_custom_call.1} parent=11 // pred_check
          %p474 = pneg %p352
        $region66: #{tpu_custom_call.1} parent=11 // pred_check_branch
          %476 = sbr.rel (%p474) target = $region68
        $region67: #{tpu_custom_call.1} parent=11 // pred_region
          _
        $region68: #{tpu_custom_call.1} parent=11 // pred_fallthru
          _
        // Predicated region
        $region69: #{tpu_custom_call.1} parent=11 // pred_check
          %p477 = pneg %p373
        $region70: #{tpu_custom_call.1} parent=11 // pred_check_branch
          %479 = sbr.rel (%p477) target = $region72
        $region71: #{tpu_custom_call.1} parent=11 // pred_region
          _
        $region72: #{tpu_custom_call.1} parent=11 // pred_fallthru
          _
        // Predicated region
        $region73: #{tpu_custom_call.1} parent=11 // pred_check
          %p480 = pneg %p394
        $region74: #{tpu_custom_call.1} parent=11 // pred_check_branch
          %482 = sbr.rel (%p480) target = $region76
        $region75: #{tpu_custom_call.1} parent=11 // pred_region
          _
        $region76: #{tpu_custom_call.1} parent=11 // pred_fallthru
          _
      $region12: #{tpu_custom_call.1} parent=5 // pred_fallthru
        _
      %p483 = scmp.lt.s32.totalorder %s32, 2
      // Predicated region
      $region77: #{tpu_custom_call.1} parent=5 // pred_check
        %p484 = pneg %p483
      $region78: #{tpu_custom_call.1} parent=5 // pred_check_branch
        %486 = sbr.rel (%p484) target = $region80
      $region79: #{tpu_custom_call.1} parent=5 // pred_region
        // Predicated region
        $region81: #{tpu_custom_call.1} parent=79 // pred_check
          %p487 = pneg %p52
        $region82: #{tpu_custom_call.1} parent=79 // pred_check_branch
          %489 = sbr.rel (%p487) target = $region84
        $region83: #{tpu_custom_call.1} parent=79 // pred_region
          %p490 = scmp.lt.s32.totalorder %s32, 1
          %s491 = scalar_select %p490, %s32, 1
          %s492 = smul.addr %s491, 32
          %s493 = smul.addr %s492, 8
          %s494 = scalar_lea.vmem %s0, %s493
        $region84: #{tpu_custom_call.1} parent=79 // pred_fallthru
          _
      $region80: #{tpu_custom_call.1} parent=5 // pred_fallthru
        _
      %p495 = scmp.le.s32.totalorder 1, %s32
      %p496 = scmp.lt.s32.totalorder %s32, 3
      %p497 = pnand %p495, %p496
      %p498 = pneg %p497
      // Predicated region
      $region85: #{tpu_custom_call.1} parent=5 // pred_check
        _
      $region86: #{tpu_custom_call.1} parent=5 // pred_check_branch
        %500 = sbr.rel (%p497) target = $region88
      $region87: #{tpu_custom_call.1} parent=5 // pred_region
        %s501 = ssub.s32 %s32, 1
        %p502 = scmp.lt.s32.totalorder %s37, 1
        %s503 = scalar_select %p502, %s37, 1
        %s504 = smul.addr %s503, 32
        %s505 = smul.addr %s504, 8
        %s506 = scalar_lea.vmem %s0, %s505
        %p507 = pneg %p58
        %p508 = pneg %p55
        %p509 = pneg %p79
        %p510 = pneg %p76
        %p511 = pneg %p100
        %p512 = pneg %p97
        %p513 = pneg %p121
        %p514 = pneg %p118
        %p515 = pneg %p142
        %p516 = pneg %p139
        %p517 = pneg %p163
        %p518 = pneg %p160
        %p519 = pneg %p184
        %p520 = pneg %p181
        %p521 = pneg %p205
        %p522 = pneg %p202
        %p523 = pneg %p226
        %p524 = pneg %p223
        %p525 = pneg %p247
        %p526 = pneg %p244
        %p527 = pneg %p268
        %p528 = pneg %p265
        %p529 = pneg %p289
        %p530 = pneg %p286
        %p531 = pneg %p310
        %p532 = pneg %p307
        %p533 = pneg %p331
        %p534 = pneg %p328
        %p535 = pneg %p352
        %p536 = pneg %p349
        %p537 = pneg %p373
        %p538 = pneg %p370
        %p539 = pneg %p394
        %p540 = pneg %p391
        %p541 = pneg %p420
        %p542 = pneg %p417
        %s543 = sand.u32 %s407, 1
        %s544 = scalar_lea.sflag [#allocation6], %s543
        %s545 = sand.u32 %s407, 1
        %s546 = smul.addr %s545, 256
        %s547 = scalar_lea.vmem [#allocation5], %s546
        %p548 = scmp.lt.s32.totalorder %s37, 1
        %s549 = scalar_select %p548, %s37, 1
        %s550 = smul.addr %s549, 32
        %s551 = smul.addr %s550, 8
        %s552 = scalar_lea.vmem %s0, %s551
        %v554 = vld [vmem:[%s552] sm:$0xff]
        %v555 = vld [vmem:[%s552 + $0x8] sm:$0xff]
        %v556 = vld [vmem:[%s552 + $0x10] sm:$0xff]
        %v557 = vld [vmem:[%s552 + $0x18] sm:$0xff]
        %v558 = vld [vmem:[%s552 + $0x20] sm:$0xff]
        %v559 = vld [vmem:[%s552 + $0x28] sm:$0xff]
        %v560 = vld [vmem:[%s552 + $0x30] sm:$0xff]
        %v561 = vld [vmem:[%s552 + $0x38] sm:$0xff]
        %v562 = vld [vmem:[%s552 + $0x40] sm:$0xff]
        %v563 = vld [vmem:[%s552 + $0x48] sm:$0xff]
        %v564 = vld [vmem:[%s552 + $0x50] sm:$0xff]
        %v565 = vld [vmem:[%s552 + $0x58] sm:$0xff]
        %v566 = vld [vmem:[%s552 + $0x60] sm:$0xff]
        %v567 = vld [vmem:[%s552 + $0x68] sm:$0xff]
        %v568 = vld [vmem:[%s552 + $0x70] sm:$0xff]
        %v569 = vld [vmem:[%s552 + $0x78] sm:$0xff]
        %v570 = vld [vmem:[%s552 + $0x80] sm:$0xff]
        %v571 = vld [vmem:[%s552 + $0x88] sm:$0xff]
        %v572 = vld [vmem:[%s552 + $0x90] sm:$0xff]
        %v573 = vld [vmem:[%s552 + $0x98] sm:$0xff]
        %v574 = vld [vmem:[%s552 + $0xa0] sm:$0xff]
        %v575 = vld [vmem:[%s552 + $0xa8] sm:$0xff]
        %v576 = vld [vmem:[%s552 + $0xb0] sm:$0xff]
        %v577 = vld [vmem:[%s552 + $0xb8] sm:$0xff]
        %v578 = vld [vmem:[%s552 + $0xc0] sm:$0xff]
        %v579 = vld [vmem:[%s552 + $0xc8] sm:$0xff]
        %v580 = vld [vmem:[%s552 + $0xd0] sm:$0xff]
        %v581 = vld [vmem:[%s552 + $0xd8] sm:$0xff]
        %v582 = vld [vmem:[%s552 + $0xe0] sm:$0xff]
        %v583 = vld [vmem:[%s552 + $0xe8] sm:$0xff]
        %v584 = vld [vmem:[%s552 + $0xf0] sm:$0xff]
        %v585 = vld [vmem:[%s552 + $0xf8] sm:$0xff]
        %v586 = vpack.c.bf16 %v555, %v554
        %v587 = vpack.c.bf16 %v557, %v556
        %v588 = vpack.c.bf16 %v559, %v558
        %v589 = vpack.c.bf16 %v561, %v560
        %v590 = vpack.c.bf16 %v563, %v562
        %v591 = vpack.c.bf16 %v565, %v564
        %v592 = vpack.c.bf16 %v567, %v566
        %v593 = vpack.c.bf16 %v569, %v568
        %v594 = vpack.c.bf16 %v571, %v570
        %v595 = vpack.c.bf16 %v573, %v572
        %v596 = vpack.c.bf16 %v575, %v574
        %v597 = vpack.c.bf16 %v577, %v576
        %v598 = vpack.c.bf16 %v579, %v578
        %v599 = vpack.c.bf16 %v581, %v580
        %v600 = vpack.c.bf16 %v583, %v582
        %v601 = vpack.c.bf16 %v585, %v584
        %v602 = vpack.c.bf16 %v554, %v554
        %v603 = vpack.c.bf16 %v555, %v555
        %v604 = vpack.c.bf16 %v556, %v556
        %v605 = vpack.c.bf16 %v557, %v557
        %v606 = vpack.c.bf16 %v558, %v558
        %v607 = vpack.c.bf16 %v559, %v559
        %v608 = vpack.c.bf16 %v560, %v560
        %v609 = vpack.c.bf16 %v561, %v561
        %v610 = vpack.c.bf16 %v562, %v562
        %v611 = vpack.c.bf16 %v563, %v563
        %v612 = vpack.c.bf16 %v564, %v564
        %v613 = vpack.c.bf16 %v565, %v565
        %v614 = vpack.c.bf16 %v566, %v566
        %v615 = vpack.c.bf16 %v567, %v567
        %v616 = vpack.c.bf16 %v568, %v568
        %v617 = vpack.c.bf16 %v569, %v569
        %v618 = vpack.c.bf16 %v570, %v570
        %v619 = vpack.c.bf16 %v571, %v571
        %v620 = vpack.c.bf16 %v572, %v572
        %v621 = vpack.c.bf16 %v573, %v573
        %v622 = vpack.c.bf16 %v574, %v574
        %v623 = vpack.c.bf16 %v575, %v575
        %v624 = vpack.c.bf16 %v576, %v576
        %v625 = vpack.c.bf16 %v577, %v577
        %v626 = vpack.c.bf16 %v578, %v578
        %v627 = vpack.c.bf16 %v579, %v579
        %v628 = vpack.c.bf16 %v580, %v580
        %v629 = vpack.c.bf16 %v581, %v581
        %v630 = vpack.c.bf16 %v582, %v582
        %v631 = vpack.c.bf16 %v583, %v583
        %v632 = vpack.c.bf16 %v584, %v584
        %v633 = vpack.c.bf16 %v585, %v585
        %v634 = vld [vmem:[#allocation2] sm:$0x1]
        %v635 = vld [vmem:[%s3] sm:$0xf]
        %v636 = vld [vmem:[%s3 + $0x4] sm:$0xf]
        %v637 = vld [vmem:[%s3 + $0x8] sm:$0xf]
        %v638 = vld [vmem:[%s3 + $0xc] sm:$0xf]
        %v639 = vld [vmem:[%s3 + $0x10] sm:$0xf]
        %v640 = vld [vmem:[%s3 + $0x14] sm:$0xf]
        %v641 = vld [vmem:[%s3 + $0x18] sm:$0xf]
        %v642 = vld [vmem:[%s3 + $0x1c] sm:$0xf]
        %v643 = vld [vmem:[%s4] sm:$0x1]
        %v645 = vperm.slane %v643, 0
        %v655 = vunpack.c.l.b16 %v635
        %v656 = vunpack.c.l.b16 %v636
        %v657 = vunpack.c.l.b16 %v637
        %v658 = vunpack.c.l.b16 %v638
        %v659 = vunpack.c.l.b16 %v639
        %v660 = vunpack.c.l.b16 %v640
        %v661 = vunpack.c.l.b16 %v641
        %v662 = vunpack.c.l.b16 %v642
        %v663 = vpack.c.b16 %v656, %v655
        %v664 = vpack.c.b16 %v658, %v657
        %v665 = vpack.c.b16 %v660, %v659
        %v666 = vpack.c.b16 %v662, %v661
        %vm671 = vcmask 523264
        %v673 = vsel %vm671, %v586, 0
        %v676 = vsel %vm671, %v587, 0
        %v679 = vsel %vm671, %v588, 0
        %v682 = vsel %vm671, %v589, 0
        %v685 = vsel %vm671, %v590, 0
        %v688 = vsel %vm671, %v591, 0
        %v691 = vsel %vm671, %v592, 0
        %v694 = vsel %vm671, %v593, 0
        %v697 = vsel %vm671, %v594, 0
        %v700 = vsel %vm671, %v595, 0
        %v703 = vsel %vm671, %v596, 0
        %v706 = vsel %vm671, %v597, 0
        %v709 = vsel %vm671, %v598, 0
        %v712 = vsel %vm671, %v599, 0
        %v715 = vsel %vm671, %v600, 0
        %v718 = vsel %vm671, %v601, 0
        %720 = vmatpush.bf16.msra.mxu0 0
        %721 = vmatpush.bf16.msra.mxu0 0
        %722 = vmatpush.bf16.msra.mxu0 0
        %723 = vmatpush.bf16.msra.mxu0 0
        %724 = vmatpush.bf16.msra.mxu0 %v666
        %725 = vmatpush.bf16.msra.mxu0 %v665
        %726 = vmatpush.bf16.msra.mxu0 %v664
        %727 = vmatpush.bf16.msra.mxu0 %v663
        %728 = vmatmul.bf16.gmra.mxu0 %v673
        %v729 = vpop.f32.mrf.mxu0
        %v730 = vadd.f32 %v645, %v729
        %v731 = vpop.f32.mrf.mxu0
        %v732 = vadd.f32 %v645, %v731
        %733 = vmatmul.bf16.gmra.mxu0 %v676
        %v734 = vpop.f32.mrf.mxu0
        %v735 = vadd.f32 %v645, %v734
        %v736 = vpop.f32.mrf.mxu0
        %v737 = vadd.f32 %v645, %v736
        %738 = vmatmul.bf16.gmra.mxu0 %v679
        %v739 = vpop.f32.mrf.mxu0
        %v740 = vadd.f32 %v645, %v739
        %v741 = vpop.f32.mrf.mxu0
        %v742 = vadd.f32 %v645, %v741
        %743 = vmatmul.bf16.gmra.mxu0 %v682
        %v744 = vpop.f32.mrf.mxu0
        %v745 = vadd.f32 %v645, %v744
        %v746 = vpop.f32.mrf.mxu0
        %v747 = vadd.f32 %v645, %v746
        %748 = vmatmul.bf16.gmra.mxu0 %v685
        %v749 = vpop.f32.mrf.mxu0
        %v750 = vadd.f32 %v645, %v749
        %v751 = vpop.f32.mrf.mxu0
        %v752 = vadd.f32 %v645, %v751
        %753 = vmatmul.bf16.gmra.mxu0 %v688
        %v754 = vpop.f32.mrf.mxu0
        %v755 = vadd.f32 %v645, %v754
        %v756 = vpop.f32.mrf.mxu0
        %v757 = vadd.f32 %v645, %v756
        %758 = vmatmul.bf16.gmra.mxu0 %v691
        %v759 = vpop.f32.mrf.mxu0
        %v760 = vadd.f32 %v645, %v759
        %v761 = vpop.f32.mrf.mxu0
        %v762 = vadd.f32 %v645, %v761
        %763 = vmatmul.bf16.gmra.mxu0 %v694
        %v764 = vpop.f32.mrf.mxu0
        %v765 = vadd.f32 %v645, %v764
        %v766 = vpop.f32.mrf.mxu0
        %v767 = vadd.f32 %v645, %v766
        %768 = vmatmul.bf16.gmra.mxu0 %v697
        %v769 = vpop.f32.mrf.mxu0
        %v770 = vadd.f32 %v645, %v769
        %v771 = vpop.f32.mrf.mxu0
        %v772 = vadd.f32 %v645, %v771
        %773 = vmatmul.bf16.gmra.mxu0 %v700
        %v774 = vpop.f32.mrf.mxu0
        %v775 = vadd.f32 %v645, %v774
        %v776 = vpop.f32.mrf.mxu0
        %v777 = vadd.f32 %v645, %v776
        %778 = vmatmul.bf16.gmra.mxu0 %v703
        %v779 = vpop.f32.mrf.mxu0
        %v780 = vadd.f32 %v645, %v779
        %v781 = vpop.f32.mrf.mxu0
        %v782 = vadd.f32 %v645, %v781
        %783 = vmatmul.bf16.gmra.mxu0 %v706
        %v784 = vpop.f32.mrf.mxu0
        %v785 = vadd.f32 %v645, %v784
        %v786 = vpop.f32.mrf.mxu0
        %v787 = vadd.f32 %v645, %v786
        %788 = vmatmul.bf16.gmra.mxu0 %v709
        %v789 = vpop.f32.mrf.mxu0
        %v790 = vadd.f32 %v645, %v789
        %v791 = vpop.f32.mrf.mxu0
        %v792 = vadd.f32 %v645, %v791
        %793 = vmatmul.bf16.gmra.mxu0 %v712
        %v794 = vpop.f32.mrf.mxu0
        %v795 = vadd.f32 %v645, %v794
        %v796 = vpop.f32.mrf.mxu0
        %v797 = vadd.f32 %v645, %v796
        %798 = vmatmul.bf16.gmra.mxu0 %v715
        %v799 = vpop.f32.mrf.mxu0
        %v800 = vadd.f32 %v645, %v799
        %v801 = vpop.f32.mrf.mxu0
        %v802 = vadd.f32 %v645, %v801
        %803 = vmatmul.bf16.gmra.mxu0 %v718
        %v804 = vpop.f32.mrf.mxu0
        %v805 = vadd.f32 %v645, %v804
        %v806 = vpop.f32.mrf.mxu0
        %v807 = vadd.f32 %v645, %v806
        %808 = vdwg.mxu0
        %v809 = vpack.c.bf16 %v730, %v730
        %v810 = vpack.c.bf16 %v732, %v732
        %v811 = vpack.c.bf16 %v735, %v735
        %v812 = vpack.c.bf16 %v737, %v737
        %v813 = vpack.c.bf16 %v740, %v740
        %v814 = vpack.c.bf16 %v742, %v742
        %v815 = vpack.c.bf16 %v745, %v745
        %v816 = vpack.c.bf16 %v747, %v747
        %v817 = vpack.c.bf16 %v750, %v750
        %v818 = vpack.c.bf16 %v752, %v752
        %v819 = vpack.c.bf16 %v755, %v755
        %v820 = vpack.c.bf16 %v757, %v757
        %v821 = vpack.c.bf16 %v760, %v760
        %v822 = vpack.c.bf16 %v762, %v762
        %v823 = vpack.c.bf16 %v765, %v765
        %v824 = vpack.c.bf16 %v767, %v767
        %v825 = vpack.c.bf16 %v770, %v770
        %v826 = vpack.c.bf16 %v772, %v772
        %v827 = vpack.c.bf16 %v775, %v775
        %v828 = vpack.c.bf16 %v777, %v777
        %v829 = vpack.c.bf16 %v780, %v780
        %v830 = vpack.c.bf16 %v782, %v782
        %v831 = vpack.c.bf16 %v785, %v785
        %v832 = vpack.c.bf16 %v787, %v787
        %v833 = vpack.c.bf16 %v790, %v790
        %v834 = vpack.c.bf16 %v792, %v792
        %v835 = vpack.c.bf16 %v795, %v795
        %v836 = vpack.c.bf16 %v797, %v797
        %v837 = vpack.c.bf16 %v800, %v800
        %v838 = vpack.c.bf16 %v802, %v802
        %v839 = vpack.c.bf16 %v805, %v805
        %v840 = vpack.c.bf16 %v807, %v807
        %v843 = vunpack.c.l.b16 %v809
        %v844 = vunpack.c.l.b16 %v810
        %v845 = vpack.c.b16 %v844, %v843
        %846 = vrot.lane.b32.xlu0 %v845, 80
        %v847 = vpop.permute.xlu0 %846
        %vm848 = vcmask 130048
        %v850 = vsel %vm848, %v847, 0
        %v853 = vsel %vm848, %v845, 0
        %855 = vmatpush.bf16.xpose.msra.mxu0 0
        %856 = vmatpush.bf16.xpose.msra.mxu0 0
        %857 = vmatpush.bf16.xpose.msra.mxu0 0
        %858 = vmatpush.bf16.xpose.msra.mxu0 0
        %859 = vmatpush.bf16.xpose.msra.mxu0 0
        %860 = vmatpush.bf16.xpose.msra.mxu0 0
        %861 = vmatpush.bf16.xpose.msra.mxu0 0
        %862 = vmatpush.bf16.xpose.msra.mxu0 %v853
        %863 = vmatmul.bf16.gmra.mxu0 %v850
        %v864 = vpop.f32.mrf.mxu0
        %v865 = vadd.f32 0.0, %v864
        %v866 = vpop.f32.mrf.mxu0
        %v867 = vadd.f32 0.0, %v866
        %868 = vdwg.mxu0
        %v871 = vunpack.c.l.b16 %v811
        %v872 = vunpack.c.l.b16 %v812
        %v873 = vpack.c.b16 %v872, %v871
        %874 = vrot.lane.b32.xlu0 %v873, 80
        %v875 = vpop.permute.xlu0 %874
        %v877 = vsel %vm848, %v875, 0
        %v880 = vsel %vm848, %v873, 0
        %882 = vmatpush.bf16.xpose.msra.mxu0 0
        %883 = vmatpush.bf16.xpose.msra.mxu0 0
        %884 = vmatpush.bf16.xpose.msra.mxu0 0
        %885 = vmatpush.bf16.xpose.msra.mxu0 0
        %886 = vmatpush.bf16.xpose.msra.mxu0 0
        %887 = vmatpush.bf16.xpose.msra.mxu0 0
        %888 = vmatpush.bf16.xpose.msra.mxu0 0
        %889 = vmatpush.bf16.xpose.msra.mxu0 %v880
        %890 = vmatmul.bf16.gmra.mxu0 %v877
        %v891 = vpop.f32.mrf.mxu0
        %v892 = vadd.f32 0.0, %v891
        %v893 = vpop.f32.mrf.mxu0
        %v894 = vadd.f32 0.0, %v893
        %895 = vdwg.mxu0
        %v898 = vunpack.c.l.b16 %v813
        %v899 = vunpack.c.l.b16 %v814
        %v900 = vpack.c.b16 %v899, %v898
        %901 = vrot.lane.b32.xlu0 %v900, 80
        %v902 = vpop.permute.xlu0 %901
        %v904 = vsel %vm848, %v902, 0
        %v907 = vsel %vm848, %v900, 0
        %909 = vmatpush.bf16.xpose.msra.mxu0 0
        %910 = vmatpush.bf16.xpose.msra.mxu0 0
        %911 = vmatpush.bf16.xpose.msra.mxu0 0
        %912 = vmatpush.bf16.xpose.msra.mxu0 0
        %913 = vmatpush.bf16.xpose.msra.mxu0 0
        %914 = vmatpush.bf16.xpose.msra.mxu0 0
        %915 = vmatpush.bf16.xpose.msra.mxu0 0
        %916 = vmatpush.bf16.xpose.msra.mxu0 %v907
        %917 = vmatmul.bf16.gmra.mxu0 %v904
        %v918 = vpop.f32.mrf.mxu0
        %v919 = vadd.f32 0.0, %v918
        %v920 = vpop.f32.mrf.mxu0
        %v921 = vadd.f32 0.0, %v920
        %922 = vdwg.mxu0
        %v925 = vunpack.c.l.b16 %v815
        %v926 = vunpack.c.l.b16 %v816
        %v927 = vpack.c.b16 %v926, %v925
        %928 = vrot.lane.b32.xlu0 %v927, 80
        %v929 = vpop.permute.xlu0 %928
        %v931 = vsel %vm848, %v929, 0
        %v934 = vsel %vm848, %v927, 0
        %936 = vmatpush.bf16.xpose.msra.mxu0 0
        %937 = vmatpush.bf16.xpose.msra.mxu0 0
        %938 = vmatpush.bf16.xpose.msra.mxu0 0
        %939 = vmatpush.bf16.xpose.msra.mxu0 0
        %940 = vmatpush.bf16.xpose.msra.mxu0 0
        %941 = vmatpush.bf16.xpose.msra.mxu0 0
        %942 = vmatpush.bf16.xpose.msra.mxu0 0
        %943 = vmatpush.bf16.xpose.msra.mxu0 %v934
        %944 = vmatmul.bf16.gmra.mxu0 %v931
        %v945 = vpop.f32.mrf.mxu0
        %v946 = vadd.f32 0.0, %v945
        %v947 = vpop.f32.mrf.mxu0
        %v948 = vadd.f32 0.0, %v947
        %949 = vdwg.mxu0
        %v952 = vunpack.c.l.b16 %v817
        %v953 = vunpack.c.l.b16 %v818
        %v954 = vpack.c.b16 %v953, %v952
        %955 = vrot.lane.b32.xlu0 %v954, 80
        %v956 = vpop.permute.xlu0 %955
        %v958 = vsel %vm848, %v956, 0
        %v961 = vsel %vm848, %v954, 0
        %963 = vmatpush.bf16.xpose.msra.mxu0 0
        %964 = vmatpush.bf16.xpose.msra.mxu0 0
        %965 = vmatpush.bf16.xpose.msra.mxu0 0
        %966 = vmatpush.bf16.xpose.msra.mxu0 0
        %967 = vmatpush.bf16.xpose.msra.mxu0 0
        %968 = vmatpush.bf16.xpose.msra.mxu0 0
        %969 = vmatpush.bf16.xpose.msra.mxu0 0
        %970 = vmatpush.bf16.xpose.msra.mxu0 %v961
        %971 = vmatmul.bf16.gmra.mxu0 %v958
        %v972 = vpop.f32.mrf.mxu0
        %v973 = vadd.f32 0.0, %v972
        %v974 = vpop.f32.mrf.mxu0
        %v975 = vadd.f32 0.0, %v974
        %976 = vdwg.mxu0
        %v979 = vunpack.c.l.b16 %v819
        %v980 = vunpack.c.l.b16 %v820
        %v981 = vpack.c.b16 %v980, %v979
        %982 = vrot.lane.b32.xlu0 %v981, 80
        %v983 = vpop.permute.xlu0 %982
        %v985 = vsel %vm848, %v983, 0
        %v988 = vsel %vm848, %v981, 0
        %990 = vmatpush.bf16.xpose.msra.mxu0 0
        %991 = vmatpush.bf16.xpose.msra.mxu0 0
        %992 = vmatpush.bf16.xpose.msra.mxu0 0
        %993 = vmatpush.bf16.xpose.msra.mxu0 0
        %994 = vmatpush.bf16.xpose.msra.mxu0 0
        %995 = vmatpush.bf16.xpose.msra.mxu0 0
        %996 = vmatpush.bf16.xpose.msra.mxu0 0
        %997 = vmatpush.bf16.xpose.msra.mxu0 %v988
        %998 = vmatmul.bf16.gmra.mxu0 %v985
        %v999 = vpop.f32.mrf.mxu0
        %v1000 = vadd.f32 0.0, %v999
        %v1001 = vpop.f32.mrf.mxu0
        %v1002 = vadd.f32 0.0, %v1001
        %1003 = vdwg.mxu0
        %v1006 = vunpack.c.l.b16 %v821
        %v1007 = vunpack.c.l.b16 %v822
        %v1008 = vpack.c.b16 %v1007, %v1006
        %1009 = vrot.lane.b32.xlu0 %v1008, 80
        %v1010 = vpop.permute.xlu0 %1009
        %v1012 = vsel %vm848, %v1010, 0
        %v1015 = vsel %vm848, %v1008, 0
        %1017 = vmatpush.bf16.xpose.msra.mxu0 0
        %1018 = vmatpush.bf16.xpose.msra.mxu0 0
        %1019 = vmatpush.bf16.xpose.msra.mxu0 0
        %1020 = vmatpush.bf16.xpose.msra.mxu0 0
        %1021 = vmatpush.bf16.xpose.msra.mxu0 0
        %1022 = vmatpush.bf16.xpose.msra.mxu0 0
        %1023 = vmatpush.bf16.xpose.msra.mxu0 0
        %1024 = vmatpush.bf16.xpose.msra.mxu0 %v1015
        %1025 = vmatmul.bf16.gmra.mxu0 %v1012
        %v1026 = vpop.f32.mrf.mxu0
        %v1027 = vadd.f32 0.0, %v1026
        %v1028 = vpop.f32.mrf.mxu0
        %v1029 = vadd.f32 0.0, %v1028
        %1030 = vdwg.mxu0
        %v1033 = vunpack.c.l.b16 %v823
        %v1034 = vunpack.c.l.b16 %v824
        %v1035 = vpack.c.b16 %v1034, %v1033
        %1036 = vrot.lane.b32.xlu0 %v1035, 80
        %v1037 = vpop.permute.xlu0 %1036
        %v1039 = vsel %vm848, %v1037, 0
        %v1042 = vsel %vm848, %v1035, 0
        %1044 = vmatpush.bf16.xpose.msra.mxu0 0
        %1045 = vmatpush.bf16.xpose.msra.mxu0 0
        %1046 = vmatpush.bf16.xpose.msra.mxu0 0
        %1047 = vmatpush.bf16.xpose.msra.mxu0 0
        %1048 = vmatpush.bf16.xpose.msra.mxu0 0
        %1049 = vmatpush.bf16.xpose.msra.mxu0 0
        %1050 = vmatpush.bf16.xpose.msra.mxu0 0
        %1051 = vmatpush.bf16.xpose.msra.mxu0 %v1042
        %1052 = vmatmul.bf16.gmra.mxu0 %v1039
        %v1053 = vpop.f32.mrf.mxu0
        %v1054 = vadd.f32 0.0, %v1053
        %v1055 = vpop.f32.mrf.mxu0
        %v1056 = vadd.f32 0.0, %v1055
        %1057 = vdwg.mxu0
        %v1060 = vunpack.c.l.b16 %v825
        %v1061 = vunpack.c.l.b16 %v826
        %v1062 = vpack.c.b16 %v1061, %v1060
        %1063 = vrot.lane.b32.xlu0 %v1062, 80
        %v1064 = vpop.permute.xlu0 %1063
        %v1066 = vsel %vm848, %v1064, 0
        %v1069 = vsel %vm848, %v1062, 0
        %1071 = vmatpush.bf16.xpose.msra.mxu0 0
        %1072 = vmatpush.bf16.xpose.msra.mxu0 0
        %1073 = vmatpush.bf16.xpose.msra.mxu0 0
        %1074 = vmatpush.bf16.xpose.msra.mxu0 0
        %1075 = vmatpush.bf16.xpose.msra.mxu0 0
        %1076 = vmatpush.bf16.xpose.msra.mxu0 0
        %1077 = vmatpush.bf16.xpose.msra.mxu0 0
        %1078 = vmatpush.bf16.xpose.msra.mxu0 %v1069
        %1079 = vmatmul.bf16.gmra.mxu0 %v1066
        %v1080 = vpop.f32.mrf.mxu0
        %v1081 = vadd.f32 0.0, %v1080
        %v1082 = vpop.f32.mrf.mxu0
        %v1083 = vadd.f32 0.0, %v1082
        %1084 = vdwg.mxu0
        %v1087 = vunpack.c.l.b16 %v827
        %v1088 = vunpack.c.l.b16 %v828
        %v1089 = vpack.c.b16 %v1088, %v1087
        %1090 = vrot.lane.b32.xlu0 %v1089, 80
        %v1091 = vpop.permute.xlu0 %1090
        %v1093 = vsel %vm848, %v1091, 0
        %v1096 = vsel %vm848, %v1089, 0
        %1098 = vmatpush.bf16.xpose.msra.mxu0 0
        %1099 = vmatpush.bf16.xpose.msra.mxu0 0
        %1100 = vmatpush.bf16.xpose.msra.mxu0 0
        %1101 = vmatpush.bf16.xpose.msra.mxu0 0
        %1102 = vmatpush.bf16.xpose.msra.mxu0 0
        %1103 = vmatpush.bf16.xpose.msra.mxu0 0
        %1104 = vmatpush.bf16.xpose.msra.mxu0 0
        %1105 = vmatpush.bf16.xpose.msra.mxu0 %v1096
        %1106 = vmatmul.bf16.gmra.mxu0 %v1093
        %v1107 = vpop.f32.mrf.mxu0
        %v1108 = vadd.f32 0.0, %v1107
        %v1109 = vpop.f32.mrf.mxu0
        %v1110 = vadd.f32 0.0, %v1109
        %1111 = vdwg.mxu0
        %v1114 = vunpack.c.l.b16 %v829
        %v1115 = vunpack.c.l.b16 %v830
        %v1116 = vpack.c.b16 %v1115, %v1114
        %1117 = vrot.lane.b32.xlu0 %v1116, 80
        %v1118 = vpop.permute.xlu0 %1117
        %v1120 = vsel %vm848, %v1118, 0
        %v1123 = vsel %vm848, %v1116, 0
        %1125 = vmatpush.bf16.xpose.msra.mxu0 0
        %1126 = vmatpush.bf16.xpose.msra.mxu0 0
        %1127 = vmatpush.bf16.xpose.msra.mxu0 0
        %1128 = vmatpush.bf16.xpose.msra.mxu0 0
        %1129 = vmatpush.bf16.xpose.msra.mxu0 0
        %1130 = vmatpush.bf16.xpose.msra.mxu0 0
        %1131 = vmatpush.bf16.xpose.msra.mxu0 0
        %1132 = vmatpush.bf16.xpose.msra.mxu0 %v1123
        %1133 = vmatmul.bf16.gmra.mxu0 %v1120
        %v1134 = vpop.f32.mrf.mxu0
        %v1135 = vadd.f32 0.0, %v1134
        %v1136 = vpop.f32.mrf.mxu0
        %v1137 = vadd.f32 0.0, %v1136
        %1138 = vdwg.mxu0
        %v1141 = vunpack.c.l.b16 %v831
        %v1142 = vunpack.c.l.b16 %v832
        %v1143 = vpack.c.b16 %v1142, %v1141
        %1144 = vrot.lane.b32.xlu0 %v1143, 80
        %v1145 = vpop.permute.xlu0 %1144
        %v1147 = vsel %vm848, %v1145, 0
        %v1150 = vsel %vm848, %v1143, 0
        %1152 = vmatpush.bf16.xpose.msra.mxu0 0
        %1153 = vmatpush.bf16.xpose.msra.mxu0 0
        %1154 = vmatpush.bf16.xpose.msra.mxu0 0
        %1155 = vmatpush.bf16.xpose.msra.mxu0 0
        %1156 = vmatpush.bf16.xpose.msra.mxu0 0
        %1157 = vmatpush.bf16.xpose.msra.mxu0 0
        %1158 = vmatpush.bf16.xpose.msra.mxu0 0
        %1159 = vmatpush.bf16.xpose.msra.mxu0 %v1150
        %1160 = vmatmul.bf16.gmra.mxu0 %v1147
        %v1161 = vpop.f32.mrf.mxu0
        %v1162 = vadd.f32 0.0, %v1161
        %v1163 = vpop.f32.mrf.mxu0
        %v1164 = vadd.f32 0.0, %v1163
        %1165 = vdwg.mxu0
        %v1168 = vunpack.c.l.b16 %v833
        %v1169 = vunpack.c.l.b16 %v834
        %v1170 = vpack.c.b16 %v1169, %v1168
        %1171 = vrot.lane.b32.xlu0 %v1170, 80
        %v1172 = vpop.permute.xlu0 %1171
        %v1174 = vsel %vm848, %v1172, 0
        %v1177 = vsel %vm848, %v1170, 0
        %1179 = vmatpush.bf16.xpose.msra.mxu0 0
        %1180 = vmatpush.bf16.xpose.msra.mxu0 0
        %1181 = vmatpush.bf16.xpose.msra.mxu0 0
        %1182 = vmatpush.bf16.xpose.msra.mxu0 0
        %1183 = vmatpush.bf16.xpose.msra.mxu0 0
        %1184 = vmatpush.bf16.xpose.msra.mxu0 0
        %1185 = vmatpush.bf16.xpose.msra.mxu0 0
        %1186 = vmatpush.bf16.xpose.msra.mxu0 %v1177
        %1187 = vmatmul.bf16.gmra.mxu0 %v1174
        %v1188 = vpop.f32.mrf.mxu0
        %v1189 = vadd.f32 0.0, %v1188
        %v1190 = vpop.f32.mrf.mxu0
        %v1191 = vadd.f32 0.0, %v1190
        %1192 = vdwg.mxu0
        %v1195 = vunpack.c.l.b16 %v835
        %v1196 = vunpack.c.l.b16 %v836
        %v1197 = vpack.c.b16 %v1196, %v1195
        %1198 = vrot.lane.b32.xlu0 %v1197, 80
        %v1199 = vpop.permute.xlu0 %1198
        %v1201 = vsel %vm848, %v1199, 0
        %v1204 = vsel %vm848, %v1197, 0
        %1206 = vmatpush.bf16.xpose.msra.mxu0 0
        %1207 = vmatpush.bf16.xpose.msra.mxu0 0
        %1208 = vmatpush.bf16.xpose.msra.mxu0 0
        %1209 = vmatpush.bf16.xpose.msra.mxu0 0
        %1210 = vmatpush.bf16.xpose.msra.mxu0 0
        %1211 = vmatpush.bf16.xpose.msra.mxu0 0
        %1212 = vmatpush.bf16.xpose.msra.mxu0 0
        %1213 = vmatpush.bf16.xpose.msra.mxu0 %v1204
        %1214 = vmatmul.bf16.gmra.mxu0 %v1201
        %v1215 = vpop.f32.mrf.mxu0
        %v1216 = vadd.f32 0.0, %v1215
        %v1217 = vpop.f32.mrf.mxu0
        %v1218 = vadd.f32 0.0, %v1217
        %1219 = vdwg.mxu0
        %v1222 = vunpack.c.l.b16 %v837
        %v1223 = vunpack.c.l.b16 %v838
        %v1224 = vpack.c.b16 %v1223, %v1222
        %1225 = vrot.lane.b32.xlu0 %v1224, 80
        %v1226 = vpop.permute.xlu0 %1225
        %v1228 = vsel %vm848, %v1226, 0
        %v1231 = vsel %vm848, %v1224, 0
        %1233 = vmatpush.bf16.xpose.msra.mxu0 0
        %1234 = vmatpush.bf16.xpose.msra.mxu0 0
        %1235 = vmatpush.bf16.xpose.msra.mxu0 0
        %1236 = vmatpush.bf16.xpose.msra.mxu0 0
        %1237 = vmatpush.bf16.xpose.msra.mxu0 0
        %1238 = vmatpush.bf16.xpose.msra.mxu0 0
        %1239 = vmatpush.bf16.xpose.msra.mxu0 0
        %1240 = vmatpush.bf16.xpose.msra.mxu0 %v1231
        %1241 = vmatmul.bf16.gmra.mxu0 %v1228
        %v1242 = vpop.f32.mrf.mxu0
        %v1243 = vadd.f32 0.0, %v1242
        %v1244 = vpop.f32.mrf.mxu0
        %v1245 = vadd.f32 0.0, %v1244
        %1246 = vdwg.mxu0
        %v1249 = vunpack.c.l.b16 %v839
        %v1250 = vunpack.c.l.b16 %v840
        %v1251 = vpack.c.b16 %v1250, %v1249
        %1252 = vrot.lane.b32.xlu0 %v1251, 80
        %v1253 = vpop.permute.xlu0 %1252
        %v1255 = vsel %vm848, %v1253, 0
        %v1258 = vsel %vm848, %v1251, 0
        %1260 = vmatpush.bf16.xpose.msra.mxu0 0
        %1261 = vmatpush.bf16.xpose.msra.mxu0 0
        %1262 = vmatpush.bf16.xpose.msra.mxu0 0
        %1263 = vmatpush.bf16.xpose.msra.mxu0 0
        %1264 = vmatpush.bf16.xpose.msra.mxu0 0
        %1265 = vmatpush.bf16.xpose.msra.mxu0 0
        %1266 = vmatpush.bf16.xpose.msra.mxu0 0
        %1267 = vmatpush.bf16.xpose.msra.mxu0 %v1258
        %1268 = vmatmul.bf16.gmra.mxu0 %v1255
        %v1269 = vpop.f32.mrf.mxu0
        %v1270 = vadd.f32 0.0, %v1269
        %v1271 = vpop.f32.mrf.mxu0
        %v1272 = vadd.f32 0.0, %v1271
        %1273 = vdwg.mxu0
        %v1274 = vsel %vm848, %v865, 0.0
        %v1275 = vsel %vm848, %v892, 0.0
        %v1276 = vadd.f32 %v1274, %v1275
        %v1277 = vsel %vm848, %v919, 0.0
        %v1278 = vadd.f32 %v1276, %v1277
        %v1279 = vsel %vm848, %v946, 0.0
        %v1280 = vadd.f32 %v1278, %v1279
        %v1281 = vsel %vm848, %v973, 0.0
        %v1282 = vadd.f32 %v1280, %v1281
        %v1283 = vsel %vm848, %v1000, 0.0
        %v1284 = vadd.f32 %v1282, %v1283
        %v1285 = vsel %vm848, %v1027, 0.0
        %v1286 = vadd.f32 %v1284, %v1285
        %v1287 = vsel %vm848, %v1054, 0.0
        %v1288 = vadd.f32 %v1286, %v1287
        %v1289 = vsel %vm848, %v1081, 0.0
        %v1290 = vadd.f32 %v1288, %v1289
        %v1291 = vsel %vm848, %v1108, 0.0
        %v1292 = vadd.f32 %v1290, %v1291
        %v1293 = vsel %vm848, %v1135, 0.0
        %v1294 = vadd.f32 %v1292, %v1293
        %v1295 = vsel %vm848, %v1162, 0.0
        %v1296 = vadd.f32 %v1294, %v1295
        %v1297 = vsel %vm848, %v1189, 0.0
        %v1298 = vadd.f32 %v1296, %v1297
        %v1299 = vsel %vm848, %v1216, 0.0
        %v1300 = vadd.f32 %v1298, %v1299
        %v1301 = vsel %vm848, %v1243, 0.0
        %v1302 = vadd.f32 %v1300, %v1301
        %v1303 = vsel %vm848, %v1270, 0.0
        %v1304 = vadd.f32 %v1302, %v1303
        %v1305 = vsel %vm848, %v867, 0.0
        %v1306 = vsel %vm848, %v894, 0.0
        %v1307 = vadd.f32 %v1305, %v1306
        %v1308 = vsel %vm848, %v921, 0.0
        %v1309 = vadd.f32 %v1307, %v1308
        %v1310 = vsel %vm848, %v948, 0.0
        %v1311 = vadd.f32 %v1309, %v1310
        %v1312 = vsel %vm848, %v975, 0.0
        %v1313 = vadd.f32 %v1311, %v1312
        %v1314 = vsel %vm848, %v1002, 0.0
        %v1315 = vadd.f32 %v1313, %v1314
        %v1316 = vsel %vm848, %v1029, 0.0
        %v1317 = vadd.f32 %v1315, %v1316
        %v1318 = vsel %vm848, %v1056, 0.0
        %v1319 = vadd.f32 %v1317, %v1318
        %v1320 = vsel %vm848, %v1083, 0.0
        %v1321 = vadd.f32 %v1319, %v1320
        %v1322 = vsel %vm848, %v1110, 0.0
        %v1323 = vadd.f32 %v1321, %v1322
        %v1324 = vsel %vm848, %v1137, 0.0
        %v1325 = vadd.f32 %v1323, %v1324
        %v1326 = vsel %vm848, %v1164, 0.0
        %v1327 = vadd.f32 %v1325, %v1326
        %v1328 = vsel %vm848, %v1191, 0.0
        %v1329 = vadd.f32 %v1327, %v1328
        %v1330 = vsel %vm848, %v1218, 0.0
        %v1331 = vadd.f32 %v1329, %v1330
        %v1332 = vsel %vm848, %v1245, 0.0
        %v1333 = vadd.f32 %v1331, %v1332
        %v1334 = vsel %vm848, %v1272, 0.0
        %v1335 = vadd.f32 %v1333, %v1334
        %1336 = vrot.lane.b32.xlu0 %v845, 64
        %v1337 = vpop.permute.xlu0 %1336
        %1338 = vrot.lane.b32.xlu0 %v845, 112
        %v1339 = vpop.permute.xlu0 %1338
        %v1341 = vsel %vm848, %v1337, 0
        %v1344 = vsel %vm848, %v1339, 0
        %1346 = vmatpush.bf16.xpose.msra.mxu0 0
        %1347 = vmatpush.bf16.xpose.msra.mxu0 0
        %1348 = vmatpush.bf16.xpose.msra.mxu0 0
        %1349 = vmatpush.bf16.xpose.msra.mxu0 0
        %1350 = vmatpush.bf16.xpose.msra.mxu0 0
        %1351 = vmatpush.bf16.xpose.msra.mxu0 0
        %1352 = vmatpush.bf16.xpose.msra.mxu0 0
        %1353 = vmatpush.bf16.xpose.msra.mxu0 %v1344
        %1354 = vmatmul.bf16.gmra.mxu0 %v1341
        %v1355 = vpop.f32.mrf.mxu0
        %v1356 = vadd.f32 0.0, %v1355
        %v1357 = vpop.f32.mrf.mxu0
        %v1358 = vadd.f32 0.0, %v1357
        %1359 = vdwg.mxu0
        %1360 = vrot.lane.b32.xlu0 %v873, 64
        %v1361 = vpop.permute.xlu0 %1360
        %1362 = vrot.lane.b32.xlu0 %v873, 112
        %v1363 = vpop.permute.xlu0 %1362
        %v1365 = vsel %vm848, %v1361, 0
        %v1368 = vsel %vm848, %v1363, 0
        %1370 = vmatpush.bf16.xpose.msra.mxu0 0
        %1371 = vmatpush.bf16.xpose.msra.mxu0 0
        %1372 = vmatpush.bf16.xpose.msra.mxu0 0
        %1373 = vmatpush.bf16.xpose.msra.mxu0 0
        %1374 = vmatpush.bf16.xpose.msra.mxu0 0
        %1375 = vmatpush.bf16.xpose.msra.mxu0 0
        %1376 = vmatpush.bf16.xpose.msra.mxu0 0
        %1377 = vmatpush.bf16.xpose.msra.mxu0 %v1368
        %1378 = vmatmul.bf16.gmra.mxu0 %v1365
        %v1379 = vpop.f32.mrf.mxu0
        %v1380 = vadd.f32 0.0, %v1379
        %v1381 = vpop.f32.mrf.mxu0
        %v1382 = vadd.f32 0.0, %v1381
        %1383 = vdwg.mxu0
        %1384 = vrot.lane.b32.xlu0 %v900, 64
        %v1385 = vpop.permute.xlu0 %1384
        %1386 = vrot.lane.b32.xlu0 %v900, 112
        %v1387 = vpop.permute.xlu0 %1386
        %v1389 = vsel %vm848, %v1385, 0
        %v1392 = vsel %vm848, %v1387, 0
        %1394 = vmatpush.bf16.xpose.msra.mxu0 0
        %1395 = vmatpush.bf16.xpose.msra.mxu0 0
        %1396 = vmatpush.bf16.xpose.msra.mxu0 0
        %1397 = vmatpush.bf16.xpose.msra.mxu0 0
        %1398 = vmatpush.bf16.xpose.msra.mxu0 0
        %1399 = vmatpush.bf16.xpose.msra.mxu0 0
        %1400 = vmatpush.bf16.xpose.msra.mxu0 0
        %1401 = vmatpush.bf16.xpose.msra.mxu0 %v1392
        %1402 = vmatmul.bf16.gmra.mxu0 %v1389
        %v1403 = vpop.f32.mrf.mxu0
        %v1404 = vadd.f32 0.0, %v1403
        %v1405 = vpop.f32.mrf.mxu0
        %v1406 = vadd.f32 0.0, %v1405
        %1407 = vdwg.mxu0
        %1408 = vrot.lane.b32.xlu0 %v927, 64
        %v1409 = vpop.permute.xlu0 %1408
        %1410 = vrot.lane.b32.xlu0 %v927, 112
        %v1411 = vpop.permute.xlu0 %1410
        %v1413 = vsel %vm848, %v1409, 0
        %v1416 = vsel %vm848, %v1411, 0
        %1418 = vmatpush.bf16.xpose.msra.mxu0 0
        %1419 = vmatpush.bf16.xpose.msra.mxu0 0
        %1420 = vmatpush.bf16.xpose.msra.mxu0 0
        %1421 = vmatpush.bf16.xpose.msra.mxu0 0
        %1422 = vmatpush.bf16.xpose.msra.mxu0 0
        %1423 = vmatpush.bf16.xpose.msra.mxu0 0
        %1424 = vmatpush.bf16.xpose.msra.mxu0 0
        %1425 = vmatpush.bf16.xpose.msra.mxu0 %v1416
        %1426 = vmatmul.bf16.gmra.mxu0 %v1413
        %v1427 = vpop.f32.mrf.mxu0
        %v1428 = vadd.f32 0.0, %v1427
        %v1429 = vpop.f32.mrf.mxu0
        %v1430 = vadd.f32 0.0, %v1429
        %1431 = vdwg.mxu0
        %1432 = vrot.lane.b32.xlu0 %v954, 64
        %v1433 = vpop.permute.xlu0 %1432
        %1434 = vrot.lane.b32.xlu0 %v954, 112
        %v1435 = vpop.permute.xlu0 %1434
        %v1437 = vsel %vm848, %v1433, 0
        %v1440 = vsel %vm848, %v1435, 0
        %1442 = vmatpush.bf16.xpose.msra.mxu0 0
        %1443 = vmatpush.bf16.xpose.msra.mxu0 0
        %1444 = vmatpush.bf16.xpose.msra.mxu0 0
        %1445 = vmatpush.bf16.xpose.msra.mxu0 0
        %1446 = vmatpush.bf16.xpose.msra.mxu0 0
        %1447 = vmatpush.bf16.xpose.msra.mxu0 0
        %1448 = vmatpush.bf16.xpose.msra.mxu0 0
        %1449 = vmatpush.bf16.xpose.msra.mxu0 %v1440
        %1450 = vmatmul.bf16.gmra.mxu0 %v1437
        %v1451 = vpop.f32.mrf.mxu0
        %v1452 = vadd.f32 0.0, %v1451
        %v1453 = vpop.f32.mrf.mxu0
        %v1454 = vadd.f32 0.0, %v1453
        %1455 = vdwg.mxu0
        %1456 = vrot.lane.b32.xlu0 %v981, 64
        %v1457 = vpop.permute.xlu0 %1456
        %1458 = vrot.lane.b32.xlu0 %v981, 112
        %v1459 = vpop.permute.xlu0 %1458
        %v1461 = vsel %vm848, %v1457, 0
        %v1464 = vsel %vm848, %v1459, 0
        %1466 = vmatpush.bf16.xpose.msra.mxu0 0
        %1467 = vmatpush.bf16.xpose.msra.mxu0 0
        %1468 = vmatpush.bf16.xpose.msra.mxu0 0
        %1469 = vmatpush.bf16.xpose.msra.mxu0 0
        %1470 = vmatpush.bf16.xpose.msra.mxu0 0
        %1471 = vmatpush.bf16.xpose.msra.mxu0 0
        %1472 = vmatpush.bf16.xpose.msra.mxu0 0
        %1473 = vmatpush.bf16.xpose.msra.mxu0 %v1464
        %1474 = vmatmul.bf16.gmra.mxu0 %v1461
        %v1475 = vpop.f32.mrf.mxu0
        %v1476 = vadd.f32 0.0, %v1475
        %v1477 = vpop.f32.mrf.mxu0
        %v1478 = vadd.f32 0.0, %v1477
        %1479 = vdwg.mxu0
        %1480 = vrot.lane.b32.xlu0 %v1008, 64
        %v1481 = vpop.permute.xlu0 %1480
        %1482 = vrot.lane.b32.xlu0 %v1008, 112
        %v1483 = vpop.permute.xlu0 %1482
        %v1485 = vsel %vm848, %v1481, 0
        %v1488 = vsel %vm848, %v1483, 0
        %1490 = vmatpush.bf16.xpose.msra.mxu0 0
        %1491 = vmatpush.bf16.xpose.msra.mxu0 0
        %1492 = vmatpush.bf16.xpose.msra.mxu0 0
        %1493 = vmatpush.bf16.xpose.msra.mxu0 0
        %1494 = vmatpush.bf16.xpose.msra.mxu0 0
        %1495 = vmatpush.bf16.xpose.msra.mxu0 0
        %1496 = vmatpush.bf16.xpose.msra.mxu0 0
        %1497 = vmatpush.bf16.xpose.msra.mxu0 %v1488
        %1498 = vmatmul.bf16.gmra.mxu0 %v1485
        %v1499 = vpop.f32.mrf.mxu0
        %v1500 = vadd.f32 0.0, %v1499
        %v1501 = vpop.f32.mrf.mxu0
        %v1502 = vadd.f32 0.0, %v1501
        %1503 = vdwg.mxu0
        %1504 = vrot.lane.b32.xlu0 %v1035, 64
        %v1505 = vpop.permute.xlu0 %1504
        %1506 = vrot.lane.b32.xlu0 %v1035, 112
        %v1507 = vpop.permute.xlu0 %1506
        %v1509 = vsel %vm848, %v1505, 0
        %v1512 = vsel %vm848, %v1507, 0
        %1514 = vmatpush.bf16.xpose.msra.mxu0 0
        %1515 = vmatpush.bf16.xpose.msra.mxu0 0
        %1516 = vmatpush.bf16.xpose.msra.mxu0 0
        %1517 = vmatpush.bf16.xpose.msra.mxu0 0
        %1518 = vmatpush.bf16.xpose.msra.mxu0 0
        %1519 = vmatpush.bf16.xpose.msra.mxu0 0
        %1520 = vmatpush.bf16.xpose.msra.mxu0 0
        %1521 = vmatpush.bf16.xpose.msra.mxu0 %v1512
        %1522 = vmatmul.bf16.gmra.mxu0 %v1509
        %v1523 = vpop.f32.mrf.mxu0
        %v1524 = vadd.f32 0.0, %v1523
        %v1525 = vpop.f32.mrf.mxu0
        %v1526 = vadd.f32 0.0, %v1525
        %1527 = vdwg.mxu0
        %1528 = vrot.lane.b32.xlu0 %v1062, 64
        %v1529 = vpop.permute.xlu0 %1528
        %1530 = vrot.lane.b32.xlu0 %v1062, 112
        %v1531 = vpop.permute.xlu0 %1530
        %v1533 = vsel %vm848, %v1529, 0
        %v1536 = vsel %vm848, %v1531, 0
        %1538 = vmatpush.bf16.xpose.msra.mxu0 0
        %1539 = vmatpush.bf16.xpose.msra.mxu0 0
        %1540 = vmatpush.bf16.xpose.msra.mxu0 0
        %1541 = vmatpush.bf16.xpose.msra.mxu0 0
        %1542 = vmatpush.bf16.xpose.msra.mxu0 0
        %1543 = vmatpush.bf16.xpose.msra.mxu0 0
        %1544 = vmatpush.bf16.xpose.msra.mxu0 0
        %1545 = vmatpush.bf16.xpose.msra.mxu0 %v1536
        %1546 = vmatmul.bf16.gmra.mxu0 %v1533
        %v1547 = vpop.f32.mrf.mxu0
        %v1548 = vadd.f32 0.0, %v1547
        %v1549 = vpop.f32.mrf.mxu0
        %v1550 = vadd.f32 0.0, %v1549
        %1551 = vdwg.mxu0
        %1552 = vrot.lane.b32.xlu0 %v1089, 64
        %v1553 = vpop.permute.xlu0 %1552
        %1554 = vrot.lane.b32.xlu0 %v1089, 112
        %v1555 = vpop.permute.xlu0 %1554
        %v1557 = vsel %vm848, %v1553, 0
        %v1560 = vsel %vm848, %v1555, 0
        %1562 = vmatpush.bf16.xpose.msra.mxu0 0
        %1563 = vmatpush.bf16.xpose.msra.mxu0 0
        %1564 = vmatpush.bf16.xpose.msra.mxu0 0
        %1565 = vmatpush.bf16.xpose.msra.mxu0 0
        %1566 = vmatpush.bf16.xpose.msra.mxu0 0
        %1567 = vmatpush.bf16.xpose.msra.mxu0 0
        %1568 = vmatpush.bf16.xpose.msra.mxu0 0
        %1569 = vmatpush.bf16.xpose.msra.mxu0 %v1560
        %1570 = vmatmul.bf16.gmra.mxu0 %v1557
        %v1571 = vpop.f32.mrf.mxu0
        %v1572 = vadd.f32 0.0, %v1571
        %v1573 = vpop.f32.mrf.mxu0
        %v1574 = vadd.f32 0.0, %v1573
        %1575 = vdwg.mxu0
        %1576 = vrot.lane.b32.xlu0 %v1116, 64
        %v1577 = vpop.permute.xlu0 %1576
        %1578 = vrot.lane.b32.xlu0 %v1116, 112
        %v1579 = vpop.permute.xlu0 %1578
        %v1581 = vsel %vm848, %v1577, 0
        %v1584 = vsel %vm848, %v1579, 0
        %1586 = vmatpush.bf16.xpose.msra.mxu0 0
        %1587 = vmatpush.bf16.xpose.msra.mxu0 0
        %1588 = vmatpush.bf16.xpose.msra.mxu0 0
        %1589 = vmatpush.bf16.xpose.msra.mxu0 0
        %1590 = vmatpush.bf16.xpose.msra.mxu0 0
        %1591 = vmatpush.bf16.xpose.msra.mxu0 0
        %1592 = vmatpush.bf16.xpose.msra.mxu0 0
        %1593 = vmatpush.bf16.xpose.msra.mxu0 %v1584
        %1594 = vmatmul.bf16.gmra.mxu0 %v1581
        %v1595 = vpop.f32.mrf.mxu0
        %v1596 = vadd.f32 0.0, %v1595
        %v1597 = vpop.f32.mrf.mxu0
        %v1598 = vadd.f32 0.0, %v1597
        %1599 = vdwg.mxu0
        %1600 = vrot.lane.b32.xlu0 %v1143, 64
        %v1601 = vpop.permute.xlu0 %1600
        %1602 = vrot.lane.b32.xlu0 %v1143, 112
        %v1603 = vpop.permute.xlu0 %1602
        %v1605 = vsel %vm848, %v1601, 0
        %v1608 = vsel %vm848, %v1603, 0
        %1610 = vmatpush.bf16.xpose.msra.mxu0 0
        %1611 = vmatpush.bf16.xpose.msra.mxu0 0
        %1612 = vmatpush.bf16.xpose.msra.mxu0 0
        %1613 = vmatpush.bf16.xpose.msra.mxu0 0
        %1614 = vmatpush.bf16.xpose.msra.mxu0 0
        %1615 = vmatpush.bf16.xpose.msra.mxu0 0
        %1616 = vmatpush.bf16.xpose.msra.mxu0 0
        %1617 = vmatpush.bf16.xpose.msra.mxu0 %v1608
        %1618 = vmatmul.bf16.gmra.mxu0 %v1605
        %v1619 = vpop.f32.mrf.mxu0
        %v1620 = vadd.f32 0.0, %v1619
        %v1621 = vpop.f32.mrf.mxu0
        %v1622 = vadd.f32 0.0, %v1621
        %1623 = vdwg.mxu0
        %1624 = vrot.lane.b32.xlu0 %v1170, 64
        %v1625 = vpop.permute.xlu0 %1624
        %1626 = vrot.lane.b32.xlu0 %v1170, 112
        %v1627 = vpop.permute.xlu0 %1626
        %v1629 = vsel %vm848, %v1625, 0
        %v1632 = vsel %vm848, %v1627, 0
        %1634 = vmatpush.bf16.xpose.msra.mxu0 0
        %1635 = vmatpush.bf16.xpose.msra.mxu0 0
        %1636 = vmatpush.bf16.xpose.msra.mxu0 0
        %1637 = vmatpush.bf16.xpose.msra.mxu0 0
        %1638 = vmatpush.bf16.xpose.msra.mxu0 0
        %1639 = vmatpush.bf16.xpose.msra.mxu0 0
        %1640 = vmatpush.bf16.xpose.msra.mxu0 0
        %1641 = vmatpush.bf16.xpose.msra.mxu0 %v1632
        %1642 = vmatmul.bf16.gmra.mxu0 %v1629
        %v1643 = vpop.f32.mrf.mxu0
        %v1644 = vadd.f32 0.0, %v1643
        %v1645 = vpop.f32.mrf.mxu0
        %v1646 = vadd.f32 0.0, %v1645
        %1647 = vdwg.mxu0
        %1648 = vrot.lane.b32.xlu0 %v1197, 64
        %v1649 = vpop.permute.xlu0 %1648
        %1650 = vrot.lane.b32.xlu0 %v1197, 112
        %v1651 = vpop.permute.xlu0 %1650
        %v1653 = vsel %vm848, %v1649, 0
        %v1656 = vsel %vm848, %v1651, 0
        %1658 = vmatpush.bf16.xpose.msra.mxu0 0
        %1659 = vmatpush.bf16.xpose.msra.mxu0 0
        %1660 = vmatpush.bf16.xpose.msra.mxu0 0
        %1661 = vmatpush.bf16.xpose.msra.mxu0 0
        %1662 = vmatpush.bf16.xpose.msra.mxu0 0
        %1663 = vmatpush.bf16.xpose.msra.mxu0 0
        %1664 = vmatpush.bf16.xpose.msra.mxu0 0
        %1665 = vmatpush.bf16.xpose.msra.mxu0 %v1656
        %1666 = vmatmul.bf16.gmra.mxu0 %v1653
        %v1667 = vpop.f32.mrf.mxu0
        %v1668 = vadd.f32 0.0, %v1667
        %v1669 = vpop.f32.mrf.mxu0
        %v1670 = vadd.f32 0.0, %v1669
        %1671 = vdwg.mxu0
        %1672 = vrot.lane.b32.xlu0 %v1224, 64
        %v1673 = vpop.permute.xlu0 %1672
        %1674 = vrot.lane.b32.xlu0 %v1224, 112
        %v1675 = vpop.permute.xlu0 %1674
        %v1677 = vsel %vm848, %v1673, 0
        %v1680 = vsel %vm848, %v1675, 0
        %1682 = vmatpush.bf16.xpose.msra.mxu0 0
        %1683 = vmatpush.bf16.xpose.msra.mxu0 0
        %1684 = vmatpush.bf16.xpose.msra.mxu0 0
        %1685 = vmatpush.bf16.xpose.msra.mxu0 0
        %1686 = vmatpush.bf16.xpose.msra.mxu0 0
        %1687 = vmatpush.bf16.xpose.msra.mxu0 0
        %1688 = vmatpush.bf16.xpose.msra.mxu0 0
        %1689 = vmatpush.bf16.xpose.msra.mxu0 %v1680
        %1690 = vmatmul.bf16.gmra.mxu0 %v1677
        %v1691 = vpop.f32.mrf.mxu0
        %v1692 = vadd.f32 0.0, %v1691
        %v1693 = vpop.f32.mrf.mxu0
        %v1694 = vadd.f32 0.0, %v1693
        %1695 = vdwg.mxu0
        %1696 = vrot.lane.b32.xlu0 %v1251, 64
        %v1697 = vpop.permute.xlu0 %1696
        %1698 = vrot.lane.b32.xlu0 %v1251, 112
        %v1699 = vpop.permute.xlu0 %1698
        %v1701 = vsel %vm848, %v1697, 0
        %v1704 = vsel %vm848, %v1699, 0
        %1706 = vmatpush.bf16.xpose.msra.mxu0 0
        %1707 = vmatpush.bf16.xpose.msra.mxu0 0
        %1708 = vmatpush.bf16.xpose.msra.mxu0 0
        %1709 = vmatpush.bf16.xpose.msra.mxu0 0
        %1710 = vmatpush.bf16.xpose.msra.mxu0 0
        %1711 = vmatpush.bf16.xpose.msra.mxu0 0
        %1712 = vmatpush.bf16.xpose.msra.mxu0 0
        %1713 = vmatpush.bf16.xpose.msra.mxu0 %v1704
        %1714 = vmatmul.bf16.gmra.mxu0 %v1701
        %v1715 = vpop.f32.mrf.mxu0
        %v1716 = vadd.f32 0.0, %v1715
        %v1717 = vpop.f32.mrf.mxu0
        %v1718 = vadd.f32 0.0, %v1717
        %1719 = vdwg.mxu0
        %v1720 = vsel %vm848, %v1356, 0.0
        %v1721 = vsel %vm848, %v1380, 0.0
        %v1722 = vadd.f32 %v1720, %v1721
        %v1723 = vsel %vm848, %v1404, 0.0
        %v1724 = vadd.f32 %v1722, %v1723
        %v1725 = vsel %vm848, %v1428, 0.0
        %v1726 = vadd.f32 %v1724, %v1725
        %v1727 = vsel %vm848, %v1452, 0.0
        %v1728 = vadd.f32 %v1726, %v1727
        %v1729 = vsel %vm848, %v1476, 0.0
        %v1730 = vadd.f32 %v1728, %v1729
        %v1731 = vsel %vm848, %v1500, 0.0
        %v1732 = vadd.f32 %v1730, %v1731
        %v1733 = vsel %vm848, %v1524, 0.0
        %v1734 = vadd.f32 %v1732, %v1733
        %v1735 = vsel %vm848, %v1548, 0.0
        %v1736 = vadd.f32 %v1734, %v1735
        %v1737 = vsel %vm848, %v1572, 0.0
        %v1738 = vadd.f32 %v1736, %v1737
        %v1739 = vsel %vm848, %v1596, 0.0
        %v1740 = vadd.f32 %v1738, %v1739
        %v1741 = vsel %vm848, %v1620, 0.0
        %v1742 = vadd.f32 %v1740, %v1741
        %v1743 = vsel %vm848, %v1644, 0.0
        %v1744 = vadd.f32 %v1742, %v1743
        %v1745 = vsel %vm848, %v1668, 0.0
        %v1746 = vadd.f32 %v1744, %v1745
        %v1747 = vsel %vm848, %v1692, 0.0
        %v1748 = vadd.f32 %v1746, %v1747
        %v1749 = vsel %vm848, %v1716, 0.0
        %v1750 = vadd.f32 %v1748, %v1749
        %v1751 = vsel %vm848, %v1358, 0.0
        %v1752 = vsel %vm848, %v1382, 0.0
        %v1753 = vadd.f32 %v1751, %v1752
        %v1754 = vsel %vm848, %v1406, 0.0
        %v1755 = vadd.f32 %v1753, %v1754
        %v1756 = vsel %vm848, %v1430, 0.0
        %v1757 = vadd.f32 %v1755, %v1756
        %v1758 = vsel %vm848, %v1454, 0.0
        %v1759 = vadd.f32 %v1757, %v1758
        %v1760 = vsel %vm848, %v1478, 0.0
        %v1761 = vadd.f32 %v1759, %v1760
        %v1762 = vsel %vm848, %v1502, 0.0
        %v1763 = vadd.f32 %v1761, %v1762
        %v1764 = vsel %vm848, %v1526, 0.0
        %v1765 = vadd.f32 %v1763, %v1764
        %v1766 = vsel %vm848, %v1550, 0.0
        %v1767 = vadd.f32 %v1765, %v1766
        %v1768 = vsel %vm848, %v1574, 0.0
        %v1769 = vadd.f32 %v1767, %v1768
        %v1770 = vsel %vm848, %v1598, 0.0
        %v1771 = vadd.f32 %v1769, %v1770
        %v1772 = vsel %vm848, %v1622, 0.0
        %v1773 = vadd.f32 %v1771, %v1772
        %v1774 = vsel %vm848, %v1646, 0.0
        %v1775 = vadd.f32 %v1773, %v1774
        %v1776 = vsel %vm848, %v1670, 0.0
        %v1777 = vadd.f32 %v1775, %v1776
        %v1778 = vsel %vm848, %v1694, 0.0
        %v1779 = vadd.f32 %v1777, %v1778
        %v1780 = vsel %vm848, %v1718, 0.0
        %v1781 = vadd.f32 %v1779, %v1780
        %1782 = vrot.lane.b32.xlu0 %v845, 48
        %v1783 = vpop.permute.xlu0 %1782
        %1784 = vrot.lane.b32.xlu0 %v845, 96
        %v1785 = vpop.permute.xlu0 %1784
        %v1787 = vsel %vm848, %v1783, 0
        %v1790 = vsel %vm848, %v1785, 0
        %1792 = vmatpush.bf16.xpose.msra.mxu0 0
        %1793 = vmatpush.bf16.xpose.msra.mxu0 0
        %1794 = vmatpush.bf16.xpose.msra.mxu0 0
        %1795 = vmatpush.bf16.xpose.msra.mxu0 0
        %1796 = vmatpush.bf16.xpose.msra.mxu0 0
        %1797 = vmatpush.bf16.xpose.msra.mxu0 0
        %1798 = vmatpush.bf16.xpose.msra.mxu0 0
        %1799 = vmatpush.bf16.xpose.msra.mxu0 %v1790
        %1800 = vmatmul.bf16.gmra.mxu0 %v1787
        %v1801 = vpop.f32.mrf.mxu0
        %v1802 = vadd.f32 0.0, %v1801
        %v1803 = vpop.f32.mrf.mxu0
        %v1804 = vadd.f32 0.0, %v1803
        %1805 = vdwg.mxu0
        %1806 = vrot.lane.b32.xlu0 %v873, 48
        %v1807 = vpop.permute.xlu0 %1806
        %1808 = vrot.lane.b32.xlu0 %v873, 96
        %v1809 = vpop.permute.xlu0 %1808
        %v1811 = vsel %vm848, %v1807, 0
        %v1814 = vsel %vm848, %v1809, 0
        %1816 = vmatpush.bf16.xpose.msra.mxu0 0
        %1817 = vmatpush.bf16.xpose.msra.mxu0 0
        %1818 = vmatpush.bf16.xpose.msra.mxu0 0
        %1819 = vmatpush.bf16.xpose.msra.mxu0 0
        %1820 = vmatpush.bf16.xpose.msra.mxu0 0
        %1821 = vmatpush.bf16.xpose.msra.mxu0 0
        %1822 = vmatpush.bf16.xpose.msra.mxu0 0
        %1823 = vmatpush.bf16.xpose.msra.mxu0 %v1814
        %1824 = vmatmul.bf16.gmra.mxu0 %v1811
        %v1825 = vpop.f32.mrf.mxu0
        %v1826 = vadd.f32 0.0, %v1825
        %v1827 = vpop.f32.mrf.mxu0
        %v1828 = vadd.f32 0.0, %v1827
        %1829 = vdwg.mxu0
        %1830 = vrot.lane.b32.xlu0 %v900, 48
        %v1831 = vpop.permute.xlu0 %1830
        %1832 = vrot.lane.b32.xlu0 %v900, 96
        %v1833 = vpop.permute.xlu0 %1832
        %v1835 = vsel %vm848, %v1831, 0
        %v1838 = vsel %vm848, %v1833, 0
        %1840 = vmatpush.bf16.xpose.msra.mxu0 0
        %1841 = vmatpush.bf16.xpose.msra.mxu0 0
        %1842 = vmatpush.bf16.xpose.msra.mxu0 0
        %1843 = vmatpush.bf16.xpose.msra.mxu0 0
        %1844 = vmatpush.bf16.xpose.msra.mxu0 0
        %1845 = vmatpush.bf16.xpose.msra.mxu0 0
        %1846 = vmatpush.bf16.xpose.msra.mxu0 0
        %1847 = vmatpush.bf16.xpose.msra.mxu0 %v1838
        %1848 = vmatmul.bf16.gmra.mxu0 %v1835
        %v1849 = vpop.f32.mrf.mxu0
        %v1850 = vadd.f32 0.0, %v1849
        %v1851 = vpop.f32.mrf.mxu0
        %v1852 = vadd.f32 0.0, %v1851
        %1853 = vdwg.mxu0
        %1854 = vrot.lane.b32.xlu0 %v927, 48
        %v1855 = vpop.permute.xlu0 %1854
        %1856 = vrot.lane.b32.xlu0 %v927, 96
        %v1857 = vpop.permute.xlu0 %1856
        %v1859 = vsel %vm848, %v1855, 0
        %v1862 = vsel %vm848, %v1857, 0
        %1864 = vmatpush.bf16.xpose.msra.mxu0 0
        %1865 = vmatpush.bf16.xpose.msra.mxu0 0
        %1866 = vmatpush.bf16.xpose.msra.mxu0 0
        %1867 = vmatpush.bf16.xpose.msra.mxu0 0
        %1868 = vmatpush.bf16.xpose.msra.mxu0 0
        %1869 = vmatpush.bf16.xpose.msra.mxu0 0
        %1870 = vmatpush.bf16.xpose.msra.mxu0 0
        %1871 = vmatpush.bf16.xpose.msra.mxu0 %v1862
        %1872 = vmatmul.bf16.gmra.mxu0 %v1859
        %v1873 = vpop.f32.mrf.mxu0
        %v1874 = vadd.f32 0.0, %v1873
        %v1875 = vpop.f32.mrf.mxu0
        %v1876 = vadd.f32 0.0, %v1875
        %1877 = vdwg.mxu0
        %1878 = vrot.lane.b32.xlu0 %v954, 48
        %v1879 = vpop.permute.xlu0 %1878
        %1880 = vrot.lane.b32.xlu0 %v954, 96
        %v1881 = vpop.permute.xlu0 %1880
        %v1883 = vsel %vm848, %v1879, 0
        %v1886 = vsel %vm848, %v1881, 0
        %1888 = vmatpush.bf16.xpose.msra.mxu0 0
        %1889 = vmatpush.bf16.xpose.msra.mxu0 0
        %1890 = vmatpush.bf16.xpose.msra.mxu0 0
        %1891 = vmatpush.bf16.xpose.msra.mxu0 0
        %1892 = vmatpush.bf16.xpose.msra.mxu0 0
        %1893 = vmatpush.bf16.xpose.msra.mxu0 0
        %1894 = vmatpush.bf16.xpose.msra.mxu0 0
        %1895 = vmatpush.bf16.xpose.msra.mxu0 %v1886
        %1896 = vmatmul.bf16.gmra.mxu0 %v1883
        %v1897 = vpop.f32.mrf.mxu0
        %v1898 = vadd.f32 0.0, %v1897
        %v1899 = vpop.f32.mrf.mxu0
        %v1900 = vadd.f32 0.0, %v1899
        %1901 = vdwg.mxu0
        %1902 = vrot.lane.b32.xlu0 %v981, 48
        %v1903 = vpop.permute.xlu0 %1902
        %1904 = vrot.lane.b32.xlu0 %v981, 96
        %v1905 = vpop.permute.xlu0 %1904
        %v1907 = vsel %vm848, %v1903, 0
        %v1910 = vsel %vm848, %v1905, 0
        %1912 = vmatpush.bf16.xpose.msra.mxu0 0
        %1913 = vmatpush.bf16.xpose.msra.mxu0 0
        %1914 = vmatpush.bf16.xpose.msra.mxu0 0
        %1915 = vmatpush.bf16.xpose.msra.mxu0 0
        %1916 = vmatpush.bf16.xpose.msra.mxu0 0
        %1917 = vmatpush.bf16.xpose.msra.mxu0 0
        %1918 = vmatpush.bf16.xpose.msra.mxu0 0
        %1919 = vmatpush.bf16.xpose.msra.mxu0 %v1910
        %1920 = vmatmul.bf16.gmra.mxu0 %v1907
        %v1921 = vpop.f32.mrf.mxu0
        %v1922 = vadd.f32 0.0, %v1921
        %v1923 = vpop.f32.mrf.mxu0
        %v1924 = vadd.f32 0.0, %v1923
        %1925 = vdwg.mxu0
        %1926 = vrot.lane.b32.xlu0 %v1008, 48
        %v1927 = vpop.permute.xlu0 %1926
        %1928 = vrot.lane.b32.xlu0 %v1008, 96
        %v1929 = vpop.permute.xlu0 %1928
        %v1931 = vsel %vm848, %v1927, 0
        %v1934 = vsel %vm848, %v1929, 0
        %1936 = vmatpush.bf16.xpose.msra.mxu0 0
        %1937 = vmatpush.bf16.xpose.msra.mxu0 0
        %1938 = vmatpush.bf16.xpose.msra.mxu0 0
        %1939 = vmatpush.bf16.xpose.msra.mxu0 0
        %1940 = vmatpush.bf16.xpose.msra.mxu0 0
        %1941 = vmatpush.bf16.xpose.msra.mxu0 0
        %1942 = vmatpush.bf16.xpose.msra.mxu0 0
        %1943 = vmatpush.bf16.xpose.msra.mxu0 %v1934
        %1944 = vmatmul.bf16.gmra.mxu0 %v1931
        %v1945 = vpop.f32.mrf.mxu0
        %v1946 = vadd.f32 0.0, %v1945
        %v1947 = vpop.f32.mrf.mxu0
        %v1948 = vadd.f32 0.0, %v1947
        %1949 = vdwg.mxu0
        %1950 = vrot.lane.b32.xlu0 %v1035, 48
        %v1951 = vpop.permute.xlu0 %1950
        %1952 = vrot.lane.b32.xlu0 %v1035, 96
        %v1953 = vpop.permute.xlu0 %1952
        %v1955 = vsel %vm848, %v1951, 0
        %v1958 = vsel %vm848, %v1953, 0
        %1960 = vmatpush.bf16.xpose.msra.mxu0 0
        %1961 = vmatpush.bf16.xpose.msra.mxu0 0
        %1962 = vmatpush.bf16.xpose.msra.mxu0 0
        %1963 = vmatpush.bf16.xpose.msra.mxu0 0
        %1964 = vmatpush.bf16.xpose.msra.mxu0 0
        %1965 = vmatpush.bf16.xpose.msra.mxu0 0
        %1966 = vmatpush.bf16.xpose.msra.mxu0 0
        %1967 = vmatpush.bf16.xpose.msra.mxu0 %v1958
        %1968 = vmatmul.bf16.gmra.mxu0 %v1955
        %v1969 = vpop.f32.mrf.mxu0
        %v1970 = vadd.f32 0.0, %v1969
        %v1971 = vpop.f32.mrf.mxu0
        %v1972 = vadd.f32 0.0, %v1971
        %1973 = vdwg.mxu0
        %1974 = vrot.lane.b32.xlu0 %v1062, 48
        %v1975 = vpop.permute.xlu0 %1974
        %1976 = vrot.lane.b32.xlu0 %v1062, 96
        %v1977 = vpop.permute.xlu0 %1976
        %v1979 = vsel %vm848, %v1975, 0
        %v1982 = vsel %vm848, %v1977, 0
        %1984 = vmatpush.bf16.xpose.msra.mxu0 0
        %1985 = vmatpush.bf16.xpose.msra.mxu0 0
        %1986 = vmatpush.bf16.xpose.msra.mxu0 0
        %1987 = vmatpush.bf16.xpose.msra.mxu0 0
        %1988 = vmatpush.bf16.xpose.msra.mxu0 0
        %1989 = vmatpush.bf16.xpose.msra.mxu0 0
        %1990 = vmatpush.bf16.xpose.msra.mxu0 0
        %1991 = vmatpush.bf16.xpose.msra.mxu0 %v1982
        %1992 = vmatmul.bf16.gmra.mxu0 %v1979
        %v1993 = vpop.f32.mrf.mxu0
        %v1994 = vadd.f32 0.0, %v1993
        %v1995 = vpop.f32.mrf.mxu0
        %v1996 = vadd.f32 0.0, %v1995
        %1997 = vdwg.mxu0
        %1998 = vrot.lane.b32.xlu0 %v1089, 48
        %v1999 = vpop.permute.xlu0 %1998
        %2000 = vrot.lane.b32.xlu0 %v1089, 96
        %v2001 = vpop.permute.xlu0 %2000
        %v2003 = vsel %vm848, %v1999, 0
        %v2006 = vsel %vm848, %v2001, 0
        %2008 = vmatpush.bf16.xpose.msra.mxu0 0
        %2009 = vmatpush.bf16.xpose.msra.mxu0 0
        %2010 = vmatpush.bf16.xpose.msra.mxu0 0
        %2011 = vmatpush.bf16.xpose.msra.mxu0 0
        %2012 = vmatpush.bf16.xpose.msra.mxu0 0
        %2013 = vmatpush.bf16.xpose.msra.mxu0 0
        %2014 = vmatpush.bf16.xpose.msra.mxu0 0
        %2015 = vmatpush.bf16.xpose.msra.mxu0 %v2006
        %2016 = vmatmul.bf16.gmra.mxu0 %v2003
        %v2017 = vpop.f32.mrf.mxu0
        %v2018 = vadd.f32 0.0, %v2017
        %v2019 = vpop.f32.mrf.mxu0
        %v2020 = vadd.f32 0.0, %v2019
        %2021 = vdwg.mxu0
        %2022 = vrot.lane.b32.xlu0 %v1116, 48
        %v2023 = vpop.permute.xlu0 %2022
        %2024 = vrot.lane.b32.xlu0 %v1116, 96
        %v2025 = vpop.permute.xlu0 %2024
        %v2027 = vsel %vm848, %v2023, 0
        %v2030 = vsel %vm848, %v2025, 0
        %2032 = vmatpush.bf16.xpose.msra.mxu0 0
        %2033 = vmatpush.bf16.xpose.msra.mxu0 0
        %2034 = vmatpush.bf16.xpose.msra.mxu0 0
        %2035 = vmatpush.bf16.xpose.msra.mxu0 0
        %2036 = vmatpush.bf16.xpose.msra.mxu0 0
        %2037 = vmatpush.bf16.xpose.msra.mxu0 0
        %2038 = vmatpush.bf16.xpose.msra.mxu0 0
        %2039 = vmatpush.bf16.xpose.msra.mxu0 %v2030
        %2040 = vmatmul.bf16.gmra.mxu0 %v2027
        %v2041 = vpop.f32.mrf.mxu0
        %v2042 = vadd.f32 0.0, %v2041
        %v2043 = vpop.f32.mrf.mxu0
        %v2044 = vadd.f32 0.0, %v2043
        %2045 = vdwg.mxu0
        %2046 = vrot.lane.b32.xlu0 %v1143, 48
        %v2047 = vpop.permute.xlu0 %2046
        %2048 = vrot.lane.b32.xlu0 %v1143, 96
        %v2049 = vpop.permute.xlu0 %2048
        %v2051 = vsel %vm848, %v2047, 0
        %v2054 = vsel %vm848, %v2049, 0
        %2056 = vmatpush.bf16.xpose.msra.mxu0 0
        %2057 = vmatpush.bf16.xpose.msra.mxu0 0
        %2058 = vmatpush.bf16.xpose.msra.mxu0 0
        %2059 = vmatpush.bf16.xpose.msra.mxu0 0
        %2060 = vmatpush.bf16.xpose.msra.mxu0 0
        %2061 = vmatpush.bf16.xpose.msra.mxu0 0
        %2062 = vmatpush.bf16.xpose.msra.mxu0 0
        %2063 = vmatpush.bf16.xpose.msra.mxu0 %v2054
        %2064 = vmatmul.bf16.gmra.mxu0 %v2051
        %v2065 = vpop.f32.mrf.mxu0
        %v2066 = vadd.f32 0.0, %v2065
        %v2067 = vpop.f32.mrf.mxu0
        %v2068 = vadd.f32 0.0, %v2067
        %2069 = vdwg.mxu0
        %2070 = vrot.lane.b32.xlu0 %v1170, 48
        %v2071 = vpop.permute.xlu0 %2070
        %2072 = vrot.lane.b32.xlu0 %v1170, 96
        %v2073 = vpop.permute.xlu0 %2072
        %v2075 = vsel %vm848, %v2071, 0
        %v2078 = vsel %vm848, %v2073, 0
        %2080 = vmatpush.bf16.xpose.msra.mxu0 0
        %2081 = vmatpush.bf16.xpose.msra.mxu0 0
        %2082 = vmatpush.bf16.xpose.msra.mxu0 0
        %2083 = vmatpush.bf16.xpose.msra.mxu0 0
        %2084 = vmatpush.bf16.xpose.msra.mxu0 0
        %2085 = vmatpush.bf16.xpose.msra.mxu0 0
        %2086 = vmatpush.bf16.xpose.msra.mxu0 0
        %2087 = vmatpush.bf16.xpose.msra.mxu0 %v2078
        %2088 = vmatmul.bf16.gmra.mxu0 %v2075
        %v2089 = vpop.f32.mrf.mxu0
        %v2090 = vadd.f32 0.0, %v2089
        %v2091 = vpop.f32.mrf.mxu0
        %v2092 = vadd.f32 0.0, %v2091
        %2093 = vdwg.mxu0
        %2094 = vrot.lane.b32.xlu0 %v1197, 48
        %v2095 = vpop.permute.xlu0 %2094
        %2096 = vrot.lane.b32.xlu0 %v1197, 96
        %v2097 = vpop.permute.xlu0 %2096
        %v2099 = vsel %vm848, %v2095, 0
        %v2102 = vsel %vm848, %v2097, 0
        %2104 = vmatpush.bf16.xpose.msra.mxu0 0
        %2105 = vmatpush.bf16.xpose.msra.mxu0 0
        %2106 = vmatpush.bf16.xpose.msra.mxu0 0
        %2107 = vmatpush.bf16.xpose.msra.mxu0 0
        %2108 = vmatpush.bf16.xpose.msra.mxu0 0
        %2109 = vmatpush.bf16.xpose.msra.mxu0 0
        %2110 = vmatpush.bf16.xpose.msra.mxu0 0
        %2111 = vmatpush.bf16.xpose.msra.mxu0 %v2102
        %2112 = vmatmul.bf16.gmra.mxu0 %v2099
        %v2113 = vpop.f32.mrf.mxu0
        %v2114 = vadd.f32 0.0, %v2113
        %v2115 = vpop.f32.mrf.mxu0
        %v2116 = vadd.f32 0.0, %v2115
        %2117 = vdwg.mxu0
        %2118 = vrot.lane.b32.xlu0 %v1224, 48
        %v2119 = vpop.permute.xlu0 %2118
        %2120 = vrot.lane.b32.xlu0 %v1224, 96
        %v2121 = vpop.permute.xlu0 %2120
        %v2123 = vsel %vm848, %v2119, 0
        %v2126 = vsel %vm848, %v2121, 0
        %2128 = vmatpush.bf16.xpose.msra.mxu0 0
        %2129 = vmatpush.bf16.xpose.msra.mxu0 0
        %2130 = vmatpush.bf16.xpose.msra.mxu0 0
        %2131 = vmatpush.bf16.xpose.msra.mxu0 0
        %2132 = vmatpush.bf16.xpose.msra.mxu0 0
        %2133 = vmatpush.bf16.xpose.msra.mxu0 0
        %2134 = vmatpush.bf16.xpose.msra.mxu0 0
        %2135 = vmatpush.bf16.xpose.msra.mxu0 %v2126
        %2136 = vmatmul.bf16.gmra.mxu0 %v2123
        %v2137 = vpop.f32.mrf.mxu0
        %v2138 = vadd.f32 0.0, %v2137
        %v2139 = vpop.f32.mrf.mxu0
        %v2140 = vadd.f32 0.0, %v2139
        %2141 = vdwg.mxu0
        %2142 = vrot.lane.b32.xlu0 %v1251, 48
        %v2143 = vpop.permute.xlu0 %2142
        %2144 = vrot.lane.b32.xlu0 %v1251, 96
        %v2145 = vpop.permute.xlu0 %2144
        %v2147 = vsel %vm848, %v2143, 0
        %v2150 = vsel %vm848, %v2145, 0
        %2152 = vmatpush.bf16.xpose.msra.mxu0 0
        %2153 = vmatpush.bf16.xpose.msra.mxu0 0
        %2154 = vmatpush.bf16.xpose.msra.mxu0 0
        %2155 = vmatpush.bf16.xpose.msra.mxu0 0
        %2156 = vmatpush.bf16.xpose.msra.mxu0 0
        %2157 = vmatpush.bf16.xpose.msra.mxu0 0
        %2158 = vmatpush.bf16.xpose.msra.mxu0 0
        %2159 = vmatpush.bf16.xpose.msra.mxu0 %v2150
        %2160 = vmatmul.bf16.gmra.mxu0 %v2147
        %v2161 = vpop.f32.mrf.mxu0
        %v2162 = vadd.f32 0.0, %v2161
        %v2163 = vpop.f32.mrf.mxu0
        %v2164 = vadd.f32 0.0, %v2163
        %2165 = vdwg.mxu0
        %v2166 = vsel %vm848, %v1802, 0.0
        %v2167 = vsel %vm848, %v1826, 0.0
        %v2168 = vadd.f32 %v2166, %v2167
        %v2169 = vsel %vm848, %v1850, 0.0
        %v2170 = vadd.f32 %v2168, %v2169
        %v2171 = vsel %vm848, %v1874, 0.0
        %v2172 = vadd.f32 %v2170, %v2171
        %v2173 = vsel %vm848, %v1898, 0.0
        %v2174 = vadd.f32 %v2172, %v2173
        %v2175 = vsel %vm848, %v1922, 0.0
        %v2176 = vadd.f32 %v2174, %v2175
        %v2177 = vsel %vm848, %v1946, 0.0
        %v2178 = vadd.f32 %v2176, %v2177
        %v2179 = vsel %vm848, %v1970, 0.0
        %v2180 = vadd.f32 %v2178, %v2179
        %v2181 = vsel %vm848, %v1994, 0.0
        %v2182 = vadd.f32 %v2180, %v2181
        %v2183 = vsel %vm848, %v2018, 0.0
        %v2184 = vadd.f32 %v2182, %v2183
        %v2185 = vsel %vm848, %v2042, 0.0
        %v2186 = vadd.f32 %v2184, %v2185
        %v2187 = vsel %vm848, %v2066, 0.0
        %v2188 = vadd.f32 %v2186, %v2187
        %v2189 = vsel %vm848, %v2090, 0.0
        %v2190 = vadd.f32 %v2188, %v2189
        %v2191 = vsel %vm848, %v2114, 0.0
        %v2192 = vadd.f32 %v2190, %v2191
        %v2193 = vsel %vm848, %v2138, 0.0
        %v2194 = vadd.f32 %v2192, %v2193
        %v2195 = vsel %vm848, %v2162, 0.0
        %v2196 = vadd.f32 %v2194, %v2195
        %v2197 = vsel %vm848, %v1804, 0.0
        %v2198 = vsel %vm848, %v1828, 0.0
        %v2199 = vadd.f32 %v2197, %v2198
        %v2200 = vsel %vm848, %v1852, 0.0
        %v2201 = vadd.f32 %v2199, %v2200
        %v2202 = vsel %vm848, %v1876, 0.0
        %v2203 = vadd.f32 %v2201, %v2202
        %v2204 = vsel %vm848, %v1900, 0.0
        %v2205 = vadd.f32 %v2203, %v2204
        %v2206 = vsel %vm848, %v1924, 0.0
        %v2207 = vadd.f32 %v2205, %v2206
        %v2208 = vsel %vm848, %v1948, 0.0
        %v2209 = vadd.f32 %v2207, %v2208
        %v2210 = vsel %vm848, %v1972, 0.0
        %v2211 = vadd.f32 %v2209, %v2210
        %v2212 = vsel %vm848, %v1996, 0.0
        %v2213 = vadd.f32 %v2211, %v2212
        %v2214 = vsel %vm848, %v2020, 0.0
        %v2215 = vadd.f32 %v2213, %v2214
        %v2216 = vsel %vm848, %v2044, 0.0
        %v2217 = vadd.f32 %v2215, %v2216
        %v2218 = vsel %vm848, %v2068, 0.0
        %v2219 = vadd.f32 %v2217, %v2218
        %v2220 = vsel %vm848, %v2092, 0.0
        %v2221 = vadd.f32 %v2219, %v2220
        %v2222 = vsel %vm848, %v2116, 0.0
        %v2223 = vadd.f32 %v2221, %v2222
        %v2224 = vsel %vm848, %v2140, 0.0
        %v2225 = vadd.f32 %v2223, %v2224
        %v2226 = vsel %vm848, %v2164, 0.0
        %v2227 = vadd.f32 %v2225, %v2226
        %v2228 = vld [vmem:[%s2] sm:$0xff]
        %v2229 = vld [vmem:[%s2 + $0x8] sm:$0xff]
        %v2230 = vld [vmem:[%s2 + $0x10] sm:$0xff]
        %v2231 = vld [vmem:[%s2 + $0x18] sm:$0xff]
        %v2232 = vld [vmem:[%s2 + $0x20] sm:$0xff]
        %v2233 = vld [vmem:[%s2 + $0x28] sm:$0xff]
        %v2234 = vmul.f32 %v1304, 0.00390625
        %v2235 = vmul.f32 %v1335, 0.00390625
        %v2236 = vmul.f32 %v1750, 0.00390625
        %v2237 = vmul.f32 %v1781, 0.00390625
        %v2238 = vmul.f32 %v2196, 0.00390625
        %v2239 = vmul.f32 %v2227, 0.00390625
        %v2240 = vtanh.pop %v2234
        %v2241 = vtanh.pop %v2235
        %v2242 = vtanh.pop %v2236
        %v2243 = vtanh.pop %v2237
        %v2244 = vtanh.pop %v2238
        %v2245 = vtanh.pop %v2239
        %v2247 = vperm.slane %v634, 0
        %2248 = vset.pattern.permute.xlu0 0
        %2249 = vperm.xlu0 %2248, %v2247
        %v2250 = vpop.permute.xlu0 %2249
        %v2252 = vmul.f32 %v2250, %v2240
        %v2253 = vmul.f32 %v2250, %v2241
        %v2254 = vmul.f32 %v2250, %v2242
        %v2255 = vmul.f32 %v2250, %v2243
        %v2256 = vmul.f32 %v2250, %v2244
        %v2257 = vmul.f32 %v2250, %v2245
        %v2258 = vadd.f32 %v2228, %v2252
        %v2259 = vadd.f32 %v2229, %v2253
        %v2260 = vadd.f32 %v2230, %v2254
        %v2261 = vadd.f32 %v2231, %v2255
        %v2262 = vadd.f32 %v2232, %v2256
        %v2263 = vadd.f32 %v2233, %v2257
        %v2264 = vpack.c.bf16 %v2258, %v2258
        %v2265 = vpack.c.bf16 %v2259, %v2259
        %v2266 = vpack.c.bf16 %v2260, %v2260
        %v2267 = vpack.c.bf16 %v2261, %v2261
        %v2268 = vpack.c.bf16 %v2262, %v2262
        %v2269 = vpack.c.bf16 %v2263, %v2263
        %v2276 = vunpack.c.l.b16 %v2264
        %v2277 = vunpack.c.l.b16 %v2265
        %v2278 = vunpack.c.l.b16 %v2266
        %v2279 = vunpack.c.l.b16 %v2267
        %v2280 = vunpack.c.l.b16 %v2268
        %v2281 = vunpack.c.l.b16 %v2269
        %v2282 = vpack.c.b16 %v2277, %v2276
        %v2283 = vpack.c.b16 %v2279, %v2278
        %v2284 = vpack.c.b16 %v2281, %v2280
        %v2287 = vunpack.c.l.b16 %v602
        %v2288 = vunpack.c.l.b16 %v603
        %v2289 = vpack.c.b16 %v2288, %v2287
        %v2292 = vsel %vm848, %v2282, 0
        %v2295 = vsel %vm848, %v2283, 0
        %v2298 = vsel %vm848, %v2284, 0
        %2300 = vmatpush.bf16.msra.mxu0 0
        %2301 = vmatpush.bf16.msra.mxu0 0
        %2302 = vmatpush.bf16.msra.mxu0 0
        %2303 = vmatpush.bf16.msra.mxu0 0
        %2304 = vmatpush.bf16.msra.mxu0 0
        %2305 = vmatpush.bf16.msra.mxu0 0
        %2306 = vmatpush.bf16.msra.mxu0 0
        %2307 = vmatpush.bf16.msra.mxu0 %v2289
        %2308 = vmatmul.bf16.gmra.mxu0 %v2292
        %v2309 = vpop.f32.mrf.mxu0
        %v2310 = vadd.f32 0.0, %v2309
        %v2311 = vpop.f32.mrf.mxu0
        %v2312 = vadd.f32 0.0, %v2311
        %2313 = vmatmul.bf16.gmra.mxu0 %v2295
        %v2314 = vpop.f32.mrf.mxu0
        %v2315 = vadd.f32 0.0, %v2314
        %v2316 = vpop.f32.mrf.mxu0
        %v2317 = vadd.f32 0.0, %v2316
        %2318 = vmatmul.bf16.gmra.mxu0 %v2298
        %v2319 = vpop.f32.mrf.mxu0
        %v2320 = vadd.f32 0.0, %v2319
        %v2321 = vpop.f32.mrf.mxu0
        %v2322 = vadd.f32 0.0, %v2321
        %2323 = vdwg.mxu0
        %v2326 = vunpack.c.l.b16 %v604
        %v2327 = vunpack.c.l.b16 %v605
        %v2328 = vpack.c.b16 %v2327, %v2326
        %2330 = vmatpush.bf16.msra.mxu0 0
        %2331 = vmatpush.bf16.msra.mxu0 0
        %2332 = vmatpush.bf16.msra.mxu0 0
        %2333 = vmatpush.bf16.msra.mxu0 0
        %2334 = vmatpush.bf16.msra.mxu0 0
        %2335 = vmatpush.bf16.msra.mxu0 0
        %2336 = vmatpush.bf16.msra.mxu0 0
        %2337 = vmatpush.bf16.msra.mxu0 %v2328
        %2338 = vmatmul.bf16.gmra.mxu0 %v2292
        %v2339 = vpop.f32.mrf.mxu0
        %v2340 = vadd.f32 0.0, %v2339
        %v2341 = vpop.f32.mrf.mxu0
        %v2342 = vadd.f32 0.0, %v2341
        %2343 = vmatmul.bf16.gmra.mxu0 %v2295
        %v2344 = vpop.f32.mrf.mxu0
        %v2345 = vadd.f32 0.0, %v2344
        %v2346 = vpop.f32.mrf.mxu0
        %v2347 = vadd.f32 0.0, %v2346
        %2348 = vmatmul.bf16.gmra.mxu0 %v2298
        %v2349 = vpop.f32.mrf.mxu0
        %v2350 = vadd.f32 0.0, %v2349
        %v2351 = vpop.f32.mrf.mxu0
        %v2352 = vadd.f32 0.0, %v2351
        %2353 = vdwg.mxu0
        %v2356 = vunpack.c.l.b16 %v606
        %v2357 = vunpack.c.l.b16 %v607
        %v2358 = vpack.c.b16 %v2357, %v2356
        %2360 = vmatpush.bf16.msra.mxu0 0
        %2361 = vmatpush.bf16.msra.mxu0 0
        %2362 = vmatpush.bf16.msra.mxu0 0
        %2363 = vmatpush.bf16.msra.mxu0 0
        %2364 = vmatpush.bf16.msra.mxu0 0
        %2365 = vmatpush.bf16.msra.mxu0 0
        %2366 = vmatpush.bf16.msra.mxu0 0
        %2367 = vmatpush.bf16.msra.mxu0 %v2358
        %2368 = vmatmul.bf16.gmra.mxu0 %v2292
        %v2369 = vpop.f32.mrf.mxu0
        %v2370 = vadd.f32 0.0, %v2369
        %v2371 = vpop.f32.mrf.mxu0
        %v2372 = vadd.f32 0.0, %v2371
        %2373 = vmatmul.bf16.gmra.mxu0 %v2295
        %v2374 = vpop.f32.mrf.mxu0
        %v2375 = vadd.f32 0.0, %v2374
        %v2376 = vpop.f32.mrf.mxu0
        %v2377 = vadd.f32 0.0, %v2376
        %2378 = vmatmul.bf16.gmra.mxu0 %v2298
        %v2379 = vpop.f32.mrf.mxu0
        %v2380 = vadd.f32 0.0, %v2379
        %v2381 = vpop.f32.mrf.mxu0
        %v2382 = vadd.f32 0.0, %v2381
        %2383 = vdwg.mxu0
        %v2386 = vunpack.c.l.b16 %v608
        %v2387 = vunpack.c.l.b16 %v609
        %v2388 = vpack.c.b16 %v2387, %v2386
        %2390 = vmatpush.bf16.msra.mxu0 0
        %2391 = vmatpush.bf16.msra.mxu0 0
        %2392 = vmatpush.bf16.msra.mxu0 0
        %2393 = vmatpush.bf16.msra.mxu0 0
        %2394 = vmatpush.bf16.msra.mxu0 0
        %2395 = vmatpush.bf16.msra.mxu0 0
        %2396 = vmatpush.bf16.msra.mxu0 0
        %2397 = vmatpush.bf16.msra.mxu0 %v2388
        %2398 = vmatmul.bf16.gmra.mxu0 %v2292
        %v2399 = vpop.f32.mrf.mxu0
        %v2400 = vadd.f32 0.0, %v2399
        %v2401 = vpop.f32.mrf.mxu0
        %v2402 = vadd.f32 0.0, %v2401
        %2403 = vmatmul.bf16.gmra.mxu0 %v2295
        %v2404 = vpop.f32.mrf.mxu0
        %v2405 = vadd.f32 0.0, %v2404
        %v2406 = vpop.f32.mrf.mxu0
        %v2407 = vadd.f32 0.0, %v2406
        %2408 = vmatmul.bf16.gmra.mxu0 %v2298
        %v2409 = vpop.f32.mrf.mxu0
        %v2410 = vadd.f32 0.0, %v2409
        %v2411 = vpop.f32.mrf.mxu0
        %v2412 = vadd.f32 0.0, %v2411
        %2413 = vdwg.mxu0
        %v2416 = vunpack.c.l.b16 %v610
        %v2417 = vunpack.c.l.b16 %v611
        %v2418 = vpack.c.b16 %v2417, %v2416
        %2420 = vmatpush.bf16.msra.mxu0 0
        %2421 = vmatpush.bf16.msra.mxu0 0
        %2422 = vmatpush.bf16.msra.mxu0 0
        %2423 = vmatpush.bf16.msra.mxu0 0
        %2424 = vmatpush.bf16.msra.mxu0 0
        %2425 = vmatpush.bf16.msra.mxu0 0
        %2426 = vmatpush.bf16.msra.mxu0 0
        %2427 = vmatpush.bf16.msra.mxu0 %v2418
        %2428 = vmatmul.bf16.gmra.mxu0 %v2292
        %v2429 = vpop.f32.mrf.mxu0
        %v2430 = vadd.f32 0.0, %v2429
        %v2431 = vpop.f32.mrf.mxu0
        %v2432 = vadd.f32 0.0, %v2431
        %2433 = vmatmul.bf16.gmra.mxu0 %v2295
        %v2434 = vpop.f32.mrf.mxu0
        %v2435 = vadd.f32 0.0, %v2434
        %v2436 = vpop.f32.mrf.mxu0
        %v2437 = vadd.f32 0.0, %v2436
        %2438 = vmatmul.bf16.gmra.mxu0 %v2298
        %v2439 = vpop.f32.mrf.mxu0
        %v2440 = vadd.f32 0.0, %v2439
        %v2441 = vpop.f32.mrf.mxu0
        %v2442 = vadd.f32 0.0, %v2441
        %2443 = vdwg.mxu0
        %v2446 = vunpack.c.l.b16 %v612
        %v2447 = vunpack.c.l.b16 %v613
        %v2448 = vpack.c.b16 %v2447, %v2446
        %2450 = vmatpush.bf16.msra.mxu0 0
        %2451 = vmatpush.bf16.msra.mxu0 0
        %2452 = vmatpush.bf16.msra.mxu0 0
        %2453 = vmatpush.bf16.msra.mxu0 0
        %2454 = vmatpush.bf16.msra.mxu0 0
        %2455 = vmatpush.bf16.msra.mxu0 0
        %2456 = vmatpush.bf16.msra.mxu0 0
        %2457 = vmatpush.bf16.msra.mxu0 %v2448
        %2458 = vmatmul.bf16.gmra.mxu0 %v2292
        %v2459 = vpop.f32.mrf.mxu0
        %v2460 = vadd.f32 0.0, %v2459
        %v2461 = vpop.f32.mrf.mxu0
        %v2462 = vadd.f32 0.0, %v2461
        %2463 = vmatmul.bf16.gmra.mxu0 %v2295
        %v2464 = vpop.f32.mrf.mxu0
        %v2465 = vadd.f32 0.0, %v2464
        %v2466 = vpop.f32.mrf.mxu0
        %v2467 = vadd.f32 0.0, %v2466
        %2468 = vmatmul.bf16.gmra.mxu0 %v2298
        %v2469 = vpop.f32.mrf.mxu0
        %v2470 = vadd.f32 0.0, %v2469
        %v2471 = vpop.f32.mrf.mxu0
        %v2472 = vadd.f32 0.0, %v2471
        %2473 = vdwg.mxu0
        %v2476 = vunpack.c.l.b16 %v614
        %v2477 = vunpack.c.l.b16 %v615
        %v2478 = vpack.c.b16 %v2477, %v2476
        %2480 = vmatpush.bf16.msra.mxu0 0
        %2481 = vmatpush.bf16.msra.mxu0 0
        %2482 = vmatpush.bf16.msra.mxu0 0
        %2483 = vmatpush.bf16.msra.mxu0 0
        %2484 = vmatpush.bf16.msra.mxu0 0
        %2485 = vmatpush.bf16.msra.mxu0 0
        %2486 = vmatpush.bf16.msra.mxu0 0
        %2487 = vmatpush.bf16.msra.mxu0 %v2478
        %2488 = vmatmul.bf16.gmra.mxu0 %v2292
        %v2489 = vpop.f32.mrf.mxu0
        %v2490 = vadd.f32 0.0, %v2489
        %v2491 = vpop.f32.mrf.mxu0
        %v2492 = vadd.f32 0.0, %v2491
        %2493 = vmatmul.bf16.gmra.mxu0 %v2295
        %v2494 = vpop.f32.mrf.mxu0
        %v2495 = vadd.f32 0.0, %v2494
        %v2496 = vpop.f32.mrf.mxu0
        %v2497 = vadd.f32 0.0, %v2496
        %2498 = vmatmul.bf16.gmra.mxu0 %v2298
        %v2499 = vpop.f32.mrf.mxu0
        %v2500 = vadd.f32 0.0, %v2499
        %v2501 = vpop.f32.mrf.mxu0
        %v2502 = vadd.f32 0.0, %v2501
        %2503 = vdwg.mxu0
        %v2506 = vunpack.c.l.b16 %v616
        %v2507 = vunpack.c.l.b16 %v617
        %v2508 = vpack.c.b16 %v2507, %v2506
        %2510 = vmatpush.bf16.msra.mxu0 0
        %2511 = vmatpush.bf16.msra.mxu0 0
        %2512 = vmatpush.bf16.msra.mxu0 0
        %2513 = vmatpush.bf16.msra.mxu0 0
        %2514 = vmatpush.bf16.msra.mxu0 0
        %2515 = vmatpush.bf16.msra.mxu0 0
        %2516 = vmatpush.bf16.msra.mxu0 0
        %2517 = vmatpush.bf16.msra.mxu0 %v2508
        %2518 = vmatmul.bf16.gmra.mxu0 %v2292
        %v2519 = vpop.f32.mrf.mxu0
        %v2520 = vadd.f32 0.0, %v2519
        %v2521 = vpop.f32.mrf.mxu0
        %v2522 = vadd.f32 0.0, %v2521
        %2523 = vmatmul.bf16.gmra.mxu0 %v2295
        %v2524 = vpop.f32.mrf.mxu0
        %v2525 = vadd.f32 0.0, %v2524
        %v2526 = vpop.f32.mrf.mxu0
        %v2527 = vadd.f32 0.0, %v2526
        %2528 = vmatmul.bf16.gmra.mxu0 %v2298
        %v2529 = vpop.f32.mrf.mxu0
        %v2530 = vadd.f32 0.0, %v2529
        %v2531 = vpop.f32.mrf.mxu0
        %v2532 = vadd.f32 0.0, %v2531
        %2533 = vdwg.mxu0
        %v2536 = vunpack.c.l.b16 %v618
        %v2537 = vunpack.c.l.b16 %v619
        %v2538 = vpack.c.b16 %v2537, %v2536
        %2540 = vmatpush.bf16.msra.mxu0 0
        %2541 = vmatpush.bf16.msra.mxu0 0
        %2542 = vmatpush.bf16.msra.mxu0 0
        %2543 = vmatpush.bf16.msra.mxu0 0
        %2544 = vmatpush.bf16.msra.mxu0 0
        %2545 = vmatpush.bf16.msra.mxu0 0
        %2546 = vmatpush.bf16.msra.mxu0 0
        %2547 = vmatpush.bf16.msra.mxu0 %v2538
        %2548 = vmatmul.bf16.gmra.mxu0 %v2292
        %v2549 = vpop.f32.mrf.mxu0
        %v2550 = vadd.f32 0.0, %v2549
        %v2551 = vpop.f32.mrf.mxu0
        %v2552 = vadd.f32 0.0, %v2551
        %2553 = vmatmul.bf16.gmra.mxu0 %v2295
        %v2554 = vpop.f32.mrf.mxu0
        %v2555 = vadd.f32 0.0, %v2554
        %v2556 = vpop.f32.mrf.mxu0
        %v2557 = vadd.f32 0.0, %v2556
        %2558 = vmatmul.bf16.gmra.mxu0 %v2298
        %v2559 = vpop.f32.mrf.mxu0
        %v2560 = vadd.f32 0.0, %v2559
        %v2561 = vpop.f32.mrf.mxu0
        %v2562 = vadd.f32 0.0, %v2561
        %2563 = vdwg.mxu0
        %v2566 = vunpack.c.l.b16 %v620
        %v2567 = vunpack.c.l.b16 %v621
        %v2568 = vpack.c.b16 %v2567, %v2566
        %2570 = vmatpush.bf16.msra.mxu0 0
        %2571 = vmatpush.bf16.msra.mxu0 0
        %2572 = vmatpush.bf16.msra.mxu0 0
        %2573 = vmatpush.bf16.msra.mxu0 0
        %2574 = vmatpush.bf16.msra.mxu0 0
        %2575 = vmatpush.bf16.msra.mxu0 0
        %2576 = vmatpush.bf16.msra.mxu0 0
        %2577 = vmatpush.bf16.msra.mxu0 %v2568
        %2578 = vmatmul.bf16.gmra.mxu0 %v2292
        %v2579 = vpop.f32.mrf.mxu0
        %v2580 = vadd.f32 0.0, %v2579
        %v2581 = vpop.f32.mrf.mxu0
        %v2582 = vadd.f32 0.0, %v2581
        %2583 = vmatmul.bf16.gmra.mxu0 %v2295
        %v2584 = vpop.f32.mrf.mxu0
        %v2585 = vadd.f32 0.0, %v2584
        %v2586 = vpop.f32.mrf.mxu0
        %v2587 = vadd.f32 0.0, %v2586
        %2588 = vmatmul.bf16.gmra.mxu0 %v2298
        %v2589 = vpop.f32.mrf.mxu0
        %v2590 = vadd.f32 0.0, %v2589
        %v2591 = vpop.f32.mrf.mxu0
        %v2592 = vadd.f32 0.0, %v2591
        %2593 = vdwg.mxu0
        %v2596 = vunpack.c.l.b16 %v622
        %v2597 = vunpack.c.l.b16 %v623
        %v2598 = vpack.c.b16 %v2597, %v2596
        %2600 = vmatpush.bf16.msra.mxu0 0
        %2601 = vmatpush.bf16.msra.mxu0 0
        %2602 = vmatpush.bf16.msra.mxu0 0
        %2603 = vmatpush.bf16.msra.mxu0 0
        %2604 = vmatpush.bf16.msra.mxu0 0
        %2605 = vmatpush.bf16.msra.mxu0 0
        %2606 = vmatpush.bf16.msra.mxu0 0
        %2607 = vmatpush.bf16.msra.mxu0 %v2598
        %2608 = vmatmul.bf16.gmra.mxu0 %v2292
        %v2609 = vpop.f32.mrf.mxu0
        %v2610 = vadd.f32 0.0, %v2609
        %v2611 = vpop.f32.mrf.mxu0
        %v2612 = vadd.f32 0.0, %v2611
        %2613 = vmatmul.bf16.gmra.mxu0 %v2295
        %v2614 = vpop.f32.mrf.mxu0
        %v2615 = vadd.f32 0.0, %v2614
        %v2616 = vpop.f32.mrf.mxu0
        %v2617 = vadd.f32 0.0, %v2616
        %2618 = vmatmul.bf16.gmra.mxu0 %v2298
        %v2619 = vpop.f32.mrf.mxu0
        %v2620 = vadd.f32 0.0, %v2619
        %v2621 = vpop.f32.mrf.mxu0
        %v2622 = vadd.f32 0.0, %v2621
        %2623 = vdwg.mxu0
        %v2626 = vunpack.c.l.b16 %v624
        %v2627 = vunpack.c.l.b16 %v625
        %v2628 = vpack.c.b16 %v2627, %v2626
        %2630 = vmatpush.bf16.msra.mxu0 0
        %2631 = vmatpush.bf16.msra.mxu0 0
        %2632 = vmatpush.bf16.msra.mxu0 0
        %2633 = vmatpush.bf16.msra.mxu0 0
        %2634 = vmatpush.bf16.msra.mxu0 0
        %2635 = vmatpush.bf16.msra.mxu0 0
        %2636 = vmatpush.bf16.msra.mxu0 0
        %2637 = vmatpush.bf16.msra.mxu0 %v2628
        %2638 = vmatmul.bf16.gmra.mxu0 %v2292
        %v2639 = vpop.f32.mrf.mxu0
        %v2640 = vadd.f32 0.0, %v2639
        %v2641 = vpop.f32.mrf.mxu0
        %v2642 = vadd.f32 0.0, %v2641
        %2643 = vmatmul.bf16.gmra.mxu0 %v2295
        %v2644 = vpop.f32.mrf.mxu0
        %v2645 = vadd.f32 0.0, %v2644
        %v2646 = vpop.f32.mrf.mxu0
        %v2647 = vadd.f32 0.0, %v2646
        %2648 = vmatmul.bf16.gmra.mxu0 %v2298
        %v2649 = vpop.f32.mrf.mxu0
        %v2650 = vadd.f32 0.0, %v2649
        %v2651 = vpop.f32.mrf.mxu0
        %v2652 = vadd.f32 0.0, %v2651
        %2653 = vdwg.mxu0
        %v2656 = vunpack.c.l.b16 %v626
        %v2657 = vunpack.c.l.b16 %v627
        %v2658 = vpack.c.b16 %v2657, %v2656
        %2660 = vmatpush.bf16.msra.mxu0 0
        %2661 = vmatpush.bf16.msra.mxu0 0
        %2662 = vmatpush.bf16.msra.mxu0 0
        %2663 = vmatpush.bf16.msra.mxu0 0
        %2664 = vmatpush.bf16.msra.mxu0 0
        %2665 = vmatpush.bf16.msra.mxu0 0
        %2666 = vmatpush.bf16.msra.mxu0 0
        %2667 = vmatpush.bf16.msra.mxu0 %v2658
        %2668 = vmatmul.bf16.gmra.mxu0 %v2292
        %v2669 = vpop.f32.mrf.mxu0
        %v2670 = vadd.f32 0.0, %v2669
        %v2671 = vpop.f32.mrf.mxu0
        %v2672 = vadd.f32 0.0, %v2671
        %2673 = vmatmul.bf16.gmra.mxu0 %v2295
        %v2674 = vpop.f32.mrf.mxu0
        %v2675 = vadd.f32 0.0, %v2674
        %v2676 = vpop.f32.mrf.mxu0
        %v2677 = vadd.f32 0.0, %v2676
        %2678 = vmatmul.bf16.gmra.mxu0 %v2298
        %v2679 = vpop.f32.mrf.mxu0
        %v2680 = vadd.f32 0.0, %v2679
        %v2681 = vpop.f32.mrf.mxu0
        %v2682 = vadd.f32 0.0, %v2681
        %2683 = vdwg.mxu0
        %v2686 = vunpack.c.l.b16 %v628
        %v2687 = vunpack.c.l.b16 %v629
        %v2688 = vpack.c.b16 %v2687, %v2686
        %2690 = vmatpush.bf16.msra.mxu0 0
        %2691 = vmatpush.bf16.msra.mxu0 0
        %2692 = vmatpush.bf16.msra.mxu0 0
        %2693 = vmatpush.bf16.msra.mxu0 0
        %2694 = vmatpush.bf16.msra.mxu0 0
        %2695 = vmatpush.bf16.msra.mxu0 0
        %2696 = vmatpush.bf16.msra.mxu0 0
        %2697 = vmatpush.bf16.msra.mxu0 %v2688
        %2698 = vmatmul.bf16.gmra.mxu0 %v2292
        %v2699 = vpop.f32.mrf.mxu0
        %v2700 = vadd.f32 0.0, %v2699
        %v2701 = vpop.f32.mrf.mxu0
        %v2702 = vadd.f32 0.0, %v2701
        %2703 = vmatmul.bf16.gmra.mxu0 %v2295
        %v2704 = vpop.f32.mrf.mxu0
        %v2705 = vadd.f32 0.0, %v2704
        %v2706 = vpop.f32.mrf.mxu0
        %v2707 = vadd.f32 0.0, %v2706
        %2708 = vmatmul.bf16.gmra.mxu0 %v2298
        %v2709 = vpop.f32.mrf.mxu0
        %v2710 = vadd.f32 0.0, %v2709
        %v2711 = vpop.f32.mrf.mxu0
        %v2712 = vadd.f32 0.0, %v2711
        %2713 = vdwg.mxu0
        %v2716 = vunpack.c.l.b16 %v630
        %v2717 = vunpack.c.l.b16 %v631
        %v2718 = vpack.c.b16 %v2717, %v2716
        %2720 = vmatpush.bf16.msra.mxu0 0
        %2721 = vmatpush.bf16.msra.mxu0 0
        %2722 = vmatpush.bf16.msra.mxu0 0
        %2723 = vmatpush.bf16.msra.mxu0 0
        %2724 = vmatpush.bf16.msra.mxu0 0
        %2725 = vmatpush.bf16.msra.mxu0 0
        %2726 = vmatpush.bf16.msra.mxu0 0
        %2727 = vmatpush.bf16.msra.mxu0 %v2718
        %2728 = vmatmul.bf16.gmra.mxu0 %v2292
        %v2729 = vpop.f32.mrf.mxu0
        %v2730 = vadd.f32 0.0, %v2729
        %v2731 = vpop.f32.mrf.mxu0
        %v2732 = vadd.f32 0.0, %v2731
        %2733 = vmatmul.bf16.gmra.mxu0 %v2295
        %v2734 = vpop.f32.mrf.mxu0
        %v2735 = vadd.f32 0.0, %v2734
        %v2736 = vpop.f32.mrf.mxu0
        %v2737 = vadd.f32 0.0, %v2736
        %2738 = vmatmul.bf16.gmra.mxu0 %v2298
        %v2739 = vpop.f32.mrf.mxu0
        %v2740 = vadd.f32 0.0, %v2739
        %v2741 = vpop.f32.mrf.mxu0
        %v2742 = vadd.f32 0.0, %v2741
        %2743 = vdwg.mxu0
        %v2746 = vunpack.c.l.b16 %v632
        %v2747 = vunpack.c.l.b16 %v633
        %v2748 = vpack.c.b16 %v2747, %v2746
        %2750 = vmatpush.bf16.msra.mxu0 0
        %2751 = vmatpush.bf16.msra.mxu0 0
        %2752 = vmatpush.bf16.msra.mxu0 0
        %2753 = vmatpush.bf16.msra.mxu0 0
        %2754 = vmatpush.bf16.msra.mxu0 0
        %2755 = vmatpush.bf16.msra.mxu0 0
        %2756 = vmatpush.bf16.msra.mxu0 0
        %2757 = vmatpush.bf16.msra.mxu0 %v2748
        %2758 = vmatmul.bf16.gmra.mxu0 %v2292
        %v2759 = vpop.f32.mrf.mxu0
        %v2760 = vadd.f32 0.0, %v2759
        %v2761 = vpop.f32.mrf.mxu0
        %v2762 = vadd.f32 0.0, %v2761
        %2763 = vmatmul.bf16.gmra.mxu0 %v2295
        %v2764 = vpop.f32.mrf.mxu0
        %v2765 = vadd.f32 0.0, %v2764
        %v2766 = vpop.f32.mrf.mxu0
        %v2767 = vadd.f32 0.0, %v2766
        %2768 = vmatmul.bf16.gmra.mxu0 %v2298
        %v2769 = vpop.f32.mrf.mxu0
        %v2770 = vadd.f32 0.0, %v2769
        %v2771 = vpop.f32.mrf.mxu0
        %v2772 = vadd.f32 0.0, %v2771
        %2773 = vdwg.mxu0
        %v2774 = vpack.c.bf16 %v2312, %v2310
        %v2775 = vpack.c.bf16 %v2342, %v2340
        %v2776 = vpack.c.bf16 %v2372, %v2370
        %v2777 = vpack.c.bf16 %v2402, %v2400
        %v2778 = vpack.c.bf16 %v2432, %v2430
        %v2779 = vpack.c.bf16 %v2462, %v2460
        %v2780 = vpack.c.bf16 %v2492, %v2490
        %v2781 = vpack.c.bf16 %v2522, %v2520
        %v2782 = vpack.c.bf16 %v2552, %v2550
        %v2783 = vpack.c.bf16 %v2582, %v2580
        %v2784 = vpack.c.bf16 %v2612, %v2610
        %v2785 = vpack.c.bf16 %v2642, %v2640
        %v2786 = vpack.c.bf16 %v2672, %v2670
        %v2787 = vpack.c.bf16 %v2702, %v2700
        %v2788 = vpack.c.bf16 %v2732, %v2730
        %v2789 = vpack.c.bf16 %v2762, %v2760
        %v2790 = vld [vmem:[%s5] sm:$0xf]
        %v2791 = vld [vmem:[%s5 + $0x4] sm:$0xf]
        %v2792 = vld [vmem:[%s5 + $0x8] sm:$0xf]
        %v2793 = vld [vmem:[%s5 + $0xc] sm:$0xf]
        %v2794 = vld [vmem:[%s5 + $0x10] sm:$0xf]
        %v2795 = vld [vmem:[%s5 + $0x14] sm:$0xf]
        %v2796 = vld [vmem:[%s5 + $0x18] sm:$0xf]
        %v2797 = vld [vmem:[%s5 + $0x1c] sm:$0xf]
        %v2798 = vpack.c.bf16 %v2317, %v2315
        %v2799 = vpack.c.bf16 %v2347, %v2345
        %v2800 = vpack.c.bf16 %v2377, %v2375
        %v2801 = vpack.c.bf16 %v2407, %v2405
        %v2802 = vpack.c.bf16 %v2437, %v2435
        %v2803 = vpack.c.bf16 %v2467, %v2465
        %v2804 = vpack.c.bf16 %v2497, %v2495
        %v2805 = vpack.c.bf16 %v2527, %v2525
        %v2806 = vpack.c.bf16 %v2557, %v2555
        %v2807 = vpack.c.bf16 %v2587, %v2585
        %v2808 = vpack.c.bf16 %v2617, %v2615
        %v2809 = vpack.c.bf16 %v2647, %v2645
        %v2810 = vpack.c.bf16 %v2677, %v2675
        %v2811 = vpack.c.bf16 %v2707, %v2705
        %v2812 = vpack.c.bf16 %v2737, %v2735
        %v2813 = vpack.c.bf16 %v2767, %v2765
        %s2814 = scalar_lea.vmem %s5, 32
        %v2815 = vld [vmem:[%s2814] sm:$0xf]
        %v2816 = vld [vmem:[%s2814 + $0x4] sm:$0xf]
        %v2817 = vld [vmem:[%s2814 + $0x8] sm:$0xf]
        %v2818 = vld [vmem:[%s2814 + $0xc] sm:$0xf]
        %v2819 = vld [vmem:[%s2814 + $0x10] sm:$0xf]
        %v2820 = vld [vmem:[%s2814 + $0x14] sm:$0xf]
        %v2821 = vld [vmem:[%s2814 + $0x18] sm:$0xf]
        %v2822 = vld [vmem:[%s2814 + $0x1c] sm:$0xf]
        %v2831 = vunpack.c.l.b16 %v2815
        %v2832 = vunpack.c.l.b16 %v2816
        %v2833 = vunpack.c.l.b16 %v2817
        %v2834 = vunpack.c.l.b16 %v2818
        %v2835 = vunpack.c.l.b16 %v2819
        %v2836 = vunpack.c.l.b16 %v2820
        %v2837 = vunpack.c.l.b16 %v2821
        %v2838 = vunpack.c.l.b16 %v2822
        %v2839 = vpack.c.b16 %v2832, %v2831
        %v2840 = vpack.c.b16 %v2834, %v2833
        %v2841 = vpack.c.b16 %v2836, %v2835
        %v2842 = vpack.c.b16 %v2838, %v2837
        %v2848 = vsel %vm671, %v2798, 0
        %v2851 = vsel %vm671, %v2799, 0
        %v2854 = vsel %vm671, %v2800, 0
        %v2857 = vsel %vm671, %v2801, 0
        %v2860 = vsel %vm671, %v2802, 0
        %v2863 = vsel %vm671, %v2803, 0
        %v2866 = vsel %vm671, %v2804, 0
        %v2869 = vsel %vm671, %v2805, 0
        %v2872 = vsel %vm671, %v2806, 0
        %v2875 = vsel %vm671, %v2807, 0
        %v2878 = vsel %vm671, %v2808, 0
        %v2881 = vsel %vm671, %v2809, 0
        %v2884 = vsel %vm671, %v2810, 0
        %v2887 = vsel %vm671, %v2811, 0
        %v2890 = vsel %vm671, %v2812, 0
        %v2893 = vsel %vm671, %v2813, 0
        %2895 = vmatpush.bf16.msra.mxu0 0
        %2896 = vmatpush.bf16.msra.mxu0 0
        %2897 = vmatpush.bf16.msra.mxu0 0
        %2898 = vmatpush.bf16.msra.mxu0 0
        %2899 = vmatpush.bf16.msra.mxu0 %v2842
        %2900 = vmatpush.bf16.msra.mxu0 %v2841
        %2901 = vmatpush.bf16.msra.mxu0 %v2840
        %2902 = vmatpush.bf16.msra.mxu0 %v2839
        %2903 = vmatmul.bf16.gmra.mxu0 %v2848
        %v2904 = vpop.f32.mrf.mxu0
        %v2905 = vadd.f32 0.0, %v2904
        %v2906 = vpop.f32.mrf.mxu0
        %v2907 = vadd.f32 0.0, %v2906
        %2908 = vmatmul.bf16.gmra.mxu0 %v2851
        %v2909 = vpop.f32.mrf.mxu0
        %v2910 = vadd.f32 0.0, %v2909
        %v2911 = vpop.f32.mrf.mxu0
        %v2912 = vadd.f32 0.0, %v2911
        %2913 = vmatmul.bf16.gmra.mxu0 %v2854
        %v2914 = vpop.f32.mrf.mxu0
        %v2915 = vadd.f32 0.0, %v2914
        %v2916 = vpop.f32.mrf.mxu0
        %v2917 = vadd.f32 0.0, %v2916
        %2918 = vmatmul.bf16.gmra.mxu0 %v2857
        %v2919 = vpop.f32.mrf.mxu0
        %v2920 = vadd.f32 0.0, %v2919
        %v2921 = vpop.f32.mrf.mxu0
        %v2922 = vadd.f32 0.0, %v2921
        %2923 = vmatmul.bf16.gmra.mxu0 %v2860
        %v2924 = vpop.f32.mrf.mxu0
        %v2925 = vadd.f32 0.0, %v2924
        %v2926 = vpop.f32.mrf.mxu0
        %v2927 = vadd.f32 0.0, %v2926
        %2928 = vmatmul.bf16.gmra.mxu0 %v2863
        %v2929 = vpop.f32.mrf.mxu0
        %v2930 = vadd.f32 0.0, %v2929
        %v2931 = vpop.f32.mrf.mxu0
        %v2932 = vadd.f32 0.0, %v2931
        %2933 = vmatmul.bf16.gmra.mxu0 %v2866
        %v2934 = vpop.f32.mrf.mxu0
        %v2935 = vadd.f32 0.0, %v2934
        %v2936 = vpop.f32.mrf.mxu0
        %v2937 = vadd.f32 0.0, %v2936
        %2938 = vmatmul.bf16.gmra.mxu0 %v2869
        %v2939 = vpop.f32.mrf.mxu0
        %v2940 = vadd.f32 0.0, %v2939
        %v2941 = vpop.f32.mrf.mxu0
        %v2942 = vadd.f32 0.0, %v2941
        %2943 = vmatmul.bf16.gmra.mxu0 %v2872
        %v2944 = vpop.f32.mrf.mxu0
        %v2945 = vadd.f32 0.0, %v2944
        %v2946 = vpop.f32.mrf.mxu0
        %v2947 = vadd.f32 0.0, %v2946
        %2948 = vmatmul.bf16.gmra.mxu0 %v2875
        %v2949 = vpop.f32.mrf.mxu0
        %v2950 = vadd.f32 0.0, %v2949
        %v2951 = vpop.f32.mrf.mxu0
        %v2952 = vadd.f32 0.0, %v2951
        %2953 = vmatmul.bf16.gmra.mxu0 %v2878
        %v2954 = vpop.f32.mrf.mxu0
        %v2955 = vadd.f32 0.0, %v2954
        %v2956 = vpop.f32.mrf.mxu0
        %v2957 = vadd.f32 0.0, %v2956
        %2958 = vmatmul.bf16.gmra.mxu0 %v2881
        %v2959 = vpop.f32.mrf.mxu0
        %v2960 = vadd.f32 0.0, %v2959
        %v2961 = vpop.f32.mrf.mxu0
        %v2962 = vadd.f32 0.0, %v2961
        %2963 = vmatmul.bf16.gmra.mxu0 %v2884
        %v2964 = vpop.f32.mrf.mxu0
        %v2965 = vadd.f32 0.0, %v2964
        %v2966 = vpop.f32.mrf.mxu0
        %v2967 = vadd.f32 0.0, %v2966
        %2968 = vmatmul.bf16.gmra.mxu0 %v2887
        %v2969 = vpop.f32.mrf.mxu0
        %v2970 = vadd.f32 0.0, %v2969
        %v2971 = vpop.f32.mrf.mxu0
        %v2972 = vadd.f32 0.0, %v2971
        %2973 = vmatmul.bf16.gmra.mxu0 %v2890
        %v2974 = vpop.f32.mrf.mxu0
        %v2975 = vadd.f32 0.0, %v2974
        %v2976 = vpop.f32.mrf.mxu0
        %v2977 = vadd.f32 0.0, %v2976
        %2978 = vmatmul.bf16.gmra.mxu0 %v2893
        %v2979 = vpop.f32.mrf.mxu0
        %v2980 = vadd.f32 0.0, %v2979
        %v2981 = vpop.f32.mrf.mxu0
        %v2982 = vadd.f32 0.0, %v2981
        %2983 = vdwg.mxu0
        %v2992 = vunpack.c.l.b16 %v2790
        %v2993 = vunpack.c.l.b16 %v2791
        %v2994 = vunpack.c.l.b16 %v2792
        %v2995 = vunpack.c.l.b16 %v2793
        %v2996 = vunpack.c.l.b16 %v2794
        %v2997 = vunpack.c.l.b16 %v2795
        %v2998 = vunpack.c.l.b16 %v2796
        %v2999 = vunpack.c.l.b16 %v2797
        %v3000 = vpack.c.b16 %v2993, %v2992
        %v3001 = vpack.c.b16 %v2995, %v2994
        %v3002 = vpack.c.b16 %v2997, %v2996
        %v3003 = vpack.c.b16 %v2999, %v2998
        %v3009 = vsel %vm671, %v2774, 0
        %v3012 = vsel %vm671, %v2775, 0
        %v3015 = vsel %vm671, %v2776, 0
        %v3018 = vsel %vm671, %v2777, 0
        %v3021 = vsel %vm671, %v2778, 0
        %v3024 = vsel %vm671, %v2779, 0
        %v3027 = vsel %vm671, %v2780, 0
        %v3030 = vsel %vm671, %v2781, 0
        %v3033 = vsel %vm671, %v2782, 0
        %v3036 = vsel %vm671, %v2783, 0
        %v3039 = vsel %vm671, %v2784, 0
        %v3042 = vsel %vm671, %v2785, 0
        %v3045 = vsel %vm671, %v2786, 0
        %v3048 = vsel %vm671, %v2787, 0
        %v3051 = vsel %vm671, %v2788, 0
        %v3054 = vsel %vm671, %v2789, 0
        %3056 = vmatpush.bf16.msra.mxu0 0
        %3057 = vmatpush.bf16.msra.mxu0 0
        %3058 = vmatpush.bf16.msra.mxu0 0
        %3059 = vmatpush.bf16.msra.mxu0 0
        %3060 = vmatpush.bf16.msra.mxu0 %v3003
        %3061 = vmatpush.bf16.msra.mxu0 %v3002
        %3062 = vmatpush.bf16.msra.mxu0 %v3001
        %3063 = vmatpush.bf16.msra.mxu0 %v3000
        %3064 = vmatmul.bf16.gmra.mxu0 %v3009
        %v3065 = vpop.f32.mrf.mxu0
        %v3066 = vadd.f32 %v2905, %v3065
        %v3067 = vpop.f32.mrf.mxu0
        %v3068 = vadd.f32 %v2907, %v3067
        %3069 = vmatmul.bf16.gmra.mxu0 %v3012
        %v3070 = vpop.f32.mrf.mxu0
        %v3071 = vadd.f32 %v2910, %v3070
        %v3072 = vpop.f32.mrf.mxu0
        %v3073 = vadd.f32 %v2912, %v3072
        %3074 = vmatmul.bf16.gmra.mxu0 %v3015
        %v3075 = vpop.f32.mrf.mxu0
        %v3076 = vadd.f32 %v2915, %v3075
        %v3077 = vpop.f32.mrf.mxu0
        %v3078 = vadd.f32 %v2917, %v3077
        %3079 = vmatmul.bf16.gmra.mxu0 %v3018
        %v3080 = vpop.f32.mrf.mxu0
        %v3081 = vadd.f32 %v2920, %v3080
        %v3082 = vpop.f32.mrf.mxu0
        %v3083 = vadd.f32 %v2922, %v3082
        %3084 = vmatmul.bf16.gmra.mxu0 %v3021
        %v3085 = vpop.f32.mrf.mxu0
        %v3086 = vadd.f32 %v2925, %v3085
        %v3087 = vpop.f32.mrf.mxu0
        %v3088 = vadd.f32 %v2927, %v3087
        %3089 = vmatmul.bf16.gmra.mxu0 %v3024
        %v3090 = vpop.f32.mrf.mxu0
        %v3091 = vadd.f32 %v2930, %v3090
        %v3092 = vpop.f32.mrf.mxu0
        %v3093 = vadd.f32 %v2932, %v3092
        %3094 = vmatmul.bf16.gmra.mxu0 %v3027
        %v3095 = vpop.f32.mrf.mxu0
        %v3096 = vadd.f32 %v2935, %v3095
        %v3097 = vpop.f32.mrf.mxu0
        %v3098 = vadd.f32 %v2937, %v3097
        %3099 = vmatmul.bf16.gmra.mxu0 %v3030
        %v3100 = vpop.f32.mrf.mxu0
        %v3101 = vadd.f32 %v2940, %v3100
        %v3102 = vpop.f32.mrf.mxu0
        %v3103 = vadd.f32 %v2942, %v3102
        %3104 = vmatmul.bf16.gmra.mxu0 %v3033
        %v3105 = vpop.f32.mrf.mxu0
        %v3106 = vadd.f32 %v2945, %v3105
        %v3107 = vpop.f32.mrf.mxu0
        %v3108 = vadd.f32 %v2947, %v3107
        %3109 = vmatmul.bf16.gmra.mxu0 %v3036
        %v3110 = vpop.f32.mrf.mxu0
        %v3111 = vadd.f32 %v2950, %v3110
        %v3112 = vpop.f32.mrf.mxu0
        %v3113 = vadd.f32 %v2952, %v3112
        %3114 = vmatmul.bf16.gmra.mxu0 %v3039
        %v3115 = vpop.f32.mrf.mxu0
        %v3116 = vadd.f32 %v2955, %v3115
        %v3117 = vpop.f32.mrf.mxu0
        %v3118 = vadd.f32 %v2957, %v3117
        %3119 = vmatmul.bf16.gmra.mxu0 %v3042
        %v3120 = vpop.f32.mrf.mxu0
        %v3121 = vadd.f32 %v2960, %v3120
        %v3122 = vpop.f32.mrf.mxu0
        %v3123 = vadd.f32 %v2962, %v3122
        %3124 = vmatmul.bf16.gmra.mxu0 %v3045
        %v3125 = vpop.f32.mrf.mxu0
        %v3126 = vadd.f32 %v2965, %v3125
        %v3127 = vpop.f32.mrf.mxu0
        %v3128 = vadd.f32 %v2967, %v3127
        %3129 = vmatmul.bf16.gmra.mxu0 %v3048
        %v3130 = vpop.f32.mrf.mxu0
        %v3131 = vadd.f32 %v2970, %v3130
        %v3132 = vpop.f32.mrf.mxu0
        %v3133 = vadd.f32 %v2972, %v3132
        %3134 = vmatmul.bf16.gmra.mxu0 %v3051
        %v3135 = vpop.f32.mrf.mxu0
        %v3136 = vadd.f32 %v2975, %v3135
        %v3137 = vpop.f32.mrf.mxu0
        %v3138 = vadd.f32 %v2977, %v3137
        %3139 = vmatmul.bf16.gmra.mxu0 %v3054
        %v3140 = vpop.f32.mrf.mxu0
        %v3141 = vadd.f32 %v2980, %v3140
        %v3142 = vpop.f32.mrf.mxu0
        %v3143 = vadd.f32 %v2982, %v3142
        %3144 = vdwg.mxu0
        %v3145 = vpack.c.bf16 %v2322, %v2320
        %v3146 = vpack.c.bf16 %v2352, %v2350
        %v3147 = vpack.c.bf16 %v2382, %v2380
        %v3148 = vpack.c.bf16 %v2412, %v2410
        %v3149 = vpack.c.bf16 %v2442, %v2440
        %v3150 = vpack.c.bf16 %v2472, %v2470
        %v3151 = vpack.c.bf16 %v2502, %v2500
        %v3152 = vpack.c.bf16 %v2532, %v2530
        %v3153 = vpack.c.bf16 %v2562, %v2560
        %v3154 = vpack.c.bf16 %v2592, %v2590
        %v3155 = vpack.c.bf16 %v2622, %v2620
        %v3156 = vpack.c.bf16 %v2652, %v2650
        %v3157 = vpack.c.bf16 %v2682, %v2680
        %v3158 = vpack.c.bf16 %v2712, %v2710
        %v3159 = vpack.c.bf16 %v2742, %v2740
        %v3160 = vpack.c.bf16 %v2772, %v2770
        %s3161 = scalar_lea.vmem %s5, 64
        %v3162 = vld [vmem:[%s3161] sm:$0xf]
        %v3163 = vld [vmem:[%s3161 + $0x4] sm:$0xf]
        %v3164 = vld [vmem:[%s3161 + $0x8] sm:$0xf]
        %v3165 = vld [vmem:[%s3161 + $0xc] sm:$0xf]
        %v3166 = vld [vmem:[%s3161 + $0x10] sm:$0xf]
        %v3167 = vld [vmem:[%s3161 + $0x14] sm:$0xf]
        %v3168 = vld [vmem:[%s3161 + $0x18] sm:$0xf]
        %v3169 = vld [vmem:[%s3161 + $0x1c] sm:$0xf]
        %v3178 = vunpack.c.l.b16 %v3162
        %v3179 = vunpack.c.l.b16 %v3163
        %v3180 = vunpack.c.l.b16 %v3164
        %v3181 = vunpack.c.l.b16 %v3165
        %v3182 = vunpack.c.l.b16 %v3166
        %v3183 = vunpack.c.l.b16 %v3167
        %v3184 = vunpack.c.l.b16 %v3168
        %v3185 = vunpack.c.l.b16 %v3169
        %v3186 = vpack.c.b16 %v3179, %v3178
        %v3187 = vpack.c.b16 %v3181, %v3180
        %v3188 = vpack.c.b16 %v3183, %v3182
        %v3189 = vpack.c.b16 %v3185, %v3184
        %v3195 = vsel %vm671, %v3145, 0
        %v3198 = vsel %vm671, %v3146, 0
        %v3201 = vsel %vm671, %v3147, 0
        %v3204 = vsel %vm671, %v3148, 0
        %v3207 = vsel %vm671, %v3149, 0
        %v3210 = vsel %vm671, %v3150, 0
        %v3213 = vsel %vm671, %v3151, 0
        %v3216 = vsel %vm671, %v3152, 0
        %v3219 = vsel %vm671, %v3153, 0
        %v3222 = vsel %vm671, %v3154, 0
        %v3225 = vsel %vm671, %v3155, 0
        %v3228 = vsel %vm671, %v3156, 0
        %v3231 = vsel %vm671, %v3157, 0
        %v3234 = vsel %vm671, %v3158, 0
        %v3237 = vsel %vm671, %v3159, 0
        %v3240 = vsel %vm671, %v3160, 0
        %3242 = vmatpush.bf16.msra.mxu0 0
        %3243 = vmatpush.bf16.msra.mxu0 0
        %3244 = vmatpush.bf16.msra.mxu0 0
        %3245 = vmatpush.bf16.msra.mxu0 0
        %3246 = vmatpush.bf16.msra.mxu0 %v3189
        %3247 = vmatpush.bf16.msra.mxu0 %v3188
        %3248 = vmatpush.bf16.msra.mxu0 %v3187
        %3249 = vmatpush.bf16.msra.mxu0 %v3186
        %3250 = vmatmul.bf16.gmra.mxu0 %v3195
        %v3251 = vpop.f32.mrf.mxu0
        %v3252 = vadd.f32 0.0, %v3251
        %v3253 = vpop.f32.mrf.mxu0
        %v3254 = vadd.f32 0.0, %v3253
        %3255 = vmatmul.bf16.gmra.mxu0 %v3198
        %v3256 = vpop.f32.mrf.mxu0
        %v3257 = vadd.f32 0.0, %v3256
        %v3258 = vpop.f32.mrf.mxu0
        %v3259 = vadd.f32 0.0, %v3258
        %3260 = vmatmul.bf16.gmra.mxu0 %v3201
        %v3261 = vpop.f32.mrf.mxu0
        %v3262 = vadd.f32 0.0, %v3261
        %v3263 = vpop.f32.mrf.mxu0
        %v3264 = vadd.f32 0.0, %v3263
        %3265 = vmatmul.bf16.gmra.mxu0 %v3204
        %v3266 = vpop.f32.mrf.mxu0
        %v3267 = vadd.f32 0.0, %v3266
        %v3268 = vpop.f32.mrf.mxu0
        %v3269 = vadd.f32 0.0, %v3268
        %3270 = vmatmul.bf16.gmra.mxu0 %v3207
        %v3271 = vpop.f32.mrf.mxu0
        %v3272 = vadd.f32 0.0, %v3271
        %v3273 = vpop.f32.mrf.mxu0
        %v3274 = vadd.f32 0.0, %v3273
        %3275 = vmatmul.bf16.gmra.mxu0 %v3210
        %v3276 = vpop.f32.mrf.mxu0
        %v3277 = vadd.f32 0.0, %v3276
        %v3278 = vpop.f32.mrf.mxu0
        %v3279 = vadd.f32 0.0, %v3278
        %3280 = vmatmul.bf16.gmra.mxu0 %v3213
        %v3281 = vpop.f32.mrf.mxu0
        %v3282 = vadd.f32 0.0, %v3281
        %v3283 = vpop.f32.mrf.mxu0
        %v3284 = vadd.f32 0.0, %v3283
        %3285 = vmatmul.bf16.gmra.mxu0 %v3216
        %v3286 = vpop.f32.mrf.mxu0
        %v3287 = vadd.f32 0.0, %v3286
        %v3288 = vpop.f32.mrf.mxu0
        %v3289 = vadd.f32 0.0, %v3288
        %3290 = vmatmul.bf16.gmra.mxu0 %v3219
        %v3291 = vpop.f32.mrf.mxu0
        %v3292 = vadd.f32 0.0, %v3291
        %v3293 = vpop.f32.mrf.mxu0
        %v3294 = vadd.f32 0.0, %v3293
        %3295 = vmatmul.bf16.gmra.mxu0 %v3222
        %v3296 = vpop.f32.mrf.mxu0
        %v3297 = vadd.f32 0.0, %v3296
        %v3298 = vpop.f32.mrf.mxu0
        %v3299 = vadd.f32 0.0, %v3298
        %3300 = vmatmul.bf16.gmra.mxu0 %v3225
        %v3301 = vpop.f32.mrf.mxu0
        %v3302 = vadd.f32 0.0, %v3301
        %v3303 = vpop.f32.mrf.mxu0
        %v3304 = vadd.f32 0.0, %v3303
        %3305 = vmatmul.bf16.gmra.mxu0 %v3228
        %v3306 = vpop.f32.mrf.mxu0
        %v3307 = vadd.f32 0.0, %v3306
        %v3308 = vpop.f32.mrf.mxu0
        %v3309 = vadd.f32 0.0, %v3308
        %3310 = vmatmul.bf16.gmra.mxu0 %v3231
        %v3311 = vpop.f32.mrf.mxu0
        %v3312 = vadd.f32 0.0, %v3311
        %v3313 = vpop.f32.mrf.mxu0
        %v3314 = vadd.f32 0.0, %v3313
        %3315 = vmatmul.bf16.gmra.mxu0 %v3234
        %v3316 = vpop.f32.mrf.mxu0
        %v3317 = vadd.f32 0.0, %v3316
        %v3318 = vpop.f32.mrf.mxu0
        %v3319 = vadd.f32 0.0, %v3318
        %3320 = vmatmul.bf16.gmra.mxu0 %v3237
        %v3321 = vpop.f32.mrf.mxu0
        %v3322 = vadd.f32 0.0, %v3321
        %v3323 = vpop.f32.mrf.mxu0
        %v3324 = vadd.f32 0.0, %v3323
        %3325 = vmatmul.bf16.gmra.mxu0 %v3240
        %v3326 = vpop.f32.mrf.mxu0
        %v3327 = vadd.f32 0.0, %v3326
        %v3328 = vpop.f32.mrf.mxu0
        %v3329 = vadd.f32 0.0, %v3328
        %3330 = vdwg.mxu0
        %v3331 = vadd.f32 %v3066, %v3252
        %v3332 = vadd.f32 %v3068, %v3254
        %v3333 = vadd.f32 %v3071, %v3257
        %v3334 = vadd.f32 %v3073, %v3259
        %v3335 = vadd.f32 %v3076, %v3262
        %v3336 = vadd.f32 %v3078, %v3264
        %v3337 = vadd.f32 %v3081, %v3267
        %v3338 = vadd.f32 %v3083, %v3269
        %v3339 = vadd.f32 %v3086, %v3272
        %v3340 = vadd.f32 %v3088, %v3274
        %v3341 = vadd.f32 %v3091, %v3277
        %v3342 = vadd.f32 %v3093, %v3279
        %v3343 = vadd.f32 %v3096, %v3282
        %v3344 = vadd.f32 %v3098, %v3284
        %v3345 = vadd.f32 %v3101, %v3287
        %v3346 = vadd.f32 %v3103, %v3289
        %v3347 = vadd.f32 %v3106, %v3292
        %v3348 = vadd.f32 %v3108, %v3294
        %v3349 = vadd.f32 %v3111, %v3297
        %v3350 = vadd.f32 %v3113, %v3299
        %v3351 = vadd.f32 %v3116, %v3302
        %v3352 = vadd.f32 %v3118, %v3304
        %v3353 = vadd.f32 %v3121, %v3307
        %v3354 = vadd.f32 %v3123, %v3309
        %v3355 = vadd.f32 %v3126, %v3312
        %v3356 = vadd.f32 %v3128, %v3314
        %v3357 = vadd.f32 %v3131, %v3317
        %v3358 = vadd.f32 %v3133, %v3319
        %v3359 = vadd.f32 %v3136, %v3322
        %v3360 = vadd.f32 %v3138, %v3324
        %v3361 = vadd.f32 %v3141, %v3327
        %v3362 = vadd.f32 %v3143, %v3329
        %v3363 = vld [vmem:[%s6] sm:$0x1]
        %v3365 = vperm.slane %v3363, 0
        %v3367 = vadd.f32 %v3331, %v3365
        %v3368 = vadd.f32 %v3332, %v3365
        %v3369 = vadd.f32 %v3333, %v3365
        %v3370 = vadd.f32 %v3334, %v3365
        %v3371 = vadd.f32 %v3335, %v3365
        %v3372 = vadd.f32 %v3336, %v3365
        %v3373 = vadd.f32 %v3337, %v3365
        %v3374 = vadd.f32 %v3338, %v3365
        %v3375 = vadd.f32 %v3339, %v3365
        %v3376 = vadd.f32 %v3340, %v3365
        %v3377 = vadd.f32 %v3341, %v3365
        %v3378 = vadd.f32 %v3342, %v3365
        %v3379 = vadd.f32 %v3343, %v3365
        %v3380 = vadd.f32 %v3344, %v3365
        %v3381 = vadd.f32 %v3345, %v3365
        %v3382 = vadd.f32 %v3346, %v3365
        %v3383 = vadd.f32 %v3347, %v3365
        %v3384 = vadd.f32 %v3348, %v3365
        %v3385 = vadd.f32 %v3349, %v3365
        %v3386 = vadd.f32 %v3350, %v3365
        %v3387 = vadd.f32 %v3351, %v3365
        %v3388 = vadd.f32 %v3352, %v3365
        %v3389 = vadd.f32 %v3353, %v3365
        %v3390 = vadd.f32 %v3354, %v3365
        %v3391 = vadd.f32 %v3355, %v3365
        %v3392 = vadd.f32 %v3356, %v3365
        %v3393 = vadd.f32 %v3357, %v3365
        %v3394 = vadd.f32 %v3358, %v3365
        %v3395 = vadd.f32 %v3359, %v3365
        %v3396 = vadd.f32 %v3360, %v3365
        %v3397 = vadd.f32 %v3361, %v3365
        %v3398 = vadd.f32 %v3362, %v3365
        %v3399 = vadd.f32 %v3367, %v554
        %v3400 = vadd.f32 %v3368, %v555
        %v3401 = vadd.f32 %v3369, %v556
        %v3402 = vadd.f32 %v3370, %v557
        %v3403 = vadd.f32 %v3371, %v558
        %v3404 = vadd.f32 %v3372, %v559
        %v3405 = vadd.f32 %v3373, %v560
        %v3406 = vadd.f32 %v3374, %v561
        %v3407 = vadd.f32 %v3375, %v562
        %v3408 = vadd.f32 %v3376, %v563
        %v3409 = vadd.f32 %v3377, %v564
        %v3410 = vadd.f32 %v3378, %v565
        %v3411 = vadd.f32 %v3379, %v566
        %v3412 = vadd.f32 %v3380, %v567
        %v3413 = vadd.f32 %v3381, %v568
        %v3414 = vadd.f32 %v3382, %v569
        %v3415 = vadd.f32 %v3383, %v570
        %v3416 = vadd.f32 %v3384, %v571
        %v3417 = vadd.f32 %v3385, %v572
        %v3418 = vadd.f32 %v3386, %v573
        %v3419 = vadd.f32 %v3387, %v574
        %v3420 = vadd.f32 %v3388, %v575
        %v3421 = vadd.f32 %v3389, %v576
        %v3422 = vadd.f32 %v3390, %v577
        %v3423 = vadd.f32 %v3391, %v578
        %v3424 = vadd.f32 %v3392, %v579
        %v3425 = vadd.f32 %v3393, %v580
        %v3426 = vadd.f32 %v3394, %v581
        %v3427 = vadd.f32 %v3395, %v582
        %v3428 = vadd.f32 %v3396, %v583
        %v3429 = vadd.f32 %v3397, %v584
        %v3430 = vadd.f32 %v3398, %v585
        %v3431 = vmax.f32 %v3399, 0.0
        %v3432 = vmax.f32 %v3400, 0.0
        %v3433 = vmax.f32 %v3401, 0.0
        %v3434 = vmax.f32 %v3402, 0.0
        %v3435 = vmax.f32 %v3403, 0.0
        %v3436 = vmax.f32 %v3404, 0.0
        %v3437 = vmax.f32 %v3405, 0.0
        %v3438 = vmax.f32 %v3406, 0.0
        %v3439 = vmax.f32 %v3407, 0.0
        %v3440 = vmax.f32 %v3408, 0.0
        %v3441 = vmax.f32 %v3409, 0.0
        %v3442 = vmax.f32 %v3410, 0.0
        %v3443 = vmax.f32 %v3411, 0.0
        %v3444 = vmax.f32 %v3412, 0.0
        %v3445 = vmax.f32 %v3413, 0.0
        %v3446 = vmax.f32 %v3414, 0.0
        %v3447 = vmax.f32 %v3415, 0.0
        %v3448 = vmax.f32 %v3416, 0.0
        %v3449 = vmax.f32 %v3417, 0.0
        %v3450 = vmax.f32 %v3418, 0.0
        %v3451 = vmax.f32 %v3419, 0.0
        %v3452 = vmax.f32 %v3420, 0.0
        %v3453 = vmax.f32 %v3421, 0.0
        %v3454 = vmax.f32 %v3422, 0.0
        %v3455 = vmax.f32 %v3423, 0.0
        %v3456 = vmax.f32 %v3424, 0.0
        %v3457 = vmax.f32 %v3425, 0.0
        %v3458 = vmax.f32 %v3426, 0.0
        %v3459 = vmax.f32 %v3427, 0.0
        %v3460 = vmax.f32 %v3428, 0.0
        %v3461 = vmax.f32 %v3429, 0.0
        %v3462 = vmax.f32 %v3430, 0.0
        %v3463 = vsel %vm671, %v3431, 0.0
        %v3464 = vsel %vm671, %v3433, 0.0
        %v3465 = vadd.f32 %v3463, %v3464
        %v3466 = vsel %vm671, %v3435, 0.0
        %v3467 = vadd.f32 %v3465, %v3466
        %v3468 = vsel %vm671, %v3437, 0.0
        %v3469 = vadd.f32 %v3467, %v3468
        %v3470 = vsel %vm671, %v3439, 0.0
        %v3471 = vadd.f32 %v3469, %v3470
        %v3472 = vsel %vm671, %v3441, 0.0
        %v3473 = vadd.f32 %v3471, %v3472
        %v3474 = vsel %vm671, %v3443, 0.0
        %v3475 = vadd.f32 %v3473, %v3474
        %v3476 = vsel %vm671, %v3445, 0.0
        %v3477 = vadd.f32 %v3475, %v3476
        %v3478 = vsel %vm671, %v3447, 0.0
        %v3479 = vadd.f32 %v3477, %v3478
        %v3480 = vsel %vm671, %v3449, 0.0
        %v3481 = vadd.f32 %v3479, %v3480
        %v3482 = vsel %vm671, %v3451, 0.0
        %v3483 = vadd.f32 %v3481, %v3482
        %v3484 = vsel %vm671, %v3453, 0.0
        %v3485 = vadd.f32 %v3483, %v3484
        %v3486 = vsel %vm671, %v3455, 0.0
        %v3487 = vadd.f32 %v3485, %v3486
        %v3488 = vsel %vm671, %v3457, 0.0
        %v3489 = vadd.f32 %v3487, %v3488
        %v3490 = vsel %vm671, %v3459, 0.0
        %v3491 = vadd.f32 %v3489, %v3490
        %v3492 = vsel %vm671, %v3461, 0.0
        %v3493 = vadd.f32 %v3491, %v3492
        %v3494 = vsel %vm671, %v3432, 0.0
        %v3495 = vsel %vm671, %v3434, 0.0
        %v3496 = vadd.f32 %v3494, %v3495
        %v3497 = vsel %vm671, %v3436, 0.0
        %v3498 = vadd.f32 %v3496, %v3497
        %v3499 = vsel %vm671, %v3438, 0.0
        %v3500 = vadd.f32 %v3498, %v3499
        %v3501 = vsel %vm671, %v3440, 0.0
        %v3502 = vadd.f32 %v3500, %v3501
        %v3503 = vsel %vm671, %v3442, 0.0
        %v3504 = vadd.f32 %v3502, %v3503
        %v3505 = vsel %vm671, %v3444, 0.0
        %v3506 = vadd.f32 %v3504, %v3505
        %v3507 = vsel %vm671, %v3446, 0.0
        %v3508 = vadd.f32 %v3506, %v3507
        %v3509 = vsel %vm671, %v3448, 0.0
        %v3510 = vadd.f32 %v3508, %v3509
        %v3511 = vsel %vm671, %v3450, 0.0
        %v3512 = vadd.f32 %v3510, %v3511
        %v3513 = vsel %vm671, %v3452, 0.0
        %v3514 = vadd.f32 %v3512, %v3513
        %v3515 = vsel %vm671, %v3454, 0.0
        %v3516 = vadd.f32 %v3514, %v3515
        %v3517 = vsel %vm671, %v3456, 0.0
        %v3518 = vadd.f32 %v3516, %v3517
        %v3519 = vsel %vm671, %v3458, 0.0
        %v3520 = vadd.f32 %v3518, %v3519
        %v3521 = vsel %vm671, %v3460, 0.0
        %v3522 = vadd.f32 %v3520, %v3521
        %v3523 = vsel %vm671, %v3462, 0.0
        %v3524 = vadd.f32 %v3522, %v3523
        %v3525 = vrcp.pop 16.0
        %v3526 = vmul.f32 16.0, %v3525
        %v3527 = vsub.f32 1.0, %v3526
        %v3528 = vmul.f32 %v3525, %v3527
        %v3529 = vadd.f32 %v3525, %v3528
        %vm3530 = vweird.f32 %v3525
        %v3531 = vsel %vm3530, %v3525, %v3529
        %v3532 = vmul.f32 %v3493, %v3531
        %v3533 = vmul.f32 %v3524, %v3531
        %vm3536 = vcmask 1046528
        %v3537 = vrot.slane %v3532, 1
        %v3538 = vrot.slane %v3533, 1
        %v3539 = vsel %vm3536, %v3537, %v3538
        %v3543 = vsel %vm3536, 0.0, %v3537
        %v3544 = vsel %vm3536, %v3538, 0.0
        %v3547 = vrot.slane %v3543, 1
        %v3548 = vrot.slane %v3539, 1
        %v3549 = vsel %vm3536, %v3547, %v3548
        %v3550 = vrot.slane %v3544, 1
        %v3551 = vsel %vm3536, %v3548, %v3550
        %3552 = vrot.lane.b32.xlu0 %v3549, 64
        %v3553 = vpop.permute.xlu0 %3552
        %3554 = vrot.lane.b32.xlu0 %v3551, 64
        %v3555 = vpop.permute.xlu0 %3554
        %vm3558 = vcmask 1045504
        %v3559 = vrot.slane %v3543, 2
        %v3560 = vrot.slane %v3539, 2
        %v3561 = vsel %vm3558, %v3559, %v3560
        %v3562 = vrot.slane %v3544, 2
        %v3563 = vsel %vm3558, %v3560, %v3562
        %vm3566 = vcmask 1044480
        %v3567 = vrot.slane %v3543, 3
        %v3568 = vrot.slane %v3539, 3
        %v3569 = vsel %vm3566, %v3567, %v3568
        %v3570 = vrot.slane %v3544, 3
        %v3571 = vsel %vm3566, %v3568, %v3570
        %3572 = vrot.lane.b32.xlu0 %v3569, 64
        %v3573 = vpop.permute.xlu0 %3572
        %3574 = vrot.lane.b32.xlu0 %v3571, 64
        %v3575 = vpop.permute.xlu0 %3574
        %vm3578 = vcmask 1043456
        %v3579 = vrot.slane %v3543, 4
        %v3580 = vrot.slane %v3539, 4
        %v3581 = vsel %vm3578, %v3579, %v3580
        %v3582 = vrot.slane %v3544, 4
        %v3583 = vsel %vm3578, %v3580, %v3582
        %vm3586 = vcmask 1042432
        %v3587 = vrot.slane %v3543, 5
        %v3588 = vrot.slane %v3539, 5
        %v3589 = vsel %vm3586, %v3587, %v3588
        %v3590 = vrot.slane %v3544, 5
        %v3591 = vsel %vm3586, %v3588, %v3590
        %3592 = vrot.lane.b32.xlu0 %v3589, 64
        %v3593 = vpop.permute.xlu0 %3592
        %3594 = vrot.lane.b32.xlu0 %v3591, 64
        %v3595 = vpop.permute.xlu0 %3594
        %vm3598 = vcmask 1041408
        %v3599 = vrot.slane %v3543, 6
        %v3600 = vrot.slane %v3539, 6
        %v3601 = vsel %vm3598, %v3599, %v3600
        %v3602 = vrot.slane %v3544, 6
        %v3603 = vsel %vm3598, %v3600, %v3602
        %vm3606 = vcmask 1040384
        %v3607 = vrot.slane %v3543, 7
        %v3608 = vrot.slane %v3539, 7
        %v3609 = vsel %vm3606, %v3607, %v3608
        %v3610 = vrot.slane %v3544, 7
        %v3611 = vsel %vm3606, %v3608, %v3610
        %3612 = vrot.lane.b32.xlu0 %v3609, 64
        %v3613 = vpop.permute.xlu0 %3612
        %3614 = vrot.lane.b32.xlu0 %v3611, 64
        %v3615 = vpop.permute.xlu0 %3614
        %v3619 = vrot.slane 0.0, 1
        %v3620 = vsel %vm3536, %v3550, %v3619
        %3621 = vrot.lane.b32.xlu0 %v3620, 64
        %v3622 = vpop.permute.xlu0 %3621
        %v3624 = vrot.slane 0.0, 2
        %v3625 = vsel %vm3558, %v3562, %v3624
        %v3627 = vrot.slane 0.0, 3
        %v3628 = vsel %vm3566, %v3570, %v3627
        %3629 = vrot.lane.b32.xlu0 %v3628, 64
        %v3630 = vpop.permute.xlu0 %3629
        %v3632 = vrot.slane 0.0, 4
        %v3633 = vsel %vm3578, %v3582, %v3632
        %v3635 = vrot.slane 0.0, 5
        %v3636 = vsel %vm3586, %v3590, %v3635
        %3637 = vrot.lane.b32.xlu0 %v3636, 64
        %v3638 = vpop.permute.xlu0 %3637
        %v3640 = vrot.slane 0.0, 6
        %v3641 = vsel %vm3598, %v3602, %v3640
        %v3642 = vsel %vm671, %v3543, %v3553
        %v3643 = vsel %vm671, %v3539, %v3555
        %v3644 = vsel %vm671, %v3561, %v3573
        %v3645 = vsel %vm671, %v3563, %v3575
        %v3646 = vsel %vm671, %v3581, %v3593
        %v3647 = vsel %vm671, %v3583, %v3595
        %v3648 = vsel %vm671, %v3601, %v3613
        %v3649 = vsel %vm671, %v3603, %v3615
        %v3650 = vsel %vm671, %v3544, %v3622
        %v3651 = vsel %vm671, %v3625, %v3630
        %v3652 = vsel %vm671, %v3633, %v3638
        %v3653 = vld [vmem:[%s7] sm:$0xff]
        %v3654 = vld [vmem:[%s7 + $0x8] sm:$0xff]
        %v3655 = vld [vmem:[%s7 + $0x10] sm:$0xff]
        %v3656 = vld [vmem:[%s7 + $0x18] sm:$0xff]
        %v3657 = vld [vmem:[%s7 + $0x20] sm:$0xff]
        %v3658 = vld [vmem:[%s7 + $0x28] sm:$0xff]
        %v3659 = vld [vmem:[%s7 + $0x30] sm:$0xff]
        %v3660 = vld [vmem:[%s7 + $0x38] sm:$0xff]
        %v3661 = vld [vmem:[%s7 + $0x40] sm:$0xff]
        %v3662 = vld [vmem:[%s7 + $0x48] sm:$0xff]
        %v3663 = vld [vmem:[%s7 + $0x50] sm:$0xff]
        %v3664 = vld [vmem:[%s7 + $0x58] sm:$0xff]
        %v3665 = vld [vmem:[%s7 + $0x60] sm:$0xff]
        %v3666 = vld [vmem:[%s7 + $0x68] sm:$0xff]
        %v3667 = vld [vmem:[%s7 + $0x70] sm:$0xff]
        %v3668 = vld [vmem:[%s7 + $0x78] sm:$0xff]
        %v3669 = vld [vmem:[%s7 + $0x80] sm:$0xff]
        %v3670 = vld [vmem:[%s7 + $0x88] sm:$0xff]
        %v3671 = vld [vmem:[%s7 + $0x90] sm:$0xff]
        %v3672 = vld [vmem:[%s7 + $0x98] sm:$0xff]
        %v3673 = vld [vmem:[%s7 + $0xa0] sm:$0xff]
        %v3674 = vld [vmem:[%s7 + $0xa8] sm:$0xff]
        %v3675 = vld [vmem:[%s7 + $0xb0] sm:$0xff]
        %v3676 = vld [vmem:[%s7 + $0xb8] sm:$0xff]
        %v3677 = vld [vmem:[%s7 + $0xc0] sm:$0xff]
        %v3678 = vld [vmem:[%s7 + $0xc8] sm:$0xff]
        %v3679 = vld [vmem:[%s7 + $0xd0] sm:$0xff]
        %v3680 = vld [vmem:[%s7 + $0xd8] sm:$0xff]
        %v3681 = vld [vmem:[%s7 + $0xe0] sm:$0xff]
        %v3682 = vld [vmem:[%s7 + $0xe8] sm:$0xff]
        %v3683 = vld [vmem:[%s7 + $0xf0] sm:$0xff]
        %v3684 = vld [vmem:[%s7 + $0xf8] sm:$0xff]
        %v3685 = vld [vmem:[%s7 + $0x100] sm:$0xff]
        %v3686 = vld [vmem:[%s7 + $0x108] sm:$0xff]
        %v3687 = vld [vmem:[%s7 + $0x110] sm:$0xff]
        %v3688 = vld [vmem:[%s7 + $0x118] sm:$0xff]
        %v3689 = vld [vmem:[%s7 + $0x120] sm:$0xff]
        %v3690 = vld [vmem:[%s7 + $0x128] sm:$0xff]
        %v3691 = vld [vmem:[%s7 + $0x130] sm:$0xff]
        %v3692 = vld [vmem:[%s7 + $0x138] sm:$0xff]
        %v3693 = vld [vmem:[%s7 + $0x140] sm:$0xff]
        %v3694 = vld [vmem:[%s7 + $0x148] sm:$0xff]
        %v3695 = vld [vmem:[%s7 + $0x150] sm:$0xff]
        %v3696 = vld [vmem:[%s7 + $0x158] sm:$0xff]
        %v3697 = vld [vmem:[%s7 + $0x160] sm:$0xff]
        %v3698 = vld [vmem:[%s7 + $0x168] sm:$0xff]
        %v3699 = vld [vmem:[%s7 + $0x170] sm:$0xff]
        %v3700 = vld [vmem:[%s7 + $0x178] sm:$0xff]
        %v3701 = vld [vmem:[%s7 + $0x180] sm:$0xff]
        %v3702 = vld [vmem:[%s7 + $0x188] sm:$0xff]
        %v3703 = vld [vmem:[%s7 + $0x190] sm:$0xff]
        %v3704 = vld [vmem:[%s7 + $0x198] sm:$0xff]
        %v3705 = vld [vmem:[%s7 + $0x1a0] sm:$0xff]
        %v3706 = vld [vmem:[%s7 + $0x1a8] sm:$0xff]
        %v3707 = vld [vmem:[%s7 + $0x1b0] sm:$0xff]
        %v3708 = vld [vmem:[%s7 + $0x1b8] sm:$0xff]
        %v3709 = vld [vmem:[%s7 + $0x1c0] sm:$0xff]
        %v3710 = vld [vmem:[%s7 + $0x1c8] sm:$0xff]
        %v3711 = vld [vmem:[%s7 + $0x1d0] sm:$0xff]
        %v3712 = vld [vmem:[%s7 + $0x1d8] sm:$0xff]
        %v3713 = vld [vmem:[%s7 + $0x1e0] sm:$0xff]
        %v3714 = vld [vmem:[%s7 + $0x1e8] sm:$0xff]
        %v3715 = vld [vmem:[%s7 + $0x1f0] sm:$0xff]
        %v3716 = vld [vmem:[%s7 + $0x1f8] sm:$0xff]
        %v3717 = vld [vmem:[%s7 + $0x200] sm:$0xff]
        %v3718 = vld [vmem:[%s7 + $0x208] sm:$0xff]
        %v3719 = vld [vmem:[%s7 + $0x210] sm:$0xff]
        %v3720 = vld [vmem:[%s7 + $0x218] sm:$0xff]
        %v3721 = vld [vmem:[%s7 + $0x220] sm:$0xff]
        %v3722 = vld [vmem:[%s7 + $0x228] sm:$0xff]
        %v3723 = vld [vmem:[%s7 + $0x230] sm:$0xff]
        %v3724 = vld [vmem:[%s7 + $0x238] sm:$0xff]
        %v3725 = vld [vmem:[%s7 + $0x240] sm:$0xff]
        %v3726 = vld [vmem:[%s7 + $0x248] sm:$0xff]
        %v3727 = vld [vmem:[%s7 + $0x250] sm:$0xff]
        %v3728 = vld [vmem:[%s7 + $0x258] sm:$0xff]
        %v3729 = vld [vmem:[%s7 + $0x260] sm:$0xff]
        %v3730 = vld [vmem:[%s7 + $0x268] sm:$0xff]
        %v3731 = vld [vmem:[%s7 + $0x270] sm:$0xff]
        %v3732 = vld [vmem:[%s7 + $0x278] sm:$0xff]
        %v3733 = vld [vmem:[%s7 + $0x280] sm:$0xff]
        %v3734 = vld [vmem:[%s7 + $0x288] sm:$0xff]
        %v3735 = vld [vmem:[%s7 + $0x290] sm:$0xff]
        %v3736 = vld [vmem:[%s7 + $0x298] sm:$0xff]
        %v3737 = vld [vmem:[%s7 + $0x2a0] sm:$0xff]
        %v3738 = vld [vmem:[%s7 + $0x2a8] sm:$0xff]
        %v3739 = vld [vmem:[%s7 + $0x2b0] sm:$0xff]
        %v3740 = vld [vmem:[%s7 + $0x2b8] sm:$0xff]
        %v3741 = vld [vmem:[%s7 + $0x2c0] sm:$0xff]
        %v3742 = vld [vmem:[%s7 + $0x2c8] sm:$0xff]
        %v3743 = vld [vmem:[%s7 + $0x2d0] sm:$0xff]
        %v3744 = vld [vmem:[%s7 + $0x2d8] sm:$0xff]
        %v3745 = vld [vmem:[%s7 + $0x2e0] sm:$0xff]
        %v3746 = vld [vmem:[%s7 + $0x2e8] sm:$0xff]
        %v3747 = vld [vmem:[%s7 + $0x2f0] sm:$0xff]
        %v3748 = vld [vmem:[%s7 + $0x2f8] sm:$0xff]
        %v3749 = vld [vmem:[%s7 + $0x300] sm:$0xff]
        %v3750 = vld [vmem:[%s7 + $0x308] sm:$0xff]
        %v3751 = vld [vmem:[%s7 + $0x310] sm:$0xff]
        %v3752 = vld [vmem:[%s7 + $0x318] sm:$0xff]
        %v3753 = vld [vmem:[%s7 + $0x320] sm:$0xff]
        %v3754 = vld [vmem:[%s7 + $0x328] sm:$0xff]
        %v3755 = vld [vmem:[%s7 + $0x330] sm:$0xff]
        %v3756 = vld [vmem:[%s7 + $0x338] sm:$0xff]
        %v3757 = vld [vmem:[%s7 + $0x340] sm:$0xff]
        %v3758 = vld [vmem:[%s7 + $0x348] sm:$0xff]
        %v3759 = vld [vmem:[%s7 + $0x350] sm:$0xff]
        %v3760 = vld [vmem:[%s7 + $0x358] sm:$0xff]
        %v3761 = vld [vmem:[%s7 + $0x360] sm:$0xff]
        %v3762 = vld [vmem:[%s7 + $0x368] sm:$0xff]
        %v3763 = vld [vmem:[%s7 + $0x370] sm:$0xff]
        %v3764 = vld [vmem:[%s7 + $0x378] sm:$0xff]
        %v3765 = vld [vmem:[%s7 + $0x380] sm:$0xff]
        %v3766 = vld [vmem:[%s7 + $0x388] sm:$0xff]
        %v3767 = vld [vmem:[%s7 + $0x390] sm:$0xff]
        %v3768 = vld [vmem:[%s7 + $0x398] sm:$0xff]
        %v3769 = vld [vmem:[%s7 + $0x3a0] sm:$0xff]
        %v3770 = vld [vmem:[%s7 + $0x3a8] sm:$0xff]
        %v3771 = vld [vmem:[%s7 + $0x3b0] sm:$0xff]
        %v3772 = vld [vmem:[%s7 + $0x3b8] sm:$0xff]
        %v3773 = vld [vmem:[#allocation3] sm:$0x1]
        %v3775 = vperm.slane %v3773, 0
        %v3777 = vsel %vm671, %v3603, 0
        %v3779 = vsel %vm671, %v3641, 0
        %3781 = vmatpush.msra.mxu0 %v3668
        %3782 = vmatpush.msra.mxu0 %v3667
        %3783 = vmatpush.msra.mxu0 %v3666
        %3784 = vmatpush.msra.mxu0 %v3665
        %3785 = vmatpush.msra.mxu0 %v3664
        %3786 = vmatpush.msra.mxu0 %v3663
        %3787 = vmatpush.msra.mxu0 %v3662
        %3788 = vmatpush.msra.mxu0 %v3661
        %3789 = vmatpush.msra.mxu0 %v3660
        %3790 = vmatpush.msra.mxu0 %v3659
        %3791 = vmatpush.msra.mxu0 %v3658
        %3792 = vmatpush.msra.mxu0 %v3657
        %3793 = vmatpush.msra.mxu0 %v3656
        %3794 = vmatpush.msra.mxu0 %v3655
        %3795 = vmatpush.msra.mxu0 %v3654
        %3796 = vmatpush.msra.mxu0 %v3653
        %3797 = vmatmul.f32.gmra.mxu0 %v3642
        %v3798 = vpop.f32.mrf.mxu0
        %v3799 = vadd.f32 %v3775, %v3798
        %3800 = vmatmul.f32.gmra.mxu0 %v3643
        %v3801 = vpop.f32.mrf.mxu0
        %v3802 = vadd.f32 %v3775, %v3801
        %3803 = vdwg.mxu0
        %3804 = vmatpush.msra.mxu0 %v3684
        %3805 = vmatpush.msra.mxu0 %v3683
        %3806 = vmatpush.msra.mxu0 %v3682
        %3807 = vmatpush.msra.mxu0 %v3681
        %3808 = vmatpush.msra.mxu0 %v3680
        %3809 = vmatpush.msra.mxu0 %v3679
        %3810 = vmatpush.msra.mxu0 %v3678
        %3811 = vmatpush.msra.mxu0 %v3677
        %3812 = vmatpush.msra.mxu0 %v3676
        %3813 = vmatpush.msra.mxu0 %v3675
        %3814 = vmatpush.msra.mxu0 %v3674
        %3815 = vmatpush.msra.mxu0 %v3673
        %3816 = vmatpush.msra.mxu0 %v3672
        %3817 = vmatpush.msra.mxu0 %v3671
        %3818 = vmatpush.msra.mxu0 %v3670
        %3819 = vmatpush.msra.mxu0 %v3669
        %3820 = vmatmul.f32.gmra.mxu0 %v3644
        %v3821 = vpop.f32.mrf.mxu0
        %v3822 = vadd.f32 %v3799, %v3821
        %3823 = vmatmul.f32.gmra.mxu0 %v3645
        %v3824 = vpop.f32.mrf.mxu0
        %v3825 = vadd.f32 %v3802, %v3824
        %3826 = vdwg.mxu0
        %3827 = vmatpush.msra.mxu0 %v3700
        %3828 = vmatpush.msra.mxu0 %v3699
        %3829 = vmatpush.msra.mxu0 %v3698
        %3830 = vmatpush.msra.mxu0 %v3697
        %3831 = vmatpush.msra.mxu0 %v3696
        %3832 = vmatpush.msra.mxu0 %v3695
        %3833 = vmatpush.msra.mxu0 %v3694
        %3834 = vmatpush.msra.mxu0 %v3693
        %3835 = vmatpush.msra.mxu0 %v3692
        %3836 = vmatpush.msra.mxu0 %v3691
        %3837 = vmatpush.msra.mxu0 %v3690
        %3838 = vmatpush.msra.mxu0 %v3689
        %3839 = vmatpush.msra.mxu0 %v3688
        %3840 = vmatpush.msra.mxu0 %v3687
        %3841 = vmatpush.msra.mxu0 %v3686
        %3842 = vmatpush.msra.mxu0 %v3685
        %3843 = vmatmul.f32.gmra.mxu0 %v3646
        %v3844 = vpop.f32.mrf.mxu0
        %v3845 = vadd.f32 %v3822, %v3844
        %3846 = vmatmul.f32.gmra.mxu0 %v3647
        %v3847 = vpop.f32.mrf.mxu0
        %v3848 = vadd.f32 %v3825, %v3847
        %3849 = vdwg.mxu0
        %3850 = vmatpush.msra.mxu0 %v3716
        %3851 = vmatpush.msra.mxu0 %v3715
        %3852 = vmatpush.msra.mxu0 %v3714
        %3853 = vmatpush.msra.mxu0 %v3713
        %3854 = vmatpush.msra.mxu0 %v3712
        %3855 = vmatpush.msra.mxu0 %v3711
        %3856 = vmatpush.msra.mxu0 %v3710
        %3857 = vmatpush.msra.mxu0 %v3709
        %3858 = vmatpush.msra.mxu0 %v3708
        %3859 = vmatpush.msra.mxu0 %v3707
        %3860 = vmatpush.msra.mxu0 %v3706
        %3861 = vmatpush.msra.mxu0 %v3705
        %3862 = vmatpush.msra.mxu0 %v3704
        %3863 = vmatpush.msra.mxu0 %v3703
        %3864 = vmatpush.msra.mxu0 %v3702
        %3865 = vmatpush.msra.mxu0 %v3701
        %3866 = vmatmul.f32.gmra.mxu0 %v3648
        %v3867 = vpop.f32.mrf.mxu0
        %v3868 = vadd.f32 %v3845, %v3867
        %3869 = vmatmul.f32.gmra.mxu0 %v3649
        %v3870 = vpop.f32.mrf.mxu0
        %v3871 = vadd.f32 %v3848, %v3870
        %3872 = vdwg.mxu0
        %3873 = vmatpush.msra.mxu0 %v3732
        %3874 = vmatpush.msra.mxu0 %v3731
        %3875 = vmatpush.msra.mxu0 %v3730
        %3876 = vmatpush.msra.mxu0 %v3729
        %3877 = vmatpush.msra.mxu0 %v3728
        %3878 = vmatpush.msra.mxu0 %v3727
        %3879 = vmatpush.msra.mxu0 %v3726
        %3880 = vmatpush.msra.mxu0 %v3725
        %3881 = vmatpush.msra.mxu0 %v3724
        %3882 = vmatpush.msra.mxu0 %v3723
        %3883 = vmatpush.msra.mxu0 %v3722
        %3884 = vmatpush.msra.mxu0 %v3721
        %3885 = vmatpush.msra.mxu0 %v3720
        %3886 = vmatpush.msra.mxu0 %v3719
        %3887 = vmatpush.msra.mxu0 %v3718
        %3888 = vmatpush.msra.mxu0 %v3717
        %3889 = vmatmul.f32.gmra.mxu0 %v3643
        %v3890 = vpop.f32.mrf.mxu0
        %v3891 = vadd.f32 %v3868, %v3890
        %3892 = vmatmul.f32.gmra.mxu0 %v3650
        %v3893 = vpop.f32.mrf.mxu0
        %v3894 = vadd.f32 %v3871, %v3893
        %3895 = vdwg.mxu0
        %3896 = vmatpush.msra.mxu0 %v3748
        %3897 = vmatpush.msra.mxu0 %v3747
        %3898 = vmatpush.msra.mxu0 %v3746
        %3899 = vmatpush.msra.mxu0 %v3745
        %3900 = vmatpush.msra.mxu0 %v3744
        %3901 = vmatpush.msra.mxu0 %v3743
        %3902 = vmatpush.msra.mxu0 %v3742
        %3903 = vmatpush.msra.mxu0 %v3741
        %3904 = vmatpush.msra.mxu0 %v3740
        %3905 = vmatpush.msra.mxu0 %v3739
        %3906 = vmatpush.msra.mxu0 %v3738
        %3907 = vmatpush.msra.mxu0 %v3737
        %3908 = vmatpush.msra.mxu0 %v3736
        %3909 = vmatpush.msra.mxu0 %v3735
        %3910 = vmatpush.msra.mxu0 %v3734
        %3911 = vmatpush.msra.mxu0 %v3733
        %3912 = vmatmul.f32.gmra.mxu0 %v3645
        %v3913 = vpop.f32.mrf.mxu0
        %v3914 = vadd.f32 %v3891, %v3913
        %3915 = vmatmul.f32.gmra.mxu0 %v3651
        %v3916 = vpop.f32.mrf.mxu0
        %v3917 = vadd.f32 %v3894, %v3916
        %3918 = vdwg.mxu0
        %3919 = vmatpush.msra.mxu0 %v3764
        %3920 = vmatpush.msra.mxu0 %v3763
        %3921 = vmatpush.msra.mxu0 %v3762
        %3922 = vmatpush.msra.mxu0 %v3761
        %3923 = vmatpush.msra.mxu0 %v3760
        %3924 = vmatpush.msra.mxu0 %v3759
        %3925 = vmatpush.msra.mxu0 %v3758
        %3926 = vmatpush.msra.mxu0 %v3757
        %3927 = vmatpush.msra.mxu0 %v3756
        %3928 = vmatpush.msra.mxu0 %v3755
        %3929 = vmatpush.msra.mxu0 %v3754
        %3930 = vmatpush.msra.mxu0 %v3753
        %3931 = vmatpush.msra.mxu0 %v3752
        %3932 = vmatpush.msra.mxu0 %v3751
        %3933 = vmatpush.msra.mxu0 %v3750
        %3934 = vmatpush.msra.mxu0 %v3749
        %3935 = vmatmul.f32.gmra.mxu0 %v3647
        %v3936 = vpop.f32.mrf.mxu0
        %v3937 = vadd.f32 %v3914, %v3936
        %3938 = vmatmul.f32.gmra.mxu0 %v3652
        %v3939 = vpop.f32.mrf.mxu0
        %v3940 = vadd.f32 %v3917, %v3939
        %3941 = vdwg.mxu0
        %3942 = vmatpush.msra.mxu0 0.0
        %3943 = vmatpush.msra.mxu0 0.0
        %3944 = vmatpush.msra.mxu0 0.0
        %3945 = vmatpush.msra.mxu0 0.0
        %3946 = vmatpush.msra.mxu0 0.0
        %3947 = vmatpush.msra.mxu0 0.0
        %3948 = vmatpush.msra.mxu0 0.0
        %3949 = vmatpush.msra.mxu0 0.0
        %3950 = vmatpush.msra.mxu0 %v3772
        %3951 = vmatpush.msra.mxu0 %v3771
        %3952 = vmatpush.msra.mxu0 %v3770
        %3953 = vmatpush.msra.mxu0 %v3769
        %3954 = vmatpush.msra.mxu0 %v3768
        %3955 = vmatpush.msra.mxu0 %v3767
        %3956 = vmatpush.msra.mxu0 %v3766
        %3957 = vmatpush.msra.mxu0 %v3765
        %3958 = vmatmul.f32.gmra.mxu0 %v3777
        %v3959 = vpop.f32.mrf.mxu0
        %v3960 = vadd.f32 %v3937, %v3959
        %3961 = vmatmul.f32.gmra.mxu0 %v3779
        %v3962 = vpop.f32.mrf.mxu0
        %v3963 = vadd.f32 %v3940, %v3962
        %3964 = vdwg.mxu0
        %v3965 = vxor.u32 %v3960, 2147483648
        %v3966 = vxor.u32 %v3963, 2147483648
        %v3967 = vmul.f32 %v3965, 1.442695
        %v3968 = vpow.pop %v3967
        %v3969 = vmul.f32 %v3966, 1.442695
        %v3970 = vpow.pop %v3969
        %v3971 = vadd.f32 %v3968, 1.0
        %v3972 = vadd.f32 %v3970, 1.0
        %v3973 = vrcp.pop %v3971
        %v3974 = vmul.f32 %v3971, %v3973
        %v3975 = vsub.f32 1.0, %v3974
        %v3976 = vmul.f32 %v3973, %v3975
        %v3977 = vadd.f32 %v3973, %v3976
        %vm3978 = vweird.f32 %v3971
        %vm3979 = vweird.f32 %v3973
        %vm3980 = vmor %vm3978, %vm3979
        %v3981 = vsel %vm3980, %v3973, %v3977
        %v3982 = vand.u32 2147483647, %v3971
        %vm3983 = vcmp.eq.f32.partialorder %v3982, 8.507059e+37
        %v3984 = vand.u32 %v3971, 2147483648
        %v3985 = vor.u32 1.1754944e-38, %v3984
        %v3986 = vsel %vm3983, %v3985, %v3981
        %v3987 = vmul.f32 1.0, %v3986
        %v3988 = vrcp.pop %v3972
        %v3989 = vmul.f32 %v3972, %v3988
        %v3990 = vsub.f32 1.0, %v3989
        %v3991 = vmul.f32 %v3988, %v3990
        %v3992 = vadd.f32 %v3988, %v3991
        %vm3993 = vweird.f32 %v3972
        %vm3994 = vweird.f32 %v3988
        %vm3995 = vmor %vm3993, %vm3994
        %v3996 = vsel %vm3995, %v3988, %v3992
        %v3997 = vand.u32 2147483647, %v3972
        %vm3998 = vcmp.eq.f32.partialorder %v3997, 8.507059e+37
        %v3999 = vand.u32 %v3972, 2147483648
        %v4000 = vor.u32 1.1754944e-38, %v3999
        %v4001 = vsel %vm3998, %v4000, %v3996
        %v4002 = vmul.f32 1.0, %v4001
        %v4003 = vadd.f32 %v3987, 1.0
        %v4004 = vadd.f32 %v4002, 1.0
        %4006 = vset.pattern.permute.xlu0 0
        %4007 = vperm.xlu0 %4006, %v4003
        %v4008 = vpop.permute.xlu0 %4007
        %4011 = vset.pattern.permute.xlu0 0
        %4012 = vperm.xlu0 %4011, %v4004
        %v4013 = vpop.permute.xlu0 %4012
        %v4015 = vmul.f32 %v3431, %v4008
        %v4016 = vmul.f32 %v3432, %v4013
        %v4017 = vmul.f32 %v3433, %v4008
        %v4018 = vmul.f32 %v3434, %v4013
        %v4019 = vmul.f32 %v3435, %v4008
        %v4020 = vmul.f32 %v3436, %v4013
        %v4021 = vmul.f32 %v3437, %v4008
        %v4022 = vmul.f32 %v3438, %v4013
        %v4023 = vmul.f32 %v3439, %v4008
        %v4024 = vmul.f32 %v3440, %v4013
        %v4025 = vmul.f32 %v3441, %v4008
        %v4026 = vmul.f32 %v3442, %v4013
        %v4027 = vmul.f32 %v3443, %v4008
        %v4028 = vmul.f32 %v3444, %v4013
        %v4029 = vmul.f32 %v3445, %v4008
        %v4030 = vmul.f32 %v3446, %v4013
        %v4031 = vmul.f32 %v3447, %v4008
        %v4032 = vmul.f32 %v3448, %v4013
        %v4033 = vmul.f32 %v3449, %v4008
        %v4034 = vmul.f32 %v3450, %v4013
        %v4035 = vmul.f32 %v3451, %v4008
        %v4036 = vmul.f32 %v3452, %v4013
        %v4037 = vmul.f32 %v3453, %v4008
        %v4038 = vmul.f32 %v3454, %v4013
        %v4039 = vmul.f32 %v3455, %v4008
        %v4040 = vmul.f32 %v3456, %v4013
        %v4041 = vmul.f32 %v3457, %v4008
        %v4042 = vmul.f32 %v3458, %v4013
        %v4043 = vmul.f32 %v3459, %v4008
        %v4044 = vmul.f32 %v3460, %v4013
        %v4045 = vmul.f32 %v3461, %v4008
        %v4046 = vmul.f32 %v3462, %v4013
        %v4047 = vsel %vm671, %v4015, 0.0
        %v4048 = vsel %vm671, %v4016, 0.0
        %v4049 = vadd.f32 %v4047, %v4048
        %v4050 = vrot.slane %v4049, 4
        %v4051 = vadd.f32 %v4049, %v4050
        %v4052 = vrot.slane %v4051, 2
        %v4053 = vadd.f32 %v4051, %v4052
        %v4054 = vrot.slane %v4053, 1
        %v4055 = vadd.f32 %v4053, %v4054
        %v4056 = vsel %vm671, %v4017, 0.0
        %v4057 = vsel %vm671, %v4018, 0.0
        %v4058 = vadd.f32 %v4056, %v4057
        %v4059 = vrot.slane %v4058, 4
        %v4060 = vadd.f32 %v4058, %v4059
        %v4061 = vrot.slane %v4060, 2
        %v4062 = vadd.f32 %v4060, %v4061
        %v4063 = vrot.slane %v4062, 1
        %v4064 = vadd.f32 %v4062, %v4063
        %v4065 = vsel %vm671, %v4019, 0.0
        %v4066 = vsel %vm671, %v4020, 0.0
        %v4067 = vadd.f32 %v4065, %v4066
        %v4068 = vrot.slane %v4067, 4
        %v4069 = vadd.f32 %v4067, %v4068
        %v4070 = vrot.slane %v4069, 2
        %v4071 = vadd.f32 %v4069, %v4070
        %v4072 = vrot.slane %v4071, 1
        %v4073 = vadd.f32 %v4071, %v4072
        %v4074 = vsel %vm671, %v4021, 0.0
        %v4075 = vsel %vm671, %v4022, 0.0
        %v4076 = vadd.f32 %v4074, %v4075
        %v4077 = vrot.slane %v4076, 4
        %v4078 = vadd.f32 %v4076, %v4077
        %v4079 = vrot.slane %v4078, 2
        %v4080 = vadd.f32 %v4078, %v4079
        %v4081 = vrot.slane %v4080, 1
        %v4082 = vadd.f32 %v4080, %v4081
        %v4083 = vsel %vm671, %v4023, 0.0
        %v4084 = vsel %vm671, %v4024, 0.0
        %v4085 = vadd.f32 %v4083, %v4084
        %v4086 = vrot.slane %v4085, 4
        %v4087 = vadd.f32 %v4085, %v4086
        %v4088 = vrot.slane %v4087, 2
        %v4089 = vadd.f32 %v4087, %v4088
        %v4090 = vrot.slane %v4089, 1
        %v4091 = vadd.f32 %v4089, %v4090
        %v4092 = vsel %vm671, %v4025, 0.0
        %v4093 = vsel %vm671, %v4026, 0.0
        %v4094 = vadd.f32 %v4092, %v4093
        %v4095 = vrot.slane %v4094, 4
        %v4096 = vadd.f32 %v4094, %v4095
        %v4097 = vrot.slane %v4096, 2
        %v4098 = vadd.f32 %v4096, %v4097
        %v4099 = vrot.slane %v4098, 1
        %v4100 = vadd.f32 %v4098, %v4099
        %v4101 = vsel %vm671, %v4027, 0.0
        %v4102 = vsel %vm671, %v4028, 0.0
        %v4103 = vadd.f32 %v4101, %v4102
        %v4104 = vrot.slane %v4103, 4
        %v4105 = vadd.f32 %v4103, %v4104
        %v4106 = vrot.slane %v4105, 2
        %v4107 = vadd.f32 %v4105, %v4106
        %v4108 = vrot.slane %v4107, 1
        %v4109 = vadd.f32 %v4107, %v4108
        %v4110 = vsel %vm671, %v4029, 0.0
        %v4111 = vsel %vm671, %v4030, 0.0
        %v4112 = vadd.f32 %v4110, %v4111
        %v4113 = vrot.slane %v4112, 4
        %v4114 = vadd.f32 %v4112, %v4113
        %v4115 = vrot.slane %v4114, 2
        %v4116 = vadd.f32 %v4114, %v4115
        %v4117 = vrot.slane %v4116, 1
        %v4118 = vadd.f32 %v4116, %v4117
        %v4119 = vsel %vm671, %v4031, 0.0
        %v4120 = vsel %vm671, %v4032, 0.0
        %v4121 = vadd.f32 %v4119, %v4120
        %v4122 = vrot.slane %v4121, 4
        %v4123 = vadd.f32 %v4121, %v4122
        %v4124 = vrot.slane %v4123, 2
        %v4125 = vadd.f32 %v4123, %v4124
        %v4126 = vrot.slane %v4125, 1
        %v4127 = vadd.f32 %v4125, %v4126
        %v4128 = vsel %vm671, %v4033, 0.0
        %v4129 = vsel %vm671, %v4034, 0.0
        %v4130 = vadd.f32 %v4128, %v4129
        %v4131 = vrot.slane %v4130, 4
        %v4132 = vadd.f32 %v4130, %v4131
        %v4133 = vrot.slane %v4132, 2
        %v4134 = vadd.f32 %v4132, %v4133
        %v4135 = vrot.slane %v4134, 1
        %v4136 = vadd.f32 %v4134, %v4135
        %v4137 = vsel %vm671, %v4035, 0.0
        %v4138 = vsel %vm671, %v4036, 0.0
        %v4139 = vadd.f32 %v4137, %v4138
        %v4140 = vrot.slane %v4139, 4
        %v4141 = vadd.f32 %v4139, %v4140
        %v4142 = vrot.slane %v4141, 2
        %v4143 = vadd.f32 %v4141, %v4142
        %v4144 = vrot.slane %v4143, 1
        %v4145 = vadd.f32 %v4143, %v4144
        %v4146 = vsel %vm671, %v4037, 0.0
        %v4147 = vsel %vm671, %v4038, 0.0
        %v4148 = vadd.f32 %v4146, %v4147
        %v4149 = vrot.slane %v4148, 4
        %v4150 = vadd.f32 %v4148, %v4149
        %v4151 = vrot.slane %v4150, 2
        %v4152 = vadd.f32 %v4150, %v4151
        %v4153 = vrot.slane %v4152, 1
        %v4154 = vadd.f32 %v4152, %v4153
        %v4155 = vsel %vm671, %v4039, 0.0
        %v4156 = vsel %vm671, %v4040, 0.0
        %v4157 = vadd.f32 %v4155, %v4156
        %v4158 = vrot.slane %v4157, 4
        %v4159 = vadd.f32 %v4157, %v4158
        %v4160 = vrot.slane %v4159, 2
        %v4161 = vadd.f32 %v4159, %v4160
        %v4162 = vrot.slane %v4161, 1
        %v4163 = vadd.f32 %v4161, %v4162
        %v4164 = vsel %vm671, %v4041, 0.0
        %v4165 = vsel %vm671, %v4042, 0.0
        %v4166 = vadd.f32 %v4164, %v4165
        %v4167 = vrot.slane %v4166, 4
        %v4168 = vadd.f32 %v4166, %v4167
        %v4169 = vrot.slane %v4168, 2
        %v4170 = vadd.f32 %v4168, %v4169
        %v4171 = vrot.slane %v4170, 1
        %v4172 = vadd.f32 %v4170, %v4171
        %v4173 = vsel %vm671, %v4043, 0.0
        %v4174 = vsel %vm671, %v4044, 0.0
        %v4175 = vadd.f32 %v4173, %v4174
        %v4176 = vrot.slane %v4175, 4
        %v4177 = vadd.f32 %v4175, %v4176
        %v4178 = vrot.slane %v4177, 2
        %v4179 = vadd.f32 %v4177, %v4178
        %v4180 = vrot.slane %v4179, 1
        %v4181 = vadd.f32 %v4179, %v4180
        %v4182 = vsel %vm671, %v4045, 0.0
        %v4183 = vsel %vm671, %v4046, 0.0
        %v4184 = vadd.f32 %v4182, %v4183
        %v4185 = vrot.slane %v4184, 4
        %v4186 = vadd.f32 %v4184, %v4185
        %v4187 = vrot.slane %v4186, 2
        %v4188 = vadd.f32 %v4186, %v4187
        %v4189 = vrot.slane %v4188, 1
        %v4190 = vadd.f32 %v4188, %v4189
        %v4191 = vmul.f32 %v4055, %v3531
        %v4192 = vmul.f32 %v4064, %v3531
        %v4193 = vmul.f32 %v4073, %v3531
        %v4194 = vmul.f32 %v4082, %v3531
        %v4195 = vmul.f32 %v4091, %v3531
        %v4196 = vmul.f32 %v4100, %v3531
        %v4197 = vmul.f32 %v4109, %v3531
        %v4198 = vmul.f32 %v4118, %v3531
        %v4199 = vmul.f32 %v4127, %v3531
        %v4200 = vmul.f32 %v4136, %v3531
        %v4201 = vmul.f32 %v4145, %v3531
        %v4202 = vmul.f32 %v4154, %v3531
        %v4203 = vmul.f32 %v4163, %v3531
        %v4204 = vmul.f32 %v4172, %v3531
        %v4205 = vmul.f32 %v4181, %v3531
        %v4206 = vmul.f32 %v4190, %v3531
        %vm4223 = vcmask 1045509
        %v4224 = vsel %vm4223, %v4192, %v4191
        %vm4225 = vcmask 1046534
        %v4226 = vsel %vm4225, %v4193, %v4224
        %vm4227 = vcmask 1047559
        %v4228 = vsel %vm4227, %v4194, %v4226
        %vm4229 = vcmask 1041409
        %v4230 = vsel %vm4229, %v4196, %v4195
        %vm4231 = vcmask 1042434
        %v4232 = vsel %vm4231, %v4197, %v4230
        %vm4233 = vcmask 1043459
        %v4234 = vsel %vm4233, %v4198, %v4232
        %vm4235 = vcmask 1044484
        %v4236 = vsel %vm4235, %v4199, %v4234
        %v4237 = vsel %vm4223, %v4200, %v4236
        %v4238 = vsel %vm4225, %v4201, %v4237
        %v4239 = vsel %vm4227, %v4202, %v4238
        %v4240 = vsel %vm4229, %v4204, %v4203
        %v4241 = vsel %vm4231, %v4205, %v4240
        %v4242 = vsel %vm4233, %v4206, %v4241
        %v4246 = vsel %vm3578, 0.0, %v4228
        %v4247 = vsel %vm3578, %v4242, 0.0
        %v4250 = vrot.slane %v4246, 1
        %v4251 = vrot.slane %v4239, 1
        %v4252 = vsel %vm3536, %v4250, %v4251
        %v4253 = vrot.slane %v4247, 1
        %v4254 = vsel %vm3536, %v4251, %v4253
        %4255 = vrot.lane.b32.xlu0 %v4252, 64
        %v4256 = vpop.permute.xlu0 %4255
        %4257 = vrot.lane.b32.xlu0 %v4254, 64
        %v4258 = vpop.permute.xlu0 %4257
        %v4261 = vrot.slane %v4246, 2
        %v4262 = vrot.slane %v4239, 2
        %v4263 = vsel %vm3558, %v4261, %v4262
        %v4264 = vrot.slane %v4247, 2
        %v4265 = vsel %vm3558, %v4262, %v4264
        %v4268 = vrot.slane %v4246, 3
        %v4269 = vrot.slane %v4239, 3
        %v4270 = vsel %vm3566, %v4268, %v4269
        %v4271 = vrot.slane %v4247, 3
        %v4272 = vsel %vm3566, %v4269, %v4271
        %4273 = vrot.lane.b32.xlu0 %v4270, 64
        %v4274 = vpop.permute.xlu0 %4273
        %4275 = vrot.lane.b32.xlu0 %v4272, 64
        %v4276 = vpop.permute.xlu0 %4275
        %v4279 = vrot.slane %v4246, 4
        %v4280 = vrot.slane %v4239, 4
        %v4281 = vsel %vm3578, %v4279, %v4280
        %v4282 = vrot.slane %v4247, 4
        %v4283 = vsel %vm3578, %v4280, %v4282
        %v4286 = vrot.slane %v4246, 5
        %v4287 = vrot.slane %v4239, 5
        %v4288 = vsel %vm3586, %v4286, %v4287
        %v4289 = vrot.slane %v4247, 5
        %v4290 = vsel %vm3586, %v4287, %v4289
        %4291 = vrot.lane.b32.xlu0 %v4288, 64
        %v4292 = vpop.permute.xlu0 %4291
        %4293 = vrot.lane.b32.xlu0 %v4290, 64
        %v4294 = vpop.permute.xlu0 %4293
        %v4297 = vrot.slane %v4246, 6
        %v4298 = vrot.slane %v4239, 6
        %v4299 = vsel %vm3598, %v4297, %v4298
        %v4300 = vrot.slane %v4247, 6
        %v4301 = vsel %vm3598, %v4298, %v4300
        %v4304 = vrot.slane %v4246, 7
        %v4305 = vrot.slane %v4239, 7
        %v4306 = vsel %vm3606, %v4304, %v4305
        %v4307 = vrot.slane %v4247, 7
        %v4308 = vsel %vm3606, %v4305, %v4307
        %4309 = vrot.lane.b32.xlu0 %v4306, 64
        %v4310 = vpop.permute.xlu0 %4309
        %4311 = vrot.lane.b32.xlu0 %v4308, 64
        %v4312 = vpop.permute.xlu0 %4311
        %v4315 = vsel %vm671, %v4246, %v4256
        %v4316 = vsel %vm671, %v4239, %v4258
        %v4317 = vsel %vm671, %v4263, %v4274
        %v4318 = vsel %vm671, %v4265, %v4276
        %v4319 = vsel %vm671, %v4281, %v4292
        %v4320 = vsel %vm671, %v4283, %v4294
        %v4321 = vsel %vm671, %v4299, %v4310
        %v4322 = vsel %vm671, %v4301, %v4312
        %v4323 = vld [vmem:[%s9] sm:$0xff]
        %v4324 = vld [vmem:[%s9 + $0x8] sm:$0xff]
        %v4325 = vld [vmem:[%s9 + $0x10] sm:$0xff]
        %v4326 = vld [vmem:[%s9 + $0x18] sm:$0xff]
        %v4327 = vld [vmem:[%s9 + $0x20] sm:$0xff]
        %v4328 = vld [vmem:[%s9 + $0x28] sm:$0xff]
        %v4329 = vld [vmem:[%s9 + $0x30] sm:$0xff]
        %v4330 = vld [vmem:[%s9 + $0x38] sm:$0xff]
        %v4331 = vld [vmem:[%s9 + $0x40] sm:$0xff]
        %v4332 = vld [vmem:[%s9 + $0x48] sm:$0xff]
        %v4333 = vld [vmem:[%s9 + $0x50] sm:$0xff]
        %v4334 = vld [vmem:[%s9 + $0x58] sm:$0xff]
        %v4335 = vld [vmem:[%s9 + $0x60] sm:$0xff]
        %v4336 = vld [vmem:[%s9 + $0x68] sm:$0xff]
        %v4337 = vld [vmem:[%s9 + $0x70] sm:$0xff]
        %v4338 = vld [vmem:[%s9 + $0x78] sm:$0xff]
        %v4339 = vld [vmem:[%s9 + $0x80] sm:$0xff]
        %v4340 = vld [vmem:[%s9 + $0x88] sm:$0xff]
        %v4341 = vld [vmem:[%s9 + $0x90] sm:$0xff]
        %v4342 = vld [vmem:[%s9 + $0x98] sm:$0xff]
        %v4343 = vld [vmem:[%s9 + $0xa0] sm:$0xff]
        %v4344 = vld [vmem:[%s9 + $0xa8] sm:$0xff]
        %v4345 = vld [vmem:[%s9 + $0xb0] sm:$0xff]
        %v4346 = vld [vmem:[%s9 + $0xb8] sm:$0xff]
        %v4347 = vld [vmem:[%s9 + $0xc0] sm:$0xff]
        %v4348 = vld [vmem:[%s9 + $0xc8] sm:$0xff]
        %v4349 = vld [vmem:[%s9 + $0xd0] sm:$0xff]
        %v4350 = vld [vmem:[%s9 + $0xd8] sm:$0xff]
        %v4351 = vld [vmem:[%s9 + $0xe0] sm:$0xff]
        %v4352 = vld [vmem:[%s9 + $0xe8] sm:$0xff]
        %v4353 = vld [vmem:[%s9 + $0xf0] sm:$0xff]
        %v4354 = vld [vmem:[%s9 + $0xf8] sm:$0xff]
        %v4355 = vld [vmem:[%s9 + $0x100] sm:$0xff]
        %v4356 = vld [vmem:[%s9 + $0x108] sm:$0xff]
        %v4357 = vld [vmem:[%s9 + $0x110] sm:$0xff]
        %v4358 = vld [vmem:[%s9 + $0x118] sm:$0xff]
        %v4359 = vld [vmem:[%s9 + $0x120] sm:$0xff]
        %v4360 = vld [vmem:[%s9 + $0x128] sm:$0xff]
        %v4361 = vld [vmem:[%s9 + $0x130] sm:$0xff]
        %v4362 = vld [vmem:[%s9 + $0x138] sm:$0xff]
        %v4363 = vld [vmem:[%s9 + $0x140] sm:$0xff]
        %v4364 = vld [vmem:[%s9 + $0x148] sm:$0xff]
        %v4365 = vld [vmem:[%s9 + $0x150] sm:$0xff]
        %v4366 = vld [vmem:[%s9 + $0x158] sm:$0xff]
        %v4367 = vld [vmem:[%s9 + $0x160] sm:$0xff]
        %v4368 = vld [vmem:[%s9 + $0x168] sm:$0xff]
        %v4369 = vld [vmem:[%s9 + $0x170] sm:$0xff]
        %v4370 = vld [vmem:[%s9 + $0x178] sm:$0xff]
        %v4371 = vld [vmem:[%s9 + $0x180] sm:$0xff]
        %v4372 = vld [vmem:[%s9 + $0x188] sm:$0xff]
        %v4373 = vld [vmem:[%s9 + $0x190] sm:$0xff]
        %v4374 = vld [vmem:[%s9 + $0x198] sm:$0xff]
        %v4375 = vld [vmem:[%s9 + $0x1a0] sm:$0xff]
        %v4376 = vld [vmem:[%s9 + $0x1a8] sm:$0xff]
        %v4377 = vld [vmem:[%s9 + $0x1b0] sm:$0xff]
        %v4378 = vld [vmem:[%s9 + $0x1b8] sm:$0xff]
        %v4379 = vld [vmem:[%s9 + $0x1c0] sm:$0xff]
        %v4380 = vld [vmem:[%s9 + $0x1c8] sm:$0xff]
        %v4381 = vld [vmem:[%s9 + $0x1d0] sm:$0xff]
        %v4382 = vld [vmem:[%s9 + $0x1d8] sm:$0xff]
        %v4383 = vld [vmem:[%s9 + $0x1e0] sm:$0xff]
        %v4384 = vld [vmem:[%s9 + $0x1e8] sm:$0xff]
        %v4385 = vld [vmem:[%s9 + $0x1f0] sm:$0xff]
        %v4386 = vld [vmem:[%s9 + $0x1f8] sm:$0xff]
        %v4387 = vld [vmem:[%s9 + $0x200] sm:$0xff]
        %v4388 = vld [vmem:[%s9 + $0x208] sm:$0xff]
        %v4389 = vld [vmem:[%s9 + $0x210] sm:$0xff]
        %v4390 = vld [vmem:[%s9 + $0x218] sm:$0xff]
        %v4391 = vld [vmem:[%s9 + $0x220] sm:$0xff]
        %v4392 = vld [vmem:[%s9 + $0x228] sm:$0xff]
        %v4393 = vld [vmem:[%s9 + $0x230] sm:$0xff]
        %v4394 = vld [vmem:[%s9 + $0x238] sm:$0xff]
        %v4395 = vld [vmem:[#allocation4] sm:$0x1]
        %v4397 = vperm.slane %v4395, 0
        %v4399 = vsel %vm671, %v4239, 0
        %v4401 = vsel %vm671, %v4247, 0
        %4403 = vmatpush.msra.mxu0 %v4338
        %4404 = vmatpush.msra.mxu0 %v4337
        %4405 = vmatpush.msra.mxu0 %v4336
        %4406 = vmatpush.msra.mxu0 %v4335
        %4407 = vmatpush.msra.mxu0 %v4334
        %4408 = vmatpush.msra.mxu0 %v4333
        %4409 = vmatpush.msra.mxu0 %v4332
        %4410 = vmatpush.msra.mxu0 %v4331
        %4411 = vmatpush.msra.mxu0 %v4330
        %4412 = vmatpush.msra.mxu0 %v4329
        %4413 = vmatpush.msra.mxu0 %v4328
        %4414 = vmatpush.msra.mxu0 %v4327
        %4415 = vmatpush.msra.mxu0 %v4326
        %4416 = vmatpush.msra.mxu0 %v4325
        %4417 = vmatpush.msra.mxu0 %v4324
        %4418 = vmatpush.msra.mxu0 %v4323
        %4419 = vmatmul.f32.gmra.mxu0 %v4315
        %v4420 = vpop.f32.mrf.mxu0
        %v4421 = vadd.f32 %v4397, %v4420
        %4422 = vmatmul.f32.gmra.mxu0 %v4316
        %v4423 = vpop.f32.mrf.mxu0
        %v4424 = vadd.f32 %v4397, %v4423
        %4425 = vdwg.mxu0
        %4426 = vmatpush.msra.mxu0 %v4354
        %4427 = vmatpush.msra.mxu0 %v4353
        %4428 = vmatpush.msra.mxu0 %v4352
        %4429 = vmatpush.msra.mxu0 %v4351
        %4430 = vmatpush.msra.mxu0 %v4350
        %4431 = vmatpush.msra.mxu0 %v4349
        %4432 = vmatpush.msra.mxu0 %v4348
        %4433 = vmatpush.msra.mxu0 %v4347
        %4434 = vmatpush.msra.mxu0 %v4346
        %4435 = vmatpush.msra.mxu0 %v4345
        %4436 = vmatpush.msra.mxu0 %v4344
        %4437 = vmatpush.msra.mxu0 %v4343
        %4438 = vmatpush.msra.mxu0 %v4342
        %4439 = vmatpush.msra.mxu0 %v4341
        %4440 = vmatpush.msra.mxu0 %v4340
        %4441 = vmatpush.msra.mxu0 %v4339
        %4442 = vmatmul.f32.gmra.mxu0 %v4317
        %v4443 = vpop.f32.mrf.mxu0
        %v4444 = vadd.f32 %v4421, %v4443
        %4445 = vmatmul.f32.gmra.mxu0 %v4318
        %v4446 = vpop.f32.mrf.mxu0
        %v4447 = vadd.f32 %v4424, %v4446
        %4448 = vdwg.mxu0
        %4449 = vmatpush.msra.mxu0 %v4370
        %4450 = vmatpush.msra.mxu0 %v4369
        %4451 = vmatpush.msra.mxu0 %v4368
        %4452 = vmatpush.msra.mxu0 %v4367
        %4453 = vmatpush.msra.mxu0 %v4366
        %4454 = vmatpush.msra.mxu0 %v4365
        %4455 = vmatpush.msra.mxu0 %v4364
        %4456 = vmatpush.msra.mxu0 %v4363
        %4457 = vmatpush.msra.mxu0 %v4362
        %4458 = vmatpush.msra.mxu0 %v4361
        %4459 = vmatpush.msra.mxu0 %v4360
        %4460 = vmatpush.msra.mxu0 %v4359
        %4461 = vmatpush.msra.mxu0 %v4358
        %4462 = vmatpush.msra.mxu0 %v4357
        %4463 = vmatpush.msra.mxu0 %v4356
        %4464 = vmatpush.msra.mxu0 %v4355
        %4465 = vmatmul.f32.gmra.mxu0 %v4319
        %v4466 = vpop.f32.mrf.mxu0
        %v4467 = vadd.f32 %v4444, %v4466
        %4468 = vmatmul.f32.gmra.mxu0 %v4320
        %v4469 = vpop.f32.mrf.mxu0
        %v4470 = vadd.f32 %v4447, %v4469
        %4471 = vdwg.mxu0
        %4472 = vmatpush.msra.mxu0 %v4386
        %4473 = vmatpush.msra.mxu0 %v4385
        %4474 = vmatpush.msra.mxu0 %v4384
        %4475 = vmatpush.msra.mxu0 %v4383
        %4476 = vmatpush.msra.mxu0 %v4382
        %4477 = vmatpush.msra.mxu0 %v4381
        %4478 = vmatpush.msra.mxu0 %v4380
        %4479 = vmatpush.msra.mxu0 %v4379
        %4480 = vmatpush.msra.mxu0 %v4378
        %4481 = vmatpush.msra.mxu0 %v4377
        %4482 = vmatpush.msra.mxu0 %v4376
        %4483 = vmatpush.msra.mxu0 %v4375
        %4484 = vmatpush.msra.mxu0 %v4374
        %4485 = vmatpush.msra.mxu0 %v4373
        %4486 = vmatpush.msra.mxu0 %v4372
        %4487 = vmatpush.msra.mxu0 %v4371
        %4488 = vmatmul.f32.gmra.mxu0 %v4321
        %v4489 = vpop.f32.mrf.mxu0
        %v4490 = vadd.f32 %v4467, %v4489
        %4491 = vmatmul.f32.gmra.mxu0 %v4322
        %v4492 = vpop.f32.mrf.mxu0
        %v4493 = vadd.f32 %v4470, %v4492
        %4494 = vdwg.mxu0
        %4495 = vmatpush.msra.mxu0 0.0
        %4496 = vmatpush.msra.mxu0 0.0
        %4497 = vmatpush.msra.mxu0 0.0
        %4498 = vmatpush.msra.mxu0 0.0
        %4499 = vmatpush.msra.mxu0 0.0
        %4500 = vmatpush.msra.mxu0 0.0
        %4501 = vmatpush.msra.mxu0 0.0
        %4502 = vmatpush.msra.mxu0 0.0
        %4503 = vmatpush.msra.mxu0 %v4394
        %4504 = vmatpush.msra.mxu0 %v4393
        %4505 = vmatpush.msra.mxu0 %v4392
        %4506 = vmatpush.msra.mxu0 %v4391
        %4507 = vmatpush.msra.mxu0 %v4390
        %4508 = vmatpush.msra.mxu0 %v4389
        %4509 = vmatpush.msra.mxu0 %v4388
        %4510 = vmatpush.msra.mxu0 %v4387
        %4511 = vmatmul.f32.gmra.mxu0 %v4399
        %v4512 = vpop.f32.mrf.mxu0
        %v4513 = vadd.f32 %v4490, %v4512
        %4514 = vmatmul.f32.gmra.mxu0 %v4401
        %v4515 = vpop.f32.mrf.mxu0
        %v4516 = vadd.f32 %v4493, %v4515
        %4517 = vdwg.mxu0
        %v4518 = vxor.u32 %v4513, 2147483648
        %v4519 = vxor.u32 %v4516, 2147483648
        %v4520 = vmul.f32 %v4518, 1.442695
        %v4521 = vpow.pop %v4520
        %v4522 = vmul.f32 %v4519, 1.442695
        %v4523 = vpow.pop %v4522
        %v4524 = vadd.f32 %v4521, 1.0
        %v4525 = vadd.f32 %v4523, 1.0
        %v4526 = vrcp.pop %v4524
        %v4527 = vmul.f32 %v4524, %v4526
        %v4528 = vsub.f32 1.0, %v4527
        %v4529 = vmul.f32 %v4526, %v4528
        %v4530 = vadd.f32 %v4526, %v4529
        %vm4531 = vweird.f32 %v4524
        %vm4532 = vweird.f32 %v4526
        %vm4533 = vmor %vm4531, %vm4532
        %v4534 = vsel %vm4533, %v4526, %v4530
        %v4535 = vand.u32 2147483647, %v4524
        %vm4536 = vcmp.eq.f32.partialorder %v4535, 8.507059e+37
        %v4537 = vand.u32 %v4524, 2147483648
        %v4538 = vor.u32 1.1754944e-38, %v4537
        %v4539 = vsel %vm4536, %v4538, %v4534
        %v4540 = vmul.f32 1.0, %v4539
        %v4541 = vrcp.pop %v4525
        %v4542 = vmul.f32 %v4525, %v4541
        %v4543 = vsub.f32 1.0, %v4542
        %v4544 = vmul.f32 %v4541, %v4543
        %v4545 = vadd.f32 %v4541, %v4544
        %vm4546 = vweird.f32 %v4525
        %vm4547 = vweird.f32 %v4541
        %vm4548 = vmor %vm4546, %vm4547
        %v4549 = vsel %vm4548, %v4541, %v4545
        %v4550 = vand.u32 2147483647, %v4525
        %vm4551 = vcmp.eq.f32.partialorder %v4550, 8.507059e+37
        %v4552 = vand.u32 %v4525, 2147483648
        %v4553 = vor.u32 1.1754944e-38, %v4552
        %v4554 = vsel %vm4551, %v4553, %v4549
        %v4555 = vmul.f32 1.0, %v4554
        %v4556 = vadd.f32 %v4540, 1.0
        %v4557 = vadd.f32 %v4555, 1.0
        %v4560 = vrot.slane %v4556, 1
        %v4561 = vrot.slane %v4556, 2
        %v4562 = vrot.slane %v4556, 3
        %v4563 = vrot.slane %v4556, 4
        %v4564 = vrot.slane %v4556, 5
        %v4565 = vrot.slane %v4556, 6
        %v4566 = vrot.slane %v4556, 7
        %v4567 = vrot.slane %v4557, 1
        %v4568 = vrot.slane %v4557, 2
        %v4569 = vrot.slane %v4557, 3
        %v4570 = vrot.slane %v4557, 4
        %v4571 = vrot.slane %v4557, 5
        %v4572 = vrot.slane %v4557, 6
        %v4573 = vrot.slane %v4557, 7
        %v4574 = vperm.slane %v4556, 0
        %v4575 = vperm.slane %v4560, 0
        %v4576 = vperm.slane %v4561, 0
        %v4577 = vperm.slane %v4562, 0
        %v4578 = vperm.slane %v4563, 0
        %v4579 = vperm.slane %v4564, 0
        %v4580 = vperm.slane %v4565, 0
        %v4581 = vperm.slane %v4566, 0
        %v4582 = vperm.slane %v4557, 0
        %v4583 = vperm.slane %v4567, 0
        %v4584 = vperm.slane %v4568, 0
        %v4585 = vperm.slane %v4569, 0
        %v4586 = vperm.slane %v4570, 0
        %v4587 = vperm.slane %v4571, 0
        %v4588 = vperm.slane %v4572, 0
        %v4589 = vperm.slane %v4573, 0
        %4590 = vset.pattern.permute.xlu0 0
        %4591 = vperm.xlu0 %4590, %v4574
        %v4592 = vpop.permute.xlu0 %4591
        %4594 = vset.pattern.permute.xlu0 0
        %4595 = vperm.xlu0 %4594, %v4575
        %v4596 = vpop.permute.xlu0 %4595
        %4598 = vset.pattern.permute.xlu0 0
        %4599 = vperm.xlu0 %4598, %v4576
        %v4600 = vpop.permute.xlu0 %4599
        %4602 = vset.pattern.permute.xlu0 0
        %4603 = vperm.xlu0 %4602, %v4577
        %v4604 = vpop.permute.xlu0 %4603
        %4606 = vset.pattern.permute.xlu0 0
        %4607 = vperm.xlu0 %4606, %v4578
        %v4608 = vpop.permute.xlu0 %4607
        %4610 = vset.pattern.permute.xlu0 0
        %4611 = vperm.xlu0 %4610, %v4579
        %v4612 = vpop.permute.xlu0 %4611
        %4614 = vset.pattern.permute.xlu0 0
        %4615 = vperm.xlu0 %4614, %v4580
        %v4616 = vpop.permute.xlu0 %4615
        %4618 = vset.pattern.permute.xlu0 0
        %4619 = vperm.xlu0 %4618, %v4581
        %v4620 = vpop.permute.xlu0 %4619
        %4622 = vset.pattern.permute.xlu0 0
        %4623 = vperm.xlu0 %4622, %v4582
        %v4624 = vpop.permute.xlu0 %4623
        %4626 = vset.pattern.permute.xlu0 0
        %4627 = vperm.xlu0 %4626, %v4583
        %v4628 = vpop.permute.xlu0 %4627
        %4630 = vset.pattern.permute.xlu0 0
        %4631 = vperm.xlu0 %4630, %v4584
        %v4632 = vpop.permute.xlu0 %4631
        %4634 = vset.pattern.permute.xlu0 0
        %4635 = vperm.xlu0 %4634, %v4585
        %v4636 = vpop.permute.xlu0 %4635
        %4638 = vset.pattern.permute.xlu0 0
        %4639 = vperm.xlu0 %4638, %v4586
        %v4640 = vpop.permute.xlu0 %4639
        %4642 = vset.pattern.permute.xlu0 0
        %4643 = vperm.xlu0 %4642, %v4587
        %v4644 = vpop.permute.xlu0 %4643
        %4646 = vset.pattern.permute.xlu0 0
        %4647 = vperm.xlu0 %4646, %v4588
        %v4648 = vpop.permute.xlu0 %4647
        %4650 = vset.pattern.permute.xlu0 0
        %4651 = vperm.xlu0 %4650, %v4589
        %v4652 = vpop.permute.xlu0 %4651
        %v4654 = vmul.f32 %v4015, %v4592
        %v4655 = vmul.f32 %v4016, %v4592
        %v4656 = vmul.f32 %v4017, %v4596
        %v4657 = vmul.f32 %v4018, %v4596
        %v4658 = vmul.f32 %v4019, %v4600
        %v4659 = vmul.f32 %v4020, %v4600
        %v4660 = vmul.f32 %v4021, %v4604
        %v4661 = vmul.f32 %v4022, %v4604
        %v4662 = vmul.f32 %v4023, %v4608
        %v4663 = vmul.f32 %v4024, %v4608
        %v4664 = vmul.f32 %v4025, %v4612
        %v4665 = vmul.f32 %v4026, %v4612
        %v4666 = vmul.f32 %v4027, %v4616
        %v4667 = vmul.f32 %v4028, %v4616
        %v4668 = vmul.f32 %v4029, %v4620
        %v4669 = vmul.f32 %v4030, %v4620
        %v4670 = vmul.f32 %v4031, %v4624
        %v4671 = vmul.f32 %v4032, %v4624
        %v4672 = vmul.f32 %v4033, %v4628
        %v4673 = vmul.f32 %v4034, %v4628
        %v4674 = vmul.f32 %v4035, %v4632
        %v4675 = vmul.f32 %v4036, %v4632
        %v4676 = vmul.f32 %v4037, %v4636
        %v4677 = vmul.f32 %v4038, %v4636
        %v4678 = vmul.f32 %v4039, %v4640
        %v4679 = vmul.f32 %v4040, %v4640
        %v4680 = vmul.f32 %v4041, %v4644
        %v4681 = vmul.f32 %v4042, %v4644
        %v4682 = vmul.f32 %v4043, %v4648
        %v4683 = vmul.f32 %v4044, %v4648
        %v4684 = vmul.f32 %v4045, %v4652
        %v4685 = vmul.f32 %v4046, %v4652
        %v4686 = vsel %vm671, %v4654, 0.0
        %v4687 = vsel %vm671, %v4656, 0.0
        %v4688 = vadd.f32 %v4686, %v4687
        %v4689 = vsel %vm671, %v4658, 0.0
        %v4690 = vadd.f32 %v4688, %v4689
        %v4691 = vsel %vm671, %v4660, 0.0
        %v4692 = vadd.f32 %v4690, %v4691
        %v4693 = vsel %vm671, %v4662, 0.0
        %v4694 = vadd.f32 %v4692, %v4693
        %v4695 = vsel %vm671, %v4664, 0.0
        %v4696 = vadd.f32 %v4694, %v4695
        %v4697 = vsel %vm671, %v4666, 0.0
        %v4698 = vadd.f32 %v4696, %v4697
        %v4699 = vsel %vm671, %v4668, 0.0
        %v4700 = vadd.f32 %v4698, %v4699
        %v4701 = vsel %vm671, %v4670, 0.0
        %v4702 = vadd.f32 %v4700, %v4701
        %v4703 = vsel %vm671, %v4672, 0.0
        %v4704 = vadd.f32 %v4702, %v4703
        %v4705 = vsel %vm671, %v4674, 0.0
        %v4706 = vadd.f32 %v4704, %v4705
        %v4707 = vsel %vm671, %v4676, 0.0
        %v4708 = vadd.f32 %v4706, %v4707
        %v4709 = vsel %vm671, %v4678, 0.0
        %v4710 = vadd.f32 %v4708, %v4709
        %v4711 = vsel %vm671, %v4680, 0.0
        %v4712 = vadd.f32 %v4710, %v4711
        %v4713 = vsel %vm671, %v4682, 0.0
        %v4714 = vadd.f32 %v4712, %v4713
        %v4715 = vsel %vm671, %v4684, 0.0
        %v4716 = vadd.f32 %v4714, %v4715
        %v4717 = vsel %vm671, %v4655, 0.0
        %v4718 = vsel %vm671, %v4657, 0.0
        %v4719 = vadd.f32 %v4717, %v4718
        %v4720 = vsel %vm671, %v4659, 0.0
        %v4721 = vadd.f32 %v4719, %v4720
        %v4722 = vsel %vm671, %v4661, 0.0
        %v4723 = vadd.f32 %v4721, %v4722
        %v4724 = vsel %vm671, %v4663, 0.0
        %v4725 = vadd.f32 %v4723, %v4724
        %v4726 = vsel %vm671, %v4665, 0.0
        %v4727 = vadd.f32 %v4725, %v4726
        %v4728 = vsel %vm671, %v4667, 0.0
        %v4729 = vadd.f32 %v4727, %v4728
        %v4730 = vsel %vm671, %v4669, 0.0
        %v4731 = vadd.f32 %v4729, %v4730
        %v4732 = vsel %vm671, %v4671, 0.0
        %v4733 = vadd.f32 %v4731, %v4732
        %v4734 = vsel %vm671, %v4673, 0.0
        %v4735 = vadd.f32 %v4733, %v4734
        %v4736 = vsel %vm671, %v4675, 0.0
        %v4737 = vadd.f32 %v4735, %v4736
        %v4738 = vsel %vm671, %v4677, 0.0
        %v4739 = vadd.f32 %v4737, %v4738
        %v4740 = vsel %vm671, %v4679, 0.0
        %v4741 = vadd.f32 %v4739, %v4740
        %v4742 = vsel %vm671, %v4681, 0.0
        %v4743 = vadd.f32 %v4741, %v4742
        %v4744 = vsel %vm671, %v4683, 0.0
        %v4745 = vadd.f32 %v4743, %v4744
        %v4746 = vsel %vm671, %v4685, 0.0
        %v4747 = vadd.f32 %v4745, %v4746
        %v4748 = vmul.f32 %v4716, %v3531
        %v4749 = vmul.f32 %v4747, %v3531
        %v4750 = vsel %vm671, %v4748, 0.0
        %v4751 = vsel %vm671, %v4749, 0.0
        %v4752 = vadd.f32 %v4750, %v4751
        %v4753 = vrot.slane %v4752, 4
        %v4754 = vadd.f32 %v4752, %v4753
        %v4755 = vrot.slane %v4754, 2
        %v4756 = vadd.f32 %v4754, %v4755
        %v4757 = vrot.slane %v4756, 1
        %v4758 = vadd.f32 %v4756, %v4757
        %v4759 = vmul.f32 %v4758, %v3531
        %v4760 = vld [vmem:[%s11] sm:$0xff]
        %v4761 = vld [vmem:[%s11 + $0x8] sm:$0xff]
        %v4762 = vld [vmem:[%s11 + $0x10] sm:$0xff]
        %v4763 = vld [vmem:[%s11 + $0x18] sm:$0xff]
        %v4764 = vld [vmem:[%s11 + $0x20] sm:$0xff]
        %v4765 = vld [vmem:[%s11 + $0x28] sm:$0xff]
        %v4766 = vld [vmem:[%s11 + $0x30] sm:$0xff]
        %v4767 = vld [vmem:[%s11 + $0x38] sm:$0xff]
        %v4768 = vld [vmem:[%s12] sm:$0x1]
        %v4770 = vsel %vm671, %v4759, 0
        %4772 = vmatpush.msra.mxu0 0.0
        %4773 = vmatpush.msra.mxu0 0.0
        %4774 = vmatpush.msra.mxu0 0.0
        %4775 = vmatpush.msra.mxu0 0.0
        %4776 = vmatpush.msra.mxu0 0.0
        %4777 = vmatpush.msra.mxu0 0.0
        %4778 = vmatpush.msra.mxu0 0.0
        %4779 = vmatpush.msra.mxu0 0.0
        %4780 = vmatpush.msra.mxu0 %v4767
        %4781 = vmatpush.msra.mxu0 %v4766
        %4782 = vmatpush.msra.mxu0 %v4765
        %4783 = vmatpush.msra.mxu0 %v4764
        %4784 = vmatpush.msra.mxu0 %v4763
        %4785 = vmatpush.msra.mxu0 %v4762
        %4786 = vmatpush.msra.mxu0 %v4761
        %4787 = vmatpush.msra.mxu0 %v4760
        %4788 = vmatmul.f32.gmra.mxu0 %v4770
        %v4789 = vpop.f32.mrf.mxu0
        %v4790 = vadd.f32 %v4768, %v4789
        %4791 = vdwg.mxu0
        %v4792 = vmax.f32 %v4790, 0.0
        %v4793 = vld [vmem:[%s13] sm:$0xff]
        %v4794 = vld [vmem:[%s13 + $0x8] sm:$0xff]
        %v4795 = vld [vmem:[%s13 + $0x10] sm:$0xff]
        %v4796 = vld [vmem:[%s13 + $0x18] sm:$0xff]
        %v4797 = vld [vmem:[%s14] sm:$0x1]
        %vm4798 = vcmask 261120
        %v4800 = vsel %vm4798, %v4792, 0
        %4802 = vmatpush.msra.mxu0 0.0
        %4803 = vmatpush.msra.mxu0 0.0
        %4804 = vmatpush.msra.mxu0 0.0
        %4805 = vmatpush.msra.mxu0 0.0
        %4806 = vmatpush.msra.mxu0 0.0
        %4807 = vmatpush.msra.mxu0 0.0
        %4808 = vmatpush.msra.mxu0 0.0
        %4809 = vmatpush.msra.mxu0 0.0
        %4810 = vmatpush.msra.mxu0 0.0
        %4811 = vmatpush.msra.mxu0 0.0
        %4812 = vmatpush.msra.mxu0 0.0
        %4813 = vmatpush.msra.mxu0 0.0
        %4814 = vmatpush.msra.mxu0 %v4796
        %4815 = vmatpush.msra.mxu0 %v4795
        %4816 = vmatpush.msra.mxu0 %v4794
        %4817 = vmatpush.msra.mxu0 %v4793
        %4818 = vmatmul.f32.gmra.mxu0 %v4800
        %v4819 = vpop.f32.mrf.mxu0
        %v4820 = vadd.f32 %v4797, %v4819
        %4821 = vdwg.mxu0
        %v4822 = vxor.u32 %v4820, 2147483648
        %v4823 = vmul.f32 %v4822, 1.442695
        %v4824 = vpow.pop %v4823
        %v4825 = vadd.f32 %v4824, 1.0
        %v4826 = vrcp.pop %v4825
        %v4827 = vmul.f32 %v4825, %v4826
        %v4828 = vsub.f32 1.0, %v4827
        %v4829 = vmul.f32 %v4826, %v4828
        %v4830 = vadd.f32 %v4826, %v4829
        %vm4831 = vweird.f32 %v4825
        %vm4832 = vweird.f32 %v4826
        %vm4833 = vmor %vm4831, %vm4832
        %v4834 = vsel %vm4833, %v4826, %v4830
        %v4835 = vand.u32 2147483647, %v4825
        %vm4836 = vcmp.eq.f32.partialorder %v4835, 8.507059e+37
        %v4837 = vand.u32 %v4825, 2147483648
        %v4838 = vor.u32 1.1754944e-38, %v4837
        %v4839 = vsel %vm4836, %v4838, %v4834
        %v4840 = vmul.f32 1.0, %v4839
        %v4841 = vadd.f32 %v4840, 1.0
        %v4842 = vperm.slane %v4841, 0
        %v4843 = vmul.f32 %v4654, %v4842
        %v4844 = vmul.f32 %v4655, %v4842
        %v4845 = vmul.f32 %v4656, %v4842
        %v4846 = vmul.f32 %v4657, %v4842
        %v4847 = vmul.f32 %v4658, %v4842
        %v4848 = vmul.f32 %v4659, %v4842
        %v4849 = vmul.f32 %v4660, %v4842
        %v4850 = vmul.f32 %v4661, %v4842
        %v4851 = vmul.f32 %v4662, %v4842
        %v4852 = vmul.f32 %v4663, %v4842
        %v4853 = vmul.f32 %v4664, %v4842
        %v4854 = vmul.f32 %v4665, %v4842
        %v4855 = vmul.f32 %v4666, %v4842
        %v4856 = vmul.f32 %v4667, %v4842
        %v4857 = vmul.f32 %v4668, %v4842
        %v4858 = vmul.f32 %v4669, %v4842
        %v4859 = vmul.f32 %v4670, %v4842
        %v4860 = vmul.f32 %v4671, %v4842
        %v4861 = vmul.f32 %v4672, %v4842
        %v4862 = vmul.f32 %v4673, %v4842
        %v4863 = vmul.f32 %v4674, %v4842
        %v4864 = vmul.f32 %v4675, %v4842
        %v4865 = vmul.f32 %v4676, %v4842
        %v4866 = vmul.f32 %v4677, %v4842
        %v4867 = vmul.f32 %v4678, %v4842
        %v4868 = vmul.f32 %v4679, %v4842
        %v4869 = vmul.f32 %v4680, %v4842
        %v4870 = vmul.f32 %v4681, %v4842
        %v4871 = vmul.f32 %v4682, %v4842
        %v4872 = vmul.f32 %v4683, %v4842
        %v4873 = vmul.f32 %v4684, %v4842
        %v4874 = vmul.f32 %v4685, %v4842
        %v4875 = vpack.c.bf16 %v4843, %v4843
        %v4876 = vpack.c.bf16 %v4844, %v4844
        %v4877 = vpack.c.bf16 %v4845, %v4845
        %v4878 = vpack.c.bf16 %v4846, %v4846
        %v4879 = vpack.c.bf16 %v4847, %v4847
        %v4880 = vpack.c.bf16 %v4848, %v4848
        %v4881 = vpack.c.bf16 %v4849, %v4849
        %v4882 = vpack.c.bf16 %v4850, %v4850
        %v4883 = vpack.c.bf16 %v4851, %v4851
        %v4884 = vpack.c.bf16 %v4852, %v4852
        %v4885 = vpack.c.bf16 %v4853, %v4853
        %v4886 = vpack.c.bf16 %v4854, %v4854
        %v4887 = vpack.c.bf16 %v4855, %v4855
        %v4888 = vpack.c.bf16 %v4856, %v4856
        %v4889 = vpack.c.bf16 %v4857, %v4857
        %v4890 = vpack.c.bf16 %v4858, %v4858
        %v4891 = vpack.c.bf16 %v4859, %v4859
        %v4892 = vpack.c.bf16 %v4860, %v4860
        %v4893 = vpack.c.bf16 %v4861, %v4861
        %v4894 = vpack.c.bf16 %v4862, %v4862
        %v4895 = vpack.c.bf16 %v4863, %v4863
        %v4896 = vpack.c.bf16 %v4864, %v4864
        %v4897 = vpack.c.bf16 %v4865, %v4865
        %v4898 = vpack.c.bf16 %v4866, %v4866
        %v4899 = vpack.c.bf16 %v4867, %v4867
        %v4900 = vpack.c.bf16 %v4868, %v4868
        %v4901 = vpack.c.bf16 %v4869, %v4869
        %v4902 = vpack.c.bf16 %v4870, %v4870
        %v4903 = vpack.c.bf16 %v4871, %v4871
        %v4904 = vpack.c.bf16 %v4872, %v4872
        %v4905 = vpack.c.bf16 %v4873, %v4873
        %v4906 = vpack.c.bf16 %v4874, %v4874
        %v4939 = vunpack.c.l.b16 %v4875
        %v4940 = vunpack.c.l.b16 %v4876
        %v4941 = vunpack.c.l.b16 %v4877
        %v4942 = vunpack.c.l.b16 %v4878
        %v4943 = vunpack.c.l.b16 %v4879
        %v4944 = vunpack.c.l.b16 %v4880
        %v4945 = vunpack.c.l.b16 %v4881
        %v4946 = vunpack.c.l.b16 %v4882
        %v4947 = vunpack.c.l.b16 %v4883
        %v4948 = vunpack.c.l.b16 %v4884
        %v4949 = vunpack.c.l.b16 %v4885
        %v4950 = vunpack.c.l.b16 %v4886
        %v4951 = vunpack.c.l.b16 %v4887
        %v4952 = vunpack.c.l.b16 %v4888
        %v4953 = vunpack.c.l.b16 %v4889
        %v4954 = vunpack.c.l.b16 %v4890
        %v4955 = vunpack.c.l.b16 %v4891
        %v4956 = vunpack.c.l.b16 %v4892
        %v4957 = vunpack.c.l.b16 %v4893
        %v4958 = vunpack.c.l.b16 %v4894
        %v4959 = vunpack.c.l.b16 %v4895
        %v4960 = vunpack.c.l.b16 %v4896
        %v4961 = vunpack.c.l.b16 %v4897
        %v4962 = vunpack.c.l.b16 %v4898
        %v4963 = vunpack.c.l.b16 %v4899
        %v4964 = vunpack.c.l.b16 %v4900
        %v4965 = vunpack.c.l.b16 %v4901
        %v4966 = vunpack.c.l.b16 %v4902
        %v4967 = vunpack.c.l.b16 %v4903
        %v4968 = vunpack.c.l.b16 %v4904
        %v4969 = vunpack.c.l.b16 %v4905
        %v4970 = vunpack.c.l.b16 %v4906
        %v4971 = vpack.c.b16 %v4940, %v4939
        %v4972 = vpack.c.b16 %v4942, %v4941
        %v4973 = vpack.c.b16 %v4944, %v4943
        %v4974 = vpack.c.b16 %v4946, %v4945
        %v4975 = vpack.c.b16 %v4948, %v4947
        %v4976 = vpack.c.b16 %v4950, %v4949
        %v4977 = vpack.c.b16 %v4952, %v4951
        %v4978 = vpack.c.b16 %v4954, %v4953
        %v4979 = vpack.c.b16 %v4956, %v4955
        %v4980 = vpack.c.b16 %v4958, %v4957
        %v4981 = vpack.c.b16 %v4960, %v4959
        %v4982 = vpack.c.b16 %v4962, %v4961
        %v4983 = vpack.c.b16 %v4964, %v4963
        %v4984 = vpack.c.b16 %v4966, %v4965
        %v4985 = vpack.c.b16 %v4968, %v4967
        %v4986 = vpack.c.b16 %v4970, %v4969
        %v4987 = vld [vmem:[%s15] sm:$0xf]
        %v4988 = vld [vmem:[%s15 + $0x4] sm:$0xf]
        %v4989 = vld [vmem:[%s15 + $0x8] sm:$0xf]
        %v4990 = vld [vmem:[%s15 + $0xc] sm:$0xf]
        %v4991 = vld [vmem:[%s15 + $0x10] sm:$0xf]
        %v4992 = vld [vmem:[%s15 + $0x14] sm:$0xf]
        %v4993 = vld [vmem:[%s15 + $0x18] sm:$0xf]
        %v4994 = vld [vmem:[%s15 + $0x1c] sm:$0xf]
        %s4995 = scalar_lea.vmem %s15, 32
        %v4996 = vld [vmem:[%s4995] sm:$0xf]
        %v4997 = vld [vmem:[%s4995 + $0x4] sm:$0xf]
        %v4998 = vld [vmem:[%s4995 + $0x8] sm:$0xf]
        %v4999 = vld [vmem:[%s4995 + $0xc] sm:$0xf]
        %v5000 = vld [vmem:[%s4995 + $0x10] sm:$0xf]
        %v5001 = vld [vmem:[%s4995 + $0x14] sm:$0xf]
        %v5002 = vld [vmem:[%s4995 + $0x18] sm:$0xf]
        %v5003 = vld [vmem:[%s4995 + $0x1c] sm:$0xf]
        %v5012 = vunpack.c.l.b16 %v4996
        %v5013 = vunpack.c.l.b16 %v4997
        %v5014 = vunpack.c.l.b16 %v4998
        %v5015 = vunpack.c.l.b16 %v4999
        %v5016 = vunpack.c.l.b16 %v5000
        %v5017 = vunpack.c.l.b16 %v5001
        %v5018 = vunpack.c.l.b16 %v5002
        %v5019 = vunpack.c.l.b16 %v5003
        %v5020 = vpack.c.b16 %v5013, %v5012
        %v5021 = vpack.c.b16 %v5015, %v5014
        %v5022 = vpack.c.b16 %v5017, %v5016
        %v5023 = vpack.c.b16 %v5019, %v5018
        %v5029 = vsel %vm671, 0, 0
        %v5032 = vsel %vm671, %v4971, 0
        %v5035 = vsel %vm671, %v4972, 0
        %v5038 = vsel %vm671, %v4973, 0
        %v5041 = vsel %vm671, %v4974, 0
        %v5044 = vsel %vm671, %v4975, 0
        %v5047 = vsel %vm671, %v4976, 0
        %v5050 = vsel %vm671, %v4977, 0
        %v5053 = vsel %vm671, %v4978, 0
        %v5056 = vsel %vm671, %v4979, 0
        %v5059 = vsel %vm671, %v4980, 0
        %v5062 = vsel %vm671, %v4981, 0
        %v5065 = vsel %vm671, %v4982, 0
        %v5068 = vsel %vm671, %v4983, 0
        %5070 = vmatpush.bf16.msra.mxu0 0
        %5071 = vmatpush.bf16.msra.mxu0 0
        %5072 = vmatpush.bf16.msra.mxu0 0
        %5073 = vmatpush.bf16.msra.mxu0 0
        %5074 = vmatpush.bf16.msra.mxu0 %v5023
        %5075 = vmatpush.bf16.msra.mxu0 %v5022
        %5076 = vmatpush.bf16.msra.mxu0 %v5021
        %5077 = vmatpush.bf16.msra.mxu0 %v5020
        %5078 = vmatmul.bf16.gmra.mxu0 %v5029
        %v5079 = vpop.f32.mrf.mxu0
        %v5080 = vadd.f32 0.0, %v5079
        %v5081 = vpop.f32.mrf.mxu0
        %v5082 = vadd.f32 0.0, %v5081
        %5083 = vmatmul.bf16.gmra.mxu0 %v5029
        %v5084 = vpop.f32.mrf.mxu0
        %v5085 = vadd.f32 0.0, %v5084
        %v5086 = vpop.f32.mrf.mxu0
        %v5087 = vadd.f32 0.0, %v5086
        %5088 = vmatmul.bf16.gmra.mxu0 %v5029
        %v5089 = vpop.f32.mrf.mxu0
        %v5090 = vadd.f32 0.0, %v5089
        %v5091 = vpop.f32.mrf.mxu0
        %v5092 = vadd.f32 0.0, %v5091
        %5093 = vmatmul.bf16.gmra.mxu0 %v5032
        %v5094 = vpop.f32.mrf.mxu0
        %v5095 = vadd.f32 0.0, %v5094
        %v5096 = vpop.f32.mrf.mxu0
        %v5097 = vadd.f32 0.0, %v5096
        %5098 = vmatmul.bf16.gmra.mxu0 %v5035
        %v5099 = vpop.f32.mrf.mxu0
        %v5100 = vadd.f32 0.0, %v5099
        %v5101 = vpop.f32.mrf.mxu0
        %v5102 = vadd.f32 0.0, %v5101
        %5103 = vmatmul.bf16.gmra.mxu0 %v5038
        %v5104 = vpop.f32.mrf.mxu0
        %v5105 = vadd.f32 0.0, %v5104
        %v5106 = vpop.f32.mrf.mxu0
        %v5107 = vadd.f32 0.0, %v5106
        %5108 = vmatmul.bf16.gmra.mxu0 %v5041
        %v5109 = vpop.f32.mrf.mxu0
        %v5110 = vadd.f32 0.0, %v5109
        %v5111 = vpop.f32.mrf.mxu0
        %v5112 = vadd.f32 0.0, %v5111
        %5113 = vmatmul.bf16.gmra.mxu0 %v5044
        %v5114 = vpop.f32.mrf.mxu0
        %v5115 = vadd.f32 0.0, %v5114
        %v5116 = vpop.f32.mrf.mxu0
        %v5117 = vadd.f32 0.0, %v5116
        %5118 = vmatmul.bf16.gmra.mxu0 %v5047
        %v5119 = vpop.f32.mrf.mxu0
        %v5120 = vadd.f32 0.0, %v5119
        %v5121 = vpop.f32.mrf.mxu0
        %v5122 = vadd.f32 0.0, %v5121
        %5123 = vmatmul.bf16.gmra.mxu0 %v5050
        %v5124 = vpop.f32.mrf.mxu0
        %v5125 = vadd.f32 0.0, %v5124
        %v5126 = vpop.f32.mrf.mxu0
        %v5127 = vadd.f32 0.0, %v5126
        %5128 = vmatmul.bf16.gmra.mxu0 %v5053
        %v5129 = vpop.f32.mrf.mxu0
        %v5130 = vadd.f32 0.0, %v5129
        %v5131 = vpop.f32.mrf.mxu0
        %v5132 = vadd.f32 0.0, %v5131
        %5133 = vmatmul.bf16.gmra.mxu0 %v5056
        %v5134 = vpop.f32.mrf.mxu0
        %v5135 = vadd.f32 0.0, %v5134
        %v5136 = vpop.f32.mrf.mxu0
        %v5137 = vadd.f32 0.0, %v5136
        %5138 = vmatmul.bf16.gmra.mxu0 %v5059
        %v5139 = vpop.f32.mrf.mxu0
        %v5140 = vadd.f32 0.0, %v5139
        %v5141 = vpop.f32.mrf.mxu0
        %v5142 = vadd.f32 0.0, %v5141
        %5143 = vmatmul.bf16.gmra.mxu0 %v5062
        %v5144 = vpop.f32.mrf.mxu0
        %v5145 = vadd.f32 0.0, %v5144
        %v5146 = vpop.f32.mrf.mxu0
        %v5147 = vadd.f32 0.0, %v5146
        %5148 = vmatmul.bf16.gmra.mxu0 %v5065
        %v5149 = vpop.f32.mrf.mxu0
        %v5150 = vadd.f32 0.0, %v5149
        %v5151 = vpop.f32.mrf.mxu0
        %v5152 = vadd.f32 0.0, %v5151
        %5153 = vmatmul.bf16.gmra.mxu0 %v5068
        %v5154 = vpop.f32.mrf.mxu0
        %v5155 = vadd.f32 0.0, %v5154
        %v5156 = vpop.f32.mrf.mxu0
        %v5157 = vadd.f32 0.0, %v5156
        %5158 = vdwg.mxu0
        %v5167 = vunpack.c.l.b16 %v4987
        %v5168 = vunpack.c.l.b16 %v4988
        %v5169 = vunpack.c.l.b16 %v4989
        %v5170 = vunpack.c.l.b16 %v4990
        %v5171 = vunpack.c.l.b16 %v4991
        %v5172 = vunpack.c.l.b16 %v4992
        %v5173 = vunpack.c.l.b16 %v4993
        %v5174 = vunpack.c.l.b16 %v4994
        %v5175 = vpack.c.b16 %v5168, %v5167
        %v5176 = vpack.c.b16 %v5170, %v5169
        %v5177 = vpack.c.b16 %v5172, %v5171
        %v5178 = vpack.c.b16 %v5174, %v5173
        %5183 = vmatpush.bf16.msra.mxu0 0
        %5184 = vmatpush.bf16.msra.mxu0 0
        %5185 = vmatpush.bf16.msra.mxu0 0
        %5186 = vmatpush.bf16.msra.mxu0 0
        %5187 = vmatpush.bf16.msra.mxu0 %v5178
        %5188 = vmatpush.bf16.msra.mxu0 %v5177
        %5189 = vmatpush.bf16.msra.mxu0 %v5176
        %5190 = vmatpush.bf16.msra.mxu0 %v5175
        %5191 = vmatmul.bf16.gmra.mxu0 %v5029
        %v5192 = vpop.f32.mrf.mxu0
        %v5193 = vadd.f32 %v5080, %v5192
        %v5194 = vpop.f32.mrf.mxu0
        %v5195 = vadd.f32 %v5082, %v5194
        %5196 = vmatmul.bf16.gmra.mxu0 %v5029
        %v5197 = vpop.f32.mrf.mxu0
        %v5198 = vadd.f32 %v5085, %v5197
        %v5199 = vpop.f32.mrf.mxu0
        %v5200 = vadd.f32 %v5087, %v5199
        %5201 = vmatmul.bf16.gmra.mxu0 %v5029
        %v5202 = vpop.f32.mrf.mxu0
        %v5203 = vadd.f32 %v5090, %v5202
        %v5204 = vpop.f32.mrf.mxu0
        %v5205 = vadd.f32 %v5092, %v5204
        %5206 = vmatmul.bf16.gmra.mxu0 %v5029
        %v5207 = vpop.f32.mrf.mxu0
        %v5208 = vadd.f32 %v5095, %v5207
        %v5209 = vpop.f32.mrf.mxu0
        %v5210 = vadd.f32 %v5097, %v5209
        %5211 = vmatmul.bf16.gmra.mxu0 %v5032
        %v5212 = vpop.f32.mrf.mxu0
        %v5213 = vadd.f32 %v5100, %v5212
        %v5214 = vpop.f32.mrf.mxu0
        %v5215 = vadd.f32 %v5102, %v5214
        %5216 = vmatmul.bf16.gmra.mxu0 %v5035
        %v5217 = vpop.f32.mrf.mxu0
        %v5218 = vadd.f32 %v5105, %v5217
        %v5219 = vpop.f32.mrf.mxu0
        %v5220 = vadd.f32 %v5107, %v5219
        %5221 = vmatmul.bf16.gmra.mxu0 %v5038
        %v5222 = vpop.f32.mrf.mxu0
        %v5223 = vadd.f32 %v5110, %v5222
        %v5224 = vpop.f32.mrf.mxu0
        %v5225 = vadd.f32 %v5112, %v5224
        %5226 = vmatmul.bf16.gmra.mxu0 %v5041
        %v5227 = vpop.f32.mrf.mxu0
        %v5228 = vadd.f32 %v5115, %v5227
        %v5229 = vpop.f32.mrf.mxu0
        %v5230 = vadd.f32 %v5117, %v5229
        %5231 = vmatmul.bf16.gmra.mxu0 %v5044
        %v5232 = vpop.f32.mrf.mxu0
        %v5233 = vadd.f32 %v5120, %v5232
        %v5234 = vpop.f32.mrf.mxu0
        %v5235 = vadd.f32 %v5122, %v5234
        %5236 = vmatmul.bf16.gmra.mxu0 %v5047
        %v5237 = vpop.f32.mrf.mxu0
        %v5238 = vadd.f32 %v5125, %v5237
        %v5239 = vpop.f32.mrf.mxu0
        %v5240 = vadd.f32 %v5127, %v5239
        %5241 = vmatmul.bf16.gmra.mxu0 %v5050
        %v5242 = vpop.f32.mrf.mxu0
        %v5243 = vadd.f32 %v5130, %v5242
        %v5244 = vpop.f32.mrf.mxu0
        %v5245 = vadd.f32 %v5132, %v5244
        %5246 = vmatmul.bf16.gmra.mxu0 %v5053
        %v5247 = vpop.f32.mrf.mxu0
        %v5248 = vadd.f32 %v5135, %v5247
        %v5249 = vpop.f32.mrf.mxu0
        %v5250 = vadd.f32 %v5137, %v5249
        %5251 = vmatmul.bf16.gmra.mxu0 %v5056
        %v5252 = vpop.f32.mrf.mxu0
        %v5253 = vadd.f32 %v5140, %v5252
        %v5254 = vpop.f32.mrf.mxu0
        %v5255 = vadd.f32 %v5142, %v5254
        %5256 = vmatmul.bf16.gmra.mxu0 %v5059
        %v5257 = vpop.f32.mrf.mxu0
        %v5258 = vadd.f32 %v5145, %v5257
        %v5259 = vpop.f32.mrf.mxu0
        %v5260 = vadd.f32 %v5147, %v5259
        %5261 = vmatmul.bf16.gmra.mxu0 %v5062
        %v5262 = vpop.f32.mrf.mxu0
        %v5263 = vadd.f32 %v5150, %v5262
        %v5264 = vpop.f32.mrf.mxu0
        %v5265 = vadd.f32 %v5152, %v5264
        %5266 = vmatmul.bf16.gmra.mxu0 %v5065
        %v5267 = vpop.f32.mrf.mxu0
        %v5268 = vadd.f32 %v5155, %v5267
        %v5269 = vpop.f32.mrf.mxu0
        %v5270 = vadd.f32 %v5157, %v5269
        %5271 = vdwg.mxu0
        %s5272 = scalar_lea.vmem %s15, 64
        %v5273 = vld [vmem:[%s5272] sm:$0xf]
        %v5274 = vld [vmem:[%s5272 + $0x4] sm:$0xf]
        %v5275 = vld [vmem:[%s5272 + $0x8] sm:$0xf]
        %v5276 = vld [vmem:[%s5272 + $0xc] sm:$0xf]
        %v5277 = vld [vmem:[%s5272 + $0x10] sm:$0xf]
        %v5278 = vld [vmem:[%s5272 + $0x14] sm:$0xf]
        %v5279 = vld [vmem:[%s5272 + $0x18] sm:$0xf]
        %v5280 = vld [vmem:[%s5272 + $0x1c] sm:$0xf]
        %v5289 = vunpack.c.l.b16 %v5273
        %v5290 = vunpack.c.l.b16 %v5274
        %v5291 = vunpack.c.l.b16 %v5275
        %v5292 = vunpack.c.l.b16 %v5276
        %v5293 = vunpack.c.l.b16 %v5277
        %v5294 = vunpack.c.l.b16 %v5278
        %v5295 = vunpack.c.l.b16 %v5279
        %v5296 = vunpack.c.l.b16 %v5280
        %v5297 = vpack.c.b16 %v5290, %v5289
        %v5298 = vpack.c.b16 %v5292, %v5291
        %v5299 = vpack.c.b16 %v5294, %v5293
        %v5300 = vpack.c.b16 %v5296, %v5295
        %v5306 = vsel %vm671, %v4984, 0
        %5308 = vmatpush.bf16.msra.mxu0 0
        %5309 = vmatpush.bf16.msra.mxu0 0
        %5310 = vmatpush.bf16.msra.mxu0 0
        %5311 = vmatpush.bf16.msra.mxu0 0
        %5312 = vmatpush.bf16.msra.mxu0 %v5300
        %5313 = vmatpush.bf16.msra.mxu0 %v5299
        %5314 = vmatpush.bf16.msra.mxu0 %v5298
        %5315 = vmatpush.bf16.msra.mxu0 %v5297
        %5316 = vmatmul.bf16.gmra.mxu0 %v5029
        %v5317 = vpop.f32.mrf.mxu0
        %v5318 = vadd.f32 0.0, %v5317
        %v5319 = vpop.f32.mrf.mxu0
        %v5320 = vadd.f32 0.0, %v5319
        %5321 = vmatmul.bf16.gmra.mxu0 %v5029
        %v5322 = vpop.f32.mrf.mxu0
        %v5323 = vadd.f32 0.0, %v5322
        %v5324 = vpop.f32.mrf.mxu0
        %v5325 = vadd.f32 0.0, %v5324
        %5326 = vmatmul.bf16.gmra.mxu0 %v5032
        %v5327 = vpop.f32.mrf.mxu0
        %v5328 = vadd.f32 0.0, %v5327
        %v5329 = vpop.f32.mrf.mxu0
        %v5330 = vadd.f32 0.0, %v5329
        %5331 = vmatmul.bf16.gmra.mxu0 %v5035
        %v5332 = vpop.f32.mrf.mxu0
        %v5333 = vadd.f32 0.0, %v5332
        %v5334 = vpop.f32.mrf.mxu0
        %v5335 = vadd.f32 0.0, %v5334
        %5336 = vmatmul.bf16.gmra.mxu0 %v5038
        %v5337 = vpop.f32.mrf.mxu0
        %v5338 = vadd.f32 0.0, %v5337
        %v5339 = vpop.f32.mrf.mxu0
        %v5340 = vadd.f32 0.0, %v5339
        %5341 = vmatmul.bf16.gmra.mxu0 %v5041
        %v5342 = vpop.f32.mrf.mxu0
        %v5343 = vadd.f32 0.0, %v5342
        %v5344 = vpop.f32.mrf.mxu0
        %v5345 = vadd.f32 0.0, %v5344
        %5346 = vmatmul.bf16.gmra.mxu0 %v5044
        %v5347 = vpop.f32.mrf.mxu0
        %v5348 = vadd.f32 0.0, %v5347
        %v5349 = vpop.f32.mrf.mxu0
        %v5350 = vadd.f32 0.0, %v5349
        %5351 = vmatmul.bf16.gmra.mxu0 %v5047
        %v5352 = vpop.f32.mrf.mxu0
        %v5353 = vadd.f32 0.0, %v5352
        %v5354 = vpop.f32.mrf.mxu0
        %v5355 = vadd.f32 0.0, %v5354
        %5356 = vmatmul.bf16.gmra.mxu0 %v5050
        %v5357 = vpop.f32.mrf.mxu0
        %v5358 = vadd.f32 0.0, %v5357
        %v5359 = vpop.f32.mrf.mxu0
        %v5360 = vadd.f32 0.0, %v5359
        %5361 = vmatmul.bf16.gmra.mxu0 %v5053
        %v5362 = vpop.f32.mrf.mxu0
        %v5363 = vadd.f32 0.0, %v5362
        %v5364 = vpop.f32.mrf.mxu0
        %v5365 = vadd.f32 0.0, %v5364
        %5366 = vmatmul.bf16.gmra.mxu0 %v5056
        %v5367 = vpop.f32.mrf.mxu0
        %v5368 = vadd.f32 0.0, %v5367
        %v5369 = vpop.f32.mrf.mxu0
        %v5370 = vadd.f32 0.0, %v5369
        %5371 = vmatmul.bf16.gmra.mxu0 %v5059
        %v5372 = vpop.f32.mrf.mxu0
        %v5373 = vadd.f32 0.0, %v5372
        %v5374 = vpop.f32.mrf.mxu0
        %v5375 = vadd.f32 0.0, %v5374
        %5376 = vmatmul.bf16.gmra.mxu0 %v5062
        %v5377 = vpop.f32.mrf.mxu0
        %v5378 = vadd.f32 0.0, %v5377
        %v5379 = vpop.f32.mrf.mxu0
        %v5380 = vadd.f32 0.0, %v5379
        %5381 = vmatmul.bf16.gmra.mxu0 %v5065
        %v5382 = vpop.f32.mrf.mxu0
        %v5383 = vadd.f32 0.0, %v5382
        %v5384 = vpop.f32.mrf.mxu0
        %v5385 = vadd.f32 0.0, %v5384
        %5386 = vmatmul.bf16.gmra.mxu0 %v5068
        %v5387 = vpop.f32.mrf.mxu0
        %v5388 = vadd.f32 0.0, %v5387
        %v5389 = vpop.f32.mrf.mxu0
        %v5390 = vadd.f32 0.0, %v5389
        %5391 = vmatmul.bf16.gmra.mxu0 %v5306
        %v5392 = vpop.f32.mrf.mxu0
        %v5393 = vadd.f32 0.0, %v5392
        %v5394 = vpop.f32.mrf.mxu0
        %v5395 = vadd.f32 0.0, %v5394
        %5396 = vdwg.mxu0
        %v5397 = vadd.f32 %v5193, %v5318
        %v5398 = vadd.f32 %v5195, %v5320
        %v5399 = vadd.f32 %v5198, %v5323
        %v5400 = vadd.f32 %v5200, %v5325
        %v5401 = vadd.f32 %v5203, %v5328
        %v5402 = vadd.f32 %v5205, %v5330
        %v5403 = vadd.f32 %v5208, %v5333
        %v5404 = vadd.f32 %v5210, %v5335
        %v5405 = vadd.f32 %v5213, %v5338
        %v5406 = vadd.f32 %v5215, %v5340
        %v5407 = vadd.f32 %v5218, %v5343
        %v5408 = vadd.f32 %v5220, %v5345
        %v5409 = vadd.f32 %v5223, %v5348
        %v5410 = vadd.f32 %v5225, %v5350
        %v5411 = vadd.f32 %v5228, %v5353
        %v5412 = vadd.f32 %v5230, %v5355
        %v5413 = vadd.f32 %v5233, %v5358
        %v5414 = vadd.f32 %v5235, %v5360
        %v5415 = vadd.f32 %v5238, %v5363
        %v5416 = vadd.f32 %v5240, %v5365
        %v5417 = vadd.f32 %v5243, %v5368
        %v5418 = vadd.f32 %v5245, %v5370
        %v5419 = vadd.f32 %v5248, %v5373
        %v5420 = vadd.f32 %v5250, %v5375
        %v5421 = vadd.f32 %v5253, %v5378
        %v5422 = vadd.f32 %v5255, %v5380
        %v5423 = vadd.f32 %v5258, %v5383
        %v5424 = vadd.f32 %v5260, %v5385
        %v5425 = vadd.f32 %v5263, %v5388
        %v5426 = vadd.f32 %v5265, %v5390
        %v5427 = vadd.f32 %v5268, %v5393
        %v5428 = vadd.f32 %v5270, %v5395
        %s5429 = scalar_lea.vmem %s15, 96
        %v5430 = vld [vmem:[%s5429] sm:$0xf]
        %v5431 = vld [vmem:[%s5429 + $0x4] sm:$0xf]
        %v5432 = vld [vmem:[%s5429 + $0x8] sm:$0xf]
        %v5433 = vld [vmem:[%s5429 + $0xc] sm:$0xf]
        %v5434 = vld [vmem:[%s5429 + $0x10] sm:$0xf]
        %v5435 = vld [vmem:[%s5429 + $0x14] sm:$0xf]
        %v5436 = vld [vmem:[%s5429 + $0x18] sm:$0xf]
        %v5437 = vld [vmem:[%s5429 + $0x1c] sm:$0xf]
        %v5446 = vunpack.c.l.b16 %v5430
        %v5447 = vunpack.c.l.b16 %v5431
        %v5448 = vunpack.c.l.b16 %v5432
        %v5449 = vunpack.c.l.b16 %v5433
        %v5450 = vunpack.c.l.b16 %v5434
        %v5451 = vunpack.c.l.b16 %v5435
        %v5452 = vunpack.c.l.b16 %v5436
        %v5453 = vunpack.c.l.b16 %v5437
        %v5454 = vpack.c.b16 %v5447, %v5446
        %v5455 = vpack.c.b16 %v5449, %v5448
        %v5456 = vpack.c.b16 %v5451, %v5450
        %v5457 = vpack.c.b16 %v5453, %v5452
        %v5463 = vsel %vm671, %v4985, 0
        %5465 = vmatpush.bf16.msra.mxu0 0
        %5466 = vmatpush.bf16.msra.mxu0 0
        %5467 = vmatpush.bf16.msra.mxu0 0
        %5468 = vmatpush.bf16.msra.mxu0 0
        %5469 = vmatpush.bf16.msra.mxu0 %v5457
        %5470 = vmatpush.bf16.msra.mxu0 %v5456
        %5471 = vmatpush.bf16.msra.mxu0 %v5455
        %5472 = vmatpush.bf16.msra.mxu0 %v5454
        %5473 = vmatmul.bf16.gmra.mxu0 %v5029
        %v5474 = vpop.f32.mrf.mxu0
        %v5475 = vadd.f32 0.0, %v5474
        %v5476 = vpop.f32.mrf.mxu0
        %v5477 = vadd.f32 0.0, %v5476
        %5478 = vmatmul.bf16.gmra.mxu0 %v5032
        %v5479 = vpop.f32.mrf.mxu0
        %v5480 = vadd.f32 0.0, %v5479
        %v5481 = vpop.f32.mrf.mxu0
        %v5482 = vadd.f32 0.0, %v5481
        %5483 = vmatmul.bf16.gmra.mxu0 %v5035
        %v5484 = vpop.f32.mrf.mxu0
        %v5485 = vadd.f32 0.0, %v5484
        %v5486 = vpop.f32.mrf.mxu0
        %v5487 = vadd.f32 0.0, %v5486
        %5488 = vmatmul.bf16.gmra.mxu0 %v5038
        %v5489 = vpop.f32.mrf.mxu0
        %v5490 = vadd.f32 0.0, %v5489
        %v5491 = vpop.f32.mrf.mxu0
        %v5492 = vadd.f32 0.0, %v5491
        %5493 = vmatmul.bf16.gmra.mxu0 %v5041
        %v5494 = vpop.f32.mrf.mxu0
        %v5495 = vadd.f32 0.0, %v5494
        %v5496 = vpop.f32.mrf.mxu0
        %v5497 = vadd.f32 0.0, %v5496
        %5498 = vmatmul.bf16.gmra.mxu0 %v5044
        %v5499 = vpop.f32.mrf.mxu0
        %v5500 = vadd.f32 0.0, %v5499
        %v5501 = vpop.f32.mrf.mxu0
        %v5502 = vadd.f32 0.0, %v5501
        %5503 = vmatmul.bf16.gmra.mxu0 %v5047
        %v5504 = vpop.f32.mrf.mxu0
        %v5505 = vadd.f32 0.0, %v5504
        %v5506 = vpop.f32.mrf.mxu0
        %v5507 = vadd.f32 0.0, %v5506
        %5508 = vmatmul.bf16.gmra.mxu0 %v5050
        %v5509 = vpop.f32.mrf.mxu0
        %v5510 = vadd.f32 0.0, %v5509
        %v5511 = vpop.f32.mrf.mxu0
        %v5512 = vadd.f32 0.0, %v5511
        %5513 = vmatmul.bf16.gmra.mxu0 %v5053
        %v5514 = vpop.f32.mrf.mxu0
        %v5515 = vadd.f32 0.0, %v5514
        %v5516 = vpop.f32.mrf.mxu0
        %v5517 = vadd.f32 0.0, %v5516
        %5518 = vmatmul.bf16.gmra.mxu0 %v5056
        %v5519 = vpop.f32.mrf.mxu0
        %v5520 = vadd.f32 0.0, %v5519
        %v5521 = vpop.f32.mrf.mxu0
        %v5522 = vadd.f32 0.0, %v5521
        %5523 = vmatmul.bf16.gmra.mxu0 %v5059
        %v5524 = vpop.f32.mrf.mxu0
        %v5525 = vadd.f32 0.0, %v5524
        %v5526 = vpop.f32.mrf.mxu0
        %v5527 = vadd.f32 0.0, %v5526
        %5528 = vmatmul.bf16.gmra.mxu0 %v5062
        %v5529 = vpop.f32.mrf.mxu0
        %v5530 = vadd.f32 0.0, %v5529
        %v5531 = vpop.f32.mrf.mxu0
        %v5532 = vadd.f32 0.0, %v5531
        %5533 = vmatmul.bf16.gmra.mxu0 %v5065
        %v5534 = vpop.f32.mrf.mxu0
        %v5535 = vadd.f32 0.0, %v5534
        %v5536 = vpop.f32.mrf.mxu0
        %v5537 = vadd.f32 0.0, %v5536
        %5538 = vmatmul.bf16.gmra.mxu0 %v5068
        %v5539 = vpop.f32.mrf.mxu0
        %v5540 = vadd.f32 0.0, %v5539
        %v5541 = vpop.f32.mrf.mxu0
        %v5542 = vadd.f32 0.0, %v5541
        %5543 = vmatmul.bf16.gmra.mxu0 %v5306
        %v5544 = vpop.f32.mrf.mxu0
        %v5545 = vadd.f32 0.0, %v5544
        %v5546 = vpop.f32.mrf.mxu0
        %v5547 = vadd.f32 0.0, %v5546
        %5548 = vmatmul.bf16.gmra.mxu0 %v5463
        %v5549 = vpop.f32.mrf.mxu0
        %v5550 = vadd.f32 0.0, %v5549
        %v5551 = vpop.f32.mrf.mxu0
        %v5552 = vadd.f32 0.0, %v5551
        %5553 = vdwg.mxu0
        %v5554 = vadd.f32 %v5397, %v5475
        %v5555 = vadd.f32 %v5398, %v5477
        %v5556 = vadd.f32 %v5399, %v5480
        %v5557 = vadd.f32 %v5400, %v5482
        %v5558 = vadd.f32 %v5401, %v5485
        %v5559 = vadd.f32 %v5402, %v5487
        %v5560 = vadd.f32 %v5403, %v5490
        %v5561 = vadd.f32 %v5404, %v5492
        %v5562 = vadd.f32 %v5405, %v5495
        %v5563 = vadd.f32 %v5406, %v5497
        %v5564 = vadd.f32 %v5407, %v5500
        %v5565 = vadd.f32 %v5408, %v5502
        %v5566 = vadd.f32 %v5409, %v5505
        %v5567 = vadd.f32 %v5410, %v5507
        %v5568 = vadd.f32 %v5411, %v5510
        %v5569 = vadd.f32 %v5412, %v5512
        %v5570 = vadd.f32 %v5413, %v5515
        %v5571 = vadd.f32 %v5414, %v5517
        %v5572 = vadd.f32 %v5415, %v5520
        %v5573 = vadd.f32 %v5416, %v5522
        %v5574 = vadd.f32 %v5417, %v5525
        %v5575 = vadd.f32 %v5418, %v5527
        %v5576 = vadd.f32 %v5419, %v5530
        %v5577 = vadd.f32 %v5420, %v5532
        %v5578 = vadd.f32 %v5421, %v5535
        %v5579 = vadd.f32 %v5422, %v5537
        %v5580 = vadd.f32 %v5423, %v5540
        %v5581 = vadd.f32 %v5424, %v5542
        %v5582 = vadd.f32 %v5425, %v5545
        %v5583 = vadd.f32 %v5426, %v5547
        %v5584 = vadd.f32 %v5427, %v5550
        %v5585 = vadd.f32 %v5428, %v5552
        %s5586 = scalar_lea.vmem %s15, 128
        %v5587 = vld [vmem:[%s5586] sm:$0xf]
        %v5588 = vld [vmem:[%s5586 + $0x4] sm:$0xf]
        %v5589 = vld [vmem:[%s5586 + $0x8] sm:$0xf]
        %v5590 = vld [vmem:[%s5586 + $0xc] sm:$0xf]
        %v5591 = vld [vmem:[%s5586 + $0x10] sm:$0xf]
        %v5592 = vld [vmem:[%s5586 + $0x14] sm:$0xf]
        %v5593 = vld [vmem:[%s5586 + $0x18] sm:$0xf]
        %v5594 = vld [vmem:[%s5586 + $0x1c] sm:$0xf]
        %v5603 = vunpack.c.l.b16 %v5587
        %v5604 = vunpack.c.l.b16 %v5588
        %v5605 = vunpack.c.l.b16 %v5589
        %v5606 = vunpack.c.l.b16 %v5590
        %v5607 = vunpack.c.l.b16 %v5591
        %v5608 = vunpack.c.l.b16 %v5592
        %v5609 = vunpack.c.l.b16 %v5593
        %v5610 = vunpack.c.l.b16 %v5594
        %v5611 = vpack.c.b16 %v5604, %v5603
        %v5612 = vpack.c.b16 %v5606, %v5605
        %v5613 = vpack.c.b16 %v5608, %v5607
        %v5614 = vpack.c.b16 %v5610, %v5609
        %v5620 = vsel %vm671, %v4986, 0
        %5622 = vmatpush.bf16.msra.mxu0 0
        %5623 = vmatpush.bf16.msra.mxu0 0
        %5624 = vmatpush.bf16.msra.mxu0 0
        %5625 = vmatpush.bf16.msra.mxu0 0
        %5626 = vmatpush.bf16.msra.mxu0 %v5614
        %5627 = vmatpush.bf16.msra.mxu0 %v5613
        %5628 = vmatpush.bf16.msra.mxu0 %v5612
        %5629 = vmatpush.bf16.msra.mxu0 %v5611
        %5630 = vmatmul.bf16.gmra.mxu0 %v5032
        %v5631 = vpop.f32.mrf.mxu0
        %v5632 = vadd.f32 0.0, %v5631
        %v5633 = vpop.f32.mrf.mxu0
        %v5634 = vadd.f32 0.0, %v5633
        %5635 = vmatmul.bf16.gmra.mxu0 %v5035
        %v5636 = vpop.f32.mrf.mxu0
        %v5637 = vadd.f32 0.0, %v5636
        %v5638 = vpop.f32.mrf.mxu0
        %v5639 = vadd.f32 0.0, %v5638
        %5640 = vmatmul.bf16.gmra.mxu0 %v5038
        %v5641 = vpop.f32.mrf.mxu0
        %v5642 = vadd.f32 0.0, %v5641
        %v5643 = vpop.f32.mrf.mxu0
        %v5644 = vadd.f32 0.0, %v5643
        %5645 = vmatmul.bf16.gmra.mxu0 %v5041
        %v5646 = vpop.f32.mrf.mxu0
        %v5647 = vadd.f32 0.0, %v5646
        %v5648 = vpop.f32.mrf.mxu0
        %v5649 = vadd.f32 0.0, %v5648
        %5650 = vmatmul.bf16.gmra.mxu0 %v5044
        %v5651 = vpop.f32.mrf.mxu0
        %v5652 = vadd.f32 0.0, %v5651
        %v5653 = vpop.f32.mrf.mxu0
        %v5654 = vadd.f32 0.0, %v5653
        %5655 = vmatmul.bf16.gmra.mxu0 %v5047
        %v5656 = vpop.f32.mrf.mxu0
        %v5657 = vadd.f32 0.0, %v5656
        %v5658 = vpop.f32.mrf.mxu0
        %v5659 = vadd.f32 0.0, %v5658
        %5660 = vmatmul.bf16.gmra.mxu0 %v5050
        %v5661 = vpop.f32.mrf.mxu0
        %v5662 = vadd.f32 0.0, %v5661
        %v5663 = vpop.f32.mrf.mxu0
        %v5664 = vadd.f32 0.0, %v5663
        %5665 = vmatmul.bf16.gmra.mxu0 %v5053
        %v5666 = vpop.f32.mrf.mxu0
        %v5667 = vadd.f32 0.0, %v5666
        %v5668 = vpop.f32.mrf.mxu0
        %v5669 = vadd.f32 0.0, %v5668
        %5670 = vmatmul.bf16.gmra.mxu0 %v5056
        %v5671 = vpop.f32.mrf.mxu0
        %v5672 = vadd.f32 0.0, %v5671
        %v5673 = vpop.f32.mrf.mxu0
        %v5674 = vadd.f32 0.0, %v5673
        %5675 = vmatmul.bf16.gmra.mxu0 %v5059
        %v5676 = vpop.f32.mrf.mxu0
        %v5677 = vadd.f32 0.0, %v5676
        %v5678 = vpop.f32.mrf.mxu0
        %v5679 = vadd.f32 0.0, %v5678
        %5680 = vmatmul.bf16.gmra.mxu0 %v5062
        %v5681 = vpop.f32.mrf.mxu0
        %v5682 = vadd.f32 0.0, %v5681
        %v5683 = vpop.f32.mrf.mxu0
        %v5684 = vadd.f32 0.0, %v5683
        %5685 = vmatmul.bf16.gmra.mxu0 %v5065
        %v5686 = vpop.f32.mrf.mxu0
        %v5687 = vadd.f32 0.0, %v5686
        %v5688 = vpop.f32.mrf.mxu0
        %v5689 = vadd.f32 0.0, %v5688
        %5690 = vmatmul.bf16.gmra.mxu0 %v5068
        %v5691 = vpop.f32.mrf.mxu0
        %v5692 = vadd.f32 0.0, %v5691
        %v5693 = vpop.f32.mrf.mxu0
        %v5694 = vadd.f32 0.0, %v5693
        %5695 = vmatmul.bf16.gmra.mxu0 %v5306
        %v5696 = vpop.f32.mrf.mxu0
        %v5697 = vadd.f32 0.0, %v5696
        %v5698 = vpop.f32.mrf.mxu0
        %v5699 = vadd.f32 0.0, %v5698
        %5700 = vmatmul.bf16.gmra.mxu0 %v5463
        %v5701 = vpop.f32.mrf.mxu0
        %v5702 = vadd.f32 0.0, %v5701
        %v5703 = vpop.f32.mrf.mxu0
        %v5704 = vadd.f32 0.0, %v5703
        %5705 = vmatmul.bf16.gmra.mxu0 %v5620
        %v5706 = vpop.f32.mrf.mxu0
        %v5707 = vadd.f32 0.0, %v5706
        %v5708 = vpop.f32.mrf.mxu0
        %v5709 = vadd.f32 0.0, %v5708
        %5710 = vdwg.mxu0
        %v5711 = vadd.f32 %v5554, %v5632
        %v5712 = vadd.f32 %v5555, %v5634
        %v5713 = vadd.f32 %v5556, %v5637
        %v5714 = vadd.f32 %v5557, %v5639
        %v5715 = vadd.f32 %v5558, %v5642
        %v5716 = vadd.f32 %v5559, %v5644
        %v5717 = vadd.f32 %v5560, %v5647
        %v5718 = vadd.f32 %v5561, %v5649
        %v5719 = vadd.f32 %v5562, %v5652
        %v5720 = vadd.f32 %v5563, %v5654
        %v5721 = vadd.f32 %v5564, %v5657
        %v5722 = vadd.f32 %v5565, %v5659
        %v5723 = vadd.f32 %v5566, %v5662
        %v5724 = vadd.f32 %v5567, %v5664
        %v5725 = vadd.f32 %v5568, %v5667
        %v5726 = vadd.f32 %v5569, %v5669
        %v5727 = vadd.f32 %v5570, %v5672
        %v5728 = vadd.f32 %v5571, %v5674
        %v5729 = vadd.f32 %v5572, %v5677
        %v5730 = vadd.f32 %v5573, %v5679
        %v5731 = vadd.f32 %v5574, %v5682
        %v5732 = vadd.f32 %v5575, %v5684
        %v5733 = vadd.f32 %v5576, %v5687
        %v5734 = vadd.f32 %v5577, %v5689
        %v5735 = vadd.f32 %v5578, %v5692
        %v5736 = vadd.f32 %v5579, %v5694
        %v5737 = vadd.f32 %v5580, %v5697
        %v5738 = vadd.f32 %v5581, %v5699
        %v5739 = vadd.f32 %v5582, %v5702
        %v5740 = vadd.f32 %v5583, %v5704
        %v5741 = vadd.f32 %v5584, %v5707
        %v5742 = vadd.f32 %v5585, %v5709
        %s5743 = scalar_lea.vmem %s15, 160
        %v5744 = vld [vmem:[%s5743] sm:$0xf]
        %v5745 = vld [vmem:[%s5743 + $0x4] sm:$0xf]
        %v5746 = vld [vmem:[%s5743 + $0x8] sm:$0xf]
        %v5747 = vld [vmem:[%s5743 + $0xc] sm:$0xf]
        %v5748 = vld [vmem:[%s5743 + $0x10] sm:$0xf]
        %v5749 = vld [vmem:[%s5743 + $0x14] sm:$0xf]
        %v5750 = vld [vmem:[%s5743 + $0x18] sm:$0xf]
        %v5751 = vld [vmem:[%s5743 + $0x1c] sm:$0xf]
        %v5760 = vunpack.c.l.b16 %v5744
        %v5761 = vunpack.c.l.b16 %v5745
        %v5762 = vunpack.c.l.b16 %v5746
        %v5763 = vunpack.c.l.b16 %v5747
        %v5764 = vunpack.c.l.b16 %v5748
        %v5765 = vunpack.c.l.b16 %v5749
        %v5766 = vunpack.c.l.b16 %v5750
        %v5767 = vunpack.c.l.b16 %v5751
        %v5768 = vpack.c.b16 %v5761, %v5760
        %v5769 = vpack.c.b16 %v5763, %v5762
        %v5770 = vpack.c.b16 %v5765, %v5764
        %v5771 = vpack.c.b16 %v5767, %v5766
        %5776 = vmatpush.bf16.msra.mxu0 0
        %5777 = vmatpush.bf16.msra.mxu0 0
        %5778 = vmatpush.bf16.msra.mxu0 0
        %5779 = vmatpush.bf16.msra.mxu0 0
        %5780 = vmatpush.bf16.msra.mxu0 %v5771
        %5781 = vmatpush.bf16.msra.mxu0 %v5770
        %5782 = vmatpush.bf16.msra.mxu0 %v5769
        %5783 = vmatpush.bf16.msra.mxu0 %v5768
        %5784 = vmatmul.bf16.gmra.mxu0 %v5035
        %v5785 = vpop.f32.mrf.mxu0
        %v5786 = vadd.f32 0.0, %v5785
        %v5787 = vpop.f32.mrf.mxu0
        %v5788 = vadd.f32 0.0, %v5787
        %5789 = vmatmul.bf16.gmra.mxu0 %v5038
        %v5790 = vpop.f32.mrf.mxu0
        %v5791 = vadd.f32 0.0, %v5790
        %v5792 = vpop.f32.mrf.mxu0
        %v5793 = vadd.f32 0.0, %v5792
        %5794 = vmatmul.bf16.gmra.mxu0 %v5041
        %v5795 = vpop.f32.mrf.mxu0
        %v5796 = vadd.f32 0.0, %v5795
        %v5797 = vpop.f32.mrf.mxu0
        %v5798 = vadd.f32 0.0, %v5797
        %5799 = vmatmul.bf16.gmra.mxu0 %v5044
        %v5800 = vpop.f32.mrf.mxu0
        %v5801 = vadd.f32 0.0, %v5800
        %v5802 = vpop.f32.mrf.mxu0
        %v5803 = vadd.f32 0.0, %v5802
        %5804 = vmatmul.bf16.gmra.mxu0 %v5047
        %v5805 = vpop.f32.mrf.mxu0
        %v5806 = vadd.f32 0.0, %v5805
        %v5807 = vpop.f32.mrf.mxu0
        %v5808 = vadd.f32 0.0, %v5807
        %5809 = vmatmul.bf16.gmra.mxu0 %v5050
        %v5810 = vpop.f32.mrf.mxu0
        %v5811 = vadd.f32 0.0, %v5810
        %v5812 = vpop.f32.mrf.mxu0
        %v5813 = vadd.f32 0.0, %v5812
        %5814 = vmatmul.bf16.gmra.mxu0 %v5053
        %v5815 = vpop.f32.mrf.mxu0
        %v5816 = vadd.f32 0.0, %v5815
        %v5817 = vpop.f32.mrf.mxu0
        %v5818 = vadd.f32 0.0, %v5817
        %5819 = vmatmul.bf16.gmra.mxu0 %v5056
        %v5820 = vpop.f32.mrf.mxu0
        %v5821 = vadd.f32 0.0, %v5820
        %v5822 = vpop.f32.mrf.mxu0
        %v5823 = vadd.f32 0.0, %v5822
        %5824 = vmatmul.bf16.gmra.mxu0 %v5059
        %v5825 = vpop.f32.mrf.mxu0
        %v5826 = vadd.f32 0.0, %v5825
        %v5827 = vpop.f32.mrf.mxu0
        %v5828 = vadd.f32 0.0, %v5827
        %5829 = vmatmul.bf16.gmra.mxu0 %v5062
        %v5830 = vpop.f32.mrf.mxu0
        %v5831 = vadd.f32 0.0, %v5830
        %v5832 = vpop.f32.mrf.mxu0
        %v5833 = vadd.f32 0.0, %v5832
        %5834 = vmatmul.bf16.gmra.mxu0 %v5065
        %v5835 = vpop.f32.mrf.mxu0
        %v5836 = vadd.f32 0.0, %v5835
        %v5837 = vpop.f32.mrf.mxu0
        %v5838 = vadd.f32 0.0, %v5837
        %5839 = vmatmul.bf16.gmra.mxu0 %v5068
        %v5840 = vpop.f32.mrf.mxu0
        %v5841 = vadd.f32 0.0, %v5840
        %v5842 = vpop.f32.mrf.mxu0
        %v5843 = vadd.f32 0.0, %v5842
        %5844 = vmatmul.bf16.gmra.mxu0 %v5306
        %v5845 = vpop.f32.mrf.mxu0
        %v5846 = vadd.f32 0.0, %v5845
        %v5847 = vpop.f32.mrf.mxu0
        %v5848 = vadd.f32 0.0, %v5847
        %5849 = vmatmul.bf16.gmra.mxu0 %v5463
        %v5850 = vpop.f32.mrf.mxu0
        %v5851 = vadd.f32 0.0, %v5850
        %v5852 = vpop.f32.mrf.mxu0
        %v5853 = vadd.f32 0.0, %v5852
        %5854 = vmatmul.bf16.gmra.mxu0 %v5620
        %v5855 = vpop.f32.mrf.mxu0
        %v5856 = vadd.f32 0.0, %v5855
        %v5857 = vpop.f32.mrf.mxu0
        %v5858 = vadd.f32 0.0, %v5857
        %5859 = vmatmul.bf16.gmra.mxu0 %v5029
        %v5860 = vpop.f32.mrf.mxu0
        %v5861 = vadd.f32 0.0, %v5860
        %v5862 = vpop.f32.mrf.mxu0
        %v5863 = vadd.f32 0.0, %v5862
        %5864 = vdwg.mxu0
        %v5865 = vadd.f32 %v5711, %v5786
        %v5866 = vadd.f32 %v5712, %v5788
        %v5867 = vadd.f32 %v5713, %v5791
        %v5868 = vadd.f32 %v5714, %v5793
        %v5869 = vadd.f32 %v5715, %v5796
        %v5870 = vadd.f32 %v5716, %v5798
        %v5871 = vadd.f32 %v5717, %v5801
        %v5872 = vadd.f32 %v5718, %v5803
        %v5873 = vadd.f32 %v5719, %v5806
        %v5874 = vadd.f32 %v5720, %v5808
        %v5875 = vadd.f32 %v5721, %v5811
        %v5876 = vadd.f32 %v5722, %v5813
        %v5877 = vadd.f32 %v5723, %v5816
        %v5878 = vadd.f32 %v5724, %v5818
        %v5879 = vadd.f32 %v5725, %v5821
        %v5880 = vadd.f32 %v5726, %v5823
        %v5881 = vadd.f32 %v5727, %v5826
        %v5882 = vadd.f32 %v5728, %v5828
        %v5883 = vadd.f32 %v5729, %v5831
        %v5884 = vadd.f32 %v5730, %v5833
        %v5885 = vadd.f32 %v5731, %v5836
        %v5886 = vadd.f32 %v5732, %v5838
        %v5887 = vadd.f32 %v5733, %v5841
        %v5888 = vadd.f32 %v5734, %v5843
        %v5889 = vadd.f32 %v5735, %v5846
        %v5890 = vadd.f32 %v5736, %v5848
        %v5891 = vadd.f32 %v5737, %v5851
        %v5892 = vadd.f32 %v5738, %v5853
        %v5893 = vadd.f32 %v5739, %v5856
        %v5894 = vadd.f32 %v5740, %v5858
        %v5895 = vadd.f32 %v5741, %v5861
        %v5896 = vadd.f32 %v5742, %v5863
        %s5897 = scalar_lea.vmem %s15, 192
        %v5898 = vld [vmem:[%s5897] sm:$0xf]
        %v5899 = vld [vmem:[%s5897 + $0x4] sm:$0xf]
        %v5900 = vld [vmem:[%s5897 + $0x8] sm:$0xf]
        %v5901 = vld [vmem:[%s5897 + $0xc] sm:$0xf]
        %v5902 = vld [vmem:[%s5897 + $0x10] sm:$0xf]
        %v5903 = vld [vmem:[%s5897 + $0x14] sm:$0xf]
        %v5904 = vld [vmem:[%s5897 + $0x18] sm:$0xf]
        %v5905 = vld [vmem:[%s5897 + $0x1c] sm:$0xf]
        %v5914 = vunpack.c.l.b16 %v5898
        %v5915 = vunpack.c.l.b16 %v5899
        %v5916 = vunpack.c.l.b16 %v5900
        %v5917 = vunpack.c.l.b16 %v5901
        %v5918 = vunpack.c.l.b16 %v5902
        %v5919 = vunpack.c.l.b16 %v5903
        %v5920 = vunpack.c.l.b16 %v5904
        %v5921 = vunpack.c.l.b16 %v5905
        %v5922 = vpack.c.b16 %v5915, %v5914
        %v5923 = vpack.c.b16 %v5917, %v5916
        %v5924 = vpack.c.b16 %v5919, %v5918
        %v5925 = vpack.c.b16 %v5921, %v5920
        %5930 = vmatpush.bf16.msra.mxu0 0
        %5931 = vmatpush.bf16.msra.mxu0 0
        %5932 = vmatpush.bf16.msra.mxu0 0
        %5933 = vmatpush.bf16.msra.mxu0 0
        %5934 = vmatpush.bf16.msra.mxu0 %v5925
        %5935 = vmatpush.bf16.msra.mxu0 %v5924
        %5936 = vmatpush.bf16.msra.mxu0 %v5923
        %5937 = vmatpush.bf16.msra.mxu0 %v5922
        %5938 = vmatmul.bf16.gmra.mxu0 %v5038
        %v5939 = vpop.f32.mrf.mxu0
        %v5940 = vadd.f32 0.0, %v5939
        %v5941 = vpop.f32.mrf.mxu0
        %v5942 = vadd.f32 0.0, %v5941
        %5943 = vmatmul.bf16.gmra.mxu0 %v5041
        %v5944 = vpop.f32.mrf.mxu0
        %v5945 = vadd.f32 0.0, %v5944
        %v5946 = vpop.f32.mrf.mxu0
        %v5947 = vadd.f32 0.0, %v5946
        %5948 = vmatmul.bf16.gmra.mxu0 %v5044
        %v5949 = vpop.f32.mrf.mxu0
        %v5950 = vadd.f32 0.0, %v5949
        %v5951 = vpop.f32.mrf.mxu0
        %v5952 = vadd.f32 0.0, %v5951
        %5953 = vmatmul.bf16.gmra.mxu0 %v5047
        %v5954 = vpop.f32.mrf.mxu0
        %v5955 = vadd.f32 0.0, %v5954
        %v5956 = vpop.f32.mrf.mxu0
        %v5957 = vadd.f32 0.0, %v5956
        %5958 = vmatmul.bf16.gmra.mxu0 %v5050
        %v5959 = vpop.f32.mrf.mxu0
        %v5960 = vadd.f32 0.0, %v5959
        %v5961 = vpop.f32.mrf.mxu0
        %v5962 = vadd.f32 0.0, %v5961
        %5963 = vmatmul.bf16.gmra.mxu0 %v5053
        %v5964 = vpop.f32.mrf.mxu0
        %v5965 = vadd.f32 0.0, %v5964
        %v5966 = vpop.f32.mrf.mxu0
        %v5967 = vadd.f32 0.0, %v5966
        %5968 = vmatmul.bf16.gmra.mxu0 %v5056
        %v5969 = vpop.f32.mrf.mxu0
        %v5970 = vadd.f32 0.0, %v5969
        %v5971 = vpop.f32.mrf.mxu0
        %v5972 = vadd.f32 0.0, %v5971
        %5973 = vmatmul.bf16.gmra.mxu0 %v5059
        %v5974 = vpop.f32.mrf.mxu0
        %v5975 = vadd.f32 0.0, %v5974
        %v5976 = vpop.f32.mrf.mxu0
        %v5977 = vadd.f32 0.0, %v5976
        %5978 = vmatmul.bf16.gmra.mxu0 %v5062
        %v5979 = vpop.f32.mrf.mxu0
        %v5980 = vadd.f32 0.0, %v5979
        %v5981 = vpop.f32.mrf.mxu0
        %v5982 = vadd.f32 0.0, %v5981
        %5983 = vmatmul.bf16.gmra.mxu0 %v5065
        %v5984 = vpop.f32.mrf.mxu0
        %v5985 = vadd.f32 0.0, %v5984
        %v5986 = vpop.f32.mrf.mxu0
        %v5987 = vadd.f32 0.0, %v5986
        %5988 = vmatmul.bf16.gmra.mxu0 %v5068
        %v5989 = vpop.f32.mrf.mxu0
        %v5990 = vadd.f32 0.0, %v5989
        %v5991 = vpop.f32.mrf.mxu0
        %v5992 = vadd.f32 0.0, %v5991
        %5993 = vmatmul.bf16.gmra.mxu0 %v5306
        %v5994 = vpop.f32.mrf.mxu0
        %v5995 = vadd.f32 0.0, %v5994
        %v5996 = vpop.f32.mrf.mxu0
        %v5997 = vadd.f32 0.0, %v5996
        %5998 = vmatmul.bf16.gmra.mxu0 %v5463
        %v5999 = vpop.f32.mrf.mxu0
        %v6000 = vadd.f32 0.0, %v5999
        %v6001 = vpop.f32.mrf.mxu0
        %v6002 = vadd.f32 0.0, %v6001
        %6003 = vmatmul.bf16.gmra.mxu0 %v5620
        %v6004 = vpop.f32.mrf.mxu0
        %v6005 = vadd.f32 0.0, %v6004
        %v6006 = vpop.f32.mrf.mxu0
        %v6007 = vadd.f32 0.0, %v6006
        %6008 = vmatmul.bf16.gmra.mxu0 %v5029
        %v6009 = vpop.f32.mrf.mxu0
        %v6010 = vadd.f32 0.0, %v6009
        %v6011 = vpop.f32.mrf.mxu0
        %v6012 = vadd.f32 0.0, %v6011
        %6013 = vmatmul.bf16.gmra.mxu0 %v5029
        %v6014 = vpop.f32.mrf.mxu0
        %v6015 = vadd.f32 0.0, %v6014
        %v6016 = vpop.f32.mrf.mxu0
        %v6017 = vadd.f32 0.0, %v6016
        %6018 = vdwg.mxu0
        %v6019 = vadd.f32 %v5865, %v5940
        %v6020 = vadd.f32 %v5866, %v5942
        %v6021 = vadd.f32 %v5867, %v5945
        %v6022 = vadd.f32 %v5868, %v5947
        %v6023 = vadd.f32 %v5869, %v5950
        %v6024 = vadd.f32 %v5870, %v5952
        %v6025 = vadd.f32 %v5871, %v5955
        %v6026 = vadd.f32 %v5872, %v5957
        %v6027 = vadd.f32 %v5873, %v5960
        %v6028 = vadd.f32 %v5874, %v5962
        %v6029 = vadd.f32 %v5875, %v5965
        %v6030 = vadd.f32 %v5876, %v5967
        %v6031 = vadd.f32 %v5877, %v5970
        %v6032 = vadd.f32 %v5878, %v5972
        %v6033 = vadd.f32 %v5879, %v5975
        %v6034 = vadd.f32 %v5880, %v5977
        %v6035 = vadd.f32 %v5881, %v5980
        %v6036 = vadd.f32 %v5882, %v5982
        %v6037 = vadd.f32 %v5883, %v5985
        %v6038 = vadd.f32 %v5884, %v5987
        %v6039 = vadd.f32 %v5885, %v5990
        %v6040 = vadd.f32 %v5886, %v5992
        %v6041 = vadd.f32 %v5887, %v5995
        %v6042 = vadd.f32 %v5888, %v5997
        %v6043 = vadd.f32 %v5889, %v6000
        %v6044 = vadd.f32 %v5890, %v6002
        %v6045 = vadd.f32 %v5891, %v6005
        %v6046 = vadd.f32 %v5892, %v6007
        %v6047 = vadd.f32 %v5893, %v6010
        %v6048 = vadd.f32 %v5894, %v6012
        %v6049 = vadd.f32 %v5895, %v6015
        %v6050 = vadd.f32 %v5896, %v6017
        %s6051 = scalar_lea.vmem %s15, 224
        %v6052 = vld [vmem:[%s6051] sm:$0xf]
        %v6053 = vld [vmem:[%s6051 + $0x4] sm:$0xf]
        %v6054 = vld [vmem:[%s6051 + $0x8] sm:$0xf]
        %v6055 = vld [vmem:[%s6051 + $0xc] sm:$0xf]
        %v6056 = vld [vmem:[%s6051 + $0x10] sm:$0xf]
        %v6057 = vld [vmem:[%s6051 + $0x14] sm:$0xf]
        %v6058 = vld [vmem:[%s6051 + $0x18] sm:$0xf]
        %v6059 = vld [vmem:[%s6051 + $0x1c] sm:$0xf]
        %v6068 = vunpack.c.l.b16 %v6052
        %v6069 = vunpack.c.l.b16 %v6053
        %v6070 = vunpack.c.l.b16 %v6054
        %v6071 = vunpack.c.l.b16 %v6055
        %v6072 = vunpack.c.l.b16 %v6056
        %v6073 = vunpack.c.l.b16 %v6057
        %v6074 = vunpack.c.l.b16 %v6058
        %v6075 = vunpack.c.l.b16 %v6059
        %v6076 = vpack.c.b16 %v6069, %v6068
        %v6077 = vpack.c.b16 %v6071, %v6070
        %v6078 = vpack.c.b16 %v6073, %v6072
        %v6079 = vpack.c.b16 %v6075, %v6074
        %6084 = vmatpush.bf16.msra.mxu0 0
        %6085 = vmatpush.bf16.msra.mxu0 0
        %6086 = vmatpush.bf16.msra.mxu0 0
        %6087 = vmatpush.bf16.msra.mxu0 0
        %6088 = vmatpush.bf16.msra.mxu0 %v6079
        %6089 = vmatpush.bf16.msra.mxu0 %v6078
        %6090 = vmatpush.bf16.msra.mxu0 %v6077
        %6091 = vmatpush.bf16.msra.mxu0 %v6076
        %6092 = vmatmul.bf16.gmra.mxu0 %v5041
        %v6093 = vpop.f32.mrf.mxu0
        %v6094 = vadd.f32 0.0, %v6093
        %v6095 = vpop.f32.mrf.mxu0
        %v6096 = vadd.f32 0.0, %v6095
        %6097 = vmatmul.bf16.gmra.mxu0 %v5044
        %v6098 = vpop.f32.mrf.mxu0
        %v6099 = vadd.f32 0.0, %v6098
        %v6100 = vpop.f32.mrf.mxu0
        %v6101 = vadd.f32 0.0, %v6100
        %6102 = vmatmul.bf16.gmra.mxu0 %v5047
        %v6103 = vpop.f32.mrf.mxu0
        %v6104 = vadd.f32 0.0, %v6103
        %v6105 = vpop.f32.mrf.mxu0
        %v6106 = vadd.f32 0.0, %v6105
        %6107 = vmatmul.bf16.gmra.mxu0 %v5050
        %v6108 = vpop.f32.mrf.mxu0
        %v6109 = vadd.f32 0.0, %v6108
        %v6110 = vpop.f32.mrf.mxu0
        %v6111 = vadd.f32 0.0, %v6110
        %6112 = vmatmul.bf16.gmra.mxu0 %v5053
        %v6113 = vpop.f32.mrf.mxu0
        %v6114 = vadd.f32 0.0, %v6113
        %v6115 = vpop.f32.mrf.mxu0
        %v6116 = vadd.f32 0.0, %v6115
        %6117 = vmatmul.bf16.gmra.mxu0 %v5056
        %v6118 = vpop.f32.mrf.mxu0
        %v6119 = vadd.f32 0.0, %v6118
        %v6120 = vpop.f32.mrf.mxu0
        %v6121 = vadd.f32 0.0, %v6120
        %6122 = vmatmul.bf16.gmra.mxu0 %v5059
        %v6123 = vpop.f32.mrf.mxu0
        %v6124 = vadd.f32 0.0, %v6123
        %v6125 = vpop.f32.mrf.mxu0
        %v6126 = vadd.f32 0.0, %v6125
        %6127 = vmatmul.bf16.gmra.mxu0 %v5062
        %v6128 = vpop.f32.mrf.mxu0
        %v6129 = vadd.f32 0.0, %v6128
        %v6130 = vpop.f32.mrf.mxu0
        %v6131 = vadd.f32 0.0, %v6130
        %6132 = vmatmul.bf16.gmra.mxu0 %v5065
        %v6133 = vpop.f32.mrf.mxu0
        %v6134 = vadd.f32 0.0, %v6133
        %v6135 = vpop.f32.mrf.mxu0
        %v6136 = vadd.f32 0.0, %v6135
        %6137 = vmatmul.bf16.gmra.mxu0 %v5068
        %v6138 = vpop.f32.mrf.mxu0
        %v6139 = vadd.f32 0.0, %v6138
        %v6140 = vpop.f32.mrf.mxu0
        %v6141 = vadd.f32 0.0, %v6140
        %6142 = vmatmul.bf16.gmra.mxu0 %v5306
        %v6143 = vpop.f32.mrf.mxu0
        %v6144 = vadd.f32 0.0, %v6143
        %v6145 = vpop.f32.mrf.mxu0
        %v6146 = vadd.f32 0.0, %v6145
        %6147 = vmatmul.bf16.gmra.mxu0 %v5463
        %v6148 = vpop.f32.mrf.mxu0
        %v6149 = vadd.f32 0.0, %v6148
        %v6150 = vpop.f32.mrf.mxu0
        %v6151 = vadd.f32 0.0, %v6150
        %6152 = vmatmul.bf16.gmra.mxu0 %v5620
        %v6153 = vpop.f32.mrf.mxu0
        %v6154 = vadd.f32 0.0, %v6153
        %v6155 = vpop.f32.mrf.mxu0
        %v6156 = vadd.f32 0.0, %v6155
        %6157 = vmatmul.bf16.gmra.mxu0 %v5029
        %v6158 = vpop.f32.mrf.mxu0
        %v6159 = vadd.f32 0.0, %v6158
        %v6160 = vpop.f32.mrf.mxu0
        %v6161 = vadd.f32 0.0, %v6160
        %6162 = vmatmul.bf16.gmra.mxu0 %v5029
        %v6163 = vpop.f32.mrf.mxu0
        %v6164 = vadd.f32 0.0, %v6163
        %v6165 = vpop.f32.mrf.mxu0
        %v6166 = vadd.f32 0.0, %v6165
        %6167 = vmatmul.bf16.gmra.mxu0 %v5029
        %v6168 = vpop.f32.mrf.mxu0
        %v6169 = vadd.f32 0.0, %v6168
        %v6170 = vpop.f32.mrf.mxu0
        %v6171 = vadd.f32 0.0, %v6170
        %6172 = vdwg.mxu0
        %v6173 = vadd.f32 %v6019, %v6094
        %v6174 = vadd.f32 %v6020, %v6096
        %v6175 = vadd.f32 %v6021, %v6099
        %v6176 = vadd.f32 %v6022, %v6101
        %v6177 = vadd.f32 %v6023, %v6104
        %v6178 = vadd.f32 %v6024, %v6106
        %v6179 = vadd.f32 %v6025, %v6109
        %v6180 = vadd.f32 %v6026, %v6111
        %v6181 = vadd.f32 %v6027, %v6114
        %v6182 = vadd.f32 %v6028, %v6116
        %v6183 = vadd.f32 %v6029, %v6119
        %v6184 = vadd.f32 %v6030, %v6121
        %v6185 = vadd.f32 %v6031, %v6124
        %v6186 = vadd.f32 %v6032, %v6126
        %v6187 = vadd.f32 %v6033, %v6129
        %v6188 = vadd.f32 %v6034, %v6131
        %v6189 = vadd.f32 %v6035, %v6134
        %v6190 = vadd.f32 %v6036, %v6136
        %v6191 = vadd.f32 %v6037, %v6139
        %v6192 = vadd.f32 %v6038, %v6141
        %v6193 = vadd.f32 %v6039, %v6144
        %v6194 = vadd.f32 %v6040, %v6146
        %v6195 = vadd.f32 %v6041, %v6149
        %v6196 = vadd.f32 %v6042, %v6151
        %v6197 = vadd.f32 %v6043, %v6154
        %v6198 = vadd.f32 %v6044, %v6156
        %v6199 = vadd.f32 %v6045, %v6159
        %v6200 = vadd.f32 %v6046, %v6161
        %v6201 = vadd.f32 %v6047, %v6164
        %v6202 = vadd.f32 %v6048, %v6166
        %v6203 = vadd.f32 %v6049, %v6169
        %v6204 = vadd.f32 %v6050, %v6171
        %s6205 = scalar_lea.vmem %s15, 256
        %v6206 = vld [vmem:[%s6205] sm:$0xf]
        %v6207 = vld [vmem:[%s6205 + $0x4] sm:$0xf]
        %v6208 = vld [vmem:[%s6205 + $0x8] sm:$0xf]
        %v6209 = vld [vmem:[%s6205 + $0xc] sm:$0xf]
        %v6210 = vld [vmem:[%s6205 + $0x10] sm:$0xf]
        %v6211 = vld [vmem:[%s6205 + $0x14] sm:$0xf]
        %v6212 = vld [vmem:[%s6205 + $0x18] sm:$0xf]
        %v6213 = vld [vmem:[%s6205 + $0x1c] sm:$0xf]
        %v6222 = vunpack.c.l.b16 %v6206
        %v6223 = vunpack.c.l.b16 %v6207
        %v6224 = vunpack.c.l.b16 %v6208
        %v6225 = vunpack.c.l.b16 %v6209
        %v6226 = vunpack.c.l.b16 %v6210
        %v6227 = vunpack.c.l.b16 %v6211
        %v6228 = vunpack.c.l.b16 %v6212
        %v6229 = vunpack.c.l.b16 %v6213
        %v6230 = vpack.c.b16 %v6223, %v6222
        %v6231 = vpack.c.b16 %v6225, %v6224
        %v6232 = vpack.c.b16 %v6227, %v6226
        %v6233 = vpack.c.b16 %v6229, %v6228
        %6238 = vmatpush.bf16.msra.mxu0 0
        %6239 = vmatpush.bf16.msra.mxu0 0
        %6240 = vmatpush.bf16.msra.mxu0 0
        %6241 = vmatpush.bf16.msra.mxu0 0
        %6242 = vmatpush.bf16.msra.mxu0 %v6233
        %6243 = vmatpush.bf16.msra.mxu0 %v6232
        %6244 = vmatpush.bf16.msra.mxu0 %v6231
        %6245 = vmatpush.bf16.msra.mxu0 %v6230
        %6246 = vmatmul.bf16.gmra.mxu0 %v5044
        %v6247 = vpop.f32.mrf.mxu0
        %v6248 = vadd.f32 0.0, %v6247
        %v6249 = vpop.f32.mrf.mxu0
        %v6250 = vadd.f32 0.0, %v6249
        %6251 = vmatmul.bf16.gmra.mxu0 %v5047
        %v6252 = vpop.f32.mrf.mxu0
        %v6253 = vadd.f32 0.0, %v6252
        %v6254 = vpop.f32.mrf.mxu0
        %v6255 = vadd.f32 0.0, %v6254
        %6256 = vmatmul.bf16.gmra.mxu0 %v5050
        %v6257 = vpop.f32.mrf.mxu0
        %v6258 = vadd.f32 0.0, %v6257
        %v6259 = vpop.f32.mrf.mxu0
        %v6260 = vadd.f32 0.0, %v6259
        %6261 = vmatmul.bf16.gmra.mxu0 %v5053
        %v6262 = vpop.f32.mrf.mxu0
        %v6263 = vadd.f32 0.0, %v6262
        %v6264 = vpop.f32.mrf.mxu0
        %v6265 = vadd.f32 0.0, %v6264
        %6266 = vmatmul.bf16.gmra.mxu0 %v5056
        %v6267 = vpop.f32.mrf.mxu0
        %v6268 = vadd.f32 0.0, %v6267
        %v6269 = vpop.f32.mrf.mxu0
        %v6270 = vadd.f32 0.0, %v6269
        %6271 = vmatmul.bf16.gmra.mxu0 %v5059
        %v6272 = vpop.f32.mrf.mxu0
        %v6273 = vadd.f32 0.0, %v6272
        %v6274 = vpop.f32.mrf.mxu0
        %v6275 = vadd.f32 0.0, %v6274
        %6276 = vmatmul.bf16.gmra.mxu0 %v5062
        %v6277 = vpop.f32.mrf.mxu0
        %v6278 = vadd.f32 0.0, %v6277
        %v6279 = vpop.f32.mrf.mxu0
        %v6280 = vadd.f32 0.0, %v6279
        %6281 = vmatmul.bf16.gmra.mxu0 %v5065
        %v6282 = vpop.f32.mrf.mxu0
        %v6283 = vadd.f32 0.0, %v6282
        %v6284 = vpop.f32.mrf.mxu0
        %v6285 = vadd.f32 0.0, %v6284
        %6286 = vmatmul.bf16.gmra.mxu0 %v5068
        %v6287 = vpop.f32.mrf.mxu0
        %v6288 = vadd.f32 0.0, %v6287
        %v6289 = vpop.f32.mrf.mxu0
        %v6290 = vadd.f32 0.0, %v6289
        %6291 = vmatmul.bf16.gmra.mxu0 %v5306
        %v6292 = vpop.f32.mrf.mxu0
        %v6293 = vadd.f32 0.0, %v6292
        %v6294 = vpop.f32.mrf.mxu0
        %v6295 = vadd.f32 0.0, %v6294
        %6296 = vmatmul.bf16.gmra.mxu0 %v5463
        %v6297 = vpop.f32.mrf.mxu0
        %v6298 = vadd.f32 0.0, %v6297
        %v6299 = vpop.f32.mrf.mxu0
        %v6300 = vadd.f32 0.0, %v6299
        %6301 = vmatmul.bf16.gmra.mxu0 %v5620
        %v6302 = vpop.f32.mrf.mxu0
        %v6303 = vadd.f32 0.0, %v6302
        %v6304 = vpop.f32.mrf.mxu0
        %v6305 = vadd.f32 0.0, %v6304
        %6306 = vmatmul.bf16.gmra.mxu0 %v5029
        %v6307 = vpop.f32.mrf.mxu0
        %v6308 = vadd.f32 0.0, %v6307
        %v6309 = vpop.f32.mrf.mxu0
        %v6310 = vadd.f32 0.0, %v6309
        %6311 = vmatmul.bf16.gmra.mxu0 %v5029
        %v6312 = vpop.f32.mrf.mxu0
        %v6313 = vadd.f32 0.0, %v6312
        %v6314 = vpop.f32.mrf.mxu0
        %v6315 = vadd.f32 0.0, %v6314
        %6316 = vmatmul.bf16.gmra.mxu0 %v5029
        %v6317 = vpop.f32.mrf.mxu0
        %v6318 = vadd.f32 0.0, %v6317
        %v6319 = vpop.f32.mrf.mxu0
        %v6320 = vadd.f32 0.0, %v6319
        %6321 = vmatmul.bf16.gmra.mxu0 %v5029
        %v6322 = vpop.f32.mrf.mxu0
        %v6323 = vadd.f32 0.0, %v6322
        %v6324 = vpop.f32.mrf.mxu0
        %v6325 = vadd.f32 0.0, %v6324
        %6326 = vdwg.mxu0
        %v6327 = vadd.f32 %v6173, %v6248
        %v6328 = vadd.f32 %v6174, %v6250
        %v6329 = vadd.f32 %v6175, %v6253
        %v6330 = vadd.f32 %v6176, %v6255
        %v6331 = vadd.f32 %v6177, %v6258
        %v6332 = vadd.f32 %v6178, %v6260
        %v6333 = vadd.f32 %v6179, %v6263
        %v6334 = vadd.f32 %v6180, %v6265
        %v6335 = vadd.f32 %v6181, %v6268
        %v6336 = vadd.f32 %v6182, %v6270
        %v6337 = vadd.f32 %v6183, %v6273
        %v6338 = vadd.f32 %v6184, %v6275
        %v6339 = vadd.f32 %v6185, %v6278
        %v6340 = vadd.f32 %v6186, %v6280
        %v6341 = vadd.f32 %v6187, %v6283
        %v6342 = vadd.f32 %v6188, %v6285
        %v6343 = vadd.f32 %v6189, %v6288
        %v6344 = vadd.f32 %v6190, %v6290
        %v6345 = vadd.f32 %v6191, %v6293
        %v6346 = vadd.f32 %v6192, %v6295
        %v6347 = vadd.f32 %v6193, %v6298
        %v6348 = vadd.f32 %v6194, %v6300
        %v6349 = vadd.f32 %v6195, %v6303
        %v6350 = vadd.f32 %v6196, %v6305
        %v6351 = vadd.f32 %v6197, %v6308
        %v6352 = vadd.f32 %v6198, %v6310
        %v6353 = vadd.f32 %v6199, %v6313
        %v6354 = vadd.f32 %v6200, %v6315
        %v6355 = vadd.f32 %v6201, %v6318
        %v6356 = vadd.f32 %v6202, %v6320
        %v6357 = vadd.f32 %v6203, %v6323
        %v6358 = vadd.f32 %v6204, %v6325
        %v6359 = vld [vmem:[%s16] sm:$0x1]
        %v6361 = vperm.slane %v6359, 0
        %v6363 = vadd.f32 %v6327, %v6361
        %v6364 = vadd.f32 %v6328, %v6361
        %v6365 = vadd.f32 %v6329, %v6361
        %v6366 = vadd.f32 %v6330, %v6361
        %v6367 = vadd.f32 %v6331, %v6361
        %v6368 = vadd.f32 %v6332, %v6361
        %v6369 = vadd.f32 %v6333, %v6361
        %v6370 = vadd.f32 %v6334, %v6361
        %v6371 = vadd.f32 %v6335, %v6361
        %v6372 = vadd.f32 %v6336, %v6361
        %v6373 = vadd.f32 %v6337, %v6361
        %v6374 = vadd.f32 %v6338, %v6361
        %v6375 = vadd.f32 %v6339, %v6361
        %v6376 = vadd.f32 %v6340, %v6361
        %v6377 = vadd.f32 %v6341, %v6361
        %v6378 = vadd.f32 %v6342, %v6361
        %v6379 = vadd.f32 %v6343, %v6361
        %v6380 = vadd.f32 %v6344, %v6361
        %v6381 = vadd.f32 %v6345, %v6361
        %v6382 = vadd.f32 %v6346, %v6361
        %v6383 = vadd.f32 %v6347, %v6361
        %v6384 = vadd.f32 %v6348, %v6361
        %v6385 = vadd.f32 %v6349, %v6361
        %v6386 = vadd.f32 %v6350, %v6361
        %v6387 = vadd.f32 %v6351, %v6361
        %v6388 = vadd.f32 %v6352, %v6361
        %v6389 = vadd.f32 %v6353, %v6361
        %v6390 = vadd.f32 %v6354, %v6361
        %v6391 = vadd.f32 %v6355, %v6361
        %v6392 = vadd.f32 %v6356, %v6361
        %v6393 = vadd.f32 %v6357, %v6361
        %v6394 = vadd.f32 %v6358, %v6361
        %v6395 = vadd.f32 %v6363, %v554
        %v6396 = vadd.f32 %v6364, %v555
        %v6397 = vadd.f32 %v6365, %v556
        %v6398 = vadd.f32 %v6366, %v557
        %v6399 = vadd.f32 %v6367, %v558
        %v6400 = vadd.f32 %v6368, %v559
        %v6401 = vadd.f32 %v6369, %v560
        %v6402 = vadd.f32 %v6370, %v561
        %v6403 = vadd.f32 %v6371, %v562
        %v6404 = vadd.f32 %v6372, %v563
        %v6405 = vadd.f32 %v6373, %v564
        %v6406 = vadd.f32 %v6374, %v565
        %v6407 = vadd.f32 %v6375, %v566
        %v6408 = vadd.f32 %v6376, %v567
        %v6409 = vadd.f32 %v6377, %v568
        %v6410 = vadd.f32 %v6378, %v569
        %v6411 = vadd.f32 %v6379, %v570
        %v6412 = vadd.f32 %v6380, %v571
        %v6413 = vadd.f32 %v6381, %v572
        %v6414 = vadd.f32 %v6382, %v573
        %v6415 = vadd.f32 %v6383, %v574
        %v6416 = vadd.f32 %v6384, %v575
        %v6417 = vadd.f32 %v6385, %v576
        %v6418 = vadd.f32 %v6386, %v577
        %v6419 = vadd.f32 %v6387, %v578
        %v6420 = vadd.f32 %v6388, %v579
        %v6421 = vadd.f32 %v6389, %v580
        %v6422 = vadd.f32 %v6390, %v581
        %v6423 = vadd.f32 %v6391, %v582
        %v6424 = vadd.f32 %v6392, %v583
        %v6425 = vadd.f32 %v6393, %v584
        %v6426 = vadd.f32 %v6394, %v585
        %v6427 = vmax.f32 %v6395, 0.0
        %v6428 = vmax.f32 %v6396, 0.0
        %v6429 = vmax.f32 %v6397, 0.0
        %v6430 = vmax.f32 %v6398, 0.0
        %v6431 = vmax.f32 %v6399, 0.0
        %v6432 = vmax.f32 %v6400, 0.0
        %v6433 = vmax.f32 %v6401, 0.0
        %v6434 = vmax.f32 %v6402, 0.0
        %v6435 = vmax.f32 %v6403, 0.0
        %v6436 = vmax.f32 %v6404, 0.0
        %v6437 = vmax.f32 %v6405, 0.0
        %v6438 = vmax.f32 %v6406, 0.0
        %v6439 = vmax.f32 %v6407, 0.0
        %v6440 = vmax.f32 %v6408, 0.0
        %v6441 = vmax.f32 %v6409, 0.0
        %v6442 = vmax.f32 %v6410, 0.0
        %v6443 = vmax.f32 %v6411, 0.0
        %v6444 = vmax.f32 %v6412, 0.0
        %v6445 = vmax.f32 %v6413, 0.0
        %v6446 = vmax.f32 %v6414, 0.0
        %v6447 = vmax.f32 %v6415, 0.0
        %v6448 = vmax.f32 %v6416, 0.0
        %v6449 = vmax.f32 %v6417, 0.0
        %v6450 = vmax.f32 %v6418, 0.0
        %v6451 = vmax.f32 %v6419, 0.0
        %v6452 = vmax.f32 %v6420, 0.0
        %v6453 = vmax.f32 %v6421, 0.0
        %v6454 = vmax.f32 %v6422, 0.0
        %v6455 = vmax.f32 %v6423, 0.0
        %v6456 = vmax.f32 %v6424, 0.0
        %v6457 = vmax.f32 %v6425, 0.0
        %v6458 = vmax.f32 %v6426, 0.0
        %6459 = vst.msk [vmem:[%s547] sm:$0xff] %vm671, %v6427
        %6460 = vst.msk [vmem:[%s547 + $0x8] sm:$0xff] %vm671, %v6428
        %6461 = vst.msk [vmem:[%s547 + $0x10] sm:$0xff] %vm671, %v6429
        %6462 = vst.msk [vmem:[%s547 + $0x18] sm:$0xff] %vm671, %v6430
        %6463 = vst.msk [vmem:[%s547 + $0x20] sm:$0xff] %vm671, %v6431
        %6464 = vst.msk [vmem:[%s547 + $0x28] sm:$0xff] %vm671, %v6432
        %6465 = vst.msk [vmem:[%s547 + $0x30] sm:$0xff] %vm671, %v6433
        %6466 = vst.msk [vmem:[%s547 + $0x38] sm:$0xff] %vm671, %v6434
        %6467 = vst.msk [vmem:[%s547 + $0x40] sm:$0xff] %vm671, %v6435
        %6468 = vst.msk [vmem:[%s547 + $0x48] sm:$0xff] %vm671, %v6436
        %6469 = vst.msk [vmem:[%s547 + $0x50] sm:$0xff] %vm671, %v6437
        %6470 = vst.msk [vmem:[%s547 + $0x58] sm:$0xff] %vm671, %v6438
        %6471 = vst.msk [vmem:[%s547 + $0x60] sm:$0xff] %vm671, %v6439
        %6472 = vst.msk [vmem:[%s547 + $0x68] sm:$0xff] %vm671, %v6440
        %6473 = vst.msk [vmem:[%s547 + $0x70] sm:$0xff] %vm671, %v6441
        %6474 = vst.msk [vmem:[%s547 + $0x78] sm:$0xff] %vm671, %v6442
        %6475 = vst.msk [vmem:[%s547 + $0x80] sm:$0xff] %vm671, %v6443
        %6476 = vst.msk [vmem:[%s547 + $0x88] sm:$0xff] %vm671, %v6444
        %6477 = vst.msk [vmem:[%s547 + $0x90] sm:$0xff] %vm671, %v6445
        %6478 = vst.msk [vmem:[%s547 + $0x98] sm:$0xff] %vm671, %v6446
        %6479 = vst.msk [vmem:[%s547 + $0xa0] sm:$0xff] %vm671, %v6447
        %6480 = vst.msk [vmem:[%s547 + $0xa8] sm:$0xff] %vm671, %v6448
        %6481 = vst.msk [vmem:[%s547 + $0xb0] sm:$0xff] %vm671, %v6449
        %6482 = vst.msk [vmem:[%s547 + $0xb8] sm:$0xff] %vm671, %v6450
        %6483 = vst.msk [vmem:[%s547 + $0xc0] sm:$0xff] %vm671, %v6451
        %6484 = vst.msk [vmem:[%s547 + $0xc8] sm:$0xff] %vm671, %v6452
        %6485 = vst.msk [vmem:[%s547 + $0xd0] sm:$0xff] %vm671, %v6453
        %6486 = vst.msk [vmem:[%s547 + $0xd8] sm:$0xff] %vm671, %v6454
        %6487 = vst.msk [vmem:[%s547 + $0xe0] sm:$0xff] %vm671, %v6455
        %6488 = vst.msk [vmem:[%s547 + $0xe8] sm:$0xff] %vm671, %v6456
        %6489 = vst.msk [vmem:[%s547 + $0xf0] sm:$0xff] %vm671, %v6457
        %6490 = vst.msk [vmem:[%s547 + $0xf8] sm:$0xff] %vm671, %v6458
        %s6491 = sand.u32 %s407, 1
        %s6492 = scalar_lea.sflag [#allocation6], %s6491
        %s6493 = sand.u32 %s407, 1
        %s6494 = smul.addr %s6493, 256
        %s6495 = scalar_lea.vmem [#allocation5], %s6494
        // Predicated region
        $region89: #{tpu_custom_call.1} parent=87 // pred_check
          %p6496 = pneg %p417
        $region90: #{tpu_custom_call.1} parent=87 // pred_check_branch
          %6498 = sbr.rel (%p6496) target = $region92
        $region91: #{tpu_custom_call.1} parent=87 // pred_region
          %6500 = vsyncadd %s6492, 0
          %s6501 = smul.addr %s37, 32
          %s6502 = smul.addr %s6501, 8
          %s6503 = scalar_lea.hbm %s17, %s6502
          %s6504 = sshll.u32 %s6495, 4
          %s6505 = int_to_ptr.vmem [resolvable:$true] %s6504
          %s6506 = sshll.u32 %s6503, 4
          %s6507 = int_to_ptr.hbm [resolvable:$true] %s6506
          %6512 = dma.vmem_to_hbm [thread:$0]  %s6505, 4096, %s6507, %s6492, 128, 128, 8
        $region92: #{tpu_custom_call.1} parent=87 // pred_fallthru
          _
      $region88: #{tpu_custom_call.1} parent=5 // pred_fallthru
        _
      %p6513 = scmp.le.s32.totalorder 2, %s32
      // Predicated region
      $region93: #{tpu_custom_call.1} parent=5 // pred_check
        %p6514 = pneg %p6513
      $region94: #{tpu_custom_call.1} parent=5 // pred_check_branch
        %6516 = sbr.rel (%p6514) target = $region96
      $region95: #{tpu_custom_call.1} parent=5 // pred_region
        %s6517 = ssub.s32 %s32, 2
        // Predicated region
        $region97: #{tpu_custom_call.1} parent=95 // pred_check
          %p6518 = pneg %p423
        $region98: #{tpu_custom_call.1} parent=95 // pred_check_branch
          %6520 = sbr.rel (%p6518) target = $region100
        $region99: #{tpu_custom_call.1} parent=95 // pred_region
          %s6521 = sand.u32 %s408, 1
          %s6522 = scalar_lea.sflag [#allocation6], %s6521
          %s6523 = sand.u32 %s408, 1
          %s6524 = smul.addr %s6523, 256
          %s6525 = scalar_lea.vmem [#allocation5], %s6524
          %6527 = dma.done %s6522, 4096
        $region100: #{tpu_custom_call.1} parent=95 // pred_fallthru
          _
      $region96: #{tpu_custom_call.1} parent=5 // pred_fallthru
        _
    $region6: #{tpu_custom_call.1} parent=1 // loop_footer
      %s36 = sadd.s32 1, %s32
    $region7: #{tpu_custom_call.1} parent=1 // loop_footer_branch
      %31 = sbr.rel target = $region3
    $region8: #{tpu_custom_call.1} parent=1 // loop_exit
      _
    %6528 = vsyncpa [#allocation6], 1
    %s6529 = scalar_lea.sflag [#allocation6], 1
    %6530 = vsyncpa %s6529, 1

</llo_original>
